<compile_context>
chip_gen: v6e
topology: v6e:2x2x1
jax: 0.10.0
libtpu: 0.0.40
codegen_flags: <defaults>
</compile_context>

<pallas_src>
import functools

import jax
import jax.numpy as jnp
from jax import lax
from jax.experimental import pallas as pl
from jax.experimental.pallas import tpu as pltpu


def _round_up(x, m):
    return (x + m - 1) // m * m


# ----------------------------- fused LSTM + FC kernel -----------------------------
def _fused_lstm_fc_kernel(
    x_ref,      # (T*Bp, I)               time-major input, batch padded to Bp
    wih0_ref,   # (I, 4*Hp)               layer-0 input->gate weights (pre-transposed, gate-padded)
    wihr_ref,   # (max(L-1,1), Hp, 4*Hp)  layer>0 input->gate weights
    whh_ref,    # (L, Hp, 4*Hp)           hidden->gate weights
    b_ref,      # (L, 1, 4*Hp)            bias_ih + bias_hh, gate-padded
    fcw_ref,    # (T, Hp, Op)             fc weight, per-timestep layout
    fcb_ref,    # (1, Op)                 fc bias
    o_ref,      # (Bp, Op)                output
    y_sc,       # (T*Bp, Hp)              inter-layer activations (VMEM scratch)
    gx_sc,      # (T*Bp, 4*Hp)            hoisted input projection (VMEM scratch)
    *,
    seq_len, batch_pad, hidden_pad, num_layers,
):
    T, Bp, Hp = seq_len, batch_pad, hidden_pad

    for layer in range(num_layers):
        # ---- Hoisted input projection (+ bias) for the whole sequence: ONE MXU matmul.
        if layer == 0:
            src = x_ref[...]
            w_in = wih0_ref[...]
        else:
            src = y_sc[...]
            w_in = wihr_ref[layer - 1]
        gx_sc[...] = (
            jnp.dot(src, w_in, preferred_element_type=jnp.float32) + b_ref[layer]
        )

        # ---- Recurrence: only h_{t-1} @ W_hh remains inside the timestep loop.
        def step(t, carry, _layer=layer):
            h, c = carry
            row = pl.multiple_of(t * Bp, 8)
            gates = gx_sc[pl.ds(row, Bp), :] + jnp.dot(
                h, whh_ref[_layer], preferred_element_type=jnp.float32
            )
            # PyTorch gate order i, f, g, o; each slice is a full 128-lane block.
            i_g = jax.nn.sigmoid(gates[:, 0 * Hp:1 * Hp])
            f_g = jax.nn.sigmoid(gates[:, 1 * Hp:2 * Hp])
            g_g = jnp.tanh(gates[:, 2 * Hp:3 * Hp])
            o_g = jax.nn.sigmoid(gates[:, 3 * Hp:4 * Hp])
            c_new = f_g * c + i_g * g_g
            h_new = o_g * jnp.tanh(c_new)
            y_sc[pl.ds(row, Bp), :] = h_new                      # lane-dense store
            return (h_new, c_new)

        init = (jnp.zeros((Bp, Hp), jnp.float32),
                jnp.zeros((Bp, Hp), jnp.float32))
        lax.fori_loop(0, T, step, init, unroll=True)

    # ---- FC head: out = concat_t(y_t) @ W_fc^T + b  ==  sum_t y_t @ W_fc[t] + b.
    op = fcb_ref.shape[-1]

    def fc_step(t, acc):
        row = pl.multiple_of(t * Bp, 8)
        return acc + jnp.dot(
            y_sc[pl.ds(row, Bp), :], fcw_ref[t], preferred_element_type=jnp.float32
        )

    acc = lax.fori_loop(0, T, fc_step, jnp.zeros((Bp, op), jnp.float32), unroll=True)
    # Dropout in eval mode is identity.
    o_ref[...] = acc + fcb_ref[...]


# ------------------------------- parameter prep -------------------------------
def init_params(key, input_size, hidden_size, num_layers, sequence_length, output_size):
    """PyTorch-layout parameters with PyTorch-style uniform(-k, k) init."""
    params = {"lstm": []}
    k_lstm = 1.0 / jnp.sqrt(jnp.float32(hidden_size))
    for layer in range(num_layers):
        in_sz = input_size if layer == 0 else hidden_size
        key, k1, k2, k3, k4 = jax.random.split(key, 5)
        w_ih = jax.random.uniform(k1, (4 * hidden_size, in_sz), jnp.float32, -k_lstm, k_lstm)
        w_hh = jax.random.uniform(k2, (4 * hidden_size, hidden_size), jnp.float32, -k_lstm, k_lstm)
        b_ih = jax.random.uniform(k3, (4 * hidden_size,), jnp.float32, -k_lstm, k_lstm)
        b_hh = jax.random.uniform(k4, (4 * hidden_size,), jnp.float32, -k_lstm, k_lstm)
        params["lstm"].append({"w_ih": w_ih, "w_hh": w_hh, "bias": b_ih + b_hh})
    fan_in = hidden_size * sequence_length
    k_fc = 1.0 / jnp.sqrt(jnp.float32(fan_in))
    key, k5, k6 = jax.random.split(key, 3)
    params["fc_w"] = jax.random.uniform(k5, (output_size, fan_in), jnp.float32, -k_fc, k_fc)
    params["fc_b"] = jax.random.uniform(k6, (output_size,), jnp.float32, -k_fc, k_fc)
    return params


def _prepare_kernel_params(params, hidden_size, num_layers, sequence_length, output_size):
    """One-time wrapper-side re-layout: transpose, gate-pad H->Hp, pad O->Op."""
    H, T, O = hidden_size, sequence_length, output_size
    Hp = _round_up(H, 128)
    Op = _round_up(O, 128)

    def gate_pad_cols(w_t):  # (in, 4H) -> (in, 4Hp), zero-pad each gate block
        in_dim = w_t.shape[0]
        w4 = w_t.reshape(in_dim, 4, H)
        w4 = jnp.pad(w4, ((0, 0), (0, 0), (0, Hp - H)))
        return w4.reshape(in_dim, 4 * Hp)

    wih0 = gate_pad_cols(params["lstm"][0]["w_ih"].T)                 # (I, 4Hp)
    wihr, whh, bias = [], [], []
    for l in range(num_layers):
        lp = params["lstm"][l]
        w_hh_t = jnp.pad(gate_pad_cols(lp["w_hh"].T), ((0, Hp - H), (0, 0)))  # (Hp, 4Hp)
        whh.append(w_hh_t)
        bias.append(gate_pad_cols(lp["bias"].reshape(1, 4 * H)))              # (1, 4Hp)
        if l > 0:
            w_ih_t = jnp.pad(gate_pad_cols(lp["w_ih"].T), ((0, Hp - H), (0, 0)))
            wihr.append(w_ih_t)                                               # (Hp, 4Hp)
    if not wihr:  # num_layers == 1: dummy, never read by the kernel
        wihr.append(jnp.zeros((Hp, 4 * Hp), jnp.float32))

    whh = jnp.stack(whh)                                              # (L, Hp, 4Hp)
    wihr = jnp.stack(wihr)                                            # (max(L-1,1), Hp, 4Hp)
    bias = jnp.stack(bias)                                            # (L, 1, 4Hp)

    fcw = params["fc_w"].T.reshape(T, H, O)                           # fc_w[o, t*H+h] -> [t,h,o]
    fcw = jnp.pad(fcw, ((0, 0), (0, Hp - H), (0, Op - O)))            # (T, Hp, Op)
    fcb = jnp.pad(params["fc_b"].reshape(1, O), ((0, 0), (0, Op - O)))  # (1, Op)
    return wih0, wihr, whh, bias, fcw, fcb, Hp, Op


# ------------------------------- full forward --------------------------------
@functools.partial(jax.jit, static_argnums=(2, 3, 4))
def flexible_lstm_forward(params, x, hidden_size, num_layers, output_size):
    """x: (B, T, input_size) batch-first, like PyTorch.  Returns (B, output_size)."""
    B, T, I = x.shape
    wih0, wihr, whh, bias, fcw, fcb, Hp, Op = _prepare_kernel_params(
        params, hidden_size, num_layers, T, output_size
    )
    Bp = _round_up(B, 8)

    # batch-first -> time-major, pad batch to a sublane multiple, flatten to 2-D so
    # the hoisted input projection is one (T*Bp, I) x (I, 4Hp) matmul.
    x_tm = jnp.transpose(x.astype(jnp.float32), (1, 0, 2))            # (T, B, I)
    x_tm = jnp.pad(x_tm, ((0, 0), (0, Bp - B), (0, 0)))               # (T, Bp, I)
    x2d = x_tm.reshape(T * Bp, I)

    kernel = functools.partial(
        _fused_lstm_fc_kernel,
        seq_len=T, batch_pad=Bp, hidden_pad=Hp, num_layers=num_layers,
    )
    out_pad = pl.pallas_call(
        kernel,
        out_shape=jax.ShapeDtypeStruct((Bp, Op), jnp.float32),
        in_specs=[pl.BlockSpec(memory_space=pltpu.MemorySpace.VMEM)] * 7,
        out_specs=pl.BlockSpec(memory_space=pltpu.MemorySpace.VMEM),
        scratch_shapes=[
            pltpu.VMEM((T * Bp, Hp), jnp.float32),       # per-layer h_t outputs
            pltpu.VMEM((T * Bp, 4 * Hp), jnp.float32),   # hoisted gate projection
        ],
    )(x2d, wih0, wihr, whh, bias, fcw, fcb)
    return out_pad[:B, :output_size]


# ------------------------------- pure-JAX reference --------------------------
def _reference_forward(params, x, hidden_size, num_layers, output_size):
    hi = jax.lax.Precision.HIGHEST
    B, T, _ = x.shape
    H = hidden_size
    h_seq = x.astype(jnp.float32)
    for l in range(num_layers):
        lp = params["lstm"][l]
        w_ih, w_hh, b = lp["w_ih"], lp["w_hh"], lp["bias"]
        h = jnp.zeros((B, H), jnp.float32)
        c = jnp.zeros((B, H), jnp.float32)
        outs = []
        for t in range(T):
            g = (jnp.dot(h_seq[:, t, :], w_ih.T, precision=hi)
                 + jnp.dot(h, w_hh.T, precision=hi) + b[None, :])
            i_g = jax.nn.sigmoid(g[:, 0 * H:1 * H])
            f_g = jax.nn.sigmoid(g[:, 1 * H:2 * H])
            g_g = jnp.tanh(g[:, 2 * H:3 * H])
            o_g = jax.nn.sigmoid(g[:, 3 * H:4 * H])
            c = f_g * c + i_g * g_g
            h = o_g * jnp.tanh(c)
            outs.append(h)
        h_seq = jnp.stack(outs, axis=1)                               # (B, T, H)
    flat = h_seq.reshape(B, T * H)
    return jnp.dot(flat, params["fc_w"].T, precision=hi) + params["fc_b"][None, :]


if __name__ == "__main__":
    batch = 2
    seq_len = 8
    input_size = 4
    hidden_size = 32
    num_layers = 2
    output_size = 3

    key = jax.random.PRNGKey(0)
    key, kx, kp = jax.random.split(key, 3)
    x = jax.random.normal(kx, (batch, seq_len, input_size), dtype=jnp.float32)
    params = init_params(kp, input_size, hidden_size, num_layers, seq_len, output_size)

    out = flexible_lstm_forward(params, x, hidden_size, num_layers, output_size)
    jax.block_until_ready(out)
    assert out.shape == (batch, output_size), out.shape

    ref = _reference_forward(params, x, hidden_size, num_layers, output_size)
    err = float(jnp.max(jnp.abs(out - ref)))
    assert err < 2e-2, f"kernel/reference mismatch, max abs err = {err}"

    print("KERNEL_OK")
</pallas_src>

<mosaic_0001>
module attributes {stable_mosaic.version = 11 : i64} {
  func.func @_fused_lstm_fc_kernel(%arg0: memref<64x4xf32, #tpu.memory_space<vmem>>, %arg1: memref<4x512xf32, #tpu.memory_space<vmem>>, %arg2: memref<1x128x512xf32, #tpu.memory_space<vmem>>, %arg3: memref<2x128x512xf32, #tpu.memory_space<vmem>>, %arg4: memref<2x1x512xf32, #tpu.memory_space<vmem>>, %arg5: memref<8x128x128xf32, #tpu.memory_space<vmem>>, %arg6: memref<1x128xf32, #tpu.memory_space<vmem>>, %arg7: memref<8x128xf32, #tpu.memory_space<vmem>>, %arg8: memref<64x128xf32, #tpu.memory_space<vmem>>, %arg9: memref<64x512xf32, #tpu.memory_space<vmem>>) attributes {dimension_semantics = [], scalar_prefetch = 0 : i64, scratch_operands = 2 : i64, tpu.core_type = #tpu.core_type<tc>} {
    %c0 = arith.constant 0 : index
    %c0_0 = arith.constant 0 : index
    %0 = vector.load %arg0[%c0, %c0_0] : memref<64x4xf32, #tpu.memory_space<vmem>>, vector<64x4xf32>
    %c0_1 = arith.constant 0 : index
    %c0_2 = arith.constant 0 : index
    %1 = vector.load %arg1[%c0_1, %c0_2] : memref<4x512xf32, #tpu.memory_space<vmem>>, vector<4x512xf32>
    %cst = arith.constant dense<0.000000e+00> : vector<64x512xf32>
    %2 = tpu.matmul %0, %1, %cst {dimension_numbers = #tpu.dot_dimension_numbers<[1], [0], [0], [1], [0, 0, 1, 1], [], []>} : vector<64x4xf32>, vector<4x512xf32>, vector<64x512xf32> -> vector<64x512xf32>
    %c0_3 = arith.constant 0 : index
    %c0_4 = arith.constant 0 : index
    %c0_5 = arith.constant 0 : index
    %3 = vector.load %arg4[%c0_3, %c0_4, %c0_5] : memref<2x1x512xf32, #tpu.memory_space<vmem>>, vector<1x1x512xf32>
    %4 = vector.shape_cast %3 : vector<1x1x512xf32> to vector<1x512xf32>
    %5 = vector.broadcast %4 : vector<1x512xf32> to vector<64x512xf32>
    %6 = arith.addf %2, %5 : vector<64x512xf32>
    %c0_6 = arith.constant 0 : index
    %c0_7 = arith.constant 0 : index
    %7 = vector.load %arg9[%c0_6, %c0_7] : memref<64x512xf32, #tpu.memory_space<vmem>>, vector<64x512xf32>
    tpu.vector_store %arg9[%c0_6, %c0_7], %6 {strides = array<i32>} : memref<64x512xf32, #tpu.memory_space<vmem>>, vector<64x512xf32>,
    %cst_8 = arith.constant 0.000000e+00 : f32
    %8 = vector.broadcast %cst_8 : f32 to vector<8x128xf32>
    %cst_9 = arith.constant 0.000000e+00 : f32
    %9 = vector.broadcast %cst_9 : f32 to vector<8x128xf32>
    %c0_i32 = arith.constant 0 : i32
    %c8_i32 = arith.constant 8 : i32
    %10 = arith.muli %c0_i32, %c8_i32 : i32
    %11 = tpu.assume_multiple %10, 8 : i32
    %12 = arith.index_cast %11 : i32 to index
    %c0_10 = arith.constant 0 : index
    %13 = vector.load %arg9[%12, %c0_10] : memref<64x512xf32, #tpu.memory_space<vmem>>, vector<8x512xf32>
    %c0_11 = arith.constant 0 : index
    %c0_12 = arith.constant 0 : index
    %c0_13 = arith.constant 0 : index
    %14 = vector.load %arg3[%c0_11, %c0_12, %c0_13] : memref<2x128x512xf32, #tpu.memory_space<vmem>>, vector<1x128x512xf32>
    %15 = vector.shape_cast %14 : vector<1x128x512xf32> to vector<128x512xf32>
    %cst_14 = arith.constant dense<0.000000e+00> : vector<8x512xf32>
    %16 = tpu.matmul %8, %15, %cst_14 {dimension_numbers = #tpu.dot_dimension_numbers<[1], [0], [0], [1], [0, 0, 1, 1], [], []>} : vector<8x128xf32>, vector<128x512xf32>, vector<8x512xf32> -> vector<8x512xf32>
    %17 = arith.addf %13, %16 : vector<8x512xf32>
    %18 = vector.extract_strided_slice %17 {offsets = [0, 0], sizes = [8, 128], strides = [1, 1]} : vector<8x512xf32> to vector<8x128xf32>
    %19 = arith.negf %18 : vector<8x128xf32>
    %20 = math.exp %19 : vector<8x128xf32>
    %cst_15 = arith.constant 1.000000e+00 : f32
    %21 = vector.broadcast %cst_15 : f32 to vector<8x128xf32>
    %22 = arith.addf %21, %20 : vector<8x128xf32>
    %23 = arith.divf %21, %22 : vector<8x128xf32>
    %24 = vector.extract_strided_slice %17 {offsets = [0, 128], sizes = [8, 128], strides = [1, 1]} : vector<8x512xf32> to vector<8x128xf32>
    %25 = arith.negf %24 : vector<8x128xf32>
    %26 = math.exp %25 : vector<8x128xf32>
    %cst_16 = arith.constant 1.000000e+00 : f32
    %27 = vector.broadcast %cst_16 : f32 to vector<8x128xf32>
    %28 = arith.addf %27, %26 : vector<8x128xf32>
    %29 = arith.divf %27, %28 : vector<8x128xf32>
    %30 = vector.extract_strided_slice %17 {offsets = [0, 256], sizes = [8, 128], strides = [1, 1]} : vector<8x512xf32> to vector<8x128xf32>
    %31 = math.tanh %30 : vector<8x128xf32>
    %32 = vector.extract_strided_slice %17 {offsets = [0, 384], sizes = [8, 128], strides = [1, 1]} : vector<8x512xf32> to vector<8x128xf32>
    %33 = arith.negf %32 : vector<8x128xf32>
    %34 = math.exp %33 : vector<8x128xf32>
    %cst_17 = arith.constant 1.000000e+00 : f32
    %35 = vector.broadcast %cst_17 : f32 to vector<8x128xf32>
    %36 = arith.addf %35, %34 : vector<8x128xf32>
    %37 = arith.divf %35, %36 : vector<8x128xf32>
    %38 = arith.mulf %29, %9 : vector<8x128xf32>
    %39 = arith.mulf %23, %31 : vector<8x128xf32>
    %40 = arith.addf %38, %39 : vector<8x128xf32>
    %41 = math.tanh %40 : vector<8x128xf32>
    %42 = arith.mulf %37, %41 : vector<8x128xf32>
    %43 = arith.index_cast %11 : i32 to index
    %c0_18 = arith.constant 0 : index
    %44 = vector.load %arg8[%43, %c0_18] : memref<64x128xf32, #tpu.memory_space<vmem>>, vector<8x128xf32>
    tpu.vector_store %arg8[%43, %c0_18], %42 {strides = array<i32>} : memref<64x128xf32, #tpu.memory_space<vmem>>, vector<8x128xf32>,
    %c1_i32 = arith.constant 1 : i32
    %c8_i32_19 = arith.constant 8 : i32
    %45 = arith.muli %c1_i32, %c8_i32_19 : i32
    %46 = tpu.assume_multiple %45, 8 : i32
    %47 = arith.index_cast %46 : i32 to index
    %c0_20 = arith.constant 0 : index
    %48 = vector.load %arg9[%47, %c0_20] : memref<64x512xf32, #tpu.memory_space<vmem>>, vector<8x512xf32>
    %c0_21 = arith.constant 0 : index
    %c0_22 = arith.constant 0 : index
    %c0_23 = arith.constant 0 : index
    %49 = vector.load %arg3[%c0_21, %c0_22, %c0_23] : memref<2x128x512xf32, #tpu.memory_space<vmem>>, vector<1x128x512xf32>
    %50 = vector.shape_cast %49 : vector<1x128x512xf32> to vector<128x512xf32>
    %cst_24 = arith.constant dense<0.000000e+00> : vector<8x512xf32>
    %51 = tpu.matmul %42, %50, %cst_24 {dimension_numbers = #tpu.dot_dimension_numbers<[1], [0], [0], [1], [0, 0, 1, 1], [], []>} : vector<8x128xf32>, vector<128x512xf32>, vector<8x512xf32> -> vector<8x512xf32>
    %52 = arith.addf %48, %51 : vector<8x512xf32>
    %53 = vector.extract_strided_slice %52 {offsets = [0, 0], sizes = [8, 128], strides = [1, 1]} : vector<8x512xf32> to vector<8x128xf32>
    %54 = arith.negf %53 : vector<8x128xf32>
    %55 = math.exp %54 : vector<8x128xf32>
    %cst_25 = arith.constant 1.000000e+00 : f32
    %56 = vector.broadcast %cst_25 : f32 to vector<8x128xf32>
    %57 = arith.addf %56, %55 : vector<8x128xf32>
    %58 = arith.divf %56, %57 : vector<8x128xf32>
    %59 = vector.extract_strided_slice %52 {offsets = [0, 128], sizes = [8, 128], strides = [1, 1]} : vector<8x512xf32> to vector<8x128xf32>
    %60 = arith.negf %59 : vector<8x128xf32>
    %61 = math.exp %60 : vector<8x128xf32>
    %cst_26 = arith.constant 1.000000e+00 : f32
    %62 = vector.broadcast %cst_26 : f32 to vector<8x128xf32>
    %63 = arith.addf %62, %61 : vector<8x128xf32>
    %64 = arith.divf %62, %63 : vector<8x128xf32>
    %65 = vector.extract_strided_slice %52 {offsets = [0, 256], sizes = [8, 128], strides = [1, 1]} : vector<8x512xf32> to vector<8x128xf32>
    %66 = math.tanh %65 : vector<8x128xf32>
    %67 = vector.extract_strided_slice %52 {offsets = [0, 384], sizes = [8, 128], strides = [1, 1]} : vector<8x512xf32> to vector<8x128xf32>
    %68 = arith.negf %67 : vector<8x128xf32>
    %69 = math.exp %68 : vector<8x128xf32>
    %cst_27 = arith.constant 1.000000e+00 : f32
    %70 = vector.broadcast %cst_27 : f32 to vector<8x128xf32>
    %71 = arith.addf %70, %69 : vector<8x128xf32>
    %72 = arith.divf %70, %71 : vector<8x128xf32>
    %73 = arith.mulf %64, %40 : vector<8x128xf32>
    %74 = arith.mulf %58, %66 : vector<8x128xf32>
    %75 = arith.addf %73, %74 : vector<8x128xf32>
    %76 = math.tanh %75 : vector<8x128xf32>
    %77 = arith.mulf %72, %76 : vector<8x128xf32>
    %78 = arith.index_cast %46 : i32 to index
    %c0_28 = arith.constant 0 : index
    %79 = vector.load %arg8[%78, %c0_28] : memref<64x128xf32, #tpu.memory_space<vmem>>, vector<8x128xf32>
    tpu.vector_store %arg8[%78, %c0_28], %77 {strides = array<i32>} : memref<64x128xf32, #tpu.memory_space<vmem>>, vector<8x128xf32>,
    %c2_i32 = arith.constant 2 : i32
    %c8_i32_29 = arith.constant 8 : i32
    %80 = arith.muli %c2_i32, %c8_i32_29 : i32
    %81 = tpu.assume_multiple %80, 8 : i32
    %82 = arith.index_cast %81 : i32 to index
    %c0_30 = arith.constant 0 : index
    %83 = vector.load %arg9[%82, %c0_30] : memref<64x512xf32, #tpu.memory_space<vmem>>, vector<8x512xf32>
    %c0_31 = arith.constant 0 : index
    %c0_32 = arith.constant 0 : index
    %c0_33 = arith.constant 0 : index
    %84 = vector.load %arg3[%c0_31, %c0_32, %c0_33] : memref<2x128x512xf32, #tpu.memory_space<vmem>>, vector<1x128x512xf32>
    %85 = vector.shape_cast %84 : vector<1x128x512xf32> to vector<128x512xf32>
    %cst_34 = arith.constant dense<0.000000e+00> : vector<8x512xf32>
    %86 = tpu.matmul %77, %85, %cst_34 {dimension_numbers = #tpu.dot_dimension_numbers<[1], [0], [0], [1], [0, 0, 1, 1], [], []>} : vector<8x128xf32>, vector<128x512xf32>, vector<8x512xf32> -> vector<8x512xf32>
    %87 = arith.addf %83, %86 : vector<8x512xf32>
    %88 = vector.extract_strided_slice %87 {offsets = [0, 0], sizes = [8, 128], strides = [1, 1]} : vector<8x512xf32> to vector<8x128xf32>
    %89 = arith.negf %88 : vector<8x128xf32>
    %90 = math.exp %89 : vector<8x128xf32>
    %cst_35 = arith.constant 1.000000e+00 : f32
    %91 = vector.broadcast %cst_35 : f32 to vector<8x128xf32>
    %92 = arith.addf %91, %90 : vector<8x128xf32>
    %93 = arith.divf %91, %92 : vector<8x128xf32>
    %94 = vector.extract_strided_slice %87 {offsets = [0, 128], sizes = [8, 128], strides = [1, 1]} : vector<8x512xf32> to vector<8x128xf32>
    %95 = arith.negf %94 : vector<8x128xf32>
    %96 = math.exp %95 : vector<8x128xf32>
    %cst_36 = arith.constant 1.000000e+00 : f32
    %97 = vector.broadcast %cst_36 : f32 to vector<8x128xf32>
    %98 = arith.addf %97, %96 : vector<8x128xf32>
    %99 = arith.divf %97, %98 : vector<8x128xf32>
    %100 = vector.extract_strided_slice %87 {offsets = [0, 256], sizes = [8, 128], strides = [1, 1]} : vector<8x512xf32> to vector<8x128xf32>
    %101 = math.tanh %100 : vector<8x128xf32>
    %102 = vector.extract_strided_slice %87 {offsets = [0, 384], sizes = [8, 128], strides = [1, 1]} : vector<8x512xf32> to vector<8x128xf32>
    %103 = arith.negf %102 : vector<8x128xf32>
    %104 = math.exp %103 : vector<8x128xf32>
    %cst_37 = arith.constant 1.000000e+00 : f32
    %105 = vector.broadcast %cst_37 : f32 to vector<8x128xf32>
    %106 = arith.addf %105, %104 : vector<8x128xf32>
    %107 = arith.divf %105, %106 : vector<8x128xf32>
    %108 = arith.mulf %99, %75 : vector<8x128xf32>
    %109 = arith.mulf %93, %101 : vector<8x128xf32>
    %110 = arith.addf %108, %109 : vector<8x128xf32>
    %111 = math.tanh %110 : vector<8x128xf32>
    %112 = arith.mulf %107, %111 : vector<8x128xf32>
    %113 = arith.index_cast %81 : i32 to index
    %c0_38 = arith.constant 0 : index
    %114 = vector.load %arg8[%113, %c0_38] : memref<64x128xf32, #tpu.memory_space<vmem>>, vector<8x128xf32>
    tpu.vector_store %arg8[%113, %c0_38], %112 {strides = array<i32>} : memref<64x128xf32, #tpu.memory_space<vmem>>, vector<8x128xf32>,
    %c3_i32 = arith.constant 3 : i32
    %c8_i32_39 = arith.constant 8 : i32
    %115 = arith.muli %c3_i32, %c8_i32_39 : i32
    %116 = tpu.assume_multiple %115, 8 : i32
    %117 = arith.index_cast %116 : i32 to index
    %c0_40 = arith.constant 0 : index
    %118 = vector.load %arg9[%117, %c0_40] : memref<64x512xf32, #tpu.memory_space<vmem>>, vector<8x512xf32>
    %c0_41 = arith.constant 0 : index
    %c0_42 = arith.constant 0 : index
    %c0_43 = arith.constant 0 : index
    %119 = vector.load %arg3[%c0_41, %c0_42, %c0_43] : memref<2x128x512xf32, #tpu.memory_space<vmem>>, vector<1x128x512xf32>
    %120 = vector.shape_cast %119 : vector<1x128x512xf32> to vector<128x512xf32>
    %cst_44 = arith.constant dense<0.000000e+00> : vector<8x512xf32>
    %121 = tpu.matmul %112, %120, %cst_44 {dimension_numbers = #tpu.dot_dimension_numbers<[1], [0], [0], [1], [0, 0, 1, 1], [], []>} : vector<8x128xf32>, vector<128x512xf32>, vector<8x512xf32> -> vector<8x512xf32>
    %122 = arith.addf %118, %121 : vector<8x512xf32>
    %123 = vector.extract_strided_slice %122 {offsets = [0, 0], sizes = [8, 128], strides = [1, 1]} : vector<8x512xf32> to vector<8x128xf32>
    %124 = arith.negf %123 : vector<8x128xf32>
    %125 = math.exp %124 : vector<8x128xf32>
    %cst_45 = arith.constant 1.000000e+00 : f32
    %126 = vector.broadcast %cst_45 : f32 to vector<8x128xf32>
    %127 = arith.addf %126, %125 : vector<8x128xf32>
    %128 = arith.divf %126, %127 : vector<8x128xf32>
    %129 = vector.extract_strided_slice %122 {offsets = [0, 128], sizes = [8, 128], strides = [1, 1]} : vector<8x512xf32> to vector<8x128xf32>
    %130 = arith.negf %129 : vector<8x128xf32>
    %131 = math.exp %130 : vector<8x128xf32>
    %cst_46 = arith.constant 1.000000e+00 : f32
    %132 = vector.broadcast %cst_46 : f32 to vector<8x128xf32>
    %133 = arith.addf %132, %131 : vector<8x128xf32>
    %134 = arith.divf %132, %133 : vector<8x128xf32>
    %135 = vector.extract_strided_slice %122 {offsets = [0, 256], sizes = [8, 128], strides = [1, 1]} : vector<8x512xf32> to vector<8x128xf32>
    %136 = math.tanh %135 : vector<8x128xf32>
    %137 = vector.extract_strided_slice %122 {offsets = [0, 384], sizes = [8, 128], strides = [1, 1]} : vector<8x512xf32> to vector<8x128xf32>
    %138 = arith.negf %137 : vector<8x128xf32>
    %139 = math.exp %138 : vector<8x128xf32>
    %cst_47 = arith.constant 1.000000e+00 : f32
    %140 = vector.broadcast %cst_47 : f32 to vector<8x128xf32>
    %141 = arith.addf %140, %139 : vector<8x128xf32>
    %142 = arith.divf %140, %141 : vector<8x128xf32>
    %143 = arith.mulf %134, %110 : vector<8x128xf32>
    %144 = arith.mulf %128, %136 : vector<8x128xf32>
    %145 = arith.addf %143, %144 : vector<8x128xf32>
    %146 = math.tanh %145 : vector<8x128xf32>
    %147 = arith.mulf %142, %146 : vector<8x128xf32>
    %148 = arith.index_cast %116 : i32 to index
    %c0_48 = arith.constant 0 : index
    %149 = vector.load %arg8[%148, %c0_48] : memref<64x128xf32, #tpu.memory_space<vmem>>, vector<8x128xf32>
    tpu.vector_store %arg8[%148, %c0_48], %147 {strides = array<i32>} : memref<64x128xf32, #tpu.memory_space<vmem>>, vector<8x128xf32>,
    %c4_i32 = arith.constant 4 : i32
    %c8_i32_49 = arith.constant 8 : i32
    %150 = arith.muli %c4_i32, %c8_i32_49 : i32
    %151 = tpu.assume_multiple %150, 8 : i32
    %152 = arith.index_cast %151 : i32 to index
    %c0_50 = arith.constant 0 : index
    %153 = vector.load %arg9[%152, %c0_50] : memref<64x512xf32, #tpu.memory_space<vmem>>, vector<8x512xf32>
    %c0_51 = arith.constant 0 : index
    %c0_52 = arith.constant 0 : index
    %c0_53 = arith.constant 0 : index
    %154 = vector.load %arg3[%c0_51, %c0_52, %c0_53] : memref<2x128x512xf32, #tpu.memory_space<vmem>>, vector<1x128x512xf32>
    %155 = vector.shape_cast %154 : vector<1x128x512xf32> to vector<128x512xf32>
    %cst_54 = arith.constant dense<0.000000e+00> : vector<8x512xf32>
    %156 = tpu.matmul %147, %155, %cst_54 {dimension_numbers = #tpu.dot_dimension_numbers<[1], [0], [0], [1], [0, 0, 1, 1], [], []>} : vector<8x128xf32>, vector<128x512xf32>, vector<8x512xf32> -> vector<8x512xf32>
    %157 = arith.addf %153, %156 : vector<8x512xf32>
    %158 = vector.extract_strided_slice %157 {offsets = [0, 0], sizes = [8, 128], strides = [1, 1]} : vector<8x512xf32> to vector<8x128xf32>
    %159 = arith.negf %158 : vector<8x128xf32>
    %160 = math.exp %159 : vector<8x128xf32>
    %cst_55 = arith.constant 1.000000e+00 : f32
    %161 = vector.broadcast %cst_55 : f32 to vector<8x128xf32>
    %162 = arith.addf %161, %160 : vector<8x128xf32>
    %163 = arith.divf %161, %162 : vector<8x128xf32>
    %164 = vector.extract_strided_slice %157 {offsets = [0, 128], sizes = [8, 128], strides = [1, 1]} : vector<8x512xf32> to vector<8x128xf32>
    %165 = arith.negf %164 : vector<8x128xf32>
    %166 = math.exp %165 : vector<8x128xf32>
    %cst_56 = arith.constant 1.000000e+00 : f32
    %167 = vector.broadcast %cst_56 : f32 to vector<8x128xf32>
    %168 = arith.addf %167, %166 : vector<8x128xf32>
    %169 = arith.divf %167, %168 : vector<8x128xf32>
    %170 = vector.extract_strided_slice %157 {offsets = [0, 256], sizes = [8, 128], strides = [1, 1]} : vector<8x512xf32> to vector<8x128xf32>
    %171 = math.tanh %170 : vector<8x128xf32>
    %172 = vector.extract_strided_slice %157 {offsets = [0, 384], sizes = [8, 128], strides = [1, 1]} : vector<8x512xf32> to vector<8x128xf32>
    %173 = arith.negf %172 : vector<8x128xf32>
    %174 = math.exp %173 : vector<8x128xf32>
    %cst_57 = arith.constant 1.000000e+00 : f32
    %175 = vector.broadcast %cst_57 : f32 to vector<8x128xf32>
    %176 = arith.addf %175, %174 : vector<8x128xf32>
    %177 = arith.divf %175, %176 : vector<8x128xf32>
    %178 = arith.mulf %169, %145 : vector<8x128xf32>
    %179 = arith.mulf %163, %171 : vector<8x128xf32>
    %180 = arith.addf %178, %179 : vector<8x128xf32>
    %181 = math.tanh %180 : vector<8x128xf32>
    %182 = arith.mulf %177, %181 : vector<8x128xf32>
    %183 = arith.index_cast %151 : i32 to index
    %c0_58 = arith.constant 0 : index
    %184 = vector.load %arg8[%183, %c0_58] : memref<64x128xf32, #tpu.memory_space<vmem>>, vector<8x128xf32>
    tpu.vector_store %arg8[%183, %c0_58], %182 {strides = array<i32>} : memref<64x128xf32, #tpu.memory_space<vmem>>, vector<8x128xf32>,
    %c5_i32 = arith.constant 5 : i32
    %c8_i32_59 = arith.constant 8 : i32
    %185 = arith.muli %c5_i32, %c8_i32_59 : i32
    %186 = tpu.assume_multiple %185, 8 : i32
    %187 = arith.index_cast %186 : i32 to index
    %c0_60 = arith.constant 0 : index
    %188 = vector.load %arg9[%187, %c0_60] : memref<64x512xf32, #tpu.memory_space<vmem>>, vector<8x512xf32>
    %c0_61 = arith.constant 0 : index
    %c0_62 = arith.constant 0 : index
    %c0_63 = arith.constant 0 : index
    %189 = vector.load %arg3[%c0_61, %c0_62, %c0_63] : memref<2x128x512xf32, #tpu.memory_space<vmem>>, vector<1x128x512xf32>
    %190 = vector.shape_cast %189 : vector<1x128x512xf32> to vector<128x512xf32>
    %cst_64 = arith.constant dense<0.000000e+00> : vector<8x512xf32>
    %191 = tpu.matmul %182, %190, %cst_64 {dimension_numbers = #tpu.dot_dimension_numbers<[1], [0], [0], [1], [0, 0, 1, 1], [], []>} : vector<8x128xf32>, vector<128x512xf32>, vector<8x512xf32> -> vector<8x512xf32>
    %192 = arith.addf %188, %191 : vector<8x512xf32>
    %193 = vector.extract_strided_slice %192 {offsets = [0, 0], sizes = [8, 128], strides = [1, 1]} : vector<8x512xf32> to vector<8x128xf32>
    %194 = arith.negf %193 : vector<8x128xf32>
    %195 = math.exp %194 : vector<8x128xf32>
    %cst_65 = arith.constant 1.000000e+00 : f32
    %196 = vector.broadcast %cst_65 : f32 to vector<8x128xf32>
    %197 = arith.addf %196, %195 : vector<8x128xf32>
    %198 = arith.divf %196, %197 : vector<8x128xf32>
    %199 = vector.extract_strided_slice %192 {offsets = [0, 128], sizes = [8, 128], strides = [1, 1]} : vector<8x512xf32> to vector<8x128xf32>
    %200 = arith.negf %199 : vector<8x128xf32>
    %201 = math.exp %200 : vector<8x128xf32>
    %cst_66 = arith.constant 1.000000e+00 : f32
    %202 = vector.broadcast %cst_66 : f32 to vector<8x128xf32>
    %203 = arith.addf %202, %201 : vector<8x128xf32>
    %204 = arith.divf %202, %203 : vector<8x128xf32>
    %205 = vector.extract_strided_slice %192 {offsets = [0, 256], sizes = [8, 128], strides = [1, 1]} : vector<8x512xf32> to vector<8x128xf32>
    %206 = math.tanh %205 : vector<8x128xf32>
    %207 = vector.extract_strided_slice %192 {offsets = [0, 384], sizes = [8, 128], strides = [1, 1]} : vector<8x512xf32> to vector<8x128xf32>
    %208 = arith.negf %207 : vector<8x128xf32>
    %209 = math.exp %208 : vector<8x128xf32>
    %cst_67 = arith.constant 1.000000e+00 : f32
    %210 = vector.broadcast %cst_67 : f32 to vector<8x128xf32>
    %211 = arith.addf %210, %209 : vector<8x128xf32>
    %212 = arith.divf %210, %211 : vector<8x128xf32>
    %213 = arith.mulf %204, %180 : vector<8x128xf32>
    %214 = arith.mulf %198, %206 : vector<8x128xf32>
    %215 = arith.addf %213, %214 : vector<8x128xf32>
    %216 = math.tanh %215 : vector<8x128xf32>
    %217 = arith.mulf %212, %216 : vector<8x128xf32>
    %218 = arith.index_cast %186 : i32 to index
    %c0_68 = arith.constant 0 : index
    %219 = vector.load %arg8[%218, %c0_68] : memref<64x128xf32, #tpu.memory_space<vmem>>, vector<8x128xf32>
    tpu.vector_store %arg8[%218, %c0_68], %217 {strides = array<i32>} : memref<64x128xf32, #tpu.memory_space<vmem>>, vector<8x128xf32>,
    %c6_i32 = arith.constant 6 : i32
    %c8_i32_69 = arith.constant 8 : i32
    %220 = arith.muli %c6_i32, %c8_i32_69 : i32
    %221 = tpu.assume_multiple %220, 8 : i32
    %222 = arith.index_cast %221 : i32 to index
    %c0_70 = arith.constant 0 : index
    %223 = vector.load %arg9[%222, %c0_70] : memref<64x512xf32, #tpu.memory_space<vmem>>, vector<8x512xf32>
    %c0_71 = arith.constant 0 : index
    %c0_72 = arith.constant 0 : index
    %c0_73 = arith.constant 0 : index
    %224 = vector.load %arg3[%c0_71, %c0_72, %c0_73] : memref<2x128x512xf32, #tpu.memory_space<vmem>>, vector<1x128x512xf32>
    %225 = vector.shape_cast %224 : vector<1x128x512xf32> to vector<128x512xf32>
    %cst_74 = arith.constant dense<0.000000e+00> : vector<8x512xf32>
    %226 = tpu.matmul %217, %225, %cst_74 {dimension_numbers = #tpu.dot_dimension_numbers<[1], [0], [0], [1], [0, 0, 1, 1], [], []>} : vector<8x128xf32>, vector<128x512xf32>, vector<8x512xf32> -> vector<8x512xf32>
    %227 = arith.addf %223, %226 : vector<8x512xf32>
    %228 = vector.extract_strided_slice %227 {offsets = [0, 0], sizes = [8, 128], strides = [1, 1]} : vector<8x512xf32> to vector<8x128xf32>
    %229 = arith.negf %228 : vector<8x128xf32>
    %230 = math.exp %229 : vector<8x128xf32>
    %cst_75 = arith.constant 1.000000e+00 : f32
    %231 = vector.broadcast %cst_75 : f32 to vector<8x128xf32>
    %232 = arith.addf %231, %230 : vector<8x128xf32>
    %233 = arith.divf %231, %232 : vector<8x128xf32>
    %234 = vector.extract_strided_slice %227 {offsets = [0, 128], sizes = [8, 128], strides = [1, 1]} : vector<8x512xf32> to vector<8x128xf32>
    %235 = arith.negf %234 : vector<8x128xf32>
    %236 = math.exp %235 : vector<8x128xf32>
    %cst_76 = arith.constant 1.000000e+00 : f32
    %237 = vector.broadcast %cst_76 : f32 to vector<8x128xf32>
    %238 = arith.addf %237, %236 : vector<8x128xf32>
    %239 = arith.divf %237, %238 : vector<8x128xf32>
    %240 = vector.extract_strided_slice %227 {offsets = [0, 256], sizes = [8, 128], strides = [1, 1]} : vector<8x512xf32> to vector<8x128xf32>
    %241 = math.tanh %240 : vector<8x128xf32>
    %242 = vector.extract_strided_slice %227 {offsets = [0, 384], sizes = [8, 128], strides = [1, 1]} : vector<8x512xf32> to vector<8x128xf32>
    %243 = arith.negf %242 : vector<8x128xf32>
    %244 = math.exp %243 : vector<8x128xf32>
    %cst_77 = arith.constant 1.000000e+00 : f32
    %245 = vector.broadcast %cst_77 : f32 to vector<8x128xf32>
    %246 = arith.addf %245, %244 : vector<8x128xf32>
    %247 = arith.divf %245, %246 : vector<8x128xf32>
    %248 = arith.mulf %239, %215 : vector<8x128xf32>
    %249 = arith.mulf %233, %241 : vector<8x128xf32>
    %250 = arith.addf %248, %249 : vector<8x128xf32>
    %251 = math.tanh %250 : vector<8x128xf32>
    %252 = arith.mulf %247, %251 : vector<8x128xf32>
    %253 = arith.index_cast %221 : i32 to index
    %c0_78 = arith.constant 0 : index
    %254 = vector.load %arg8[%253, %c0_78] : memref<64x128xf32, #tpu.memory_space<vmem>>, vector<8x128xf32>
    tpu.vector_store %arg8[%253, %c0_78], %252 {strides = array<i32>} : memref<64x128xf32, #tpu.memory_space<vmem>>, vector<8x128xf32>,
    %c7_i32 = arith.constant 7 : i32
    %c8_i32_79 = arith.constant 8 : i32
    %255 = arith.muli %c7_i32, %c8_i32_79 : i32
    %256 = tpu.assume_multiple %255, 8 : i32
    %257 = arith.index_cast %256 : i32 to index
    %c0_80 = arith.constant 0 : index
    %258 = vector.load %arg9[%257, %c0_80] : memref<64x512xf32, #tpu.memory_space<vmem>>, vector<8x512xf32>
    %c0_81 = arith.constant 0 : index
    %c0_82 = arith.constant 0 : index
    %c0_83 = arith.constant 0 : index
    %259 = vector.load %arg3[%c0_81, %c0_82, %c0_83] : memref<2x128x512xf32, #tpu.memory_space<vmem>>, vector<1x128x512xf32>
    %260 = vector.shape_cast %259 : vector<1x128x512xf32> to vector<128x512xf32>
    %cst_84 = arith.constant dense<0.000000e+00> : vector<8x512xf32>
    %261 = tpu.matmul %252, %260, %cst_84 {dimension_numbers = #tpu.dot_dimension_numbers<[1], [0], [0], [1], [0, 0, 1, 1], [], []>} : vector<8x128xf32>, vector<128x512xf32>, vector<8x512xf32> -> vector<8x512xf32>
    %262 = arith.addf %258, %261 : vector<8x512xf32>
    %263 = vector.extract_strided_slice %262 {offsets = [0, 0], sizes = [8, 128], strides = [1, 1]} : vector<8x512xf32> to vector<8x128xf32>
    %264 = arith.negf %263 : vector<8x128xf32>
    %265 = math.exp %264 : vector<8x128xf32>
    %cst_85 = arith.constant 1.000000e+00 : f32
    %266 = vector.broadcast %cst_85 : f32 to vector<8x128xf32>
    %267 = arith.addf %266, %265 : vector<8x128xf32>
    %268 = arith.divf %266, %267 : vector<8x128xf32>
    %269 = vector.extract_strided_slice %262 {offsets = [0, 128], sizes = [8, 128], strides = [1, 1]} : vector<8x512xf32> to vector<8x128xf32>
    %270 = arith.negf %269 : vector<8x128xf32>
    %271 = math.exp %270 : vector<8x128xf32>
    %cst_86 = arith.constant 1.000000e+00 : f32
    %272 = vector.broadcast %cst_86 : f32 to vector<8x128xf32>
    %273 = arith.addf %272, %271 : vector<8x128xf32>
    %274 = arith.divf %272, %273 : vector<8x128xf32>
    %275 = vector.extract_strided_slice %262 {offsets = [0, 256], sizes = [8, 128], strides = [1, 1]} : vector<8x512xf32> to vector<8x128xf32>
    %276 = math.tanh %275 : vector<8x128xf32>
    %277 = vector.extract_strided_slice %262 {offsets = [0, 384], sizes = [8, 128], strides = [1, 1]} : vector<8x512xf32> to vector<8x128xf32>
    %278 = arith.negf %277 : vector<8x128xf32>
    %279 = math.exp %278 : vector<8x128xf32>
    %cst_87 = arith.constant 1.000000e+00 : f32
    %280 = vector.broadcast %cst_87 : f32 to vector<8x128xf32>
    %281 = arith.addf %280, %279 : vector<8x128xf32>
    %282 = arith.divf %280, %281 : vector<8x128xf32>
    %283 = arith.mulf %274, %250 : vector<8x128xf32>
    %284 = arith.mulf %268, %276 : vector<8x128xf32>
    %285 = arith.addf %283, %284 : vector<8x128xf32>
    %286 = math.tanh %285 : vector<8x128xf32>
    %287 = arith.mulf %282, %286 : vector<8x128xf32>
    %288 = arith.index_cast %256 : i32 to index
    %c0_88 = arith.constant 0 : index
    %289 = vector.load %arg8[%288, %c0_88] : memref<64x128xf32, #tpu.memory_space<vmem>>, vector<8x128xf32>
    tpu.vector_store %arg8[%288, %c0_88], %287 {strides = array<i32>} : memref<64x128xf32, #tpu.memory_space<vmem>>, vector<8x128xf32>,
    %c8_i32_89 = arith.constant 8 : i32
    %c0_90 = arith.constant 0 : index
    %c0_91 = arith.constant 0 : index
    %290 = vector.load %arg8[%c0_90, %c0_91] : memref<64x128xf32, #tpu.memory_space<vmem>>, vector<64x128xf32>
    %c0_92 = arith.constant 0 : index
    %c0_93 = arith.constant 0 : index
    %c0_94 = arith.constant 0 : index
    %291 = vector.load %arg2[%c0_92, %c0_93, %c0_94] : memref<1x128x512xf32, #tpu.memory_space<vmem>>, vector<1x128x512xf32>
    %292 = vector.shape_cast %291 : vector<1x128x512xf32> to vector<128x512xf32>
    %cst_95 = arith.constant dense<0.000000e+00> : vector<64x512xf32>
    %293 = tpu.matmul %290, %292, %cst_95 {dimension_numbers = #tpu.dot_dimension_numbers<[1], [0], [0], [1], [0, 0, 1, 1], [], []>} : vector<64x128xf32>, vector<128x512xf32>, vector<64x512xf32> -> vector<64x512xf32>
    %c1 = arith.constant 1 : index
    %c0_96 = arith.constant 0 : index
    %c0_97 = arith.constant 0 : index
    %294 = vector.load %arg4[%c1, %c0_96, %c0_97] : memref<2x1x512xf32, #tpu.memory_space<vmem>>, vector<1x1x512xf32>
    %295 = vector.shape_cast %294 : vector<1x1x512xf32> to vector<1x512xf32>
    %296 = vector.broadcast %295 : vector<1x512xf32> to vector<64x512xf32>
    %297 = arith.addf %293, %296 : vector<64x512xf32>
    %c0_98 = arith.constant 0 : index
    %c0_99 = arith.constant 0 : index
    %298 = vector.load %arg9[%c0_98, %c0_99] : memref<64x512xf32, #tpu.memory_space<vmem>>, vector<64x512xf32>
    tpu.vector_store %arg9[%c0_98, %c0_99], %297 {strides = array<i32>} : memref<64x512xf32, #tpu.memory_space<vmem>>, vector<64x512xf32>,
    %cst_100 = arith.constant 0.000000e+00 : f32
    %299 = vector.broadcast %cst_100 : f32 to vector<8x128xf32>
    %cst_101 = arith.constant 0.000000e+00 : f32
    %300 = vector.broadcast %cst_101 : f32 to vector<8x128xf32>
    %c0_i32_102 = arith.constant 0 : i32
    %c8_i32_103 = arith.constant 8 : i32
    %301 = arith.muli %c0_i32_102, %c8_i32_103 : i32
    %302 = tpu.assume_multiple %301, 8 : i32
    %303 = arith.index_cast %302 : i32 to index
    %c0_104 = arith.constant 0 : index
    %304 = vector.load %arg9[%303, %c0_104] : memref<64x512xf32, #tpu.memory_space<vmem>>, vector<8x512xf32>
    %c1_105 = arith.constant 1 : index
    %c0_106 = arith.constant 0 : index
    %c0_107 = arith.constant 0 : index
    %305 = vector.load %arg3[%c1_105, %c0_106, %c0_107] : memref<2x128x512xf32, #tpu.memory_space<vmem>>, vector<1x128x512xf32>
    %306 = vector.shape_cast %305 : vector<1x128x512xf32> to vector<128x512xf32>
    %cst_108 = arith.constant dense<0.000000e+00> : vector<8x512xf32>
    %307 = tpu.matmul %299, %306, %cst_108 {dimension_numbers = #tpu.dot_dimension_numbers<[1], [0], [0], [1], [0, 0, 1, 1], [], []>} : vector<8x128xf32>, vector<128x512xf32>, vector<8x512xf32> -> vector<8x512xf32>
    %308 = arith.addf %304, %307 : vector<8x512xf32>
    %309 = vector.extract_strided_slice %308 {offsets = [0, 0], sizes = [8, 128], strides = [1, 1]} : vector<8x512xf32> to vector<8x128xf32>
    %310 = arith.negf %309 : vector<8x128xf32>
    %311 = math.exp %310 : vector<8x128xf32>
    %cst_109 = arith.constant 1.000000e+00 : f32
    %312 = vector.broadcast %cst_109 : f32 to vector<8x128xf32>
    %313 = arith.addf %312, %311 : vector<8x128xf32>
    %314 = arith.divf %312, %313 : vector<8x128xf32>
    %315 = vector.extract_strided_slice %308 {offsets = [0, 128], sizes = [8, 128], strides = [1, 1]} : vector<8x512xf32> to vector<8x128xf32>
    %316 = arith.negf %315 : vector<8x128xf32>
    %317 = math.exp %316 : vector<8x128xf32>
    %cst_110 = arith.constant 1.000000e+00 : f32
    %318 = vector.broadcast %cst_110 : f32 to vector<8x128xf32>
    %319 = arith.addf %318, %317 : vector<8x128xf32>
    %320 = arith.divf %318, %319 : vector<8x128xf32>
    %321 = vector.extract_strided_slice %308 {offsets = [0, 256], sizes = [8, 128], strides = [1, 1]} : vector<8x512xf32> to vector<8x128xf32>
    %322 = math.tanh %321 : vector<8x128xf32>
    %323 = vector.extract_strided_slice %308 {offsets = [0, 384], sizes = [8, 128], strides = [1, 1]} : vector<8x512xf32> to vector<8x128xf32>
    %324 = arith.negf %323 : vector<8x128xf32>
    %325 = math.exp %324 : vector<8x128xf32>
    %cst_111 = arith.constant 1.000000e+00 : f32
    %326 = vector.broadcast %cst_111 : f32 to vector<8x128xf32>
    %327 = arith.addf %326, %325 : vector<8x128xf32>
    %328 = arith.divf %326, %327 : vector<8x128xf32>
    %329 = arith.mulf %320, %300 : vector<8x128xf32>
    %330 = arith.mulf %314, %322 : vector<8x128xf32>
    %331 = arith.addf %329, %330 : vector<8x128xf32>
    %332 = math.tanh %331 : vector<8x128xf32>
    %333 = arith.mulf %328, %332 : vector<8x128xf32>
    %334 = arith.index_cast %302 : i32 to index
    %c0_112 = arith.constant 0 : index
    %335 = vector.load %arg8[%334, %c0_112] : memref<64x128xf32, #tpu.memory_space<vmem>>, vector<8x128xf32>
    tpu.vector_store %arg8[%334, %c0_112], %333 {strides = array<i32>} : memref<64x128xf32, #tpu.memory_space<vmem>>, vector<8x128xf32>,
    %c1_i32_113 = arith.constant 1 : i32
    %c8_i32_114 = arith.constant 8 : i32
    %336 = arith.muli %c1_i32_113, %c8_i32_114 : i32
    %337 = tpu.assume_multiple %336, 8 : i32
    %338 = arith.index_cast %337 : i32 to index
    %c0_115 = arith.constant 0 : index
    %339 = vector.load %arg9[%338, %c0_115] : memref<64x512xf32, #tpu.memory_space<vmem>>, vector<8x512xf32>
    %c1_116 = arith.constant 1 : index
    %c0_117 = arith.constant 0 : index
    %c0_118 = arith.constant 0 : index
    %340 = vector.load %arg3[%c1_116, %c0_117, %c0_118] : memref<2x128x512xf32, #tpu.memory_space<vmem>>, vector<1x128x512xf32>
    %341 = vector.shape_cast %340 : vector<1x128x512xf32> to vector<128x512xf32>
    %cst_119 = arith.constant dense<0.000000e+00> : vector<8x512xf32>
    %342 = tpu.matmul %333, %341, %cst_119 {dimension_numbers = #tpu.dot_dimension_numbers<[1], [0], [0], [1], [0, 0, 1, 1], [], []>} : vector<8x128xf32>, vector<128x512xf32>, vector<8x512xf32> -> vector<8x512xf32>
    %343 = arith.addf %339, %342 : vector<8x512xf32>
    %344 = vector.extract_strided_slice %343 {offsets = [0, 0], sizes = [8, 128], strides = [1, 1]} : vector<8x512xf32> to vector<8x128xf32>
    %345 = arith.negf %344 : vector<8x128xf32>
    %346 = math.exp %345 : vector<8x128xf32>
    %cst_120 = arith.constant 1.000000e+00 : f32
    %347 = vector.broadcast %cst_120 : f32 to vector<8x128xf32>
    %348 = arith.addf %347, %346 : vector<8x128xf32>
    %349 = arith.divf %347, %348 : vector<8x128xf32>
    %350 = vector.extract_strided_slice %343 {offsets = [0, 128], sizes = [8, 128], strides = [1, 1]} : vector<8x512xf32> to vector<8x128xf32>
    %351 = arith.negf %350 : vector<8x128xf32>
    %352 = math.exp %351 : vector<8x128xf32>
    %cst_121 = arith.constant 1.000000e+00 : f32
    %353 = vector.broadcast %cst_121 : f32 to vector<8x128xf32>
    %354 = arith.addf %353, %352 : vector<8x128xf32>
    %355 = arith.divf %353, %354 : vector<8x128xf32>
    %356 = vector.extract_strided_slice %343 {offsets = [0, 256], sizes = [8, 128], strides = [1, 1]} : vector<8x512xf32> to vector<8x128xf32>
    %357 = math.tanh %356 : vector<8x128xf32>
    %358 = vector.extract_strided_slice %343 {offsets = [0, 384], sizes = [8, 128], strides = [1, 1]} : vector<8x512xf32> to vector<8x128xf32>
    %359 = arith.negf %358 : vector<8x128xf32>
    %360 = math.exp %359 : vector<8x128xf32>
    %cst_122 = arith.constant 1.000000e+00 : f32
    %361 = vector.broadcast %cst_122 : f32 to vector<8x128xf32>
    %362 = arith.addf %361, %360 : vector<8x128xf32>
    %363 = arith.divf %361, %362 : vector<8x128xf32>
    %364 = arith.mulf %355, %331 : vector<8x128xf32>
    %365 = arith.mulf %349, %357 : vector<8x128xf32>
    %366 = arith.addf %364, %365 : vector<8x128xf32>
    %367 = math.tanh %366 : vector<8x128xf32>
    %368 = arith.mulf %363, %367 : vector<8x128xf32>
    %369 = arith.index_cast %337 : i32 to index
    %c0_123 = arith.constant 0 : index
    %370 = vector.load %arg8[%369, %c0_123] : memref<64x128xf32, #tpu.memory_space<vmem>>, vector<8x128xf32>
    tpu.vector_store %arg8[%369, %c0_123], %368 {strides = array<i32>} : memref<64x128xf32, #tpu.memory_space<vmem>>, vector<8x128xf32>,
    %c2_i32_124 = arith.constant 2 : i32
    %c8_i32_125 = arith.constant 8 : i32
    %371 = arith.muli %c2_i32_124, %c8_i32_125 : i32
    %372 = tpu.assume_multiple %371, 8 : i32
    %373 = arith.index_cast %372 : i32 to index
    %c0_126 = arith.constant 0 : index
    %374 = vector.load %arg9[%373, %c0_126] : memref<64x512xf32, #tpu.memory_space<vmem>>, vector<8x512xf32>
    %c1_127 = arith.constant 1 : index
    %c0_128 = arith.constant 0 : index
    %c0_129 = arith.constant 0 : index
    %375 = vector.load %arg3[%c1_127, %c0_128, %c0_129] : memref<2x128x512xf32, #tpu.memory_space<vmem>>, vector<1x128x512xf32>
    %376 = vector.shape_cast %375 : vector<1x128x512xf32> to vector<128x512xf32>
    %cst_130 = arith.constant dense<0.000000e+00> : vector<8x512xf32>
    %377 = tpu.matmul %368, %376, %cst_130 {dimension_numbers = #tpu.dot_dimension_numbers<[1], [0], [0], [1], [0, 0, 1, 1], [], []>} : vector<8x128xf32>, vector<128x512xf32>, vector<8x512xf32> -> vector<8x512xf32>
    %378 = arith.addf %374, %377 : vector<8x512xf32>
    %379 = vector.extract_strided_slice %378 {offsets = [0, 0], sizes = [8, 128], strides = [1, 1]} : vector<8x512xf32> to vector<8x128xf32>
    %380 = arith.negf %379 : vector<8x128xf32>
    %381 = math.exp %380 : vector<8x128xf32>
    %cst_131 = arith.constant 1.000000e+00 : f32
    %382 = vector.broadcast %cst_131 : f32 to vector<8x128xf32>
    %383 = arith.addf %382, %381 : vector<8x128xf32>
    %384 = arith.divf %382, %383 : vector<8x128xf32>
    %385 = vector.extract_strided_slice %378 {offsets = [0, 128], sizes = [8, 128], strides = [1, 1]} : vector<8x512xf32> to vector<8x128xf32>
    %386 = arith.negf %385 : vector<8x128xf32>
    %387 = math.exp %386 : vector<8x128xf32>
    %cst_132 = arith.constant 1.000000e+00 : f32
    %388 = vector.broadcast %cst_132 : f32 to vector<8x128xf32>
    %389 = arith.addf %388, %387 : vector<8x128xf32>
    %390 = arith.divf %388, %389 : vector<8x128xf32>
    %391 = vector.extract_strided_slice %378 {offsets = [0, 256], sizes = [8, 128], strides = [1, 1]} : vector<8x512xf32> to vector<8x128xf32>
    %392 = math.tanh %391 : vector<8x128xf32>
    %393 = vector.extract_strided_slice %378 {offsets = [0, 384], sizes = [8, 128], strides = [1, 1]} : vector<8x512xf32> to vector<8x128xf32>
    %394 = arith.negf %393 : vector<8x128xf32>
    %395 = math.exp %394 : vector<8x128xf32>
    %cst_133 = arith.constant 1.000000e+00 : f32
    %396 = vector.broadcast %cst_133 : f32 to vector<8x128xf32>
    %397 = arith.addf %396, %395 : vector<8x128xf32>
    %398 = arith.divf %396, %397 : vector<8x128xf32>
    %399 = arith.mulf %390, %366 : vector<8x128xf32>
    %400 = arith.mulf %384, %392 : vector<8x128xf32>
    %401 = arith.addf %399, %400 : vector<8x128xf32>
    %402 = math.tanh %401 : vector<8x128xf32>
    %403 = arith.mulf %398, %402 : vector<8x128xf32>
    %404 = arith.index_cast %372 : i32 to index
    %c0_134 = arith.constant 0 : index
    %405 = vector.load %arg8[%404, %c0_134] : memref<64x128xf32, #tpu.memory_space<vmem>>, vector<8x128xf32>
    tpu.vector_store %arg8[%404, %c0_134], %403 {strides = array<i32>} : memref<64x128xf32, #tpu.memory_space<vmem>>, vector<8x128xf32>,
    %c3_i32_135 = arith.constant 3 : i32
    %c8_i32_136 = arith.constant 8 : i32
    %406 = arith.muli %c3_i32_135, %c8_i32_136 : i32
    %407 = tpu.assume_multiple %406, 8 : i32
    %408 = arith.index_cast %407 : i32 to index
    %c0_137 = arith.constant 0 : index
    %409 = vector.load %arg9[%408, %c0_137] : memref<64x512xf32, #tpu.memory_space<vmem>>, vector<8x512xf32>
    %c1_138 = arith.constant 1 : index
    %c0_139 = arith.constant 0 : index
    %c0_140 = arith.constant 0 : index
    %410 = vector.load %arg3[%c1_138, %c0_139, %c0_140] : memref<2x128x512xf32, #tpu.memory_space<vmem>>, vector<1x128x512xf32>
    %411 = vector.shape_cast %410 : vector<1x128x512xf32> to vector<128x512xf32>
    %cst_141 = arith.constant dense<0.000000e+00> : vector<8x512xf32>
    %412 = tpu.matmul %403, %411, %cst_141 {dimension_numbers = #tpu.dot_dimension_numbers<[1], [0], [0], [1], [0, 0, 1, 1], [], []>} : vector<8x128xf32>, vector<128x512xf32>, vector<8x512xf32> -> vector<8x512xf32>
    %413 = arith.addf %409, %412 : vector<8x512xf32>
    %414 = vector.extract_strided_slice %413 {offsets = [0, 0], sizes = [8, 128], strides = [1, 1]} : vector<8x512xf32> to vector<8x128xf32>
    %415 = arith.negf %414 : vector<8x128xf32>
    %416 = math.exp %415 : vector<8x128xf32>
    %cst_142 = arith.constant 1.000000e+00 : f32
    %417 = vector.broadcast %cst_142 : f32 to vector<8x128xf32>
    %418 = arith.addf %417, %416 : vector<8x128xf32>
    %419 = arith.divf %417, %418 : vector<8x128xf32>
    %420 = vector.extract_strided_slice %413 {offsets = [0, 128], sizes = [8, 128], strides = [1, 1]} : vector<8x512xf32> to vector<8x128xf32>
    %421 = arith.negf %420 : vector<8x128xf32>
    %422 = math.exp %421 : vector<8x128xf32>
    %cst_143 = arith.constant 1.000000e+00 : f32
    %423 = vector.broadcast %cst_143 : f32 to vector<8x128xf32>
    %424 = arith.addf %423, %422 : vector<8x128xf32>
    %425 = arith.divf %423, %424 : vector<8x128xf32>
    %426 = vector.extract_strided_slice %413 {offsets = [0, 256], sizes = [8, 128], strides = [1, 1]} : vector<8x512xf32> to vector<8x128xf32>
    %427 = math.tanh %426 : vector<8x128xf32>
    %428 = vector.extract_strided_slice %413 {offsets = [0, 384], sizes = [8, 128], strides = [1, 1]} : vector<8x512xf32> to vector<8x128xf32>
    %429 = arith.negf %428 : vector<8x128xf32>
    %430 = math.exp %429 : vector<8x128xf32>
    %cst_144 = arith.constant 1.000000e+00 : f32
    %431 = vector.broadcast %cst_144 : f32 to vector<8x128xf32>
    %432 = arith.addf %431, %430 : vector<8x128xf32>
    %433 = arith.divf %431, %432 : vector<8x128xf32>
    %434 = arith.mulf %425, %401 : vector<8x128xf32>
    %435 = arith.mulf %419, %427 : vector<8x128xf32>
    %436 = arith.addf %434, %435 : vector<8x128xf32>
    %437 = math.tanh %436 : vector<8x128xf32>
    %438 = arith.mulf %433, %437 : vector<8x128xf32>
    %439 = arith.index_cast %407 : i32 to index
    %c0_145 = arith.constant 0 : index
    %440 = vector.load %arg8[%439, %c0_145] : memref<64x128xf32, #tpu.memory_space<vmem>>, vector<8x128xf32>
    tpu.vector_store %arg8[%439, %c0_145], %438 {strides = array<i32>} : memref<64x128xf32, #tpu.memory_space<vmem>>, vector<8x128xf32>,
    %c4_i32_146 = arith.constant 4 : i32
    %c8_i32_147 = arith.constant 8 : i32
    %441 = arith.muli %c4_i32_146, %c8_i32_147 : i32
    %442 = tpu.assume_multiple %441, 8 : i32
    %443 = arith.index_cast %442 : i32 to index
    %c0_148 = arith.constant 0 : index
    %444 = vector.load %arg9[%443, %c0_148] : memref<64x512xf32, #tpu.memory_space<vmem>>, vector<8x512xf32>
    %c1_149 = arith.constant 1 : index
    %c0_150 = arith.constant 0 : index
    %c0_151 = arith.constant 0 : index
    %445 = vector.load %arg3[%c1_149, %c0_150, %c0_151] : memref<2x128x512xf32, #tpu.memory_space<vmem>>, vector<1x128x512xf32>
    %446 = vector.shape_cast %445 : vector<1x128x512xf32> to vector<128x512xf32>
    %cst_152 = arith.constant dense<0.000000e+00> : vector<8x512xf32>
    %447 = tpu.matmul %438, %446, %cst_152 {dimension_numbers = #tpu.dot_dimension_numbers<[1], [0], [0], [1], [0, 0, 1, 1], [], []>} : vector<8x128xf32>, vector<128x512xf32>, vector<8x512xf32> -> vector<8x512xf32>
    %448 = arith.addf %444, %447 : vector<8x512xf32>
    %449 = vector.extract_strided_slice %448 {offsets = [0, 0], sizes = [8, 128], strides = [1, 1]} : vector<8x512xf32> to vector<8x128xf32>
    %450 = arith.negf %449 : vector<8x128xf32>
    %451 = math.exp %450 : vector<8x128xf32>
    %cst_153 = arith.constant 1.000000e+00 : f32
    %452 = vector.broadcast %cst_153 : f32 to vector<8x128xf32>
    %453 = arith.addf %452, %451 : vector<8x128xf32>
    %454 = arith.divf %452, %453 : vector<8x128xf32>
    %455 = vector.extract_strided_slice %448 {offsets = [0, 128], sizes = [8, 128], strides = [1, 1]} : vector<8x512xf32> to vector<8x128xf32>
    %456 = arith.negf %455 : vector<8x128xf32>
    %457 = math.exp %456 : vector<8x128xf32>
    %cst_154 = arith.constant 1.000000e+00 : f32
    %458 = vector.broadcast %cst_154 : f32 to vector<8x128xf32>
    %459 = arith.addf %458, %457 : vector<8x128xf32>
    %460 = arith.divf %458, %459 : vector<8x128xf32>
    %461 = vector.extract_strided_slice %448 {offsets = [0, 256], sizes = [8, 128], strides = [1, 1]} : vector<8x512xf32> to vector<8x128xf32>
    %462 = math.tanh %461 : vector<8x128xf32>
    %463 = vector.extract_strided_slice %448 {offsets = [0, 384], sizes = [8, 128], strides = [1, 1]} : vector<8x512xf32> to vector<8x128xf32>
    %464 = arith.negf %463 : vector<8x128xf32>
    %465 = math.exp %464 : vector<8x128xf32>
    %cst_155 = arith.constant 1.000000e+00 : f32
    %466 = vector.broadcast %cst_155 : f32 to vector<8x128xf32>
    %467 = arith.addf %466, %465 : vector<8x128xf32>
    %468 = arith.divf %466, %467 : vector<8x128xf32>
    %469 = arith.mulf %460, %436 : vector<8x128xf32>
    %470 = arith.mulf %454, %462 : vector<8x128xf32>
    %471 = arith.addf %469, %470 : vector<8x128xf32>
    %472 = math.tanh %471 : vector<8x128xf32>
    %473 = arith.mulf %468, %472 : vector<8x128xf32>
    %474 = arith.index_cast %442 : i32 to index
    %c0_156 = arith.constant 0 : index
    %475 = vector.load %arg8[%474, %c0_156] : memref<64x128xf32, #tpu.memory_space<vmem>>, vector<8x128xf32>
    tpu.vector_store %arg8[%474, %c0_156], %473 {strides = array<i32>} : memref<64x128xf32, #tpu.memory_space<vmem>>, vector<8x128xf32>,
    %c5_i32_157 = arith.constant 5 : i32
    %c8_i32_158 = arith.constant 8 : i32
    %476 = arith.muli %c5_i32_157, %c8_i32_158 : i32
    %477 = tpu.assume_multiple %476, 8 : i32
    %478 = arith.index_cast %477 : i32 to index
    %c0_159 = arith.constant 0 : index
    %479 = vector.load %arg9[%478, %c0_159] : memref<64x512xf32, #tpu.memory_space<vmem>>, vector<8x512xf32>
    %c1_160 = arith.constant 1 : index
    %c0_161 = arith.constant 0 : index
    %c0_162 = arith.constant 0 : index
    %480 = vector.load %arg3[%c1_160, %c0_161, %c0_162] : memref<2x128x512xf32, #tpu.memory_space<vmem>>, vector<1x128x512xf32>
    %481 = vector.shape_cast %480 : vector<1x128x512xf32> to vector<128x512xf32>
    %cst_163 = arith.constant dense<0.000000e+00> : vector<8x512xf32>
    %482 = tpu.matmul %473, %481, %cst_163 {dimension_numbers = #tpu.dot_dimension_numbers<[1], [0], [0], [1], [0, 0, 1, 1], [], []>} : vector<8x128xf32>, vector<128x512xf32>, vector<8x512xf32> -> vector<8x512xf32>
    %483 = arith.addf %479, %482 : vector<8x512xf32>
    %484 = vector.extract_strided_slice %483 {offsets = [0, 0], sizes = [8, 128], strides = [1, 1]} : vector<8x512xf32> to vector<8x128xf32>
    %485 = arith.negf %484 : vector<8x128xf32>
    %486 = math.exp %485 : vector<8x128xf32>
    %cst_164 = arith.constant 1.000000e+00 : f32
    %487 = vector.broadcast %cst_164 : f32 to vector<8x128xf32>
    %488 = arith.addf %487, %486 : vector<8x128xf32>
    %489 = arith.divf %487, %488 : vector<8x128xf32>
    %490 = vector.extract_strided_slice %483 {offsets = [0, 128], sizes = [8, 128], strides = [1, 1]} : vector<8x512xf32> to vector<8x128xf32>
    %491 = arith.negf %490 : vector<8x128xf32>
    %492 = math.exp %491 : vector<8x128xf32>
    %cst_165 = arith.constant 1.000000e+00 : f32
    %493 = vector.broadcast %cst_165 : f32 to vector<8x128xf32>
    %494 = arith.addf %493, %492 : vector<8x128xf32>
    %495 = arith.divf %493, %494 : vector<8x128xf32>
    %496 = vector.extract_strided_slice %483 {offsets = [0, 256], sizes = [8, 128], strides = [1, 1]} : vector<8x512xf32> to vector<8x128xf32>
    %497 = math.tanh %496 : vector<8x128xf32>
    %498 = vector.extract_strided_slice %483 {offsets = [0, 384], sizes = [8, 128], strides = [1, 1]} : vector<8x512xf32> to vector<8x128xf32>
    %499 = arith.negf %498 : vector<8x128xf32>
    %500 = math.exp %499 : vector<8x128xf32>
    %cst_166 = arith.constant 1.000000e+00 : f32
    %501 = vector.broadcast %cst_166 : f32 to vector<8x128xf32>
    %502 = arith.addf %501, %500 : vector<8x128xf32>
    %503 = arith.divf %501, %502 : vector<8x128xf32>
    %504 = arith.mulf %495, %471 : vector<8x128xf32>
    %505 = arith.mulf %489, %497 : vector<8x128xf32>
    %506 = arith.addf %504, %505 : vector<8x128xf32>
    %507 = math.tanh %506 : vector<8x128xf32>
    %508 = arith.mulf %503, %507 : vector<8x128xf32>
    %509 = arith.index_cast %477 : i32 to index
    %c0_167 = arith.constant 0 : index
    %510 = vector.load %arg8[%509, %c0_167] : memref<64x128xf32, #tpu.memory_space<vmem>>, vector<8x128xf32>
    tpu.vector_store %arg8[%509, %c0_167], %508 {strides = array<i32>} : memref<64x128xf32, #tpu.memory_space<vmem>>, vector<8x128xf32>,
    %c6_i32_168 = arith.constant 6 : i32
    %c8_i32_169 = arith.constant 8 : i32
    %511 = arith.muli %c6_i32_168, %c8_i32_169 : i32
    %512 = tpu.assume_multiple %511, 8 : i32
    %513 = arith.index_cast %512 : i32 to index
    %c0_170 = arith.constant 0 : index
    %514 = vector.load %arg9[%513, %c0_170] : memref<64x512xf32, #tpu.memory_space<vmem>>, vector<8x512xf32>
    %c1_171 = arith.constant 1 : index
    %c0_172 = arith.constant 0 : index
    %c0_173 = arith.constant 0 : index
    %515 = vector.load %arg3[%c1_171, %c0_172, %c0_173] : memref<2x128x512xf32, #tpu.memory_space<vmem>>, vector<1x128x512xf32>
    %516 = vector.shape_cast %515 : vector<1x128x512xf32> to vector<128x512xf32>
    %cst_174 = arith.constant dense<0.000000e+00> : vector<8x512xf32>
    %517 = tpu.matmul %508, %516, %cst_174 {dimension_numbers = #tpu.dot_dimension_numbers<[1], [0], [0], [1], [0, 0, 1, 1], [], []>} : vector<8x128xf32>, vector<128x512xf32>, vector<8x512xf32> -> vector<8x512xf32>
    %518 = arith.addf %514, %517 : vector<8x512xf32>
    %519 = vector.extract_strided_slice %518 {offsets = [0, 0], sizes = [8, 128], strides = [1, 1]} : vector<8x512xf32> to vector<8x128xf32>
    %520 = arith.negf %519 : vector<8x128xf32>
    %521 = math.exp %520 : vector<8x128xf32>
    %cst_175 = arith.constant 1.000000e+00 : f32
    %522 = vector.broadcast %cst_175 : f32 to vector<8x128xf32>
    %523 = arith.addf %522, %521 : vector<8x128xf32>
    %524 = arith.divf %522, %523 : vector<8x128xf32>
    %525 = vector.extract_strided_slice %518 {offsets = [0, 128], sizes = [8, 128], strides = [1, 1]} : vector<8x512xf32> to vector<8x128xf32>
    %526 = arith.negf %525 : vector<8x128xf32>
    %527 = math.exp %526 : vector<8x128xf32>
    %cst_176 = arith.constant 1.000000e+00 : f32
    %528 = vector.broadcast %cst_176 : f32 to vector<8x128xf32>
    %529 = arith.addf %528, %527 : vector<8x128xf32>
    %530 = arith.divf %528, %529 : vector<8x128xf32>
    %531 = vector.extract_strided_slice %518 {offsets = [0, 256], sizes = [8, 128], strides = [1, 1]} : vector<8x512xf32> to vector<8x128xf32>
    %532 = math.tanh %531 : vector<8x128xf32>
    %533 = vector.extract_strided_slice %518 {offsets = [0, 384], sizes = [8, 128], strides = [1, 1]} : vector<8x512xf32> to vector<8x128xf32>
    %534 = arith.negf %533 : vector<8x128xf32>
    %535 = math.exp %534 : vector<8x128xf32>
    %cst_177 = arith.constant 1.000000e+00 : f32
    %536 = vector.broadcast %cst_177 : f32 to vector<8x128xf32>
    %537 = arith.addf %536, %535 : vector<8x128xf32>
    %538 = arith.divf %536, %537 : vector<8x128xf32>
    %539 = arith.mulf %530, %506 : vector<8x128xf32>
    %540 = arith.mulf %524, %532 : vector<8x128xf32>
    %541 = arith.addf %539, %540 : vector<8x128xf32>
    %542 = math.tanh %541 : vector<8x128xf32>
    %543 = arith.mulf %538, %542 : vector<8x128xf32>
    %544 = arith.index_cast %512 : i32 to index
    %c0_178 = arith.constant 0 : index
    %545 = vector.load %arg8[%544, %c0_178] : memref<64x128xf32, #tpu.memory_space<vmem>>, vector<8x128xf32>
    tpu.vector_store %arg8[%544, %c0_178], %543 {strides = array<i32>} : memref<64x128xf32, #tpu.memory_space<vmem>>, vector<8x128xf32>,
    %c7_i32_179 = arith.constant 7 : i32
    %c8_i32_180 = arith.constant 8 : i32
    %546 = arith.muli %c7_i32_179, %c8_i32_180 : i32
    %547 = tpu.assume_multiple %546, 8 : i32
    %548 = arith.index_cast %547 : i32 to index
    %c0_181 = arith.constant 0 : index
    %549 = vector.load %arg9[%548, %c0_181] : memref<64x512xf32, #tpu.memory_space<vmem>>, vector<8x512xf32>
    %c1_182 = arith.constant 1 : index
    %c0_183 = arith.constant 0 : index
    %c0_184 = arith.constant 0 : index
    %550 = vector.load %arg3[%c1_182, %c0_183, %c0_184] : memref<2x128x512xf32, #tpu.memory_space<vmem>>, vector<1x128x512xf32>
    %551 = vector.shape_cast %550 : vector<1x128x512xf32> to vector<128x512xf32>
    %cst_185 = arith.constant dense<0.000000e+00> : vector<8x512xf32>
    %552 = tpu.matmul %543, %551, %cst_185 {dimension_numbers = #tpu.dot_dimension_numbers<[1], [0], [0], [1], [0, 0, 1, 1], [], []>} : vector<8x128xf32>, vector<128x512xf32>, vector<8x512xf32> -> vector<8x512xf32>
    %553 = arith.addf %549, %552 : vector<8x512xf32>
    %554 = vector.extract_strided_slice %553 {offsets = [0, 0], sizes = [8, 128], strides = [1, 1]} : vector<8x512xf32> to vector<8x128xf32>
    %555 = arith.negf %554 : vector<8x128xf32>
    %556 = math.exp %555 : vector<8x128xf32>
    %cst_186 = arith.constant 1.000000e+00 : f32
    %557 = vector.broadcast %cst_186 : f32 to vector<8x128xf32>
    %558 = arith.addf %557, %556 : vector<8x128xf32>
    %559 = arith.divf %557, %558 : vector<8x128xf32>
    %560 = vector.extract_strided_slice %553 {offsets = [0, 128], sizes = [8, 128], strides = [1, 1]} : vector<8x512xf32> to vector<8x128xf32>
    %561 = arith.negf %560 : vector<8x128xf32>
    %562 = math.exp %561 : vector<8x128xf32>
    %cst_187 = arith.constant 1.000000e+00 : f32
    %563 = vector.broadcast %cst_187 : f32 to vector<8x128xf32>
    %564 = arith.addf %563, %562 : vector<8x128xf32>
    %565 = arith.divf %563, %564 : vector<8x128xf32>
    %566 = vector.extract_strided_slice %553 {offsets = [0, 256], sizes = [8, 128], strides = [1, 1]} : vector<8x512xf32> to vector<8x128xf32>
    %567 = math.tanh %566 : vector<8x128xf32>
    %568 = vector.extract_strided_slice %553 {offsets = [0, 384], sizes = [8, 128], strides = [1, 1]} : vector<8x512xf32> to vector<8x128xf32>
    %569 = arith.negf %568 : vector<8x128xf32>
    %570 = math.exp %569 : vector<8x128xf32>
    %cst_188 = arith.constant 1.000000e+00 : f32
    %571 = vector.broadcast %cst_188 : f32 to vector<8x128xf32>
    %572 = arith.addf %571, %570 : vector<8x128xf32>
    %573 = arith.divf %571, %572 : vector<8x128xf32>
    %574 = arith.mulf %565, %541 : vector<8x128xf32>
    %575 = arith.mulf %559, %567 : vector<8x128xf32>
    %576 = arith.addf %574, %575 : vector<8x128xf32>
    %577 = math.tanh %576 : vector<8x128xf32>
    %578 = arith.mulf %573, %577 : vector<8x128xf32>
    %579 = arith.index_cast %547 : i32 to index
    %c0_189 = arith.constant 0 : index
    %580 = vector.load %arg8[%579, %c0_189] : memref<64x128xf32, #tpu.memory_space<vmem>>, vector<8x128xf32>
    tpu.vector_store %arg8[%579, %c0_189], %578 {strides = array<i32>} : memref<64x128xf32, #tpu.memory_space<vmem>>, vector<8x128xf32>,
    %c8_i32_190 = arith.constant 8 : i32
    %cst_191 = arith.constant 0.000000e+00 : f32
    %581 = vector.broadcast %cst_191 : f32 to vector<8x128xf32>
    %c0_i32_192 = arith.constant 0 : i32
    %c8_i32_193 = arith.constant 8 : i32
    %582 = arith.muli %c0_i32_192, %c8_i32_193 : i32
    %583 = tpu.assume_multiple %582, 8 : i32
    %584 = arith.index_cast %583 : i32 to index
    %c0_194 = arith.constant 0 : index
    %585 = vector.load %arg8[%584, %c0_194] : memref<64x128xf32, #tpu.memory_space<vmem>>, vector<8x128xf32>
    %586 = arith.index_cast %c0_i32_192 : i32 to index
    %c0_195 = arith.constant 0 : index
    %c0_196 = arith.constant 0 : index
    %587 = vector.load %arg5[%586, %c0_195, %c0_196] : memref<8x128x128xf32, #tpu.memory_space<vmem>>, vector<1x128x128xf32>
    %588 = vector.shape_cast %587 : vector<1x128x128xf32> to vector<128x128xf32>
    %cst_197 = arith.constant dense<0.000000e+00> : vector<8x128xf32>
    %589 = tpu.matmul %585, %588, %cst_197 {dimension_numbers = #tpu.dot_dimension_numbers<[1], [0], [0], [1], [0, 0, 1, 1], [], []>} : vector<8x128xf32>, vector<128x128xf32>, vector<8x128xf32> -> vector<8x128xf32>
    %590 = arith.addf %581, %589 : vector<8x128xf32>
    %c1_i32_198 = arith.constant 1 : i32
    %c8_i32_199 = arith.constant 8 : i32
    %591 = arith.muli %c1_i32_198, %c8_i32_199 : i32
    %592 = tpu.assume_multiple %591, 8 : i32
    %593 = arith.index_cast %592 : i32 to index
    %c0_200 = arith.constant 0 : index
    %594 = vector.load %arg8[%593, %c0_200] : memref<64x128xf32, #tpu.memory_space<vmem>>, vector<8x128xf32>
    %595 = arith.index_cast %c1_i32_198 : i32 to index
    %c0_201 = arith.constant 0 : index
    %c0_202 = arith.constant 0 : index
    %596 = vector.load %arg5[%595, %c0_201, %c0_202] : memref<8x128x128xf32, #tpu.memory_space<vmem>>, vector<1x128x128xf32>
    %597 = vector.shape_cast %596 : vector<1x128x128xf32> to vector<128x128xf32>
    %cst_203 = arith.constant dense<0.000000e+00> : vector<8x128xf32>
    %598 = tpu.matmul %594, %597, %cst_203 {dimension_numbers = #tpu.dot_dimension_numbers<[1], [0], [0], [1], [0, 0, 1, 1], [], []>} : vector<8x128xf32>, vector<128x128xf32>, vector<8x128xf32> -> vector<8x128xf32>
    %599 = arith.addf %590, %598 : vector<8x128xf32>
    %c2_i32_204 = arith.constant 2 : i32
    %c8_i32_205 = arith.constant 8 : i32
    %600 = arith.muli %c2_i32_204, %c8_i32_205 : i32
    %601 = tpu.assume_multiple %600, 8 : i32
    %602 = arith.index_cast %601 : i32 to index
    %c0_206 = arith.constant 0 : index
    %603 = vector.load %arg8[%602, %c0_206] : memref<64x128xf32, #tpu.memory_space<vmem>>, vector<8x128xf32>
    %604 = arith.index_cast %c2_i32_204 : i32 to index
    %c0_207 = arith.constant 0 : index
    %c0_208 = arith.constant 0 : index
    %605 = vector.load %arg5[%604, %c0_207, %c0_208] : memref<8x128x128xf32, #tpu.memory_space<vmem>>, vector<1x128x128xf32>
    %606 = vector.shape_cast %605 : vector<1x128x128xf32> to vector<128x128xf32>
    %cst_209 = arith.constant dense<0.000000e+00> : vector<8x128xf32>
    %607 = tpu.matmul %603, %606, %cst_209 {dimension_numbers = #tpu.dot_dimension_numbers<[1], [0], [0], [1], [0, 0, 1, 1], [], []>} : vector<8x128xf32>, vector<128x128xf32>, vector<8x128xf32> -> vector<8x128xf32>
    %608 = arith.addf %599, %607 : vector<8x128xf32>
    %c3_i32_210 = arith.constant 3 : i32
    %c8_i32_211 = arith.constant 8 : i32
    %609 = arith.muli %c3_i32_210, %c8_i32_211 : i32
    %610 = tpu.assume_multiple %609, 8 : i32
    %611 = arith.index_cast %610 : i32 to index
    %c0_212 = arith.constant 0 : index
    %612 = vector.load %arg8[%611, %c0_212] : memref<64x128xf32, #tpu.memory_space<vmem>>, vector<8x128xf32>
    %613 = arith.index_cast %c3_i32_210 : i32 to index
    %c0_213 = arith.constant 0 : index
    %c0_214 = arith.constant 0 : index
    %614 = vector.load %arg5[%613, %c0_213, %c0_214] : memref<8x128x128xf32, #tpu.memory_space<vmem>>, vector<1x128x128xf32>
    %615 = vector.shape_cast %614 : vector<1x128x128xf32> to vector<128x128xf32>
    %cst_215 = arith.constant dense<0.000000e+00> : vector<8x128xf32>
    %616 = tpu.matmul %612, %615, %cst_215 {dimension_numbers = #tpu.dot_dimension_numbers<[1], [0], [0], [1], [0, 0, 1, 1], [], []>} : vector<8x128xf32>, vector<128x128xf32>, vector<8x128xf32> -> vector<8x128xf32>
    %617 = arith.addf %608, %616 : vector<8x128xf32>
    %c4_i32_216 = arith.constant 4 : i32
    %c8_i32_217 = arith.constant 8 : i32
    %618 = arith.muli %c4_i32_216, %c8_i32_217 : i32
    %619 = tpu.assume_multiple %618, 8 : i32
    %620 = arith.index_cast %619 : i32 to index
    %c0_218 = arith.constant 0 : index
    %621 = vector.load %arg8[%620, %c0_218] : memref<64x128xf32, #tpu.memory_space<vmem>>, vector<8x128xf32>
    %622 = arith.index_cast %c4_i32_216 : i32 to index
    %c0_219 = arith.constant 0 : index
    %c0_220 = arith.constant 0 : index
    %623 = vector.load %arg5[%622, %c0_219, %c0_220] : memref<8x128x128xf32, #tpu.memory_space<vmem>>, vector<1x128x128xf32>
    %624 = vector.shape_cast %623 : vector<1x128x128xf32> to vector<128x128xf32>
    %cst_221 = arith.constant dense<0.000000e+00> : vector<8x128xf32>
    %625 = tpu.matmul %621, %624, %cst_221 {dimension_numbers = #tpu.dot_dimension_numbers<[1], [0], [0], [1], [0, 0, 1, 1], [], []>} : vector<8x128xf32>, vector<128x128xf32>, vector<8x128xf32> -> vector<8x128xf32>
    %626 = arith.addf %617, %625 : vector<8x128xf32>
    %c5_i32_222 = arith.constant 5 : i32
    %c8_i32_223 = arith.constant 8 : i32
    %627 = arith.muli %c5_i32_222, %c8_i32_223 : i32
    %628 = tpu.assume_multiple %627, 8 : i32
    %629 = arith.index_cast %628 : i32 to index
    %c0_224 = arith.constant 0 : index
    %630 = vector.load %arg8[%629, %c0_224] : memref<64x128xf32, #tpu.memory_space<vmem>>, vector<8x128xf32>
    %631 = arith.index_cast %c5_i32_222 : i32 to index
    %c0_225 = arith.constant 0 : index
    %c0_226 = arith.constant 0 : index
    %632 = vector.load %arg5[%631, %c0_225, %c0_226] : memref<8x128x128xf32, #tpu.memory_space<vmem>>, vector<1x128x128xf32>
    %633 = vector.shape_cast %632 : vector<1x128x128xf32> to vector<128x128xf32>
    %cst_227 = arith.constant dense<0.000000e+00> : vector<8x128xf32>
    %634 = tpu.matmul %630, %633, %cst_227 {dimension_numbers = #tpu.dot_dimension_numbers<[1], [0], [0], [1], [0, 0, 1, 1], [], []>} : vector<8x128xf32>, vector<128x128xf32>, vector<8x128xf32> -> vector<8x128xf32>
    %635 = arith.addf %626, %634 : vector<8x128xf32>
    %c6_i32_228 = arith.constant 6 : i32
    %c8_i32_229 = arith.constant 8 : i32
    %636 = arith.muli %c6_i32_228, %c8_i32_229 : i32
    %637 = tpu.assume_multiple %636, 8 : i32
    %638 = arith.index_cast %637 : i32 to index
    %c0_230 = arith.constant 0 : index
    %639 = vector.load %arg8[%638, %c0_230] : memref<64x128xf32, #tpu.memory_space<vmem>>, vector<8x128xf32>
    %640 = arith.index_cast %c6_i32_228 : i32 to index
    %c0_231 = arith.constant 0 : index
    %c0_232 = arith.constant 0 : index
    %641 = vector.load %arg5[%640, %c0_231, %c0_232] : memref<8x128x128xf32, #tpu.memory_space<vmem>>, vector<1x128x128xf32>
    %642 = vector.shape_cast %641 : vector<1x128x128xf32> to vector<128x128xf32>
    %cst_233 = arith.constant dense<0.000000e+00> : vector<8x128xf32>
    %643 = tpu.matmul %639, %642, %cst_233 {dimension_numbers = #tpu.dot_dimension_numbers<[1], [0], [0], [1], [0, 0, 1, 1], [], []>} : vector<8x128xf32>, vector<128x128xf32>, vector<8x128xf32> -> vector<8x128xf32>
    %644 = arith.addf %635, %643 : vector<8x128xf32>
    %c7_i32_234 = arith.constant 7 : i32
    %c8_i32_235 = arith.constant 8 : i32
    %645 = arith.muli %c7_i32_234, %c8_i32_235 : i32
    %646 = tpu.assume_multiple %645, 8 : i32
    %647 = arith.index_cast %646 : i32 to index
    %c0_236 = arith.constant 0 : index
    %648 = vector.load %arg8[%647, %c0_236] : memref<64x128xf32, #tpu.memory_space<vmem>>, vector<8x128xf32>
    %649 = arith.index_cast %c7_i32_234 : i32 to index
    %c0_237 = arith.constant 0 : index
    %c0_238 = arith.constant 0 : index
    %650 = vector.load %arg5[%649, %c0_237, %c0_238] : memref<8x128x128xf32, #tpu.memory_space<vmem>>, vector<1x128x128xf32>
    %651 = vector.shape_cast %650 : vector<1x128x128xf32> to vector<128x128xf32>
    %cst_239 = arith.constant dense<0.000000e+00> : vector<8x128xf32>
    %652 = tpu.matmul %648, %651, %cst_239 {dimension_numbers = #tpu.dot_dimension_numbers<[1], [0], [0], [1], [0, 0, 1, 1], [], []>} : vector<8x128xf32>, vector<128x128xf32>, vector<8x128xf32> -> vector<8x128xf32>
    %653 = arith.addf %644, %652 : vector<8x128xf32>
    %c8_i32_240 = arith.constant 8 : i32
    %c0_241 = arith.constant 0 : index
    %c0_242 = arith.constant 0 : index
    %654 = vector.load %arg6[%c0_241, %c0_242] : memref<1x128xf32, #tpu.memory_space<vmem>>, vector<1x128xf32>
    %655 = vector.broadcast %654 : vector<1x128xf32> to vector<8x128xf32>
    %656 = arith.addf %653, %655 : vector<8x128xf32>
    %c0_243 = arith.constant 0 : index
    %c0_244 = arith.constant 0 : index
    %657 = vector.load %arg7[%c0_243, %c0_244] : memref<8x128xf32, #tpu.memory_space<vmem>>, vector<8x128xf32>
    tpu.vector_store %arg7[%c0_243, %c0_244], %656 {strides = array<i32>} : memref<8x128xf32, #tpu.memory_space<vmem>>, vector<8x128xf32>,
    return
  }
}

</mosaic_0001>

<llo_original>
// kernel: flexible_lstm_forward.1
$region0: #{flexible_lstm_forward.1}
  #allocation0 [shape = 'u32[]', space=smem, size = 0x4, offset = 0x4, fixed_abs, tag = 'smem constant byte address 0x4 - core index']
  #allocation1 [shape = 'u32[144,128]{1,0:T(1,128)}', space=vmem, size = 0x12000, scoped, tag = 'internal scratch']
  #allocation2 [shape = 'f32[64,128]{1,0:T(8,128)}', space=vmem, size = 0x8000, scoped, tag = 'scratch operand']
  #allocation3 [shape = 'f32[64,512]{1,0:T(8,128)}', space=vmem, size = 0x20000, scoped, tag = 'scratch operand']
  %s0 = inlined_call_operand.vmem [shape: f32[64,4], index: 0, kind: input, shape index: {}]
  %s1 = inlined_call_operand.vmem [shape: f32[4,512], index: 1, kind: input, shape index: {}]
  %s2 = inlined_call_operand.vmem [shape: f32[1,128,512], index: 2, kind: input, shape index: {}]
  %s3 = inlined_call_operand.vmem [shape: f32[2,128,512], index: 3, kind: input, shape index: {}]
  %s4 = inlined_call_operand.vmem [shape: f32[2,1,512], index: 4, kind: input, shape index: {}]
  %s5 = inlined_call_operand.vmem [shape: f32[8,128,128], index: 5, kind: input, shape index: {}]
  %s6 = inlined_call_operand.vmem [shape: f32[1,128], index: 6, kind: input, shape index: {}]
  %s7 = inlined_call_operand.vmem [shape: f32[8,128], index: 7, kind: output, shape index: {}]
  %s8 = sld [smem:[#allocation0]]
  $region38: #{flexible_lstm_forward.1} parent=0
    _
  %s10 = ssub.s32 1, %s8
  %s11 = scalar_select 0, %s10, %s8
  // Predicated region
  $region2: #{flexible_lstm_forward.1} parent=0 // pred_check
    _
  $region3: #{flexible_lstm_forward.1} parent=0 // pred_check_branch
    %13 = sbr.rel (0) target = $region5
  $region4: #{flexible_lstm_forward.1} parent=0 // pred_region
    _
  $region5: #{flexible_lstm_forward.1} parent=0 // pred_fallthru
    _
  // Predicated region
  $region6: #{flexible_lstm_forward.1} parent=0 // pred_check
    _
  $region7: #{flexible_lstm_forward.1} parent=0 // pred_check_branch
    %15 = sbr.rel (0) target = $region9
  $region8: #{flexible_lstm_forward.1} parent=0 // pred_region
    _
  $region9: #{flexible_lstm_forward.1} parent=0 // pred_fallthru
    _
  // Predicated region
  $region10: #{flexible_lstm_forward.1} parent=0 // pred_check
    _
  $region11: #{flexible_lstm_forward.1} parent=0 // pred_check_branch
    %17 = sbr.rel (0) target = $region13
  $region12: #{flexible_lstm_forward.1} parent=0 // pred_region
    _
  $region13: #{flexible_lstm_forward.1} parent=0 // pred_fallthru
    _
  // Predicated region
  $region14: #{flexible_lstm_forward.1} parent=0 // pred_check
    _
  $region15: #{flexible_lstm_forward.1} parent=0 // pred_check_branch
    %19 = sbr.rel (0) target = $region17
  $region16: #{flexible_lstm_forward.1} parent=0 // pred_region
    _
  $region17: #{flexible_lstm_forward.1} parent=0 // pred_fallthru
    _
  // Predicated region
  $region18: #{flexible_lstm_forward.1} parent=0 // pred_check
    _
  $region19: #{flexible_lstm_forward.1} parent=0 // pred_check_branch
    %21 = sbr.rel (0) target = $region21
  $region20: #{flexible_lstm_forward.1} parent=0 // pred_region
    _
  $region21: #{flexible_lstm_forward.1} parent=0 // pred_fallthru
    _
  // Predicated region
  $region22: #{flexible_lstm_forward.1} parent=0 // pred_check
    _
  $region23: #{flexible_lstm_forward.1} parent=0 // pred_check_branch
    %23 = sbr.rel (0) target = $region25
  $region24: #{flexible_lstm_forward.1} parent=0 // pred_region
    _
  $region25: #{flexible_lstm_forward.1} parent=0 // pred_fallthru
    _
  // Predicated region
  $region26: #{flexible_lstm_forward.1} parent=0 // pred_check
    _
  $region27: #{flexible_lstm_forward.1} parent=0 // pred_check_branch
    %25 = sbr.rel (0) target = $region29
  $region28: #{flexible_lstm_forward.1} parent=0 // pred_region
    _
  $region29: #{flexible_lstm_forward.1} parent=0 // pred_fallthru
    _
  %v26 = vld [vmem:[%s0] sm:$0xff]
  %v27 = vld [vmem:[%s0 + $0x8] sm:$0xff]
  %v28 = vld [vmem:[%s0 + $0x10] sm:$0xff]
  %v29 = vld [vmem:[%s0 + $0x18] sm:$0xff]
  %v30 = vld [vmem:[%s0 + $0x20] sm:$0xff]
  %v31 = vld [vmem:[%s0 + $0x28] sm:$0xff]
  %v32 = vld [vmem:[%s0 + $0x30] sm:$0xff]
  %v33 = vld [vmem:[%s0 + $0x38] sm:$0xff]
  %v34 = vld [vmem:[%s1] sm:$0xff]
  %v35 = vld [vmem:[%s1 + $0x8] sm:$0xff]
  %v36 = vld [vmem:[%s4] sm:$0xf]
  %v38 = vlaneseq
  %v39 = vshrl.u32 %v38, 7
  %v40 = vsub.s32 0, %v39
  %v41 = vrot.slane %v36, %v40
  %v42 = vlaneseq
  %v43 = vshrl.u32 %v42, 7
  %v44 = vsub.s32 1, %v43
  %v45 = vrot.slane %v36, %v44
  %v46 = vlaneseq
  %v47 = vshrl.u32 %v46, 7
  %v48 = vsub.s32 2, %v47
  %v49 = vrot.slane %v36, %v48
  %v50 = vlaneseq
  %v51 = vshrl.u32 %v50, 7
  %v52 = vsub.s32 3, %v51
  %v53 = vrot.slane %v36, %v52
  %v60 = vcombine.high %v34, %v34
  %v61 = vcombine.high %v35, %v35
  %vm62 = vcmask 31744
  %v64 = vsel %vm62, %v26, 0
  %v67 = vsel %vm62, %v27, 0
  %v70 = vsel %vm62, %v28, 0
  %v73 = vsel %vm62, %v29, 0
  %v76 = vsel %vm62, %v30, 0
  %v79 = vsel %vm62, %v31, 0
  %v82 = vsel %vm62, %v32, 0
  %v85 = vsel %vm62, %v33, 0
  %vm87 = vcmask 1043456
  %v88 = vsel %vm87, %v34, 0
  %v90 = vsel %vm87, %v60, 0
  %v92 = vsel %vm87, %v35, 0
  %v94 = vsel %vm87, %v61, 0
  %96 = vmatprep.subr.mxu0 0.0
  %97 = vmatpush1.msra.mxu0 0.0
  %98 = vmatprep.subr.mxu0 0.0
  %99 = vmatpush1.msra.mxu0 0.0
  %100 = vmatprep.subr.mxu0 0.0
  %101 = vmatpush1.msra.mxu0 0.0
  %102 = vmatprep.subr.mxu0 0.0
  %103 = vmatpush1.msra.mxu0 0.0
  %104 = vmatprep.subr.mxu0 0.0
  %105 = vmatpush1.msra.mxu0 0.0
  %106 = vmatprep.subr.mxu0 0.0
  %107 = vmatpush1.msra.mxu0 0.0
  %108 = vmatprep.subr.mxu0 0.0
  %109 = vmatpush1.msra.mxu0 0.0
  %110 = vmatprep.subr.mxu0 0.0
  %111 = vmatpush1.msra.mxu0 0.0
  %112 = vmatprep.subr.mxu0 0.0
  %113 = vmatpush1.msra.mxu0 0.0
  %114 = vmatprep.subr.mxu0 0.0
  %115 = vmatpush1.msra.mxu0 0.0
  %116 = vmatprep.subr.mxu0 0.0
  %117 = vmatpush1.msra.mxu0 0.0
  %118 = vmatprep.subr.mxu0 0.0
  %119 = vmatpush1.msra.mxu0 0.0
  %120 = vmatprep.subr.mxu0 0.0
  %121 = vmatpush1.msra.mxu0 0.0
  %122 = vmatprep.subr.mxu0 0.0
  %123 = vmatpush1.msra.mxu0 0.0
  %124 = vmatprep.subr.mxu0 0.0
  %125 = vmatpush1.msra.mxu0 0.0
  %126 = vmatprep.subr.mxu0 %v90
  %127 = vmatpush1.msra.mxu0 %v88
  %128 = vmatprep.subr.mxu0 0.0
  %129 = vmatpush2.msra.mxu0 0.0
  %130 = vmatprep.subr.mxu0 0.0
  %131 = vmatpush2.msra.mxu0 0.0
  %132 = vmatprep.subr.mxu0 0.0
  %133 = vmatpush2.msra.mxu0 0.0
  %134 = vmatprep.subr.mxu0 0.0
  %135 = vmatpush2.msra.mxu0 0.0
  %136 = vmatprep.subr.mxu0 0.0
  %137 = vmatpush2.msra.mxu0 0.0
  %138 = vmatprep.subr.mxu0 0.0
  %139 = vmatpush2.msra.mxu0 0.0
  %140 = vmatprep.subr.mxu0 0.0
  %141 = vmatpush2.msra.mxu0 0.0
  %142 = vmatprep.subr.mxu0 0.0
  %143 = vmatpush2.msra.mxu0 0.0
  %144 = vmatprep.subr.mxu0 0.0
  %145 = vmatpush2.msra.mxu0 0.0
  %146 = vmatprep.subr.mxu0 0.0
  %147 = vmatpush2.msra.mxu0 0.0
  %148 = vmatprep.subr.mxu0 0.0
  %149 = vmatpush2.msra.mxu0 0.0
  %150 = vmatprep.subr.mxu0 0.0
  %151 = vmatpush2.msra.mxu0 0.0
  %152 = vmatprep.subr.mxu0 0.0
  %153 = vmatpush2.msra.mxu0 0.0
  %154 = vmatprep.subr.mxu0 0.0
  %155 = vmatpush2.msra.mxu0 0.0
  %156 = vmatprep.subr.mxu0 0.0
  %157 = vmatpush2.msra.mxu0 0.0
  %158 = vmatprep.subr.mxu0 0.0
  %159 = vmatpush2.msra.mxu0 0.0
  %160 = vmatprep.mubr.f32.mxu0 0.0
  %161 = vmatmul.mubr.f32.gmra.mxu0 %v64
  %v162 = vpop.f32.mrf.mxu0
  %v163 = vadd.f32 %v41, %v162
  %v164 = vpop.f32.mrf.mxu0
  %v165 = vadd.f32 %v45, %v164
  %166 = vmatprep.mubr.f32.mxu0 0.0
  %167 = vmatmul.mubr.f32.gmra.mxu0 %v67
  %v168 = vpop.f32.mrf.mxu0
  %v169 = vadd.f32 %v41, %v168
  %v170 = vpop.f32.mrf.mxu0
  %v171 = vadd.f32 %v45, %v170
  %172 = vmatprep.mubr.f32.mxu0 0.0
  %173 = vmatmul.mubr.f32.gmra.mxu0 %v70
  %v174 = vpop.f32.mrf.mxu0
  %v175 = vadd.f32 %v41, %v174
  %v176 = vpop.f32.mrf.mxu0
  %v177 = vadd.f32 %v45, %v176
  %178 = vmatprep.mubr.f32.mxu0 0.0
  %179 = vmatmul.mubr.f32.gmra.mxu0 %v73
  %v180 = vpop.f32.mrf.mxu0
  %v181 = vadd.f32 %v41, %v180
  %v182 = vpop.f32.mrf.mxu0
  %v183 = vadd.f32 %v45, %v182
  %184 = vmatprep.mubr.f32.mxu0 0.0
  %185 = vmatmul.mubr.f32.gmra.mxu0 %v76
  %v186 = vpop.f32.mrf.mxu0
  %v187 = vadd.f32 %v41, %v186
  %v188 = vpop.f32.mrf.mxu0
  %v189 = vadd.f32 %v45, %v188
  %190 = vmatprep.mubr.f32.mxu0 0.0
  %191 = vmatmul.mubr.f32.gmra.mxu0 %v79
  %v192 = vpop.f32.mrf.mxu0
  %v193 = vadd.f32 %v41, %v192
  %v194 = vpop.f32.mrf.mxu0
  %v195 = vadd.f32 %v45, %v194
  %196 = vmatprep.mubr.f32.mxu0 0.0
  %197 = vmatmul.mubr.f32.gmra.mxu0 %v82
  %v198 = vpop.f32.mrf.mxu0
  %v199 = vadd.f32 %v41, %v198
  %v200 = vpop.f32.mrf.mxu0
  %v201 = vadd.f32 %v45, %v200
  %202 = vmatprep.mubr.f32.mxu0 0.0
  %203 = vmatmul.mubr.f32.gmra.mxu0 %v85
  %v204 = vpop.f32.mrf.mxu0
  %v205 = vadd.f32 %v41, %v204
  %v206 = vpop.f32.mrf.mxu0
  %v207 = vadd.f32 %v45, %v206
  %208 = vdwg.mxu0
  %209 = vmatprep.subr.mxu0 0.0
  %210 = vmatpush1.msra.mxu0 0.0
  %211 = vmatprep.subr.mxu0 0.0
  %212 = vmatpush1.msra.mxu0 0.0
  %213 = vmatprep.subr.mxu0 0.0
  %214 = vmatpush1.msra.mxu0 0.0
  %215 = vmatprep.subr.mxu0 0.0
  %216 = vmatpush1.msra.mxu0 0.0
  %217 = vmatprep.subr.mxu0 0.0
  %218 = vmatpush1.msra.mxu0 0.0
  %219 = vmatprep.subr.mxu0 0.0
  %220 = vmatpush1.msra.mxu0 0.0
  %221 = vmatprep.subr.mxu0 0.0
  %222 = vmatpush1.msra.mxu0 0.0
  %223 = vmatprep.subr.mxu0 0.0
  %224 = vmatpush1.msra.mxu0 0.0
  %225 = vmatprep.subr.mxu0 0.0
  %226 = vmatpush1.msra.mxu0 0.0
  %227 = vmatprep.subr.mxu0 0.0
  %228 = vmatpush1.msra.mxu0 0.0
  %229 = vmatprep.subr.mxu0 0.0
  %230 = vmatpush1.msra.mxu0 0.0
  %231 = vmatprep.subr.mxu0 0.0
  %232 = vmatpush1.msra.mxu0 0.0
  %233 = vmatprep.subr.mxu0 0.0
  %234 = vmatpush1.msra.mxu0 0.0
  %235 = vmatprep.subr.mxu0 0.0
  %236 = vmatpush1.msra.mxu0 0.0
  %237 = vmatprep.subr.mxu0 0.0
  %238 = vmatpush1.msra.mxu0 0.0
  %239 = vmatprep.subr.mxu0 %v94
  %240 = vmatpush1.msra.mxu0 %v92
  %241 = vmatprep.subr.mxu0 0.0
  %242 = vmatpush2.msra.mxu0 0.0
  %243 = vmatprep.subr.mxu0 0.0
  %244 = vmatpush2.msra.mxu0 0.0
  %245 = vmatprep.subr.mxu0 0.0
  %246 = vmatpush2.msra.mxu0 0.0
  %247 = vmatprep.subr.mxu0 0.0
  %248 = vmatpush2.msra.mxu0 0.0
  %249 = vmatprep.subr.mxu0 0.0
  %250 = vmatpush2.msra.mxu0 0.0
  %251 = vmatprep.subr.mxu0 0.0
  %252 = vmatpush2.msra.mxu0 0.0
  %253 = vmatprep.subr.mxu0 0.0
  %254 = vmatpush2.msra.mxu0 0.0
  %255 = vmatprep.subr.mxu0 0.0
  %256 = vmatpush2.msra.mxu0 0.0
  %257 = vmatprep.subr.mxu0 0.0
  %258 = vmatpush2.msra.mxu0 0.0
  %259 = vmatprep.subr.mxu0 0.0
  %260 = vmatpush2.msra.mxu0 0.0
  %261 = vmatprep.subr.mxu0 0.0
  %262 = vmatpush2.msra.mxu0 0.0
  %263 = vmatprep.subr.mxu0 0.0
  %264 = vmatpush2.msra.mxu0 0.0
  %265 = vmatprep.subr.mxu0 0.0
  %266 = vmatpush2.msra.mxu0 0.0
  %267 = vmatprep.subr.mxu0 0.0
  %268 = vmatpush2.msra.mxu0 0.0
  %269 = vmatprep.subr.mxu0 0.0
  %270 = vmatpush2.msra.mxu0 0.0
  %271 = vmatprep.subr.mxu0 0.0
  %272 = vmatpush2.msra.mxu0 0.0
  %273 = vmatprep.mubr.f32.mxu0 0.0
  %274 = vmatmul.mubr.f32.gmra.mxu0 %v64
  %v275 = vpop.f32.mrf.mxu0
  %v276 = vadd.f32 %v49, %v275
  %v277 = vpop.f32.mrf.mxu0
  %v278 = vadd.f32 %v53, %v277
  %279 = vmatprep.mubr.f32.mxu0 0.0
  %280 = vmatmul.mubr.f32.gmra.mxu0 %v67
  %v281 = vpop.f32.mrf.mxu0
  %v282 = vadd.f32 %v49, %v281
  %v283 = vpop.f32.mrf.mxu0
  %v284 = vadd.f32 %v53, %v283
  %285 = vmatprep.mubr.f32.mxu0 0.0
  %286 = vmatmul.mubr.f32.gmra.mxu0 %v70
  %v287 = vpop.f32.mrf.mxu0
  %v288 = vadd.f32 %v49, %v287
  %v289 = vpop.f32.mrf.mxu0
  %v290 = vadd.f32 %v53, %v289
  %291 = vmatprep.mubr.f32.mxu0 0.0
  %292 = vmatmul.mubr.f32.gmra.mxu0 %v73
  %v293 = vpop.f32.mrf.mxu0
  %v294 = vadd.f32 %v49, %v293
  %v295 = vpop.f32.mrf.mxu0
  %v296 = vadd.f32 %v53, %v295
  %297 = vmatprep.mubr.f32.mxu0 0.0
  %298 = vmatmul.mubr.f32.gmra.mxu0 %v76
  %v299 = vpop.f32.mrf.mxu0
  %v300 = vadd.f32 %v49, %v299
  %v301 = vpop.f32.mrf.mxu0
  %v302 = vadd.f32 %v53, %v301
  %303 = vmatprep.mubr.f32.mxu0 0.0
  %304 = vmatmul.mubr.f32.gmra.mxu0 %v79
  %v305 = vpop.f32.mrf.mxu0
  %v306 = vadd.f32 %v49, %v305
  %v307 = vpop.f32.mrf.mxu0
  %v308 = vadd.f32 %v53, %v307
  %309 = vmatprep.mubr.f32.mxu0 0.0
  %310 = vmatmul.mubr.f32.gmra.mxu0 %v82
  %v311 = vpop.f32.mrf.mxu0
  %v312 = vadd.f32 %v49, %v311
  %v313 = vpop.f32.mrf.mxu0
  %v314 = vadd.f32 %v53, %v313
  %315 = vmatprep.mubr.f32.mxu0 0.0
  %316 = vmatmul.mubr.f32.gmra.mxu0 %v85
  %v317 = vpop.f32.mrf.mxu0
  %v318 = vadd.f32 %v49, %v317
  %v319 = vpop.f32.mrf.mxu0
  %v320 = vadd.f32 %v53, %v319
  %321 = vdwg.mxu0
  %322 = vst [vmem:[#allocation3] sm:$0xff] %v163
  %323 = vst [vmem:[#allocation3 + $0x8] sm:$0xff] %v165
  %324 = vst [vmem:[#allocation3 + $0x10] sm:$0xff] %v276
  %325 = vst [vmem:[#allocation3 + $0x18] sm:$0xff] %v278
  %326 = vst [vmem:[#allocation3 + $0x20] sm:$0xff] %v169
  %327 = vst [vmem:[#allocation3 + $0x28] sm:$0xff] %v171
  %328 = vst [vmem:[#allocation3 + $0x30] sm:$0xff] %v282
  %329 = vst [vmem:[#allocation3 + $0x38] sm:$0xff] %v284
  %330 = vst [vmem:[#allocation3 + $0x40] sm:$0xff] %v175
  %331 = vst [vmem:[#allocation3 + $0x48] sm:$0xff] %v177
  %332 = vst [vmem:[#allocation3 + $0x50] sm:$0xff] %v288
  %333 = vst [vmem:[#allocation3 + $0x58] sm:$0xff] %v290
  %334 = vst [vmem:[#allocation3 + $0x60] sm:$0xff] %v181
  %335 = vst [vmem:[#allocation3 + $0x68] sm:$0xff] %v183
  %336 = vst [vmem:[#allocation3 + $0x70] sm:$0xff] %v294
  %337 = vst [vmem:[#allocation3 + $0x78] sm:$0xff] %v296
  %338 = vst [vmem:[#allocation3 + $0x80] sm:$0xff] %v187
  %339 = vst [vmem:[#allocation3 + $0x88] sm:$0xff] %v189
  %340 = vst [vmem:[#allocation3 + $0x90] sm:$0xff] %v300
  %341 = vst [vmem:[#allocation3 + $0x98] sm:$0xff] %v302
  %342 = vst [vmem:[#allocation3 + $0xa0] sm:$0xff] %v193
  %343 = vst [vmem:[#allocation3 + $0xa8] sm:$0xff] %v195
  %344 = vst [vmem:[#allocation3 + $0xb0] sm:$0xff] %v306
  %345 = vst [vmem:[#allocation3 + $0xb8] sm:$0xff] %v308
  %346 = vst [vmem:[#allocation3 + $0xc0] sm:$0xff] %v199
  %347 = vst [vmem:[#allocation3 + $0xc8] sm:$0xff] %v201
  %348 = vst [vmem:[#allocation3 + $0xd0] sm:$0xff] %v312
  %349 = vst [vmem:[#allocation3 + $0xd8] sm:$0xff] %v314
  %350 = vst [vmem:[#allocation3 + $0xe0] sm:$0xff] %v205
  %351 = vst [vmem:[#allocation3 + $0xe8] sm:$0xff] %v207
  %352 = vst [vmem:[#allocation3 + $0xf0] sm:$0xff] %v318
  %353 = vst [vmem:[#allocation3 + $0xf8] sm:$0xff] %v320
  %s354 = smul.u32 0, 4
  %s355 = smul.addr %s354, 8
  %s356 = scalar_lea.vmem [#allocation3], %s355
  %v357 = vld [vmem:[%s356] sm:$0xff]
  %v358 = vld [vmem:[%s356 + $0x8] sm:$0xff]
  %v359 = vld [vmem:[%s356 + $0x10] sm:$0xff]
  %v360 = vld [vmem:[%s356 + $0x18] sm:$0xff]
  %v361 = vld [vmem:[%s3] sm:$0xff]
  %v362 = vld [vmem:[%s3 + $0x8] sm:$0xff]
  %v363 = vld [vmem:[%s3 + $0x10] sm:$0xff]
  %v364 = vld [vmem:[%s3 + $0x18] sm:$0xff]
  %v365 = vld [vmem:[%s3 + $0x20] sm:$0xff]
  %v366 = vld [vmem:[%s3 + $0x28] sm:$0xff]
  %v367 = vld [vmem:[%s3 + $0x30] sm:$0xff]
  %v368 = vld [vmem:[%s3 + $0x38] sm:$0xff]
  %v369 = vld [vmem:[%s3 + $0x40] sm:$0xff]
  %v370 = vld [vmem:[%s3 + $0x48] sm:$0xff]
  %v371 = vld [vmem:[%s3 + $0x50] sm:$0xff]
  %v372 = vld [vmem:[%s3 + $0x58] sm:$0xff]
  %v373 = vld [vmem:[%s3 + $0x60] sm:$0xff]
  %v374 = vld [vmem:[%s3 + $0x68] sm:$0xff]
  %v375 = vld [vmem:[%s3 + $0x70] sm:$0xff]
  %v376 = vld [vmem:[%s3 + $0x78] sm:$0xff]
  %v377 = vld [vmem:[%s3 + $0x80] sm:$0xff]
  %v378 = vld [vmem:[%s3 + $0x88] sm:$0xff]
  %v379 = vld [vmem:[%s3 + $0x90] sm:$0xff]
  %v380 = vld [vmem:[%s3 + $0x98] sm:$0xff]
  %v381 = vld [vmem:[%s3 + $0xa0] sm:$0xff]
  %v382 = vld [vmem:[%s3 + $0xa8] sm:$0xff]
  %v383 = vld [vmem:[%s3 + $0xb0] sm:$0xff]
  %v384 = vld [vmem:[%s3 + $0xb8] sm:$0xff]
  %v385 = vld [vmem:[%s3 + $0xc0] sm:$0xff]
  %v386 = vld [vmem:[%s3 + $0xc8] sm:$0xff]
  %v387 = vld [vmem:[%s3 + $0xd0] sm:$0xff]
  %v388 = vld [vmem:[%s3 + $0xd8] sm:$0xff]
  %v389 = vld [vmem:[%s3 + $0xe0] sm:$0xff]
  %v390 = vld [vmem:[%s3 + $0xe8] sm:$0xff]
  %v391 = vld [vmem:[%s3 + $0xf0] sm:$0xff]
  %v392 = vld [vmem:[%s3 + $0xf8] sm:$0xff]
  %v393 = vld [vmem:[%s3 + $0x100] sm:$0xff]
  %v394 = vld [vmem:[%s3 + $0x108] sm:$0xff]
  %v395 = vld [vmem:[%s3 + $0x110] sm:$0xff]
  %v396 = vld [vmem:[%s3 + $0x118] sm:$0xff]
  %v397 = vld [vmem:[%s3 + $0x120] sm:$0xff]
  %v398 = vld [vmem:[%s3 + $0x128] sm:$0xff]
  %v399 = vld [vmem:[%s3 + $0x130] sm:$0xff]
  %v400 = vld [vmem:[%s3 + $0x138] sm:$0xff]
  %v401 = vld [vmem:[%s3 + $0x140] sm:$0xff]
  %v402 = vld [vmem:[%s3 + $0x148] sm:$0xff]
  %v403 = vld [vmem:[%s3 + $0x150] sm:$0xff]
  %v404 = vld [vmem:[%s3 + $0x158] sm:$0xff]
  %v405 = vld [vmem:[%s3 + $0x160] sm:$0xff]
  %v406 = vld [vmem:[%s3 + $0x168] sm:$0xff]
  %v407 = vld [vmem:[%s3 + $0x170] sm:$0xff]
  %v408 = vld [vmem:[%s3 + $0x178] sm:$0xff]
  %v409 = vld [vmem:[%s3 + $0x180] sm:$0xff]
  %v410 = vld [vmem:[%s3 + $0x188] sm:$0xff]
  %v411 = vld [vmem:[%s3 + $0x190] sm:$0xff]
  %v412 = vld [vmem:[%s3 + $0x198] sm:$0xff]
  %v413 = vld [vmem:[%s3 + $0x1a0] sm:$0xff]
  %v414 = vld [vmem:[%s3 + $0x1a8] sm:$0xff]
  %v415 = vld [vmem:[%s3 + $0x1b0] sm:$0xff]
  %v416 = vld [vmem:[%s3 + $0x1b8] sm:$0xff]
  %v417 = vld [vmem:[%s3 + $0x1c0] sm:$0xff]
  %v418 = vld [vmem:[%s3 + $0x1c8] sm:$0xff]
  %v419 = vld [vmem:[%s3 + $0x1d0] sm:$0xff]
  %v420 = vld [vmem:[%s3 + $0x1d8] sm:$0xff]
  %v421 = vld [vmem:[%s3 + $0x1e0] sm:$0xff]
  %v422 = vld [vmem:[%s3 + $0x1e8] sm:$0xff]
  %v423 = vld [vmem:[%s3 + $0x1f0] sm:$0xff]
  %v424 = vld [vmem:[%s3 + $0x1f8] sm:$0xff]
  %425 = vmatprep.subr.mxu0 %v422
  %426 = vmatpush1.msra.mxu0 %v421
  %427 = vmatprep.subr.mxu0 %v418
  %428 = vmatpush1.msra.mxu0 %v417
  %429 = vmatprep.subr.mxu0 %v414
  %430 = vmatpush1.msra.mxu0 %v413
  %431 = vmatprep.subr.mxu0 %v410
  %432 = vmatpush1.msra.mxu0 %v409
  %433 = vmatprep.subr.mxu0 %v406
  %434 = vmatpush1.msra.mxu0 %v405
  %435 = vmatprep.subr.mxu0 %v402
  %436 = vmatpush1.msra.mxu0 %v401
  %437 = vmatprep.subr.mxu0 %v398
  %438 = vmatpush1.msra.mxu0 %v397
  %439 = vmatprep.subr.mxu0 %v394
  %440 = vmatpush1.msra.mxu0 %v393
  %441 = vmatprep.subr.mxu0 %v390
  %442 = vmatpush1.msra.mxu0 %v389
  %443 = vmatprep.subr.mxu0 %v386
  %444 = vmatpush1.msra.mxu0 %v385
  %445 = vmatprep.subr.mxu0 %v382
  %446 = vmatpush1.msra.mxu0 %v381
  %447 = vmatprep.subr.mxu0 %v378
  %448 = vmatpush1.msra.mxu0 %v377
  %449 = vmatprep.subr.mxu0 %v374
  %450 = vmatpush1.msra.mxu0 %v373
  %451 = vmatprep.subr.mxu0 %v370
  %452 = vmatpush1.msra.mxu0 %v369
  %453 = vmatprep.subr.mxu0 %v366
  %454 = vmatpush1.msra.mxu0 %v365
  %455 = vmatprep.subr.mxu0 %v362
  %456 = vmatpush1.msra.mxu0 %v361
  %457 = vmatprep.subr.mxu0 0.0
  %458 = vmatpush2.msra.mxu0 0.0
  %459 = vmatprep.subr.mxu0 0.0
  %460 = vmatpush2.msra.mxu0 0.0
  %461 = vmatprep.subr.mxu0 0.0
  %462 = vmatpush2.msra.mxu0 0.0
  %463 = vmatprep.subr.mxu0 0.0
  %464 = vmatpush2.msra.mxu0 0.0
  %465 = vmatprep.subr.mxu0 0.0
  %466 = vmatpush2.msra.mxu0 0.0
  %467 = vmatprep.subr.mxu0 0.0
  %468 = vmatpush2.msra.mxu0 0.0
  %469 = vmatprep.subr.mxu0 0.0
  %470 = vmatpush2.msra.mxu0 0.0
  %471 = vmatprep.subr.mxu0 0.0
  %472 = vmatpush2.msra.mxu0 0.0
  %473 = vmatprep.subr.mxu0 0.0
  %474 = vmatpush2.msra.mxu0 0.0
  %475 = vmatprep.subr.mxu0 0.0
  %476 = vmatpush2.msra.mxu0 0.0
  %477 = vmatprep.subr.mxu0 0.0
  %478 = vmatpush2.msra.mxu0 0.0
  %479 = vmatprep.subr.mxu0 0.0
  %480 = vmatpush2.msra.mxu0 0.0
  %481 = vmatprep.subr.mxu0 0.0
  %482 = vmatpush2.msra.mxu0 0.0
  %483 = vmatprep.subr.mxu0 0.0
  %484 = vmatpush2.msra.mxu0 0.0
  %485 = vmatprep.subr.mxu0 0.0
  %486 = vmatpush2.msra.mxu0 0.0
  %487 = vmatprep.subr.mxu0 0.0
  %488 = vmatpush2.msra.mxu0 0.0
  %489 = vmatprep.mubr.f32.mxu0 0.0
  %490 = vmatmul.mubr.f32.gmra.mxu0 0.0
  %v491 = vpop.f32.mrf.mxu0
  %v492 = vadd.f32 0.0, %v491
  %v493 = vpop.f32.mrf.mxu0
  %v494 = vadd.f32 0.0, %v493
  %495 = vdwg.mxu0
  %496 = vmatprep.subr.mxu0 %v424
  %497 = vmatpush1.msra.mxu0 %v423
  %498 = vmatprep.subr.mxu0 %v420
  %499 = vmatpush1.msra.mxu0 %v419
  %500 = vmatprep.subr.mxu0 %v416
  %501 = vmatpush1.msra.mxu0 %v415
  %502 = vmatprep.subr.mxu0 %v412
  %503 = vmatpush1.msra.mxu0 %v411
  %504 = vmatprep.subr.mxu0 %v408
  %505 = vmatpush1.msra.mxu0 %v407
  %506 = vmatprep.subr.mxu0 %v404
  %507 = vmatpush1.msra.mxu0 %v403
  %508 = vmatprep.subr.mxu0 %v400
  %509 = vmatpush1.msra.mxu0 %v399
  %510 = vmatprep.subr.mxu0 %v396
  %511 = vmatpush1.msra.mxu0 %v395
  %512 = vmatprep.subr.mxu0 %v392
  %513 = vmatpush1.msra.mxu0 %v391
  %514 = vmatprep.subr.mxu0 %v388
  %515 = vmatpush1.msra.mxu0 %v387
  %516 = vmatprep.subr.mxu0 %v384
  %517 = vmatpush1.msra.mxu0 %v383
  %518 = vmatprep.subr.mxu0 %v380
  %519 = vmatpush1.msra.mxu0 %v379
  %520 = vmatprep.subr.mxu0 %v376
  %521 = vmatpush1.msra.mxu0 %v375
  %522 = vmatprep.subr.mxu0 %v372
  %523 = vmatpush1.msra.mxu0 %v371
  %524 = vmatprep.subr.mxu0 %v368
  %525 = vmatpush1.msra.mxu0 %v367
  %526 = vmatprep.subr.mxu0 %v364
  %527 = vmatpush1.msra.mxu0 %v363
  %528 = vmatprep.subr.mxu0 0.0
  %529 = vmatpush2.msra.mxu0 0.0
  %530 = vmatprep.subr.mxu0 0.0
  %531 = vmatpush2.msra.mxu0 0.0
  %532 = vmatprep.subr.mxu0 0.0
  %533 = vmatpush2.msra.mxu0 0.0
  %534 = vmatprep.subr.mxu0 0.0
  %535 = vmatpush2.msra.mxu0 0.0
  %536 = vmatprep.subr.mxu0 0.0
  %537 = vmatpush2.msra.mxu0 0.0
  %538 = vmatprep.subr.mxu0 0.0
  %539 = vmatpush2.msra.mxu0 0.0
  %540 = vmatprep.subr.mxu0 0.0
  %541 = vmatpush2.msra.mxu0 0.0
  %542 = vmatprep.subr.mxu0 0.0
  %543 = vmatpush2.msra.mxu0 0.0
  %544 = vmatprep.subr.mxu0 0.0
  %545 = vmatpush2.msra.mxu0 0.0
  %546 = vmatprep.subr.mxu0 0.0
  %547 = vmatpush2.msra.mxu0 0.0
  %548 = vmatprep.subr.mxu0 0.0
  %549 = vmatpush2.msra.mxu0 0.0
  %550 = vmatprep.subr.mxu0 0.0
  %551 = vmatpush2.msra.mxu0 0.0
  %552 = vmatprep.subr.mxu0 0.0
  %553 = vmatpush2.msra.mxu0 0.0
  %554 = vmatprep.subr.mxu0 0.0
  %555 = vmatpush2.msra.mxu0 0.0
  %556 = vmatprep.subr.mxu0 0.0
  %557 = vmatpush2.msra.mxu0 0.0
  %558 = vmatprep.subr.mxu0 0.0
  %559 = vmatpush2.msra.mxu0 0.0
  %560 = vmatprep.mubr.f32.mxu0 0.0
  %561 = vmatmul.mubr.f32.gmra.mxu0 0.0
  %v562 = vpop.f32.mrf.mxu0
  %v563 = vadd.f32 0.0, %v562
  %v564 = vpop.f32.mrf.mxu0
  %v565 = vadd.f32 0.0, %v564
  %566 = vdwg.mxu0
  %v567 = vadd.f32 %v357, %v492
  %v568 = vadd.f32 %v358, %v494
  %v569 = vadd.f32 %v359, %v563
  %v570 = vadd.f32 %v360, %v565
  %v571 = vxor.u32 %v567, 2147483648
  %v572 = vmul.f32 %v571, 1.442695
  %v573 = vpow.pop %v572
  %v574 = vadd.f32 %v573, 1.0
  %v575 = vrcp.pop %v574
  %v576 = vmul.f32 1.0, %v575
  %v577 = vxor.u32 %v568, 2147483648
  %v578 = vmul.f32 %v577, 1.442695
  %v579 = vpow.pop %v578
  %v580 = vadd.f32 %v579, 1.0
  %v581 = vrcp.pop %v580
  %v582 = vmul.f32 1.0, %v581
  %v583 = vtanh.pop %v569
  %v584 = vxor.u32 %v570, 2147483648
  %v585 = vmul.f32 %v584, 1.442695
  %v586 = vpow.pop %v585
  %v587 = vadd.f32 %v586, 1.0
  %v588 = vrcp.pop %v587
  %v589 = vmul.f32 1.0, %v588
  %v590 = vmul.f32 %v582, 0.0
  %v591 = vmul.f32 %v576, %v583
  %v592 = vadd.f32 %v590, %v591
  %v593 = vtanh.pop %v592
  %v594 = vmul.f32 %v589, %v593
  %595 = vst [vmem:[#allocation2] sm:$0xff] %v594
  %s596 = smul.u32 1, 4
  %s597 = smul.addr %s596, 8
  %s598 = scalar_lea.vmem [#allocation3], %s597
  %v599 = vld [vmem:[%s598] sm:$0xff]
  %v600 = vld [vmem:[%s598 + $0x8] sm:$0xff]
  %v601 = vld [vmem:[%s598 + $0x10] sm:$0xff]
  %v602 = vld [vmem:[%s598 + $0x18] sm:$0xff]
  %v603 = vld [vmem:[%s3] sm:$0xff]
  %v604 = vld [vmem:[%s3 + $0x8] sm:$0xff]
  %v605 = vld [vmem:[%s3 + $0x10] sm:$0xff]
  %v606 = vld [vmem:[%s3 + $0x18] sm:$0xff]
  %v607 = vld [vmem:[%s3 + $0x20] sm:$0xff]
  %v608 = vld [vmem:[%s3 + $0x28] sm:$0xff]
  %v609 = vld [vmem:[%s3 + $0x30] sm:$0xff]
  %v610 = vld [vmem:[%s3 + $0x38] sm:$0xff]
  %v611 = vld [vmem:[%s3 + $0x40] sm:$0xff]
  %v612 = vld [vmem:[%s3 + $0x48] sm:$0xff]
  %v613 = vld [vmem:[%s3 + $0x50] sm:$0xff]
  %v614 = vld [vmem:[%s3 + $0x58] sm:$0xff]
  %v615 = vld [vmem:[%s3 + $0x60] sm:$0xff]
  %v616 = vld [vmem:[%s3 + $0x68] sm:$0xff]
  %v617 = vld [vmem:[%s3 + $0x70] sm:$0xff]
  %v618 = vld [vmem:[%s3 + $0x78] sm:$0xff]
  %v619 = vld [vmem:[%s3 + $0x80] sm:$0xff]
  %v620 = vld [vmem:[%s3 + $0x88] sm:$0xff]
  %v621 = vld [vmem:[%s3 + $0x90] sm:$0xff]
  %v622 = vld [vmem:[%s3 + $0x98] sm:$0xff]
  %v623 = vld [vmem:[%s3 + $0xa0] sm:$0xff]
  %v624 = vld [vmem:[%s3 + $0xa8] sm:$0xff]
  %v625 = vld [vmem:[%s3 + $0xb0] sm:$0xff]
  %v626 = vld [vmem:[%s3 + $0xb8] sm:$0xff]
  %v627 = vld [vmem:[%s3 + $0xc0] sm:$0xff]
  %v628 = vld [vmem:[%s3 + $0xc8] sm:$0xff]
  %v629 = vld [vmem:[%s3 + $0xd0] sm:$0xff]
  %v630 = vld [vmem:[%s3 + $0xd8] sm:$0xff]
  %v631 = vld [vmem:[%s3 + $0xe0] sm:$0xff]
  %v632 = vld [vmem:[%s3 + $0xe8] sm:$0xff]
  %v633 = vld [vmem:[%s3 + $0xf0] sm:$0xff]
  %v634 = vld [vmem:[%s3 + $0xf8] sm:$0xff]
  %v635 = vld [vmem:[%s3 + $0x100] sm:$0xff]
  %v636 = vld [vmem:[%s3 + $0x108] sm:$0xff]
  %v637 = vld [vmem:[%s3 + $0x110] sm:$0xff]
  %v638 = vld [vmem:[%s3 + $0x118] sm:$0xff]
  %v639 = vld [vmem:[%s3 + $0x120] sm:$0xff]
  %v640 = vld [vmem:[%s3 + $0x128] sm:$0xff]
  %v641 = vld [vmem:[%s3 + $0x130] sm:$0xff]
  %v642 = vld [vmem:[%s3 + $0x138] sm:$0xff]
  %v643 = vld [vmem:[%s3 + $0x140] sm:$0xff]
  %v644 = vld [vmem:[%s3 + $0x148] sm:$0xff]
  %v645 = vld [vmem:[%s3 + $0x150] sm:$0xff]
  %v646 = vld [vmem:[%s3 + $0x158] sm:$0xff]
  %v647 = vld [vmem:[%s3 + $0x160] sm:$0xff]
  %v648 = vld [vmem:[%s3 + $0x168] sm:$0xff]
  %v649 = vld [vmem:[%s3 + $0x170] sm:$0xff]
  %v650 = vld [vmem:[%s3 + $0x178] sm:$0xff]
  %v651 = vld [vmem:[%s3 + $0x180] sm:$0xff]
  %v652 = vld [vmem:[%s3 + $0x188] sm:$0xff]
  %v653 = vld [vmem:[%s3 + $0x190] sm:$0xff]
  %v654 = vld [vmem:[%s3 + $0x198] sm:$0xff]
  %v655 = vld [vmem:[%s3 + $0x1a0] sm:$0xff]
  %v656 = vld [vmem:[%s3 + $0x1a8] sm:$0xff]
  %v657 = vld [vmem:[%s3 + $0x1b0] sm:$0xff]
  %v658 = vld [vmem:[%s3 + $0x1b8] sm:$0xff]
  %v659 = vld [vmem:[%s3 + $0x1c0] sm:$0xff]
  %v660 = vld [vmem:[%s3 + $0x1c8] sm:$0xff]
  %v661 = vld [vmem:[%s3 + $0x1d0] sm:$0xff]
  %v662 = vld [vmem:[%s3 + $0x1d8] sm:$0xff]
  %v663 = vld [vmem:[%s3 + $0x1e0] sm:$0xff]
  %v664 = vld [vmem:[%s3 + $0x1e8] sm:$0xff]
  %v665 = vld [vmem:[%s3 + $0x1f0] sm:$0xff]
  %v666 = vld [vmem:[%s3 + $0x1f8] sm:$0xff]
  %667 = vmatprep.subr.mxu0 %v664
  %668 = vmatpush1.msra.mxu0 %v663
  %669 = vmatprep.subr.mxu0 %v660
  %670 = vmatpush1.msra.mxu0 %v659
  %671 = vmatprep.subr.mxu0 %v656
  %672 = vmatpush1.msra.mxu0 %v655
  %673 = vmatprep.subr.mxu0 %v652
  %674 = vmatpush1.msra.mxu0 %v651
  %675 = vmatprep.subr.mxu0 %v648
  %676 = vmatpush1.msra.mxu0 %v647
  %677 = vmatprep.subr.mxu0 %v644
  %678 = vmatpush1.msra.mxu0 %v643
  %679 = vmatprep.subr.mxu0 %v640
  %680 = vmatpush1.msra.mxu0 %v639
  %681 = vmatprep.subr.mxu0 %v636
  %682 = vmatpush1.msra.mxu0 %v635
  %683 = vmatprep.subr.mxu0 %v632
  %684 = vmatpush1.msra.mxu0 %v631
  %685 = vmatprep.subr.mxu0 %v628
  %686 = vmatpush1.msra.mxu0 %v627
  %687 = vmatprep.subr.mxu0 %v624
  %688 = vmatpush1.msra.mxu0 %v623
  %689 = vmatprep.subr.mxu0 %v620
  %690 = vmatpush1.msra.mxu0 %v619
  %691 = vmatprep.subr.mxu0 %v616
  %692 = vmatpush1.msra.mxu0 %v615
  %693 = vmatprep.subr.mxu0 %v612
  %694 = vmatpush1.msra.mxu0 %v611
  %695 = vmatprep.subr.mxu0 %v608
  %696 = vmatpush1.msra.mxu0 %v607
  %697 = vmatprep.subr.mxu0 %v604
  %698 = vmatpush1.msra.mxu0 %v603
  %699 = vmatprep.subr.mxu0 0.0
  %700 = vmatpush2.msra.mxu0 0.0
  %701 = vmatprep.subr.mxu0 0.0
  %702 = vmatpush2.msra.mxu0 0.0
  %703 = vmatprep.subr.mxu0 0.0
  %704 = vmatpush2.msra.mxu0 0.0
  %705 = vmatprep.subr.mxu0 0.0
  %706 = vmatpush2.msra.mxu0 0.0
  %707 = vmatprep.subr.mxu0 0.0
  %708 = vmatpush2.msra.mxu0 0.0
  %709 = vmatprep.subr.mxu0 0.0
  %710 = vmatpush2.msra.mxu0 0.0
  %711 = vmatprep.subr.mxu0 0.0
  %712 = vmatpush2.msra.mxu0 0.0
  %713 = vmatprep.subr.mxu0 0.0
  %714 = vmatpush2.msra.mxu0 0.0
  %715 = vmatprep.subr.mxu0 0.0
  %716 = vmatpush2.msra.mxu0 0.0
  %717 = vmatprep.subr.mxu0 0.0
  %718 = vmatpush2.msra.mxu0 0.0
  %719 = vmatprep.subr.mxu0 0.0
  %720 = vmatpush2.msra.mxu0 0.0
  %721 = vmatprep.subr.mxu0 0.0
  %722 = vmatpush2.msra.mxu0 0.0
  %723 = vmatprep.subr.mxu0 0.0
  %724 = vmatpush2.msra.mxu0 0.0
  %725 = vmatprep.subr.mxu0 0.0
  %726 = vmatpush2.msra.mxu0 0.0
  %727 = vmatprep.subr.mxu0 0.0
  %728 = vmatpush2.msra.mxu0 0.0
  %729 = vmatprep.subr.mxu0 0.0
  %730 = vmatpush2.msra.mxu0 0.0
  %731 = vmatprep.mubr.f32.mxu0 0.0
  %732 = vmatmul.mubr.f32.gmra.mxu0 %v594
  %v733 = vpop.f32.mrf.mxu0
  %v734 = vadd.f32 0.0, %v733
  %v735 = vpop.f32.mrf.mxu0
  %v736 = vadd.f32 0.0, %v735
  %737 = vdwg.mxu0
  %738 = vmatprep.subr.mxu0 %v666
  %739 = vmatpush1.msra.mxu0 %v665
  %740 = vmatprep.subr.mxu0 %v662
  %741 = vmatpush1.msra.mxu0 %v661
  %742 = vmatprep.subr.mxu0 %v658
  %743 = vmatpush1.msra.mxu0 %v657
  %744 = vmatprep.subr.mxu0 %v654
  %745 = vmatpush1.msra.mxu0 %v653
  %746 = vmatprep.subr.mxu0 %v650
  %747 = vmatpush1.msra.mxu0 %v649
  %748 = vmatprep.subr.mxu0 %v646
  %749 = vmatpush1.msra.mxu0 %v645
  %750 = vmatprep.subr.mxu0 %v642
  %751 = vmatpush1.msra.mxu0 %v641
  %752 = vmatprep.subr.mxu0 %v638
  %753 = vmatpush1.msra.mxu0 %v637
  %754 = vmatprep.subr.mxu0 %v634
  %755 = vmatpush1.msra.mxu0 %v633
  %756 = vmatprep.subr.mxu0 %v630
  %757 = vmatpush1.msra.mxu0 %v629
  %758 = vmatprep.subr.mxu0 %v626
  %759 = vmatpush1.msra.mxu0 %v625
  %760 = vmatprep.subr.mxu0 %v622
  %761 = vmatpush1.msra.mxu0 %v621
  %762 = vmatprep.subr.mxu0 %v618
  %763 = vmatpush1.msra.mxu0 %v617
  %764 = vmatprep.subr.mxu0 %v614
  %765 = vmatpush1.msra.mxu0 %v613
  %766 = vmatprep.subr.mxu0 %v610
  %767 = vmatpush1.msra.mxu0 %v609
  %768 = vmatprep.subr.mxu0 %v606
  %769 = vmatpush1.msra.mxu0 %v605
  %770 = vmatprep.subr.mxu0 0.0
  %771 = vmatpush2.msra.mxu0 0.0
  %772 = vmatprep.subr.mxu0 0.0
  %773 = vmatpush2.msra.mxu0 0.0
  %774 = vmatprep.subr.mxu0 0.0
  %775 = vmatpush2.msra.mxu0 0.0
  %776 = vmatprep.subr.mxu0 0.0
  %777 = vmatpush2.msra.mxu0 0.0
  %778 = vmatprep.subr.mxu0 0.0
  %779 = vmatpush2.msra.mxu0 0.0
  %780 = vmatprep.subr.mxu0 0.0
  %781 = vmatpush2.msra.mxu0 0.0
  %782 = vmatprep.subr.mxu0 0.0
  %783 = vmatpush2.msra.mxu0 0.0
  %784 = vmatprep.subr.mxu0 0.0
  %785 = vmatpush2.msra.mxu0 0.0
  %786 = vmatprep.subr.mxu0 0.0
  %787 = vmatpush2.msra.mxu0 0.0
  %788 = vmatprep.subr.mxu0 0.0
  %789 = vmatpush2.msra.mxu0 0.0
  %790 = vmatprep.subr.mxu0 0.0
  %791 = vmatpush2.msra.mxu0 0.0
  %792 = vmatprep.subr.mxu0 0.0
  %793 = vmatpush2.msra.mxu0 0.0
  %794 = vmatprep.subr.mxu0 0.0
  %795 = vmatpush2.msra.mxu0 0.0
  %796 = vmatprep.subr.mxu0 0.0
  %797 = vmatpush2.msra.mxu0 0.0
  %798 = vmatprep.subr.mxu0 0.0
  %799 = vmatpush2.msra.mxu0 0.0
  %800 = vmatprep.subr.mxu0 0.0
  %801 = vmatpush2.msra.mxu0 0.0
  %802 = vmatprep.mubr.f32.mxu0 0.0
  %803 = vmatmul.mubr.f32.gmra.mxu0 %v594
  %v804 = vpop.f32.mrf.mxu0
  %v805 = vadd.f32 0.0, %v804
  %v806 = vpop.f32.mrf.mxu0
  %v807 = vadd.f32 0.0, %v806
  %808 = vdwg.mxu0
  %v809 = vadd.f32 %v599, %v734
  %v810 = vadd.f32 %v600, %v736
  %v811 = vadd.f32 %v601, %v805
  %v812 = vadd.f32 %v602, %v807
  %v813 = vxor.u32 %v809, 2147483648
  %v814 = vmul.f32 %v813, 1.442695
  %v815 = vpow.pop %v814
  %v816 = vadd.f32 %v815, 1.0
  %v817 = vrcp.pop %v816
  %v818 = vmul.f32 1.0, %v817
  %v819 = vxor.u32 %v810, 2147483648
  %v820 = vmul.f32 %v819, 1.442695
  %v821 = vpow.pop %v820
  %v822 = vadd.f32 %v821, 1.0
  %v823 = vrcp.pop %v822
  %v824 = vmul.f32 1.0, %v823
  %v825 = vtanh.pop %v811
  %v826 = vxor.u32 %v812, 2147483648
  %v827 = vmul.f32 %v826, 1.442695
  %v828 = vpow.pop %v827
  %v829 = vadd.f32 %v828, 1.0
  %v830 = vrcp.pop %v829
  %v831 = vmul.f32 1.0, %v830
  %v832 = vmul.f32 %v824, %v592
  %v833 = vmul.f32 %v818, %v825
  %v834 = vadd.f32 %v832, %v833
  %v835 = vtanh.pop %v834
  %v836 = vmul.f32 %v831, %v835
  %s837 = scalar_lea.vmem [#allocation2], 8
  %838 = vst [vmem:[%s837] sm:$0xff] %v836
  %s839 = smul.u32 2, 4
  %s840 = smul.addr %s839, 8
  %s841 = scalar_lea.vmem [#allocation3], %s840
  %v842 = vld [vmem:[%s841] sm:$0xff]
  %v843 = vld [vmem:[%s841 + $0x8] sm:$0xff]
  %v844 = vld [vmem:[%s841 + $0x10] sm:$0xff]
  %v845 = vld [vmem:[%s841 + $0x18] sm:$0xff]
  %v846 = vld [vmem:[%s3] sm:$0xff]
  %v847 = vld [vmem:[%s3 + $0x8] sm:$0xff]
  %v848 = vld [vmem:[%s3 + $0x10] sm:$0xff]
  %v849 = vld [vmem:[%s3 + $0x18] sm:$0xff]
  %v850 = vld [vmem:[%s3 + $0x20] sm:$0xff]
  %v851 = vld [vmem:[%s3 + $0x28] sm:$0xff]
  %v852 = vld [vmem:[%s3 + $0x30] sm:$0xff]
  %v853 = vld [vmem:[%s3 + $0x38] sm:$0xff]
  %v854 = vld [vmem:[%s3 + $0x40] sm:$0xff]
  %v855 = vld [vmem:[%s3 + $0x48] sm:$0xff]
  %v856 = vld [vmem:[%s3 + $0x50] sm:$0xff]
  %v857 = vld [vmem:[%s3 + $0x58] sm:$0xff]
  %v858 = vld [vmem:[%s3 + $0x60] sm:$0xff]
  %v859 = vld [vmem:[%s3 + $0x68] sm:$0xff]
  %v860 = vld [vmem:[%s3 + $0x70] sm:$0xff]
  %v861 = vld [vmem:[%s3 + $0x78] sm:$0xff]
  %v862 = vld [vmem:[%s3 + $0x80] sm:$0xff]
  %v863 = vld [vmem:[%s3 + $0x88] sm:$0xff]
  %v864 = vld [vmem:[%s3 + $0x90] sm:$0xff]
  %v865 = vld [vmem:[%s3 + $0x98] sm:$0xff]
  %v866 = vld [vmem:[%s3 + $0xa0] sm:$0xff]
  %v867 = vld [vmem:[%s3 + $0xa8] sm:$0xff]
  %v868 = vld [vmem:[%s3 + $0xb0] sm:$0xff]
  %v869 = vld [vmem:[%s3 + $0xb8] sm:$0xff]
  %v870 = vld [vmem:[%s3 + $0xc0] sm:$0xff]
  %v871 = vld [vmem:[%s3 + $0xc8] sm:$0xff]
  %v872 = vld [vmem:[%s3 + $0xd0] sm:$0xff]
  %v873 = vld [vmem:[%s3 + $0xd8] sm:$0xff]
  %v874 = vld [vmem:[%s3 + $0xe0] sm:$0xff]
  %v875 = vld [vmem:[%s3 + $0xe8] sm:$0xff]
  %v876 = vld [vmem:[%s3 + $0xf0] sm:$0xff]
  %v877 = vld [vmem:[%s3 + $0xf8] sm:$0xff]
  %v878 = vld [vmem:[%s3 + $0x100] sm:$0xff]
  %v879 = vld [vmem:[%s3 + $0x108] sm:$0xff]
  %v880 = vld [vmem:[%s3 + $0x110] sm:$0xff]
  %v881 = vld [vmem:[%s3 + $0x118] sm:$0xff]
  %v882 = vld [vmem:[%s3 + $0x120] sm:$0xff]
  %v883 = vld [vmem:[%s3 + $0x128] sm:$0xff]
  %v884 = vld [vmem:[%s3 + $0x130] sm:$0xff]
  %v885 = vld [vmem:[%s3 + $0x138] sm:$0xff]
  %v886 = vld [vmem:[%s3 + $0x140] sm:$0xff]
  %v887 = vld [vmem:[%s3 + $0x148] sm:$0xff]
  %v888 = vld [vmem:[%s3 + $0x150] sm:$0xff]
  %v889 = vld [vmem:[%s3 + $0x158] sm:$0xff]
  %v890 = vld [vmem:[%s3 + $0x160] sm:$0xff]
  %v891 = vld [vmem:[%s3 + $0x168] sm:$0xff]
  %v892 = vld [vmem:[%s3 + $0x170] sm:$0xff]
  %v893 = vld [vmem:[%s3 + $0x178] sm:$0xff]
  %v894 = vld [vmem:[%s3 + $0x180] sm:$0xff]
  %v895 = vld [vmem:[%s3 + $0x188] sm:$0xff]
  %v896 = vld [vmem:[%s3 + $0x190] sm:$0xff]
  %v897 = vld [vmem:[%s3 + $0x198] sm:$0xff]
  %v898 = vld [vmem:[%s3 + $0x1a0] sm:$0xff]
  %v899 = vld [vmem:[%s3 + $0x1a8] sm:$0xff]
  %v900 = vld [vmem:[%s3 + $0x1b0] sm:$0xff]
  %v901 = vld [vmem:[%s3 + $0x1b8] sm:$0xff]
  %v902 = vld [vmem:[%s3 + $0x1c0] sm:$0xff]
  %v903 = vld [vmem:[%s3 + $0x1c8] sm:$0xff]
  %v904 = vld [vmem:[%s3 + $0x1d0] sm:$0xff]
  %v905 = vld [vmem:[%s3 + $0x1d8] sm:$0xff]
  %v906 = vld [vmem:[%s3 + $0x1e0] sm:$0xff]
  %v907 = vld [vmem:[%s3 + $0x1e8] sm:$0xff]
  %v908 = vld [vmem:[%s3 + $0x1f0] sm:$0xff]
  %v909 = vld [vmem:[%s3 + $0x1f8] sm:$0xff]
  %910 = vmatprep.subr.mxu0 %v907
  %911 = vmatpush1.msra.mxu0 %v906
  %912 = vmatprep.subr.mxu0 %v903
  %913 = vmatpush1.msra.mxu0 %v902
  %914 = vmatprep.subr.mxu0 %v899
  %915 = vmatpush1.msra.mxu0 %v898
  %916 = vmatprep.subr.mxu0 %v895
  %917 = vmatpush1.msra.mxu0 %v894
  %918 = vmatprep.subr.mxu0 %v891
  %919 = vmatpush1.msra.mxu0 %v890
  %920 = vmatprep.subr.mxu0 %v887
  %921 = vmatpush1.msra.mxu0 %v886
  %922 = vmatprep.subr.mxu0 %v883
  %923 = vmatpush1.msra.mxu0 %v882
  %924 = vmatprep.subr.mxu0 %v879
  %925 = vmatpush1.msra.mxu0 %v878
  %926 = vmatprep.subr.mxu0 %v875
  %927 = vmatpush1.msra.mxu0 %v874
  %928 = vmatprep.subr.mxu0 %v871
  %929 = vmatpush1.msra.mxu0 %v870
  %930 = vmatprep.subr.mxu0 %v867
  %931 = vmatpush1.msra.mxu0 %v866
  %932 = vmatprep.subr.mxu0 %v863
  %933 = vmatpush1.msra.mxu0 %v862
  %934 = vmatprep.subr.mxu0 %v859
  %935 = vmatpush1.msra.mxu0 %v858
  %936 = vmatprep.subr.mxu0 %v855
  %937 = vmatpush1.msra.mxu0 %v854
  %938 = vmatprep.subr.mxu0 %v851
  %939 = vmatpush1.msra.mxu0 %v850
  %940 = vmatprep.subr.mxu0 %v847
  %941 = vmatpush1.msra.mxu0 %v846
  %942 = vmatprep.subr.mxu0 0.0
  %943 = vmatpush2.msra.mxu0 0.0
  %944 = vmatprep.subr.mxu0 0.0
  %945 = vmatpush2.msra.mxu0 0.0
  %946 = vmatprep.subr.mxu0 0.0
  %947 = vmatpush2.msra.mxu0 0.0
  %948 = vmatprep.subr.mxu0 0.0
  %949 = vmatpush2.msra.mxu0 0.0
  %950 = vmatprep.subr.mxu0 0.0
  %951 = vmatpush2.msra.mxu0 0.0
  %952 = vmatprep.subr.mxu0 0.0
  %953 = vmatpush2.msra.mxu0 0.0
  %954 = vmatprep.subr.mxu0 0.0
  %955 = vmatpush2.msra.mxu0 0.0
  %956 = vmatprep.subr.mxu0 0.0
  %957 = vmatpush2.msra.mxu0 0.0
  %958 = vmatprep.subr.mxu0 0.0
  %959 = vmatpush2.msra.mxu0 0.0
  %960 = vmatprep.subr.mxu0 0.0
  %961 = vmatpush2.msra.mxu0 0.0
  %962 = vmatprep.subr.mxu0 0.0
  %963 = vmatpush2.msra.mxu0 0.0
  %964 = vmatprep.subr.mxu0 0.0
  %965 = vmatpush2.msra.mxu0 0.0
  %966 = vmatprep.subr.mxu0 0.0
  %967 = vmatpush2.msra.mxu0 0.0
  %968 = vmatprep.subr.mxu0 0.0
  %969 = vmatpush2.msra.mxu0 0.0
  %970 = vmatprep.subr.mxu0 0.0
  %971 = vmatpush2.msra.mxu0 0.0
  %972 = vmatprep.subr.mxu0 0.0
  %973 = vmatpush2.msra.mxu0 0.0
  %974 = vmatprep.mubr.f32.mxu0 0.0
  %975 = vmatmul.mubr.f32.gmra.mxu0 %v836
  %v976 = vpop.f32.mrf.mxu0
  %v977 = vadd.f32 0.0, %v976
  %v978 = vpop.f32.mrf.mxu0
  %v979 = vadd.f32 0.0, %v978
  %980 = vdwg.mxu0
  %981 = vmatprep.subr.mxu0 %v909
  %982 = vmatpush1.msra.mxu0 %v908
  %983 = vmatprep.subr.mxu0 %v905
  %984 = vmatpush1.msra.mxu0 %v904
  %985 = vmatprep.subr.mxu0 %v901
  %986 = vmatpush1.msra.mxu0 %v900
  %987 = vmatprep.subr.mxu0 %v897
  %988 = vmatpush1.msra.mxu0 %v896
  %989 = vmatprep.subr.mxu0 %v893
  %990 = vmatpush1.msra.mxu0 %v892
  %991 = vmatprep.subr.mxu0 %v889
  %992 = vmatpush1.msra.mxu0 %v888
  %993 = vmatprep.subr.mxu0 %v885
  %994 = vmatpush1.msra.mxu0 %v884
  %995 = vmatprep.subr.mxu0 %v881
  %996 = vmatpush1.msra.mxu0 %v880
  %997 = vmatprep.subr.mxu0 %v877
  %998 = vmatpush1.msra.mxu0 %v876
  %999 = vmatprep.subr.mxu0 %v873
  %1000 = vmatpush1.msra.mxu0 %v872
  %1001 = vmatprep.subr.mxu0 %v869
  %1002 = vmatpush1.msra.mxu0 %v868
  %1003 = vmatprep.subr.mxu0 %v865
  %1004 = vmatpush1.msra.mxu0 %v864
  %1005 = vmatprep.subr.mxu0 %v861
  %1006 = vmatpush1.msra.mxu0 %v860
  %1007 = vmatprep.subr.mxu0 %v857
  %1008 = vmatpush1.msra.mxu0 %v856
  %1009 = vmatprep.subr.mxu0 %v853
  %1010 = vmatpush1.msra.mxu0 %v852
  %1011 = vmatprep.subr.mxu0 %v849
  %1012 = vmatpush1.msra.mxu0 %v848
  %1013 = vmatprep.subr.mxu0 0.0
  %1014 = vmatpush2.msra.mxu0 0.0
  %1015 = vmatprep.subr.mxu0 0.0
  %1016 = vmatpush2.msra.mxu0 0.0
  %1017 = vmatprep.subr.mxu0 0.0
  %1018 = vmatpush2.msra.mxu0 0.0
  %1019 = vmatprep.subr.mxu0 0.0
  %1020 = vmatpush2.msra.mxu0 0.0
  %1021 = vmatprep.subr.mxu0 0.0
  %1022 = vmatpush2.msra.mxu0 0.0
  %1023 = vmatprep.subr.mxu0 0.0
  %1024 = vmatpush2.msra.mxu0 0.0
  %1025 = vmatprep.subr.mxu0 0.0
  %1026 = vmatpush2.msra.mxu0 0.0
  %1027 = vmatprep.subr.mxu0 0.0
  %1028 = vmatpush2.msra.mxu0 0.0
  %1029 = vmatprep.subr.mxu0 0.0
  %1030 = vmatpush2.msra.mxu0 0.0
  %1031 = vmatprep.subr.mxu0 0.0
  %1032 = vmatpush2.msra.mxu0 0.0
  %1033 = vmatprep.subr.mxu0 0.0
  %1034 = vmatpush2.msra.mxu0 0.0
  %1035 = vmatprep.subr.mxu0 0.0
  %1036 = vmatpush2.msra.mxu0 0.0
  %1037 = vmatprep.subr.mxu0 0.0
  %1038 = vmatpush2.msra.mxu0 0.0
  %1039 = vmatprep.subr.mxu0 0.0
  %1040 = vmatpush2.msra.mxu0 0.0
  %1041 = vmatprep.subr.mxu0 0.0
  %1042 = vmatpush2.msra.mxu0 0.0
  %1043 = vmatprep.subr.mxu0 0.0
  %1044 = vmatpush2.msra.mxu0 0.0
  %1045 = vmatprep.mubr.f32.mxu0 0.0
  %1046 = vmatmul.mubr.f32.gmra.mxu0 %v836
  %v1047 = vpop.f32.mrf.mxu0
  %v1048 = vadd.f32 0.0, %v1047
  %v1049 = vpop.f32.mrf.mxu0
  %v1050 = vadd.f32 0.0, %v1049
  %1051 = vdwg.mxu0
  %v1052 = vadd.f32 %v842, %v977
  %v1053 = vadd.f32 %v843, %v979
  %v1054 = vadd.f32 %v844, %v1048
  %v1055 = vadd.f32 %v845, %v1050
  %v1056 = vxor.u32 %v1052, 2147483648
  %v1057 = vmul.f32 %v1056, 1.442695
  %v1058 = vpow.pop %v1057
  %v1059 = vadd.f32 %v1058, 1.0
  %v1060 = vrcp.pop %v1059
  %v1061 = vmul.f32 1.0, %v1060
  %v1062 = vxor.u32 %v1053, 2147483648
  %v1063 = vmul.f32 %v1062, 1.442695
  %v1064 = vpow.pop %v1063
  %v1065 = vadd.f32 %v1064, 1.0
  %v1066 = vrcp.pop %v1065
  %v1067 = vmul.f32 1.0, %v1066
  %v1068 = vtanh.pop %v1054
  %v1069 = vxor.u32 %v1055, 2147483648
  %v1070 = vmul.f32 %v1069, 1.442695
  %v1071 = vpow.pop %v1070
  %v1072 = vadd.f32 %v1071, 1.0
  %v1073 = vrcp.pop %v1072
  %v1074 = vmul.f32 1.0, %v1073
  %v1075 = vmul.f32 %v1067, %v834
  %v1076 = vmul.f32 %v1061, %v1068
  %v1077 = vadd.f32 %v1075, %v1076
  %v1078 = vtanh.pop %v1077
  %v1079 = vmul.f32 %v1074, %v1078
  %s1080 = scalar_lea.vmem [#allocation2], 16
  %1081 = vst [vmem:[%s1080] sm:$0xff] %v1079
  %s1082 = smul.u32 3, 4
  %s1083 = smul.addr %s1082, 8
  %s1084 = scalar_lea.vmem [#allocation3], %s1083
  %v1085 = vld [vmem:[%s1084] sm:$0xff]
  %v1086 = vld [vmem:[%s1084 + $0x8] sm:$0xff]
  %v1087 = vld [vmem:[%s1084 + $0x10] sm:$0xff]
  %v1088 = vld [vmem:[%s1084 + $0x18] sm:$0xff]
  %v1089 = vld [vmem:[%s3] sm:$0xff]
  %v1090 = vld [vmem:[%s3 + $0x8] sm:$0xff]
  %v1091 = vld [vmem:[%s3 + $0x10] sm:$0xff]
  %v1092 = vld [vmem:[%s3 + $0x18] sm:$0xff]
  %v1093 = vld [vmem:[%s3 + $0x20] sm:$0xff]
  %v1094 = vld [vmem:[%s3 + $0x28] sm:$0xff]
  %v1095 = vld [vmem:[%s3 + $0x30] sm:$0xff]
  %v1096 = vld [vmem:[%s3 + $0x38] sm:$0xff]
  %v1097 = vld [vmem:[%s3 + $0x40] sm:$0xff]
  %v1098 = vld [vmem:[%s3 + $0x48] sm:$0xff]
  %v1099 = vld [vmem:[%s3 + $0x50] sm:$0xff]
  %v1100 = vld [vmem:[%s3 + $0x58] sm:$0xff]
  %v1101 = vld [vmem:[%s3 + $0x60] sm:$0xff]
  %v1102 = vld [vmem:[%s3 + $0x68] sm:$0xff]
  %v1103 = vld [vmem:[%s3 + $0x70] sm:$0xff]
  %v1104 = vld [vmem:[%s3 + $0x78] sm:$0xff]
  %v1105 = vld [vmem:[%s3 + $0x80] sm:$0xff]
  %v1106 = vld [vmem:[%s3 + $0x88] sm:$0xff]
  %v1107 = vld [vmem:[%s3 + $0x90] sm:$0xff]
  %v1108 = vld [vmem:[%s3 + $0x98] sm:$0xff]
  %v1109 = vld [vmem:[%s3 + $0xa0] sm:$0xff]
  %v1110 = vld [vmem:[%s3 + $0xa8] sm:$0xff]
  %v1111 = vld [vmem:[%s3 + $0xb0] sm:$0xff]
  %v1112 = vld [vmem:[%s3 + $0xb8] sm:$0xff]
  %v1113 = vld [vmem:[%s3 + $0xc0] sm:$0xff]
  %v1114 = vld [vmem:[%s3 + $0xc8] sm:$0xff]
  %v1115 = vld [vmem:[%s3 + $0xd0] sm:$0xff]
  %v1116 = vld [vmem:[%s3 + $0xd8] sm:$0xff]
  %v1117 = vld [vmem:[%s3 + $0xe0] sm:$0xff]
  %v1118 = vld [vmem:[%s3 + $0xe8] sm:$0xff]
  %v1119 = vld [vmem:[%s3 + $0xf0] sm:$0xff]
  %v1120 = vld [vmem:[%s3 + $0xf8] sm:$0xff]
  %v1121 = vld [vmem:[%s3 + $0x100] sm:$0xff]
  %v1122 = vld [vmem:[%s3 + $0x108] sm:$0xff]
  %v1123 = vld [vmem:[%s3 + $0x110] sm:$0xff]
  %v1124 = vld [vmem:[%s3 + $0x118] sm:$0xff]
  %v1125 = vld [vmem:[%s3 + $0x120] sm:$0xff]
  %v1126 = vld [vmem:[%s3 + $0x128] sm:$0xff]
  %v1127 = vld [vmem:[%s3 + $0x130] sm:$0xff]
  %v1128 = vld [vmem:[%s3 + $0x138] sm:$0xff]
  %v1129 = vld [vmem:[%s3 + $0x140] sm:$0xff]
  %v1130 = vld [vmem:[%s3 + $0x148] sm:$0xff]
  %v1131 = vld [vmem:[%s3 + $0x150] sm:$0xff]
  %v1132 = vld [vmem:[%s3 + $0x158] sm:$0xff]
  %v1133 = vld [vmem:[%s3 + $0x160] sm:$0xff]
  %v1134 = vld [vmem:[%s3 + $0x168] sm:$0xff]
  %v1135 = vld [vmem:[%s3 + $0x170] sm:$0xff]
  %v1136 = vld [vmem:[%s3 + $0x178] sm:$0xff]
  %v1137 = vld [vmem:[%s3 + $0x180] sm:$0xff]
  %v1138 = vld [vmem:[%s3 + $0x188] sm:$0xff]
  %v1139 = vld [vmem:[%s3 + $0x190] sm:$0xff]
  %v1140 = vld [vmem:[%s3 + $0x198] sm:$0xff]
  %v1141 = vld [vmem:[%s3 + $0x1a0] sm:$0xff]
  %v1142 = vld [vmem:[%s3 + $0x1a8] sm:$0xff]
  %v1143 = vld [vmem:[%s3 + $0x1b0] sm:$0xff]
  %v1144 = vld [vmem:[%s3 + $0x1b8] sm:$0xff]
  %v1145 = vld [vmem:[%s3 + $0x1c0] sm:$0xff]
  %v1146 = vld [vmem:[%s3 + $0x1c8] sm:$0xff]
  %v1147 = vld [vmem:[%s3 + $0x1d0] sm:$0xff]
  %v1148 = vld [vmem:[%s3 + $0x1d8] sm:$0xff]
  %v1149 = vld [vmem:[%s3 + $0x1e0] sm:$0xff]
  %v1150 = vld [vmem:[%s3 + $0x1e8] sm:$0xff]
  %v1151 = vld [vmem:[%s3 + $0x1f0] sm:$0xff]
  %v1152 = vld [vmem:[%s3 + $0x1f8] sm:$0xff]
  %1153 = vmatprep.subr.mxu0 %v1150
  %1154 = vmatpush1.msra.mxu0 %v1149
  %1155 = vmatprep.subr.mxu0 %v1146
  %1156 = vmatpush1.msra.mxu0 %v1145
  %1157 = vmatprep.subr.mxu0 %v1142
  %1158 = vmatpush1.msra.mxu0 %v1141
  %1159 = vmatprep.subr.mxu0 %v1138
  %1160 = vmatpush1.msra.mxu0 %v1137
  %1161 = vmatprep.subr.mxu0 %v1134
  %1162 = vmatpush1.msra.mxu0 %v1133
  %1163 = vmatprep.subr.mxu0 %v1130
  %1164 = vmatpush1.msra.mxu0 %v1129
  %1165 = vmatprep.subr.mxu0 %v1126
  %1166 = vmatpush1.msra.mxu0 %v1125
  %1167 = vmatprep.subr.mxu0 %v1122
  %1168 = vmatpush1.msra.mxu0 %v1121
  %1169 = vmatprep.subr.mxu0 %v1118
  %1170 = vmatpush1.msra.mxu0 %v1117
  %1171 = vmatprep.subr.mxu0 %v1114
  %1172 = vmatpush1.msra.mxu0 %v1113
  %1173 = vmatprep.subr.mxu0 %v1110
  %1174 = vmatpush1.msra.mxu0 %v1109
  %1175 = vmatprep.subr.mxu0 %v1106
  %1176 = vmatpush1.msra.mxu0 %v1105
  %1177 = vmatprep.subr.mxu0 %v1102
  %1178 = vmatpush1.msra.mxu0 %v1101
  %1179 = vmatprep.subr.mxu0 %v1098
  %1180 = vmatpush1.msra.mxu0 %v1097
  %1181 = vmatprep.subr.mxu0 %v1094
  %1182 = vmatpush1.msra.mxu0 %v1093
  %1183 = vmatprep.subr.mxu0 %v1090
  %1184 = vmatpush1.msra.mxu0 %v1089
  %1185 = vmatprep.subr.mxu0 0.0
  %1186 = vmatpush2.msra.mxu0 0.0
  %1187 = vmatprep.subr.mxu0 0.0
  %1188 = vmatpush2.msra.mxu0 0.0
  %1189 = vmatprep.subr.mxu0 0.0
  %1190 = vmatpush2.msra.mxu0 0.0
  %1191 = vmatprep.subr.mxu0 0.0
  %1192 = vmatpush2.msra.mxu0 0.0
  %1193 = vmatprep.subr.mxu0 0.0
  %1194 = vmatpush2.msra.mxu0 0.0
  %1195 = vmatprep.subr.mxu0 0.0
  %1196 = vmatpush2.msra.mxu0 0.0
  %1197 = vmatprep.subr.mxu0 0.0
  %1198 = vmatpush2.msra.mxu0 0.0
  %1199 = vmatprep.subr.mxu0 0.0
  %1200 = vmatpush2.msra.mxu0 0.0
  %1201 = vmatprep.subr.mxu0 0.0
  %1202 = vmatpush2.msra.mxu0 0.0
  %1203 = vmatprep.subr.mxu0 0.0
  %1204 = vmatpush2.msra.mxu0 0.0
  %1205 = vmatprep.subr.mxu0 0.0
  %1206 = vmatpush2.msra.mxu0 0.0
  %1207 = vmatprep.subr.mxu0 0.0
  %1208 = vmatpush2.msra.mxu0 0.0
  %1209 = vmatprep.subr.mxu0 0.0
  %1210 = vmatpush2.msra.mxu0 0.0
  %1211 = vmatprep.subr.mxu0 0.0
  %1212 = vmatpush2.msra.mxu0 0.0
  %1213 = vmatprep.subr.mxu0 0.0
  %1214 = vmatpush2.msra.mxu0 0.0
  %1215 = vmatprep.subr.mxu0 0.0
  %1216 = vmatpush2.msra.mxu0 0.0
  %1217 = vmatprep.mubr.f32.mxu0 0.0
  %1218 = vmatmul.mubr.f32.gmra.mxu0 %v1079
  %v1219 = vpop.f32.mrf.mxu0
  %v1220 = vadd.f32 0.0, %v1219
  %v1221 = vpop.f32.mrf.mxu0
  %v1222 = vadd.f32 0.0, %v1221
  %1223 = vdwg.mxu0
  %1224 = vmatprep.subr.mxu0 %v1152
  %1225 = vmatpush1.msra.mxu0 %v1151
  %1226 = vmatprep.subr.mxu0 %v1148
  %1227 = vmatpush1.msra.mxu0 %v1147
  %1228 = vmatprep.subr.mxu0 %v1144
  %1229 = vmatpush1.msra.mxu0 %v1143
  %1230 = vmatprep.subr.mxu0 %v1140
  %1231 = vmatpush1.msra.mxu0 %v1139
  %1232 = vmatprep.subr.mxu0 %v1136
  %1233 = vmatpush1.msra.mxu0 %v1135
  %1234 = vmatprep.subr.mxu0 %v1132
  %1235 = vmatpush1.msra.mxu0 %v1131
  %1236 = vmatprep.subr.mxu0 %v1128
  %1237 = vmatpush1.msra.mxu0 %v1127
  %1238 = vmatprep.subr.mxu0 %v1124
  %1239 = vmatpush1.msra.mxu0 %v1123
  %1240 = vmatprep.subr.mxu0 %v1120
  %1241 = vmatpush1.msra.mxu0 %v1119
  %1242 = vmatprep.subr.mxu0 %v1116
  %1243 = vmatpush1.msra.mxu0 %v1115
  %1244 = vmatprep.subr.mxu0 %v1112
  %1245 = vmatpush1.msra.mxu0 %v1111
  %1246 = vmatprep.subr.mxu0 %v1108
  %1247 = vmatpush1.msra.mxu0 %v1107
  %1248 = vmatprep.subr.mxu0 %v1104
  %1249 = vmatpush1.msra.mxu0 %v1103
  %1250 = vmatprep.subr.mxu0 %v1100
  %1251 = vmatpush1.msra.mxu0 %v1099
  %1252 = vmatprep.subr.mxu0 %v1096
  %1253 = vmatpush1.msra.mxu0 %v1095
  %1254 = vmatprep.subr.mxu0 %v1092
  %1255 = vmatpush1.msra.mxu0 %v1091
  %1256 = vmatprep.subr.mxu0 0.0
  %1257 = vmatpush2.msra.mxu0 0.0
  %1258 = vmatprep.subr.mxu0 0.0
  %1259 = vmatpush2.msra.mxu0 0.0
  %1260 = vmatprep.subr.mxu0 0.0
  %1261 = vmatpush2.msra.mxu0 0.0
  %1262 = vmatprep.subr.mxu0 0.0
  %1263 = vmatpush2.msra.mxu0 0.0
  %1264 = vmatprep.subr.mxu0 0.0
  %1265 = vmatpush2.msra.mxu0 0.0
  %1266 = vmatprep.subr.mxu0 0.0
  %1267 = vmatpush2.msra.mxu0 0.0
  %1268 = vmatprep.subr.mxu0 0.0
  %1269 = vmatpush2.msra.mxu0 0.0
  %1270 = vmatprep.subr.mxu0 0.0
  %1271 = vmatpush2.msra.mxu0 0.0
  %1272 = vmatprep.subr.mxu0 0.0
  %1273 = vmatpush2.msra.mxu0 0.0
  %1274 = vmatprep.subr.mxu0 0.0
  %1275 = vmatpush2.msra.mxu0 0.0
  %1276 = vmatprep.subr.mxu0 0.0
  %1277 = vmatpush2.msra.mxu0 0.0
  %1278 = vmatprep.subr.mxu0 0.0
  %1279 = vmatpush2.msra.mxu0 0.0
  %1280 = vmatprep.subr.mxu0 0.0
  %1281 = vmatpush2.msra.mxu0 0.0
  %1282 = vmatprep.subr.mxu0 0.0
  %1283 = vmatpush2.msra.mxu0 0.0
  %1284 = vmatprep.subr.mxu0 0.0
  %1285 = vmatpush2.msra.mxu0 0.0
  %1286 = vmatprep.subr.mxu0 0.0
  %1287 = vmatpush2.msra.mxu0 0.0
  %1288 = vmatprep.mubr.f32.mxu0 0.0
  %1289 = vmatmul.mubr.f32.gmra.mxu0 %v1079
  %v1290 = vpop.f32.mrf.mxu0
  %v1291 = vadd.f32 0.0, %v1290
  %v1292 = vpop.f32.mrf.mxu0
  %v1293 = vadd.f32 0.0, %v1292
  %1294 = vdwg.mxu0
  %v1295 = vadd.f32 %v1085, %v1220
  %v1296 = vadd.f32 %v1086, %v1222
  %v1297 = vadd.f32 %v1087, %v1291
  %v1298 = vadd.f32 %v1088, %v1293
  %v1299 = vxor.u32 %v1295, 2147483648
  %v1300 = vmul.f32 %v1299, 1.442695
  %v1301 = vpow.pop %v1300
  %v1302 = vadd.f32 %v1301, 1.0
  %v1303 = vrcp.pop %v1302
  %v1304 = vmul.f32 1.0, %v1303
  %v1305 = vxor.u32 %v1296, 2147483648
  %v1306 = vmul.f32 %v1305, 1.442695
  %v1307 = vpow.pop %v1306
  %v1308 = vadd.f32 %v1307, 1.0
  %v1309 = vrcp.pop %v1308
  %v1310 = vmul.f32 1.0, %v1309
  %v1311 = vtanh.pop %v1297
  %v1312 = vxor.u32 %v1298, 2147483648
  %v1313 = vmul.f32 %v1312, 1.442695
  %v1314 = vpow.pop %v1313
  %v1315 = vadd.f32 %v1314, 1.0
  %v1316 = vrcp.pop %v1315
  %v1317 = vmul.f32 1.0, %v1316
  %v1318 = vmul.f32 %v1310, %v1077
  %v1319 = vmul.f32 %v1304, %v1311
  %v1320 = vadd.f32 %v1318, %v1319
  %v1321 = vtanh.pop %v1320
  %v1322 = vmul.f32 %v1317, %v1321
  %s1323 = scalar_lea.vmem [#allocation2], 24
  %1324 = vst [vmem:[%s1323] sm:$0xff] %v1322
  %s1325 = smul.u32 4, 4
  %s1326 = smul.addr %s1325, 8
  %s1327 = scalar_lea.vmem [#allocation3], %s1326
  %v1328 = vld [vmem:[%s1327] sm:$0xff]
  %v1329 = vld [vmem:[%s1327 + $0x8] sm:$0xff]
  %v1330 = vld [vmem:[%s1327 + $0x10] sm:$0xff]
  %v1331 = vld [vmem:[%s1327 + $0x18] sm:$0xff]
  %v1332 = vld [vmem:[%s3] sm:$0xff]
  %v1333 = vld [vmem:[%s3 + $0x8] sm:$0xff]
  %v1334 = vld [vmem:[%s3 + $0x10] sm:$0xff]
  %v1335 = vld [vmem:[%s3 + $0x18] sm:$0xff]
  %v1336 = vld [vmem:[%s3 + $0x20] sm:$0xff]
  %v1337 = vld [vmem:[%s3 + $0x28] sm:$0xff]
  %v1338 = vld [vmem:[%s3 + $0x30] sm:$0xff]
  %v1339 = vld [vmem:[%s3 + $0x38] sm:$0xff]
  %v1340 = vld [vmem:[%s3 + $0x40] sm:$0xff]
  %v1341 = vld [vmem:[%s3 + $0x48] sm:$0xff]
  %v1342 = vld [vmem:[%s3 + $0x50] sm:$0xff]
  %v1343 = vld [vmem:[%s3 + $0x58] sm:$0xff]
  %v1344 = vld [vmem:[%s3 + $0x60] sm:$0xff]
  %v1345 = vld [vmem:[%s3 + $0x68] sm:$0xff]
  %v1346 = vld [vmem:[%s3 + $0x70] sm:$0xff]
  %v1347 = vld [vmem:[%s3 + $0x78] sm:$0xff]
  %v1348 = vld [vmem:[%s3 + $0x80] sm:$0xff]
  %v1349 = vld [vmem:[%s3 + $0x88] sm:$0xff]
  %v1350 = vld [vmem:[%s3 + $0x90] sm:$0xff]
  %v1351 = vld [vmem:[%s3 + $0x98] sm:$0xff]
  %v1352 = vld [vmem:[%s3 + $0xa0] sm:$0xff]
  %v1353 = vld [vmem:[%s3 + $0xa8] sm:$0xff]
  %v1354 = vld [vmem:[%s3 + $0xb0] sm:$0xff]
  %v1355 = vld [vmem:[%s3 + $0xb8] sm:$0xff]
  %v1356 = vld [vmem:[%s3 + $0xc0] sm:$0xff]
  %v1357 = vld [vmem:[%s3 + $0xc8] sm:$0xff]
  %v1358 = vld [vmem:[%s3 + $0xd0] sm:$0xff]
  %v1359 = vld [vmem:[%s3 + $0xd8] sm:$0xff]
  %v1360 = vld [vmem:[%s3 + $0xe0] sm:$0xff]
  %v1361 = vld [vmem:[%s3 + $0xe8] sm:$0xff]
  %v1362 = vld [vmem:[%s3 + $0xf0] sm:$0xff]
  %v1363 = vld [vmem:[%s3 + $0xf8] sm:$0xff]
  %v1364 = vld [vmem:[%s3 + $0x100] sm:$0xff]
  %v1365 = vld [vmem:[%s3 + $0x108] sm:$0xff]
  %v1366 = vld [vmem:[%s3 + $0x110] sm:$0xff]
  %v1367 = vld [vmem:[%s3 + $0x118] sm:$0xff]
  %v1368 = vld [vmem:[%s3 + $0x120] sm:$0xff]
  %v1369 = vld [vmem:[%s3 + $0x128] sm:$0xff]
  %v1370 = vld [vmem:[%s3 + $0x130] sm:$0xff]
  %v1371 = vld [vmem:[%s3 + $0x138] sm:$0xff]
  %v1372 = vld [vmem:[%s3 + $0x140] sm:$0xff]
  %v1373 = vld [vmem:[%s3 + $0x148] sm:$0xff]
  %v1374 = vld [vmem:[%s3 + $0x150] sm:$0xff]
  %v1375 = vld [vmem:[%s3 + $0x158] sm:$0xff]
  %v1376 = vld [vmem:[%s3 + $0x160] sm:$0xff]
  %v1377 = vld [vmem:[%s3 + $0x168] sm:$0xff]
  %v1378 = vld [vmem:[%s3 + $0x170] sm:$0xff]
  %v1379 = vld [vmem:[%s3 + $0x178] sm:$0xff]
  %v1380 = vld [vmem:[%s3 + $0x180] sm:$0xff]
  %v1381 = vld [vmem:[%s3 + $0x188] sm:$0xff]
  %v1382 = vld [vmem:[%s3 + $0x190] sm:$0xff]
  %v1383 = vld [vmem:[%s3 + $0x198] sm:$0xff]
  %v1384 = vld [vmem:[%s3 + $0x1a0] sm:$0xff]
  %v1385 = vld [vmem:[%s3 + $0x1a8] sm:$0xff]
  %v1386 = vld [vmem:[%s3 + $0x1b0] sm:$0xff]
  %v1387 = vld [vmem:[%s3 + $0x1b8] sm:$0xff]
  %v1388 = vld [vmem:[%s3 + $0x1c0] sm:$0xff]
  %v1389 = vld [vmem:[%s3 + $0x1c8] sm:$0xff]
  %v1390 = vld [vmem:[%s3 + $0x1d0] sm:$0xff]
  %v1391 = vld [vmem:[%s3 + $0x1d8] sm:$0xff]
  %v1392 = vld [vmem:[%s3 + $0x1e0] sm:$0xff]
  %v1393 = vld [vmem:[%s3 + $0x1e8] sm:$0xff]
  %v1394 = vld [vmem:[%s3 + $0x1f0] sm:$0xff]
  %v1395 = vld [vmem:[%s3 + $0x1f8] sm:$0xff]
  %1396 = vmatprep.subr.mxu0 %v1393
  %1397 = vmatpush1.msra.mxu0 %v1392
  %1398 = vmatprep.subr.mxu0 %v1389
  %1399 = vmatpush1.msra.mxu0 %v1388
  %1400 = vmatprep.subr.mxu0 %v1385
  %1401 = vmatpush1.msra.mxu0 %v1384
  %1402 = vmatprep.subr.mxu0 %v1381
  %1403 = vmatpush1.msra.mxu0 %v1380
  %1404 = vmatprep.subr.mxu0 %v1377
  %1405 = vmatpush1.msra.mxu0 %v1376
  %1406 = vmatprep.subr.mxu0 %v1373
  %1407 = vmatpush1.msra.mxu0 %v1372
  %1408 = vmatprep.subr.mxu0 %v1369
  %1409 = vmatpush1.msra.mxu0 %v1368
  %1410 = vmatprep.subr.mxu0 %v1365
  %1411 = vmatpush1.msra.mxu0 %v1364
  %1412 = vmatprep.subr.mxu0 %v1361
  %1413 = vmatpush1.msra.mxu0 %v1360
  %1414 = vmatprep.subr.mxu0 %v1357
  %1415 = vmatpush1.msra.mxu0 %v1356
  %1416 = vmatprep.subr.mxu0 %v1353
  %1417 = vmatpush1.msra.mxu0 %v1352
  %1418 = vmatprep.subr.mxu0 %v1349
  %1419 = vmatpush1.msra.mxu0 %v1348
  %1420 = vmatprep.subr.mxu0 %v1345
  %1421 = vmatpush1.msra.mxu0 %v1344
  %1422 = vmatprep.subr.mxu0 %v1341
  %1423 = vmatpush1.msra.mxu0 %v1340
  %1424 = vmatprep.subr.mxu0 %v1337
  %1425 = vmatpush1.msra.mxu0 %v1336
  %1426 = vmatprep.subr.mxu0 %v1333
  %1427 = vmatpush1.msra.mxu0 %v1332
  %1428 = vmatprep.subr.mxu0 0.0
  %1429 = vmatpush2.msra.mxu0 0.0
  %1430 = vmatprep.subr.mxu0 0.0
  %1431 = vmatpush2.msra.mxu0 0.0
  %1432 = vmatprep.subr.mxu0 0.0
  %1433 = vmatpush2.msra.mxu0 0.0
  %1434 = vmatprep.subr.mxu0 0.0
  %1435 = vmatpush2.msra.mxu0 0.0
  %1436 = vmatprep.subr.mxu0 0.0
  %1437 = vmatpush2.msra.mxu0 0.0
  %1438 = vmatprep.subr.mxu0 0.0
  %1439 = vmatpush2.msra.mxu0 0.0
  %1440 = vmatprep.subr.mxu0 0.0
  %1441 = vmatpush2.msra.mxu0 0.0
  %1442 = vmatprep.subr.mxu0 0.0
  %1443 = vmatpush2.msra.mxu0 0.0
  %1444 = vmatprep.subr.mxu0 0.0
  %1445 = vmatpush2.msra.mxu0 0.0
  %1446 = vmatprep.subr.mxu0 0.0
  %1447 = vmatpush2.msra.mxu0 0.0
  %1448 = vmatprep.subr.mxu0 0.0
  %1449 = vmatpush2.msra.mxu0 0.0
  %1450 = vmatprep.subr.mxu0 0.0
  %1451 = vmatpush2.msra.mxu0 0.0
  %1452 = vmatprep.subr.mxu0 0.0
  %1453 = vmatpush2.msra.mxu0 0.0
  %1454 = vmatprep.subr.mxu0 0.0
  %1455 = vmatpush2.msra.mxu0 0.0
  %1456 = vmatprep.subr.mxu0 0.0
  %1457 = vmatpush2.msra.mxu0 0.0
  %1458 = vmatprep.subr.mxu0 0.0
  %1459 = vmatpush2.msra.mxu0 0.0
  %1460 = vmatprep.mubr.f32.mxu0 0.0
  %1461 = vmatmul.mubr.f32.gmra.mxu0 %v1322
  %v1462 = vpop.f32.mrf.mxu0
  %v1463 = vadd.f32 0.0, %v1462
  %v1464 = vpop.f32.mrf.mxu0
  %v1465 = vadd.f32 0.0, %v1464
  %1466 = vdwg.mxu0
  %1467 = vmatprep.subr.mxu0 %v1395
  %1468 = vmatpush1.msra.mxu0 %v1394
  %1469 = vmatprep.subr.mxu0 %v1391
  %1470 = vmatpush1.msra.mxu0 %v1390
  %1471 = vmatprep.subr.mxu0 %v1387
  %1472 = vmatpush1.msra.mxu0 %v1386
  %1473 = vmatprep.subr.mxu0 %v1383
  %1474 = vmatpush1.msra.mxu0 %v1382
  %1475 = vmatprep.subr.mxu0 %v1379
  %1476 = vmatpush1.msra.mxu0 %v1378
  %1477 = vmatprep.subr.mxu0 %v1375
  %1478 = vmatpush1.msra.mxu0 %v1374
  %1479 = vmatprep.subr.mxu0 %v1371
  %1480 = vmatpush1.msra.mxu0 %v1370
  %1481 = vmatprep.subr.mxu0 %v1367
  %1482 = vmatpush1.msra.mxu0 %v1366
  %1483 = vmatprep.subr.mxu0 %v1363
  %1484 = vmatpush1.msra.mxu0 %v1362
  %1485 = vmatprep.subr.mxu0 %v1359
  %1486 = vmatpush1.msra.mxu0 %v1358
  %1487 = vmatprep.subr.mxu0 %v1355
  %1488 = vmatpush1.msra.mxu0 %v1354
  %1489 = vmatprep.subr.mxu0 %v1351
  %1490 = vmatpush1.msra.mxu0 %v1350
  %1491 = vmatprep.subr.mxu0 %v1347
  %1492 = vmatpush1.msra.mxu0 %v1346
  %1493 = vmatprep.subr.mxu0 %v1343
  %1494 = vmatpush1.msra.mxu0 %v1342
  %1495 = vmatprep.subr.mxu0 %v1339
  %1496 = vmatpush1.msra.mxu0 %v1338
  %1497 = vmatprep.subr.mxu0 %v1335
  %1498 = vmatpush1.msra.mxu0 %v1334
  %1499 = vmatprep.subr.mxu0 0.0
  %1500 = vmatpush2.msra.mxu0 0.0
  %1501 = vmatprep.subr.mxu0 0.0
  %1502 = vmatpush2.msra.mxu0 0.0
  %1503 = vmatprep.subr.mxu0 0.0
  %1504 = vmatpush2.msra.mxu0 0.0
  %1505 = vmatprep.subr.mxu0 0.0
  %1506 = vmatpush2.msra.mxu0 0.0
  %1507 = vmatprep.subr.mxu0 0.0
  %1508 = vmatpush2.msra.mxu0 0.0
  %1509 = vmatprep.subr.mxu0 0.0
  %1510 = vmatpush2.msra.mxu0 0.0
  %1511 = vmatprep.subr.mxu0 0.0
  %1512 = vmatpush2.msra.mxu0 0.0
  %1513 = vmatprep.subr.mxu0 0.0
  %1514 = vmatpush2.msra.mxu0 0.0
  %1515 = vmatprep.subr.mxu0 0.0
  %1516 = vmatpush2.msra.mxu0 0.0
  %1517 = vmatprep.subr.mxu0 0.0
  %1518 = vmatpush2.msra.mxu0 0.0
  %1519 = vmatprep.subr.mxu0 0.0
  %1520 = vmatpush2.msra.mxu0 0.0
  %1521 = vmatprep.subr.mxu0 0.0
  %1522 = vmatpush2.msra.mxu0 0.0
  %1523 = vmatprep.subr.mxu0 0.0
  %1524 = vmatpush2.msra.mxu0 0.0
  %1525 = vmatprep.subr.mxu0 0.0
  %1526 = vmatpush2.msra.mxu0 0.0
  %1527 = vmatprep.subr.mxu0 0.0
  %1528 = vmatpush2.msra.mxu0 0.0
  %1529 = vmatprep.subr.mxu0 0.0
  %1530 = vmatpush2.msra.mxu0 0.0
  %1531 = vmatprep.mubr.f32.mxu0 0.0
  %1532 = vmatmul.mubr.f32.gmra.mxu0 %v1322
  %v1533 = vpop.f32.mrf.mxu0
  %v1534 = vadd.f32 0.0, %v1533
  %v1535 = vpop.f32.mrf.mxu0
  %v1536 = vadd.f32 0.0, %v1535
  %1537 = vdwg.mxu0
  %v1538 = vadd.f32 %v1328, %v1463
  %v1539 = vadd.f32 %v1329, %v1465
  %v1540 = vadd.f32 %v1330, %v1534
  %v1541 = vadd.f32 %v1331, %v1536
  %v1542 = vxor.u32 %v1538, 2147483648
  %v1543 = vmul.f32 %v1542, 1.442695
  %v1544 = vpow.pop %v1543
  %v1545 = vadd.f32 %v1544, 1.0
  %v1546 = vrcp.pop %v1545
  %v1547 = vmul.f32 1.0, %v1546
  %v1548 = vxor.u32 %v1539, 2147483648
  %v1549 = vmul.f32 %v1548, 1.442695
  %v1550 = vpow.pop %v1549
  %v1551 = vadd.f32 %v1550, 1.0
  %v1552 = vrcp.pop %v1551
  %v1553 = vmul.f32 1.0, %v1552
  %v1554 = vtanh.pop %v1540
  %v1555 = vxor.u32 %v1541, 2147483648
  %v1556 = vmul.f32 %v1555, 1.442695
  %v1557 = vpow.pop %v1556
  %v1558 = vadd.f32 %v1557, 1.0
  %v1559 = vrcp.pop %v1558
  %v1560 = vmul.f32 1.0, %v1559
  %v1561 = vmul.f32 %v1553, %v1320
  %v1562 = vmul.f32 %v1547, %v1554
  %v1563 = vadd.f32 %v1561, %v1562
  %v1564 = vtanh.pop %v1563
  %v1565 = vmul.f32 %v1560, %v1564
  %s1566 = scalar_lea.vmem [#allocation2], 32
  %1567 = vst [vmem:[%s1566] sm:$0xff] %v1565
  %s1568 = smul.u32 5, 4
  %s1569 = smul.addr %s1568, 8
  %s1570 = scalar_lea.vmem [#allocation3], %s1569
  %v1571 = vld [vmem:[%s1570] sm:$0xff]
  %v1572 = vld [vmem:[%s1570 + $0x8] sm:$0xff]
  %v1573 = vld [vmem:[%s1570 + $0x10] sm:$0xff]
  %v1574 = vld [vmem:[%s1570 + $0x18] sm:$0xff]
  %v1575 = vld [vmem:[%s3] sm:$0xff]
  %v1576 = vld [vmem:[%s3 + $0x8] sm:$0xff]
  %v1577 = vld [vmem:[%s3 + $0x10] sm:$0xff]
  %v1578 = vld [vmem:[%s3 + $0x18] sm:$0xff]
  %v1579 = vld [vmem:[%s3 + $0x20] sm:$0xff]
  %v1580 = vld [vmem:[%s3 + $0x28] sm:$0xff]
  %v1581 = vld [vmem:[%s3 + $0x30] sm:$0xff]
  %v1582 = vld [vmem:[%s3 + $0x38] sm:$0xff]
  %v1583 = vld [vmem:[%s3 + $0x40] sm:$0xff]
  %v1584 = vld [vmem:[%s3 + $0x48] sm:$0xff]
  %v1585 = vld [vmem:[%s3 + $0x50] sm:$0xff]
  %v1586 = vld [vmem:[%s3 + $0x58] sm:$0xff]
  %v1587 = vld [vmem:[%s3 + $0x60] sm:$0xff]
  %v1588 = vld [vmem:[%s3 + $0x68] sm:$0xff]
  %v1589 = vld [vmem:[%s3 + $0x70] sm:$0xff]
  %v1590 = vld [vmem:[%s3 + $0x78] sm:$0xff]
  %v1591 = vld [vmem:[%s3 + $0x80] sm:$0xff]
  %v1592 = vld [vmem:[%s3 + $0x88] sm:$0xff]
  %v1593 = vld [vmem:[%s3 + $0x90] sm:$0xff]
  %v1594 = vld [vmem:[%s3 + $0x98] sm:$0xff]
  %v1595 = vld [vmem:[%s3 + $0xa0] sm:$0xff]
  %v1596 = vld [vmem:[%s3 + $0xa8] sm:$0xff]
  %v1597 = vld [vmem:[%s3 + $0xb0] sm:$0xff]
  %v1598 = vld [vmem:[%s3 + $0xb8] sm:$0xff]
  %v1599 = vld [vmem:[%s3 + $0xc0] sm:$0xff]
  %v1600 = vld [vmem:[%s3 + $0xc8] sm:$0xff]
  %v1601 = vld [vmem:[%s3 + $0xd0] sm:$0xff]
  %v1602 = vld [vmem:[%s3 + $0xd8] sm:$0xff]
  %v1603 = vld [vmem:[%s3 + $0xe0] sm:$0xff]
  %v1604 = vld [vmem:[%s3 + $0xe8] sm:$0xff]
  %v1605 = vld [vmem:[%s3 + $0xf0] sm:$0xff]
  %v1606 = vld [vmem:[%s3 + $0xf8] sm:$0xff]
  %v1607 = vld [vmem:[%s3 + $0x100] sm:$0xff]
  %v1608 = vld [vmem:[%s3 + $0x108] sm:$0xff]
  %v1609 = vld [vmem:[%s3 + $0x110] sm:$0xff]
  %v1610 = vld [vmem:[%s3 + $0x118] sm:$0xff]
  %v1611 = vld [vmem:[%s3 + $0x120] sm:$0xff]
  %v1612 = vld [vmem:[%s3 + $0x128] sm:$0xff]
  %v1613 = vld [vmem:[%s3 + $0x130] sm:$0xff]
  %v1614 = vld [vmem:[%s3 + $0x138] sm:$0xff]
  %v1615 = vld [vmem:[%s3 + $0x140] sm:$0xff]
  %v1616 = vld [vmem:[%s3 + $0x148] sm:$0xff]
  %v1617 = vld [vmem:[%s3 + $0x150] sm:$0xff]
  %v1618 = vld [vmem:[%s3 + $0x158] sm:$0xff]
  %v1619 = vld [vmem:[%s3 + $0x160] sm:$0xff]
  %v1620 = vld [vmem:[%s3 + $0x168] sm:$0xff]
  %v1621 = vld [vmem:[%s3 + $0x170] sm:$0xff]
  %v1622 = vld [vmem:[%s3 + $0x178] sm:$0xff]
  %v1623 = vld [vmem:[%s3 + $0x180] sm:$0xff]
  %v1624 = vld [vmem:[%s3 + $0x188] sm:$0xff]
  %v1625 = vld [vmem:[%s3 + $0x190] sm:$0xff]
  %v1626 = vld [vmem:[%s3 + $0x198] sm:$0xff]
  %v1627 = vld [vmem:[%s3 + $0x1a0] sm:$0xff]
  %v1628 = vld [vmem:[%s3 + $0x1a8] sm:$0xff]
  %v1629 = vld [vmem:[%s3 + $0x1b0] sm:$0xff]
  %v1630 = vld [vmem:[%s3 + $0x1b8] sm:$0xff]
  %v1631 = vld [vmem:[%s3 + $0x1c0] sm:$0xff]
  %v1632 = vld [vmem:[%s3 + $0x1c8] sm:$0xff]
  %v1633 = vld [vmem:[%s3 + $0x1d0] sm:$0xff]
  %v1634 = vld [vmem:[%s3 + $0x1d8] sm:$0xff]
  %v1635 = vld [vmem:[%s3 + $0x1e0] sm:$0xff]
  %v1636 = vld [vmem:[%s3 + $0x1e8] sm:$0xff]
  %v1637 = vld [vmem:[%s3 + $0x1f0] sm:$0xff]
  %v1638 = vld [vmem:[%s3 + $0x1f8] sm:$0xff]
  %1639 = vmatprep.subr.mxu0 %v1636
  %1640 = vmatpush1.msra.mxu0 %v1635
  %1641 = vmatprep.subr.mxu0 %v1632
  %1642 = vmatpush1.msra.mxu0 %v1631
  %1643 = vmatprep.subr.mxu0 %v1628
  %1644 = vmatpush1.msra.mxu0 %v1627
  %1645 = vmatprep.subr.mxu0 %v1624
  %1646 = vmatpush1.msra.mxu0 %v1623
  %1647 = vmatprep.subr.mxu0 %v1620
  %1648 = vmatpush1.msra.mxu0 %v1619
  %1649 = vmatprep.subr.mxu0 %v1616
  %1650 = vmatpush1.msra.mxu0 %v1615
  %1651 = vmatprep.subr.mxu0 %v1612
  %1652 = vmatpush1.msra.mxu0 %v1611
  %1653 = vmatprep.subr.mxu0 %v1608
  %1654 = vmatpush1.msra.mxu0 %v1607
  %1655 = vmatprep.subr.mxu0 %v1604
  %1656 = vmatpush1.msra.mxu0 %v1603
  %1657 = vmatprep.subr.mxu0 %v1600
  %1658 = vmatpush1.msra.mxu0 %v1599
  %1659 = vmatprep.subr.mxu0 %v1596
  %1660 = vmatpush1.msra.mxu0 %v1595
  %1661 = vmatprep.subr.mxu0 %v1592
  %1662 = vmatpush1.msra.mxu0 %v1591
  %1663 = vmatprep.subr.mxu0 %v1588
  %1664 = vmatpush1.msra.mxu0 %v1587
  %1665 = vmatprep.subr.mxu0 %v1584
  %1666 = vmatpush1.msra.mxu0 %v1583
  %1667 = vmatprep.subr.mxu0 %v1580
  %1668 = vmatpush1.msra.mxu0 %v1579
  %1669 = vmatprep.subr.mxu0 %v1576
  %1670 = vmatpush1.msra.mxu0 %v1575
  %1671 = vmatprep.subr.mxu0 0.0
  %1672 = vmatpush2.msra.mxu0 0.0
  %1673 = vmatprep.subr.mxu0 0.0
  %1674 = vmatpush2.msra.mxu0 0.0
  %1675 = vmatprep.subr.mxu0 0.0
  %1676 = vmatpush2.msra.mxu0 0.0
  %1677 = vmatprep.subr.mxu0 0.0
  %1678 = vmatpush2.msra.mxu0 0.0
  %1679 = vmatprep.subr.mxu0 0.0
  %1680 = vmatpush2.msra.mxu0 0.0
  %1681 = vmatprep.subr.mxu0 0.0
  %1682 = vmatpush2.msra.mxu0 0.0
  %1683 = vmatprep.subr.mxu0 0.0
  %1684 = vmatpush2.msra.mxu0 0.0
  %1685 = vmatprep.subr.mxu0 0.0
  %1686 = vmatpush2.msra.mxu0 0.0
  %1687 = vmatprep.subr.mxu0 0.0
  %1688 = vmatpush2.msra.mxu0 0.0
  %1689 = vmatprep.subr.mxu0 0.0
  %1690 = vmatpush2.msra.mxu0 0.0
  %1691 = vmatprep.subr.mxu0 0.0
  %1692 = vmatpush2.msra.mxu0 0.0
  %1693 = vmatprep.subr.mxu0 0.0
  %1694 = vmatpush2.msra.mxu0 0.0
  %1695 = vmatprep.subr.mxu0 0.0
  %1696 = vmatpush2.msra.mxu0 0.0
  %1697 = vmatprep.subr.mxu0 0.0
  %1698 = vmatpush2.msra.mxu0 0.0
  %1699 = vmatprep.subr.mxu0 0.0
  %1700 = vmatpush2.msra.mxu0 0.0
  %1701 = vmatprep.subr.mxu0 0.0
  %1702 = vmatpush2.msra.mxu0 0.0
  %1703 = vmatprep.mubr.f32.mxu0 0.0
  %1704 = vmatmul.mubr.f32.gmra.mxu0 %v1565
  %v1705 = vpop.f32.mrf.mxu0
  %v1706 = vadd.f32 0.0, %v1705
  %v1707 = vpop.f32.mrf.mxu0
  %v1708 = vadd.f32 0.0, %v1707
  %1709 = vdwg.mxu0
  %1710 = vmatprep.subr.mxu0 %v1638
  %1711 = vmatpush1.msra.mxu0 %v1637
  %1712 = vmatprep.subr.mxu0 %v1634
  %1713 = vmatpush1.msra.mxu0 %v1633
  %1714 = vmatprep.subr.mxu0 %v1630
  %1715 = vmatpush1.msra.mxu0 %v1629
  %1716 = vmatprep.subr.mxu0 %v1626
  %1717 = vmatpush1.msra.mxu0 %v1625
  %1718 = vmatprep.subr.mxu0 %v1622
  %1719 = vmatpush1.msra.mxu0 %v1621
  %1720 = vmatprep.subr.mxu0 %v1618
  %1721 = vmatpush1.msra.mxu0 %v1617
  %1722 = vmatprep.subr.mxu0 %v1614
  %1723 = vmatpush1.msra.mxu0 %v1613
  %1724 = vmatprep.subr.mxu0 %v1610
  %1725 = vmatpush1.msra.mxu0 %v1609
  %1726 = vmatprep.subr.mxu0 %v1606
  %1727 = vmatpush1.msra.mxu0 %v1605
  %1728 = vmatprep.subr.mxu0 %v1602
  %1729 = vmatpush1.msra.mxu0 %v1601
  %1730 = vmatprep.subr.mxu0 %v1598
  %1731 = vmatpush1.msra.mxu0 %v1597
  %1732 = vmatprep.subr.mxu0 %v1594
  %1733 = vmatpush1.msra.mxu0 %v1593
  %1734 = vmatprep.subr.mxu0 %v1590
  %1735 = vmatpush1.msra.mxu0 %v1589
  %1736 = vmatprep.subr.mxu0 %v1586
  %1737 = vmatpush1.msra.mxu0 %v1585
  %1738 = vmatprep.subr.mxu0 %v1582
  %1739 = vmatpush1.msra.mxu0 %v1581
  %1740 = vmatprep.subr.mxu0 %v1578
  %1741 = vmatpush1.msra.mxu0 %v1577
  %1742 = vmatprep.subr.mxu0 0.0
  %1743 = vmatpush2.msra.mxu0 0.0
  %1744 = vmatprep.subr.mxu0 0.0
  %1745 = vmatpush2.msra.mxu0 0.0
  %1746 = vmatprep.subr.mxu0 0.0
  %1747 = vmatpush2.msra.mxu0 0.0
  %1748 = vmatprep.subr.mxu0 0.0
  %1749 = vmatpush2.msra.mxu0 0.0
  %1750 = vmatprep.subr.mxu0 0.0
  %1751 = vmatpush2.msra.mxu0 0.0
  %1752 = vmatprep.subr.mxu0 0.0
  %1753 = vmatpush2.msra.mxu0 0.0
  %1754 = vmatprep.subr.mxu0 0.0
  %1755 = vmatpush2.msra.mxu0 0.0
  %1756 = vmatprep.subr.mxu0 0.0
  %1757 = vmatpush2.msra.mxu0 0.0
  %1758 = vmatprep.subr.mxu0 0.0
  %1759 = vmatpush2.msra.mxu0 0.0
  %1760 = vmatprep.subr.mxu0 0.0
  %1761 = vmatpush2.msra.mxu0 0.0
  %1762 = vmatprep.subr.mxu0 0.0
  %1763 = vmatpush2.msra.mxu0 0.0
  %1764 = vmatprep.subr.mxu0 0.0
  %1765 = vmatpush2.msra.mxu0 0.0
  %1766 = vmatprep.subr.mxu0 0.0
  %1767 = vmatpush2.msra.mxu0 0.0
  %1768 = vmatprep.subr.mxu0 0.0
  %1769 = vmatpush2.msra.mxu0 0.0
  %1770 = vmatprep.subr.mxu0 0.0
  %1771 = vmatpush2.msra.mxu0 0.0
  %1772 = vmatprep.subr.mxu0 0.0
  %1773 = vmatpush2.msra.mxu0 0.0
  %1774 = vmatprep.mubr.f32.mxu0 0.0
  %1775 = vmatmul.mubr.f32.gmra.mxu0 %v1565
  %v1776 = vpop.f32.mrf.mxu0
  %v1777 = vadd.f32 0.0, %v1776
  %v1778 = vpop.f32.mrf.mxu0
  %v1779 = vadd.f32 0.0, %v1778
  %1780 = vdwg.mxu0
  %v1781 = vadd.f32 %v1571, %v1706
  %v1782 = vadd.f32 %v1572, %v1708
  %v1783 = vadd.f32 %v1573, %v1777
  %v1784 = vadd.f32 %v1574, %v1779
  %v1785 = vxor.u32 %v1781, 2147483648
  %v1786 = vmul.f32 %v1785, 1.442695
  %v1787 = vpow.pop %v1786
  %v1788 = vadd.f32 %v1787, 1.0
  %v1789 = vrcp.pop %v1788
  %v1790 = vmul.f32 1.0, %v1789
  %v1791 = vxor.u32 %v1782, 2147483648
  %v1792 = vmul.f32 %v1791, 1.442695
  %v1793 = vpow.pop %v1792
  %v1794 = vadd.f32 %v1793, 1.0
  %v1795 = vrcp.pop %v1794
  %v1796 = vmul.f32 1.0, %v1795
  %v1797 = vtanh.pop %v1783
  %v1798 = vxor.u32 %v1784, 2147483648
  %v1799 = vmul.f32 %v1798, 1.442695
  %v1800 = vpow.pop %v1799
  %v1801 = vadd.f32 %v1800, 1.0
  %v1802 = vrcp.pop %v1801
  %v1803 = vmul.f32 1.0, %v1802
  %v1804 = vmul.f32 %v1796, %v1563
  %v1805 = vmul.f32 %v1790, %v1797
  %v1806 = vadd.f32 %v1804, %v1805
  %v1807 = vtanh.pop %v1806
  %v1808 = vmul.f32 %v1803, %v1807
  %s1809 = scalar_lea.vmem [#allocation2], 40
  %1810 = vst [vmem:[%s1809] sm:$0xff] %v1808
  %s1811 = smul.u32 6, 4
  %s1812 = smul.addr %s1811, 8
  %s1813 = scalar_lea.vmem [#allocation3], %s1812
  %v1814 = vld [vmem:[%s1813] sm:$0xff]
  %v1815 = vld [vmem:[%s1813 + $0x8] sm:$0xff]
  %v1816 = vld [vmem:[%s1813 + $0x10] sm:$0xff]
  %v1817 = vld [vmem:[%s1813 + $0x18] sm:$0xff]
  %v1818 = vld [vmem:[%s3] sm:$0xff]
  %v1819 = vld [vmem:[%s3 + $0x8] sm:$0xff]
  %v1820 = vld [vmem:[%s3 + $0x10] sm:$0xff]
  %v1821 = vld [vmem:[%s3 + $0x18] sm:$0xff]
  %v1822 = vld [vmem:[%s3 + $0x20] sm:$0xff]
  %v1823 = vld [vmem:[%s3 + $0x28] sm:$0xff]
  %v1824 = vld [vmem:[%s3 + $0x30] sm:$0xff]
  %v1825 = vld [vmem:[%s3 + $0x38] sm:$0xff]
  %v1826 = vld [vmem:[%s3 + $0x40] sm:$0xff]
  %v1827 = vld [vmem:[%s3 + $0x48] sm:$0xff]
  %v1828 = vld [vmem:[%s3 + $0x50] sm:$0xff]
  %v1829 = vld [vmem:[%s3 + $0x58] sm:$0xff]
  %v1830 = vld [vmem:[%s3 + $0x60] sm:$0xff]
  %v1831 = vld [vmem:[%s3 + $0x68] sm:$0xff]
  %v1832 = vld [vmem:[%s3 + $0x70] sm:$0xff]
  %v1833 = vld [vmem:[%s3 + $0x78] sm:$0xff]
  %v1834 = vld [vmem:[%s3 + $0x80] sm:$0xff]
  %v1835 = vld [vmem:[%s3 + $0x88] sm:$0xff]
  %v1836 = vld [vmem:[%s3 + $0x90] sm:$0xff]
  %v1837 = vld [vmem:[%s3 + $0x98] sm:$0xff]
  %v1838 = vld [vmem:[%s3 + $0xa0] sm:$0xff]
  %v1839 = vld [vmem:[%s3 + $0xa8] sm:$0xff]
  %v1840 = vld [vmem:[%s3 + $0xb0] sm:$0xff]
  %v1841 = vld [vmem:[%s3 + $0xb8] sm:$0xff]
  %v1842 = vld [vmem:[%s3 + $0xc0] sm:$0xff]
  %v1843 = vld [vmem:[%s3 + $0xc8] sm:$0xff]
  %v1844 = vld [vmem:[%s3 + $0xd0] sm:$0xff]
  %v1845 = vld [vmem:[%s3 + $0xd8] sm:$0xff]
  %v1846 = vld [vmem:[%s3 + $0xe0] sm:$0xff]
  %v1847 = vld [vmem:[%s3 + $0xe8] sm:$0xff]
  %v1848 = vld [vmem:[%s3 + $0xf0] sm:$0xff]
  %v1849 = vld [vmem:[%s3 + $0xf8] sm:$0xff]
  %v1850 = vld [vmem:[%s3 + $0x100] sm:$0xff]
  %v1851 = vld [vmem:[%s3 + $0x108] sm:$0xff]
  %v1852 = vld [vmem:[%s3 + $0x110] sm:$0xff]
  %v1853 = vld [vmem:[%s3 + $0x118] sm:$0xff]
  %v1854 = vld [vmem:[%s3 + $0x120] sm:$0xff]
  %v1855 = vld [vmem:[%s3 + $0x128] sm:$0xff]
  %v1856 = vld [vmem:[%s3 + $0x130] sm:$0xff]
  %v1857 = vld [vmem:[%s3 + $0x138] sm:$0xff]
  %v1858 = vld [vmem:[%s3 + $0x140] sm:$0xff]
  %v1859 = vld [vmem:[%s3 + $0x148] sm:$0xff]
  %v1860 = vld [vmem:[%s3 + $0x150] sm:$0xff]
  %v1861 = vld [vmem:[%s3 + $0x158] sm:$0xff]
  %v1862 = vld [vmem:[%s3 + $0x160] sm:$0xff]
  %v1863 = vld [vmem:[%s3 + $0x168] sm:$0xff]
  %v1864 = vld [vmem:[%s3 + $0x170] sm:$0xff]
  %v1865 = vld [vmem:[%s3 + $0x178] sm:$0xff]
  %v1866 = vld [vmem:[%s3 + $0x180] sm:$0xff]
  %v1867 = vld [vmem:[%s3 + $0x188] sm:$0xff]
  %v1868 = vld [vmem:[%s3 + $0x190] sm:$0xff]
  %v1869 = vld [vmem:[%s3 + $0x198] sm:$0xff]
  %v1870 = vld [vmem:[%s3 + $0x1a0] sm:$0xff]
  %v1871 = vld [vmem:[%s3 + $0x1a8] sm:$0xff]
  %v1872 = vld [vmem:[%s3 + $0x1b0] sm:$0xff]
  %v1873 = vld [vmem:[%s3 + $0x1b8] sm:$0xff]
  %v1874 = vld [vmem:[%s3 + $0x1c0] sm:$0xff]
  %v1875 = vld [vmem:[%s3 + $0x1c8] sm:$0xff]
  %v1876 = vld [vmem:[%s3 + $0x1d0] sm:$0xff]
  %v1877 = vld [vmem:[%s3 + $0x1d8] sm:$0xff]
  %v1878 = vld [vmem:[%s3 + $0x1e0] sm:$0xff]
  %v1879 = vld [vmem:[%s3 + $0x1e8] sm:$0xff]
  %v1880 = vld [vmem:[%s3 + $0x1f0] sm:$0xff]
  %v1881 = vld [vmem:[%s3 + $0x1f8] sm:$0xff]
  %1882 = vmatprep.subr.mxu0 %v1879
  %1883 = vmatpush1.msra.mxu0 %v1878
  %1884 = vmatprep.subr.mxu0 %v1875
  %1885 = vmatpush1.msra.mxu0 %v1874
  %1886 = vmatprep.subr.mxu0 %v1871
  %1887 = vmatpush1.msra.mxu0 %v1870
  %1888 = vmatprep.subr.mxu0 %v1867
  %1889 = vmatpush1.msra.mxu0 %v1866
  %1890 = vmatprep.subr.mxu0 %v1863
  %1891 = vmatpush1.msra.mxu0 %v1862
  %1892 = vmatprep.subr.mxu0 %v1859
  %1893 = vmatpush1.msra.mxu0 %v1858
  %1894 = vmatprep.subr.mxu0 %v1855
  %1895 = vmatpush1.msra.mxu0 %v1854
  %1896 = vmatprep.subr.mxu0 %v1851
  %1897 = vmatpush1.msra.mxu0 %v1850
  %1898 = vmatprep.subr.mxu0 %v1847
  %1899 = vmatpush1.msra.mxu0 %v1846
  %1900 = vmatprep.subr.mxu0 %v1843
  %1901 = vmatpush1.msra.mxu0 %v1842
  %1902 = vmatprep.subr.mxu0 %v1839
  %1903 = vmatpush1.msra.mxu0 %v1838
  %1904 = vmatprep.subr.mxu0 %v1835
  %1905 = vmatpush1.msra.mxu0 %v1834
  %1906 = vmatprep.subr.mxu0 %v1831
  %1907 = vmatpush1.msra.mxu0 %v1830
  %1908 = vmatprep.subr.mxu0 %v1827
  %1909 = vmatpush1.msra.mxu0 %v1826
  %1910 = vmatprep.subr.mxu0 %v1823
  %1911 = vmatpush1.msra.mxu0 %v1822
  %1912 = vmatprep.subr.mxu0 %v1819
  %1913 = vmatpush1.msra.mxu0 %v1818
  %1914 = vmatprep.subr.mxu0 0.0
  %1915 = vmatpush2.msra.mxu0 0.0
  %1916 = vmatprep.subr.mxu0 0.0
  %1917 = vmatpush2.msra.mxu0 0.0
  %1918 = vmatprep.subr.mxu0 0.0
  %1919 = vmatpush2.msra.mxu0 0.0
  %1920 = vmatprep.subr.mxu0 0.0
  %1921 = vmatpush2.msra.mxu0 0.0
  %1922 = vmatprep.subr.mxu0 0.0
  %1923 = vmatpush2.msra.mxu0 0.0
  %1924 = vmatprep.subr.mxu0 0.0
  %1925 = vmatpush2.msra.mxu0 0.0
  %1926 = vmatprep.subr.mxu0 0.0
  %1927 = vmatpush2.msra.mxu0 0.0
  %1928 = vmatprep.subr.mxu0 0.0
  %1929 = vmatpush2.msra.mxu0 0.0
  %1930 = vmatprep.subr.mxu0 0.0
  %1931 = vmatpush2.msra.mxu0 0.0
  %1932 = vmatprep.subr.mxu0 0.0
  %1933 = vmatpush2.msra.mxu0 0.0
  %1934 = vmatprep.subr.mxu0 0.0
  %1935 = vmatpush2.msra.mxu0 0.0
  %1936 = vmatprep.subr.mxu0 0.0
  %1937 = vmatpush2.msra.mxu0 0.0
  %1938 = vmatprep.subr.mxu0 0.0
  %1939 = vmatpush2.msra.mxu0 0.0
  %1940 = vmatprep.subr.mxu0 0.0
  %1941 = vmatpush2.msra.mxu0 0.0
  %1942 = vmatprep.subr.mxu0 0.0
  %1943 = vmatpush2.msra.mxu0 0.0
  %1944 = vmatprep.subr.mxu0 0.0
  %1945 = vmatpush2.msra.mxu0 0.0
  %1946 = vmatprep.mubr.f32.mxu0 0.0
  %1947 = vmatmul.mubr.f32.gmra.mxu0 %v1808
  %v1948 = vpop.f32.mrf.mxu0
  %v1949 = vadd.f32 0.0, %v1948
  %v1950 = vpop.f32.mrf.mxu0
  %v1951 = vadd.f32 0.0, %v1950
  %1952 = vdwg.mxu0
  %1953 = vmatprep.subr.mxu0 %v1881
  %1954 = vmatpush1.msra.mxu0 %v1880
  %1955 = vmatprep.subr.mxu0 %v1877
  %1956 = vmatpush1.msra.mxu0 %v1876
  %1957 = vmatprep.subr.mxu0 %v1873
  %1958 = vmatpush1.msra.mxu0 %v1872
  %1959 = vmatprep.subr.mxu0 %v1869
  %1960 = vmatpush1.msra.mxu0 %v1868
  %1961 = vmatprep.subr.mxu0 %v1865
  %1962 = vmatpush1.msra.mxu0 %v1864
  %1963 = vmatprep.subr.mxu0 %v1861
  %1964 = vmatpush1.msra.mxu0 %v1860
  %1965 = vmatprep.subr.mxu0 %v1857
  %1966 = vmatpush1.msra.mxu0 %v1856
  %1967 = vmatprep.subr.mxu0 %v1853
  %1968 = vmatpush1.msra.mxu0 %v1852
  %1969 = vmatprep.subr.mxu0 %v1849
  %1970 = vmatpush1.msra.mxu0 %v1848
  %1971 = vmatprep.subr.mxu0 %v1845
  %1972 = vmatpush1.msra.mxu0 %v1844
  %1973 = vmatprep.subr.mxu0 %v1841
  %1974 = vmatpush1.msra.mxu0 %v1840
  %1975 = vmatprep.subr.mxu0 %v1837
  %1976 = vmatpush1.msra.mxu0 %v1836
  %1977 = vmatprep.subr.mxu0 %v1833
  %1978 = vmatpush1.msra.mxu0 %v1832
  %1979 = vmatprep.subr.mxu0 %v1829
  %1980 = vmatpush1.msra.mxu0 %v1828
  %1981 = vmatprep.subr.mxu0 %v1825
  %1982 = vmatpush1.msra.mxu0 %v1824
  %1983 = vmatprep.subr.mxu0 %v1821
  %1984 = vmatpush1.msra.mxu0 %v1820
  %1985 = vmatprep.subr.mxu0 0.0
  %1986 = vmatpush2.msra.mxu0 0.0
  %1987 = vmatprep.subr.mxu0 0.0
  %1988 = vmatpush2.msra.mxu0 0.0
  %1989 = vmatprep.subr.mxu0 0.0
  %1990 = vmatpush2.msra.mxu0 0.0
  %1991 = vmatprep.subr.mxu0 0.0
  %1992 = vmatpush2.msra.mxu0 0.0
  %1993 = vmatprep.subr.mxu0 0.0
  %1994 = vmatpush2.msra.mxu0 0.0
  %1995 = vmatprep.subr.mxu0 0.0
  %1996 = vmatpush2.msra.mxu0 0.0
  %1997 = vmatprep.subr.mxu0 0.0
  %1998 = vmatpush2.msra.mxu0 0.0
  %1999 = vmatprep.subr.mxu0 0.0
  %2000 = vmatpush2.msra.mxu0 0.0
  %2001 = vmatprep.subr.mxu0 0.0
  %2002 = vmatpush2.msra.mxu0 0.0
  %2003 = vmatprep.subr.mxu0 0.0
  %2004 = vmatpush2.msra.mxu0 0.0
  %2005 = vmatprep.subr.mxu0 0.0
  %2006 = vmatpush2.msra.mxu0 0.0
  %2007 = vmatprep.subr.mxu0 0.0
  %2008 = vmatpush2.msra.mxu0 0.0
  %2009 = vmatprep.subr.mxu0 0.0
  %2010 = vmatpush2.msra.mxu0 0.0
  %2011 = vmatprep.subr.mxu0 0.0
  %2012 = vmatpush2.msra.mxu0 0.0
  %2013 = vmatprep.subr.mxu0 0.0
  %2014 = vmatpush2.msra.mxu0 0.0
  %2015 = vmatprep.subr.mxu0 0.0
  %2016 = vmatpush2.msra.mxu0 0.0
  %2017 = vmatprep.mubr.f32.mxu0 0.0
  %2018 = vmatmul.mubr.f32.gmra.mxu0 %v1808
  %v2019 = vpop.f32.mrf.mxu0
  %v2020 = vadd.f32 0.0, %v2019
  %v2021 = vpop.f32.mrf.mxu0
  %v2022 = vadd.f32 0.0, %v2021
  %2023 = vdwg.mxu0
  %v2024 = vadd.f32 %v1814, %v1949
  %v2025 = vadd.f32 %v1815, %v1951
  %v2026 = vadd.f32 %v1816, %v2020
  %v2027 = vadd.f32 %v1817, %v2022
  %v2028 = vxor.u32 %v2024, 2147483648
  %v2029 = vmul.f32 %v2028, 1.442695
  %v2030 = vpow.pop %v2029
  %v2031 = vadd.f32 %v2030, 1.0
  %v2032 = vrcp.pop %v2031
  %v2033 = vmul.f32 1.0, %v2032
  %v2034 = vxor.u32 %v2025, 2147483648
  %v2035 = vmul.f32 %v2034, 1.442695
  %v2036 = vpow.pop %v2035
  %v2037 = vadd.f32 %v2036, 1.0
  %v2038 = vrcp.pop %v2037
  %v2039 = vmul.f32 1.0, %v2038
  %v2040 = vtanh.pop %v2026
  %v2041 = vxor.u32 %v2027, 2147483648
  %v2042 = vmul.f32 %v2041, 1.442695
  %v2043 = vpow.pop %v2042
  %v2044 = vadd.f32 %v2043, 1.0
  %v2045 = vrcp.pop %v2044
  %v2046 = vmul.f32 1.0, %v2045
  %v2047 = vmul.f32 %v2039, %v1806
  %v2048 = vmul.f32 %v2033, %v2040
  %v2049 = vadd.f32 %v2047, %v2048
  %v2050 = vtanh.pop %v2049
  %v2051 = vmul.f32 %v2046, %v2050
  %s2052 = scalar_lea.vmem [#allocation2], 48
  %2053 = vst [vmem:[%s2052] sm:$0xff] %v2051
  %s2054 = smul.u32 7, 4
  %s2055 = smul.addr %s2054, 8
  %s2056 = scalar_lea.vmem [#allocation3], %s2055
  %v2057 = vld [vmem:[%s2056] sm:$0xff]
  %v2058 = vld [vmem:[%s2056 + $0x8] sm:$0xff]
  %v2059 = vld [vmem:[%s2056 + $0x10] sm:$0xff]
  %v2060 = vld [vmem:[%s2056 + $0x18] sm:$0xff]
  %v2061 = vld [vmem:[%s3] sm:$0xff]
  %v2062 = vld [vmem:[%s3 + $0x8] sm:$0xff]
  %v2063 = vld [vmem:[%s3 + $0x10] sm:$0xff]
  %v2064 = vld [vmem:[%s3 + $0x18] sm:$0xff]
  %v2065 = vld [vmem:[%s3 + $0x20] sm:$0xff]
  %v2066 = vld [vmem:[%s3 + $0x28] sm:$0xff]
  %v2067 = vld [vmem:[%s3 + $0x30] sm:$0xff]
  %v2068 = vld [vmem:[%s3 + $0x38] sm:$0xff]
  %v2069 = vld [vmem:[%s3 + $0x40] sm:$0xff]
  %v2070 = vld [vmem:[%s3 + $0x48] sm:$0xff]
  %v2071 = vld [vmem:[%s3 + $0x50] sm:$0xff]
  %v2072 = vld [vmem:[%s3 + $0x58] sm:$0xff]
  %v2073 = vld [vmem:[%s3 + $0x60] sm:$0xff]
  %v2074 = vld [vmem:[%s3 + $0x68] sm:$0xff]
  %v2075 = vld [vmem:[%s3 + $0x70] sm:$0xff]
  %v2076 = vld [vmem:[%s3 + $0x78] sm:$0xff]
  %v2077 = vld [vmem:[%s3 + $0x80] sm:$0xff]
  %v2078 = vld [vmem:[%s3 + $0x88] sm:$0xff]
  %v2079 = vld [vmem:[%s3 + $0x90] sm:$0xff]
  %v2080 = vld [vmem:[%s3 + $0x98] sm:$0xff]
  %v2081 = vld [vmem:[%s3 + $0xa0] sm:$0xff]
  %v2082 = vld [vmem:[%s3 + $0xa8] sm:$0xff]
  %v2083 = vld [vmem:[%s3 + $0xb0] sm:$0xff]
  %v2084 = vld [vmem:[%s3 + $0xb8] sm:$0xff]
  %v2085 = vld [vmem:[%s3 + $0xc0] sm:$0xff]
  %v2086 = vld [vmem:[%s3 + $0xc8] sm:$0xff]
  %v2087 = vld [vmem:[%s3 + $0xd0] sm:$0xff]
  %v2088 = vld [vmem:[%s3 + $0xd8] sm:$0xff]
  %v2089 = vld [vmem:[%s3 + $0xe0] sm:$0xff]
  %v2090 = vld [vmem:[%s3 + $0xe8] sm:$0xff]
  %v2091 = vld [vmem:[%s3 + $0xf0] sm:$0xff]
  %v2092 = vld [vmem:[%s3 + $0xf8] sm:$0xff]
  %v2093 = vld [vmem:[%s3 + $0x100] sm:$0xff]
  %v2094 = vld [vmem:[%s3 + $0x108] sm:$0xff]
  %v2095 = vld [vmem:[%s3 + $0x110] sm:$0xff]
  %v2096 = vld [vmem:[%s3 + $0x118] sm:$0xff]
  %v2097 = vld [vmem:[%s3 + $0x120] sm:$0xff]
  %v2098 = vld [vmem:[%s3 + $0x128] sm:$0xff]
  %v2099 = vld [vmem:[%s3 + $0x130] sm:$0xff]
  %v2100 = vld [vmem:[%s3 + $0x138] sm:$0xff]
  %v2101 = vld [vmem:[%s3 + $0x140] sm:$0xff]
  %v2102 = vld [vmem:[%s3 + $0x148] sm:$0xff]
  %v2103 = vld [vmem:[%s3 + $0x150] sm:$0xff]
  %v2104 = vld [vmem:[%s3 + $0x158] sm:$0xff]
  %v2105 = vld [vmem:[%s3 + $0x160] sm:$0xff]
  %v2106 = vld [vmem:[%s3 + $0x168] sm:$0xff]
  %v2107 = vld [vmem:[%s3 + $0x170] sm:$0xff]
  %v2108 = vld [vmem:[%s3 + $0x178] sm:$0xff]
  %v2109 = vld [vmem:[%s3 + $0x180] sm:$0xff]
  %v2110 = vld [vmem:[%s3 + $0x188] sm:$0xff]
  %v2111 = vld [vmem:[%s3 + $0x190] sm:$0xff]
  %v2112 = vld [vmem:[%s3 + $0x198] sm:$0xff]
  %v2113 = vld [vmem:[%s3 + $0x1a0] sm:$0xff]
  %v2114 = vld [vmem:[%s3 + $0x1a8] sm:$0xff]
  %v2115 = vld [vmem:[%s3 + $0x1b0] sm:$0xff]
  %v2116 = vld [vmem:[%s3 + $0x1b8] sm:$0xff]
  %v2117 = vld [vmem:[%s3 + $0x1c0] sm:$0xff]
  %v2118 = vld [vmem:[%s3 + $0x1c8] sm:$0xff]
  %v2119 = vld [vmem:[%s3 + $0x1d0] sm:$0xff]
  %v2120 = vld [vmem:[%s3 + $0x1d8] sm:$0xff]
  %v2121 = vld [vmem:[%s3 + $0x1e0] sm:$0xff]
  %v2122 = vld [vmem:[%s3 + $0x1e8] sm:$0xff]
  %v2123 = vld [vmem:[%s3 + $0x1f0] sm:$0xff]
  %v2124 = vld [vmem:[%s3 + $0x1f8] sm:$0xff]
  %2125 = vmatprep.subr.mxu0 %v2122
  %2126 = vmatpush1.msra.mxu0 %v2121
  %2127 = vmatprep.subr.mxu0 %v2118
  %2128 = vmatpush1.msra.mxu0 %v2117
  %2129 = vmatprep.subr.mxu0 %v2114
  %2130 = vmatpush1.msra.mxu0 %v2113
  %2131 = vmatprep.subr.mxu0 %v2110
  %2132 = vmatpush1.msra.mxu0 %v2109
  %2133 = vmatprep.subr.mxu0 %v2106
  %2134 = vmatpush1.msra.mxu0 %v2105
  %2135 = vmatprep.subr.mxu0 %v2102
  %2136 = vmatpush1.msra.mxu0 %v2101
  %2137 = vmatprep.subr.mxu0 %v2098
  %2138 = vmatpush1.msra.mxu0 %v2097
  %2139 = vmatprep.subr.mxu0 %v2094
  %2140 = vmatpush1.msra.mxu0 %v2093
  %2141 = vmatprep.subr.mxu0 %v2090
  %2142 = vmatpush1.msra.mxu0 %v2089
  %2143 = vmatprep.subr.mxu0 %v2086
  %2144 = vmatpush1.msra.mxu0 %v2085
  %2145 = vmatprep.subr.mxu0 %v2082
  %2146 = vmatpush1.msra.mxu0 %v2081
  %2147 = vmatprep.subr.mxu0 %v2078
  %2148 = vmatpush1.msra.mxu0 %v2077
  %2149 = vmatprep.subr.mxu0 %v2074
  %2150 = vmatpush1.msra.mxu0 %v2073
  %2151 = vmatprep.subr.mxu0 %v2070
  %2152 = vmatpush1.msra.mxu0 %v2069
  %2153 = vmatprep.subr.mxu0 %v2066
  %2154 = vmatpush1.msra.mxu0 %v2065
  %2155 = vmatprep.subr.mxu0 %v2062
  %2156 = vmatpush1.msra.mxu0 %v2061
  %2157 = vmatprep.subr.mxu0 0.0
  %2158 = vmatpush2.msra.mxu0 0.0
  %2159 = vmatprep.subr.mxu0 0.0
  %2160 = vmatpush2.msra.mxu0 0.0
  %2161 = vmatprep.subr.mxu0 0.0
  %2162 = vmatpush2.msra.mxu0 0.0
  %2163 = vmatprep.subr.mxu0 0.0
  %2164 = vmatpush2.msra.mxu0 0.0
  %2165 = vmatprep.subr.mxu0 0.0
  %2166 = vmatpush2.msra.mxu0 0.0
  %2167 = vmatprep.subr.mxu0 0.0
  %2168 = vmatpush2.msra.mxu0 0.0
  %2169 = vmatprep.subr.mxu0 0.0
  %2170 = vmatpush2.msra.mxu0 0.0
  %2171 = vmatprep.subr.mxu0 0.0
  %2172 = vmatpush2.msra.mxu0 0.0
  %2173 = vmatprep.subr.mxu0 0.0
  %2174 = vmatpush2.msra.mxu0 0.0
  %2175 = vmatprep.subr.mxu0 0.0
  %2176 = vmatpush2.msra.mxu0 0.0
  %2177 = vmatprep.subr.mxu0 0.0
  %2178 = vmatpush2.msra.mxu0 0.0
  %2179 = vmatprep.subr.mxu0 0.0
  %2180 = vmatpush2.msra.mxu0 0.0
  %2181 = vmatprep.subr.mxu0 0.0
  %2182 = vmatpush2.msra.mxu0 0.0
  %2183 = vmatprep.subr.mxu0 0.0
  %2184 = vmatpush2.msra.mxu0 0.0
  %2185 = vmatprep.subr.mxu0 0.0
  %2186 = vmatpush2.msra.mxu0 0.0
  %2187 = vmatprep.subr.mxu0 0.0
  %2188 = vmatpush2.msra.mxu0 0.0
  %2189 = vmatprep.mubr.f32.mxu0 0.0
  %2190 = vmatmul.mubr.f32.gmra.mxu0 %v2051
  %v2191 = vpop.f32.mrf.mxu0
  %v2192 = vadd.f32 0.0, %v2191
  %v2193 = vpop.f32.mrf.mxu0
  %v2194 = vadd.f32 0.0, %v2193
  %2195 = vdwg.mxu0
  %2196 = vmatprep.subr.mxu0 %v2124
  %2197 = vmatpush1.msra.mxu0 %v2123
  %2198 = vmatprep.subr.mxu0 %v2120
  %2199 = vmatpush1.msra.mxu0 %v2119
  %2200 = vmatprep.subr.mxu0 %v2116
  %2201 = vmatpush1.msra.mxu0 %v2115
  %2202 = vmatprep.subr.mxu0 %v2112
  %2203 = vmatpush1.msra.mxu0 %v2111
  %2204 = vmatprep.subr.mxu0 %v2108
  %2205 = vmatpush1.msra.mxu0 %v2107
  %2206 = vmatprep.subr.mxu0 %v2104
  %2207 = vmatpush1.msra.mxu0 %v2103
  %2208 = vmatprep.subr.mxu0 %v2100
  %2209 = vmatpush1.msra.mxu0 %v2099
  %2210 = vmatprep.subr.mxu0 %v2096
  %2211 = vmatpush1.msra.mxu0 %v2095
  %2212 = vmatprep.subr.mxu0 %v2092
  %2213 = vmatpush1.msra.mxu0 %v2091
  %2214 = vmatprep.subr.mxu0 %v2088
  %2215 = vmatpush1.msra.mxu0 %v2087
  %2216 = vmatprep.subr.mxu0 %v2084
  %2217 = vmatpush1.msra.mxu0 %v2083
  %2218 = vmatprep.subr.mxu0 %v2080
  %2219 = vmatpush1.msra.mxu0 %v2079
  %2220 = vmatprep.subr.mxu0 %v2076
  %2221 = vmatpush1.msra.mxu0 %v2075
  %2222 = vmatprep.subr.mxu0 %v2072
  %2223 = vmatpush1.msra.mxu0 %v2071
  %2224 = vmatprep.subr.mxu0 %v2068
  %2225 = vmatpush1.msra.mxu0 %v2067
  %2226 = vmatprep.subr.mxu0 %v2064
  %2227 = vmatpush1.msra.mxu0 %v2063
  %2228 = vmatprep.subr.mxu0 0.0
  %2229 = vmatpush2.msra.mxu0 0.0
  %2230 = vmatprep.subr.mxu0 0.0
  %2231 = vmatpush2.msra.mxu0 0.0
  %2232 = vmatprep.subr.mxu0 0.0
  %2233 = vmatpush2.msra.mxu0 0.0
  %2234 = vmatprep.subr.mxu0 0.0
  %2235 = vmatpush2.msra.mxu0 0.0
  %2236 = vmatprep.subr.mxu0 0.0
  %2237 = vmatpush2.msra.mxu0 0.0
  %2238 = vmatprep.subr.mxu0 0.0
  %2239 = vmatpush2.msra.mxu0 0.0
  %2240 = vmatprep.subr.mxu0 0.0
  %2241 = vmatpush2.msra.mxu0 0.0
  %2242 = vmatprep.subr.mxu0 0.0
  %2243 = vmatpush2.msra.mxu0 0.0
  %2244 = vmatprep.subr.mxu0 0.0
  %2245 = vmatpush2.msra.mxu0 0.0
  %2246 = vmatprep.subr.mxu0 0.0
  %2247 = vmatpush2.msra.mxu0 0.0
  %2248 = vmatprep.subr.mxu0 0.0
  %2249 = vmatpush2.msra.mxu0 0.0
  %2250 = vmatprep.subr.mxu0 0.0
  %2251 = vmatpush2.msra.mxu0 0.0
  %2252 = vmatprep.subr.mxu0 0.0
  %2253 = vmatpush2.msra.mxu0 0.0
  %2254 = vmatprep.subr.mxu0 0.0
  %2255 = vmatpush2.msra.mxu0 0.0
  %2256 = vmatprep.subr.mxu0 0.0
  %2257 = vmatpush2.msra.mxu0 0.0
  %2258 = vmatprep.subr.mxu0 0.0
  %2259 = vmatpush2.msra.mxu0 0.0
  %2260 = vmatprep.mubr.f32.mxu0 0.0
  %2261 = vmatmul.mubr.f32.gmra.mxu0 %v2051
  %v2262 = vpop.f32.mrf.mxu0
  %v2263 = vadd.f32 0.0, %v2262
  %v2264 = vpop.f32.mrf.mxu0
  %v2265 = vadd.f32 0.0, %v2264
  %2266 = vdwg.mxu0
  %v2267 = vadd.f32 %v2057, %v2192
  %v2268 = vadd.f32 %v2058, %v2194
  %v2269 = vadd.f32 %v2059, %v2263
  %v2270 = vadd.f32 %v2060, %v2265
  %v2271 = vxor.u32 %v2267, 2147483648
  %v2272 = vmul.f32 %v2271, 1.442695
  %v2273 = vpow.pop %v2272
  %v2274 = vadd.f32 %v2273, 1.0
  %v2275 = vrcp.pop %v2274
  %v2276 = vmul.f32 1.0, %v2275
  %v2277 = vxor.u32 %v2268, 2147483648
  %v2278 = vmul.f32 %v2277, 1.442695
  %v2279 = vpow.pop %v2278
  %v2280 = vadd.f32 %v2279, 1.0
  %v2281 = vrcp.pop %v2280
  %v2282 = vmul.f32 1.0, %v2281
  %v2283 = vtanh.pop %v2269
  %v2284 = vxor.u32 %v2270, 2147483648
  %v2285 = vmul.f32 %v2284, 1.442695
  %v2286 = vpow.pop %v2285
  %v2287 = vadd.f32 %v2286, 1.0
  %v2288 = vrcp.pop %v2287
  %v2289 = vmul.f32 1.0, %v2288
  %v2290 = vmul.f32 %v2282, %v2049
  %v2291 = vmul.f32 %v2276, %v2283
  %v2292 = vadd.f32 %v2290, %v2291
  %v2293 = vtanh.pop %v2292
  %v2294 = vmul.f32 %v2289, %v2293
  %s2295 = scalar_lea.vmem [#allocation2], 56
  %2296 = vst [vmem:[%s2295] sm:$0xff] %v2294
  %v2297 = vld [vmem:[#allocation2] sm:$0xff]
  %v2298 = vld [vmem:[#allocation2 + $0x8] sm:$0xff]
  %v2299 = vld [vmem:[#allocation2 + $0x10] sm:$0xff]
  %v2300 = vld [vmem:[#allocation2 + $0x18] sm:$0xff]
  %v2301 = vld [vmem:[#allocation2 + $0x20] sm:$0xff]
  %v2302 = vld [vmem:[#allocation2 + $0x28] sm:$0xff]
  %v2303 = vld [vmem:[#allocation2 + $0x30] sm:$0xff]
  %v2304 = vld [vmem:[#allocation2 + $0x38] sm:$0xff]
  %v2305 = vld [vmem:[%s2] sm:$0xff]
  %v2306 = vld [vmem:[%s2 + $0x8] sm:$0xff]
  %v2307 = vld [vmem:[%s2 + $0x10] sm:$0xff]
  %v2308 = vld [vmem:[%s2 + $0x18] sm:$0xff]
  %v2309 = vld [vmem:[%s2 + $0x20] sm:$0xff]
  %v2310 = vld [vmem:[%s2 + $0x28] sm:$0xff]
  %v2311 = vld [vmem:[%s2 + $0x30] sm:$0xff]
  %v2312 = vld [vmem:[%s2 + $0x38] sm:$0xff]
  %v2313 = vld [vmem:[%s2 + $0x40] sm:$0xff]
  %v2314 = vld [vmem:[%s2 + $0x48] sm:$0xff]
  %v2315 = vld [vmem:[%s2 + $0x50] sm:$0xff]
  %v2316 = vld [vmem:[%s2 + $0x58] sm:$0xff]
  %v2317 = vld [vmem:[%s2 + $0x60] sm:$0xff]
  %v2318 = vld [vmem:[%s2 + $0x68] sm:$0xff]
  %v2319 = vld [vmem:[%s2 + $0x70] sm:$0xff]
  %v2320 = vld [vmem:[%s2 + $0x78] sm:$0xff]
  %v2321 = vld [vmem:[%s2 + $0x80] sm:$0xff]
  %v2322 = vld [vmem:[%s2 + $0x88] sm:$0xff]
  %v2323 = vld [vmem:[%s2 + $0x90] sm:$0xff]
  %v2324 = vld [vmem:[%s2 + $0x98] sm:$0xff]
  %v2325 = vld [vmem:[%s2 + $0xa0] sm:$0xff]
  %v2326 = vld [vmem:[%s2 + $0xa8] sm:$0xff]
  %v2327 = vld [vmem:[%s2 + $0xb0] sm:$0xff]
  %v2328 = vld [vmem:[%s2 + $0xb8] sm:$0xff]
  %v2329 = vld [vmem:[%s2 + $0xc0] sm:$0xff]
  %v2330 = vld [vmem:[%s2 + $0xc8] sm:$0xff]
  %v2331 = vld [vmem:[%s2 + $0xd0] sm:$0xff]
  %v2332 = vld [vmem:[%s2 + $0xd8] sm:$0xff]
  %v2333 = vld [vmem:[%s2 + $0xe0] sm:$0xff]
  %v2334 = vld [vmem:[%s2 + $0xe8] sm:$0xff]
  %v2335 = vld [vmem:[%s2 + $0xf0] sm:$0xff]
  %v2336 = vld [vmem:[%s2 + $0xf8] sm:$0xff]
  %v2337 = vld [vmem:[%s2 + $0x100] sm:$0xff]
  %v2338 = vld [vmem:[%s2 + $0x108] sm:$0xff]
  %v2339 = vld [vmem:[%s2 + $0x110] sm:$0xff]
  %v2340 = vld [vmem:[%s2 + $0x118] sm:$0xff]
  %v2341 = vld [vmem:[%s2 + $0x120] sm:$0xff]
  %v2342 = vld [vmem:[%s2 + $0x128] sm:$0xff]
  %v2343 = vld [vmem:[%s2 + $0x130] sm:$0xff]
  %v2344 = vld [vmem:[%s2 + $0x138] sm:$0xff]
  %v2345 = vld [vmem:[%s2 + $0x140] sm:$0xff]
  %v2346 = vld [vmem:[%s2 + $0x148] sm:$0xff]
  %v2347 = vld [vmem:[%s2 + $0x150] sm:$0xff]
  %v2348 = vld [vmem:[%s2 + $0x158] sm:$0xff]
  %v2349 = vld [vmem:[%s2 + $0x160] sm:$0xff]
  %v2350 = vld [vmem:[%s2 + $0x168] sm:$0xff]
  %v2351 = vld [vmem:[%s2 + $0x170] sm:$0xff]
  %v2352 = vld [vmem:[%s2 + $0x178] sm:$0xff]
  %v2353 = vld [vmem:[%s2 + $0x180] sm:$0xff]
  %v2354 = vld [vmem:[%s2 + $0x188] sm:$0xff]
  %v2355 = vld [vmem:[%s2 + $0x190] sm:$0xff]
  %v2356 = vld [vmem:[%s2 + $0x198] sm:$0xff]
  %v2357 = vld [vmem:[%s2 + $0x1a0] sm:$0xff]
  %v2358 = vld [vmem:[%s2 + $0x1a8] sm:$0xff]
  %v2359 = vld [vmem:[%s2 + $0x1b0] sm:$0xff]
  %v2360 = vld [vmem:[%s2 + $0x1b8] sm:$0xff]
  %v2361 = vld [vmem:[%s2 + $0x1c0] sm:$0xff]
  %v2362 = vld [vmem:[%s2 + $0x1c8] sm:$0xff]
  %v2363 = vld [vmem:[%s2 + $0x1d0] sm:$0xff]
  %v2364 = vld [vmem:[%s2 + $0x1d8] sm:$0xff]
  %v2365 = vld [vmem:[%s2 + $0x1e0] sm:$0xff]
  %v2366 = vld [vmem:[%s2 + $0x1e8] sm:$0xff]
  %v2367 = vld [vmem:[%s2 + $0x1f0] sm:$0xff]
  %v2368 = vld [vmem:[%s2 + $0x1f8] sm:$0xff]
  %s2369 = scalar_lea.vmem %s4, 4
  %v2370 = vld [vmem:[%s2369] sm:$0xf]
  %v2372 = vlaneseq
  %v2373 = vshrl.u32 %v2372, 7
  %v2374 = vsub.s32 0, %v2373
  %v2375 = vrot.slane %v2370, %v2374
  %v2376 = vlaneseq
  %v2377 = vshrl.u32 %v2376, 7
  %v2378 = vsub.s32 1, %v2377
  %v2379 = vrot.slane %v2370, %v2378
  %v2380 = vlaneseq
  %v2381 = vshrl.u32 %v2380, 7
  %v2382 = vsub.s32 2, %v2381
  %v2383 = vrot.slane %v2370, %v2382
  %v2384 = vlaneseq
  %v2385 = vshrl.u32 %v2384, 7
  %v2386 = vsub.s32 3, %v2385
  %v2387 = vrot.slane %v2370, %v2386
  %2392 = vmatprep.subr.mxu0 %v2366
  %2393 = vmatpush1.msra.mxu0 %v2365
  %2394 = vmatprep.subr.mxu0 %v2362
  %2395 = vmatpush1.msra.mxu0 %v2361
  %2396 = vmatprep.subr.mxu0 %v2358
  %2397 = vmatpush1.msra.mxu0 %v2357
  %2398 = vmatprep.subr.mxu0 %v2354
  %2399 = vmatpush1.msra.mxu0 %v2353
  %2400 = vmatprep.subr.mxu0 %v2350
  %2401 = vmatpush1.msra.mxu0 %v2349
  %2402 = vmatprep.subr.mxu0 %v2346
  %2403 = vmatpush1.msra.mxu0 %v2345
  %2404 = vmatprep.subr.mxu0 %v2342
  %2405 = vmatpush1.msra.mxu0 %v2341
  %2406 = vmatprep.subr.mxu0 %v2338
  %2407 = vmatpush1.msra.mxu0 %v2337
  %2408 = vmatprep.subr.mxu0 %v2334
  %2409 = vmatpush1.msra.mxu0 %v2333
  %2410 = vmatprep.subr.mxu0 %v2330
  %2411 = vmatpush1.msra.mxu0 %v2329
  %2412 = vmatprep.subr.mxu0 %v2326
  %2413 = vmatpush1.msra.mxu0 %v2325
  %2414 = vmatprep.subr.mxu0 %v2322
  %2415 = vmatpush1.msra.mxu0 %v2321
  %2416 = vmatprep.subr.mxu0 %v2318
  %2417 = vmatpush1.msra.mxu0 %v2317
  %2418 = vmatprep.subr.mxu0 %v2314
  %2419 = vmatpush1.msra.mxu0 %v2313
  %2420 = vmatprep.subr.mxu0 %v2310
  %2421 = vmatpush1.msra.mxu0 %v2309
  %2422 = vmatprep.subr.mxu0 %v2306
  %2423 = vmatpush1.msra.mxu0 %v2305
  %2424 = vmatprep.subr.mxu0 0.0
  %2425 = vmatpush2.msra.mxu0 0.0
  %2426 = vmatprep.subr.mxu0 0.0
  %2427 = vmatpush2.msra.mxu0 0.0
  %2428 = vmatprep.subr.mxu0 0.0
  %2429 = vmatpush2.msra.mxu0 0.0
  %2430 = vmatprep.subr.mxu0 0.0
  %2431 = vmatpush2.msra.mxu0 0.0
  %2432 = vmatprep.subr.mxu0 0.0
  %2433 = vmatpush2.msra.mxu0 0.0
  %2434 = vmatprep.subr.mxu0 0.0
  %2435 = vmatpush2.msra.mxu0 0.0
  %2436 = vmatprep.subr.mxu0 0.0
  %2437 = vmatpush2.msra.mxu0 0.0
  %2438 = vmatprep.subr.mxu0 0.0
  %2439 = vmatpush2.msra.mxu0 0.0
  %2440 = vmatprep.subr.mxu0 0.0
  %2441 = vmatpush2.msra.mxu0 0.0
  %2442 = vmatprep.subr.mxu0 0.0
  %2443 = vmatpush2.msra.mxu0 0.0
  %2444 = vmatprep.subr.mxu0 0.0
  %2445 = vmatpush2.msra.mxu0 0.0
  %2446 = vmatprep.subr.mxu0 0.0
  %2447 = vmatpush2.msra.mxu0 0.0
  %2448 = vmatprep.subr.mxu0 0.0
  %2449 = vmatpush2.msra.mxu0 0.0
  %2450 = vmatprep.subr.mxu0 0.0
  %2451 = vmatpush2.msra.mxu0 0.0
  %2452 = vmatprep.subr.mxu0 0.0
  %2453 = vmatpush2.msra.mxu0 0.0
  %2454 = vmatprep.subr.mxu0 0.0
  %2455 = vmatpush2.msra.mxu0 0.0
  %2456 = vmatprep.mubr.f32.mxu0 0.0
  %2457 = vmatmul.mubr.f32.gmra.mxu0 %v2297
  %v2458 = vpop.f32.mrf.mxu0
  %v2459 = vadd.f32 %v2375, %v2458
  %v2460 = vpop.f32.mrf.mxu0
  %v2461 = vadd.f32 %v2379, %v2460
  %2462 = vmatprep.mubr.f32.mxu0 0.0
  %2463 = vmatmul.mubr.f32.gmra.mxu0 %v2298
  %v2464 = vpop.f32.mrf.mxu0
  %v2465 = vadd.f32 %v2375, %v2464
  %v2466 = vpop.f32.mrf.mxu0
  %v2467 = vadd.f32 %v2379, %v2466
  %2468 = vmatprep.mubr.f32.mxu0 0.0
  %2469 = vmatmul.mubr.f32.gmra.mxu0 %v2299
  %v2470 = vpop.f32.mrf.mxu0
  %v2471 = vadd.f32 %v2375, %v2470
  %v2472 = vpop.f32.mrf.mxu0
  %v2473 = vadd.f32 %v2379, %v2472
  %2474 = vmatprep.mubr.f32.mxu0 0.0
  %2475 = vmatmul.mubr.f32.gmra.mxu0 %v2300
  %v2476 = vpop.f32.mrf.mxu0
  %v2477 = vadd.f32 %v2375, %v2476
  %v2478 = vpop.f32.mrf.mxu0
  %v2479 = vadd.f32 %v2379, %v2478
  %2480 = vmatprep.mubr.f32.mxu0 0.0
  %2481 = vmatmul.mubr.f32.gmra.mxu0 %v2301
  %v2482 = vpop.f32.mrf.mxu0
  %v2483 = vadd.f32 %v2375, %v2482
  %v2484 = vpop.f32.mrf.mxu0
  %v2485 = vadd.f32 %v2379, %v2484
  %2486 = vmatprep.mubr.f32.mxu0 0.0
  %2487 = vmatmul.mubr.f32.gmra.mxu0 %v2302
  %v2488 = vpop.f32.mrf.mxu0
  %v2489 = vadd.f32 %v2375, %v2488
  %v2490 = vpop.f32.mrf.mxu0
  %v2491 = vadd.f32 %v2379, %v2490
  %2492 = vmatprep.mubr.f32.mxu0 0.0
  %2493 = vmatmul.mubr.f32.gmra.mxu0 %v2303
  %v2494 = vpop.f32.mrf.mxu0
  %v2495 = vadd.f32 %v2375, %v2494
  %v2496 = vpop.f32.mrf.mxu0
  %v2497 = vadd.f32 %v2379, %v2496
  %2498 = vmatprep.mubr.f32.mxu0 0.0
  %2499 = vmatmul.mubr.f32.gmra.mxu0 %v2304
  %v2500 = vpop.f32.mrf.mxu0
  %v2501 = vadd.f32 %v2375, %v2500
  %v2502 = vpop.f32.mrf.mxu0
  %v2503 = vadd.f32 %v2379, %v2502
  %2504 = vdwg.mxu0
  %2505 = vmatprep.subr.mxu0 %v2368
  %2506 = vmatpush1.msra.mxu0 %v2367
  %2507 = vmatprep.subr.mxu0 %v2364
  %2508 = vmatpush1.msra.mxu0 %v2363
  %2509 = vmatprep.subr.mxu0 %v2360
  %2510 = vmatpush1.msra.mxu0 %v2359
  %2511 = vmatprep.subr.mxu0 %v2356
  %2512 = vmatpush1.msra.mxu0 %v2355
  %2513 = vmatprep.subr.mxu0 %v2352
  %2514 = vmatpush1.msra.mxu0 %v2351
  %2515 = vmatprep.subr.mxu0 %v2348
  %2516 = vmatpush1.msra.mxu0 %v2347
  %2517 = vmatprep.subr.mxu0 %v2344
  %2518 = vmatpush1.msra.mxu0 %v2343
  %2519 = vmatprep.subr.mxu0 %v2340
  %2520 = vmatpush1.msra.mxu0 %v2339
  %2521 = vmatprep.subr.mxu0 %v2336
  %2522 = vmatpush1.msra.mxu0 %v2335
  %2523 = vmatprep.subr.mxu0 %v2332
  %2524 = vmatpush1.msra.mxu0 %v2331
  %2525 = vmatprep.subr.mxu0 %v2328
  %2526 = vmatpush1.msra.mxu0 %v2327
  %2527 = vmatprep.subr.mxu0 %v2324
  %2528 = vmatpush1.msra.mxu0 %v2323
  %2529 = vmatprep.subr.mxu0 %v2320
  %2530 = vmatpush1.msra.mxu0 %v2319
  %2531 = vmatprep.subr.mxu0 %v2316
  %2532 = vmatpush1.msra.mxu0 %v2315
  %2533 = vmatprep.subr.mxu0 %v2312
  %2534 = vmatpush1.msra.mxu0 %v2311
  %2535 = vmatprep.subr.mxu0 %v2308
  %2536 = vmatpush1.msra.mxu0 %v2307
  %2537 = vmatprep.subr.mxu0 0.0
  %2538 = vmatpush2.msra.mxu0 0.0
  %2539 = vmatprep.subr.mxu0 0.0
  %2540 = vmatpush2.msra.mxu0 0.0
  %2541 = vmatprep.subr.mxu0 0.0
  %2542 = vmatpush2.msra.mxu0 0.0
  %2543 = vmatprep.subr.mxu0 0.0
  %2544 = vmatpush2.msra.mxu0 0.0
  %2545 = vmatprep.subr.mxu0 0.0
  %2546 = vmatpush2.msra.mxu0 0.0
  %2547 = vmatprep.subr.mxu0 0.0
  %2548 = vmatpush2.msra.mxu0 0.0
  %2549 = vmatprep.subr.mxu0 0.0
  %2550 = vmatpush2.msra.mxu0 0.0
  %2551 = vmatprep.subr.mxu0 0.0
  %2552 = vmatpush2.msra.mxu0 0.0
  %2553 = vmatprep.subr.mxu0 0.0
  %2554 = vmatpush2.msra.mxu0 0.0
  %2555 = vmatprep.subr.mxu0 0.0
  %2556 = vmatpush2.msra.mxu0 0.0
  %2557 = vmatprep.subr.mxu0 0.0
  %2558 = vmatpush2.msra.mxu0 0.0
  %2559 = vmatprep.subr.mxu0 0.0
  %2560 = vmatpush2.msra.mxu0 0.0
  %2561 = vmatprep.subr.mxu0 0.0
  %2562 = vmatpush2.msra.mxu0 0.0
  %2563 = vmatprep.subr.mxu0 0.0
  %2564 = vmatpush2.msra.mxu0 0.0
  %2565 = vmatprep.subr.mxu0 0.0
  %2566 = vmatpush2.msra.mxu0 0.0
  %2567 = vmatprep.subr.mxu0 0.0
  %2568 = vmatpush2.msra.mxu0 0.0
  %2569 = vmatprep.mubr.f32.mxu0 0.0
  %2570 = vmatmul.mubr.f32.gmra.mxu0 %v2297
  %v2571 = vpop.f32.mrf.mxu0
  %v2572 = vadd.f32 %v2383, %v2571
  %v2573 = vpop.f32.mrf.mxu0
  %v2574 = vadd.f32 %v2387, %v2573
  %2575 = vmatprep.mubr.f32.mxu0 0.0
  %2576 = vmatmul.mubr.f32.gmra.mxu0 %v2298
  %v2577 = vpop.f32.mrf.mxu0
  %v2578 = vadd.f32 %v2383, %v2577
  %v2579 = vpop.f32.mrf.mxu0
  %v2580 = vadd.f32 %v2387, %v2579
  %2581 = vmatprep.mubr.f32.mxu0 0.0
  %2582 = vmatmul.mubr.f32.gmra.mxu0 %v2299
  %v2583 = vpop.f32.mrf.mxu0
  %v2584 = vadd.f32 %v2383, %v2583
  %v2585 = vpop.f32.mrf.mxu0
  %v2586 = vadd.f32 %v2387, %v2585
  %2587 = vmatprep.mubr.f32.mxu0 0.0
  %2588 = vmatmul.mubr.f32.gmra.mxu0 %v2300
  %v2589 = vpop.f32.mrf.mxu0
  %v2590 = vadd.f32 %v2383, %v2589
  %v2591 = vpop.f32.mrf.mxu0
  %v2592 = vadd.f32 %v2387, %v2591
  %2593 = vmatprep.mubr.f32.mxu0 0.0
  %2594 = vmatmul.mubr.f32.gmra.mxu0 %v2301
  %v2595 = vpop.f32.mrf.mxu0
  %v2596 = vadd.f32 %v2383, %v2595
  %v2597 = vpop.f32.mrf.mxu0
  %v2598 = vadd.f32 %v2387, %v2597
  %2599 = vmatprep.mubr.f32.mxu0 0.0
  %2600 = vmatmul.mubr.f32.gmra.mxu0 %v2302
  %v2601 = vpop.f32.mrf.mxu0
  %v2602 = vadd.f32 %v2383, %v2601
  %v2603 = vpop.f32.mrf.mxu0
  %v2604 = vadd.f32 %v2387, %v2603
  %2605 = vmatprep.mubr.f32.mxu0 0.0
  %2606 = vmatmul.mubr.f32.gmra.mxu0 %v2303
  %v2607 = vpop.f32.mrf.mxu0
  %v2608 = vadd.f32 %v2383, %v2607
  %v2609 = vpop.f32.mrf.mxu0
  %v2610 = vadd.f32 %v2387, %v2609
  %2611 = vmatprep.mubr.f32.mxu0 0.0
  %2612 = vmatmul.mubr.f32.gmra.mxu0 %v2304
  %v2613 = vpop.f32.mrf.mxu0
  %v2614 = vadd.f32 %v2383, %v2613
  %v2615 = vpop.f32.mrf.mxu0
  %v2616 = vadd.f32 %v2387, %v2615
  %2617 = vdwg.mxu0
  %2618 = vst [vmem:[#allocation3] sm:$0xff] %v2459
  %2619 = vst [vmem:[#allocation3 + $0x8] sm:$0xff] %v2461
  %2620 = vst [vmem:[#allocation3 + $0x10] sm:$0xff] %v2572
  %2621 = vst [vmem:[#allocation3 + $0x18] sm:$0xff] %v2574
  %2622 = vst [vmem:[#allocation3 + $0x20] sm:$0xff] %v2465
  %2623 = vst [vmem:[#allocation3 + $0x28] sm:$0xff] %v2467
  %2624 = vst [vmem:[#allocation3 + $0x30] sm:$0xff] %v2578
  %2625 = vst [vmem:[#allocation3 + $0x38] sm:$0xff] %v2580
  %2626 = vst [vmem:[#allocation3 + $0x40] sm:$0xff] %v2471
  %2627 = vst [vmem:[#allocation3 + $0x48] sm:$0xff] %v2473
  %2628 = vst [vmem:[#allocation3 + $0x50] sm:$0xff] %v2584
  %2629 = vst [vmem:[#allocation3 + $0x58] sm:$0xff] %v2586
  %2630 = vst [vmem:[#allocation3 + $0x60] sm:$0xff] %v2477
  %2631 = vst [vmem:[#allocation3 + $0x68] sm:$0xff] %v2479
  %2632 = vst [vmem:[#allocation3 + $0x70] sm:$0xff] %v2590
  %2633 = vst [vmem:[#allocation3 + $0x78] sm:$0xff] %v2592
  %2634 = vst [vmem:[#allocation3 + $0x80] sm:$0xff] %v2483
  %2635 = vst [vmem:[#allocation3 + $0x88] sm:$0xff] %v2485
  %2636 = vst [vmem:[#allocation3 + $0x90] sm:$0xff] %v2596
  %2637 = vst [vmem:[#allocation3 + $0x98] sm:$0xff] %v2598
  %2638 = vst [vmem:[#allocation3 + $0xa0] sm:$0xff] %v2489
  %2639 = vst [vmem:[#allocation3 + $0xa8] sm:$0xff] %v2491
  %2640 = vst [vmem:[#allocation3 + $0xb0] sm:$0xff] %v2602
  %2641 = vst [vmem:[#allocation3 + $0xb8] sm:$0xff] %v2604
  %2642 = vst [vmem:[#allocation3 + $0xc0] sm:$0xff] %v2495
  %2643 = vst [vmem:[#allocation3 + $0xc8] sm:$0xff] %v2497
  %2644 = vst [vmem:[#allocation3 + $0xd0] sm:$0xff] %v2608
  %2645 = vst [vmem:[#allocation3 + $0xd8] sm:$0xff] %v2610
  %2646 = vst [vmem:[#allocation3 + $0xe0] sm:$0xff] %v2501
  %2647 = vst [vmem:[#allocation3 + $0xe8] sm:$0xff] %v2503
  %2648 = vst [vmem:[#allocation3 + $0xf0] sm:$0xff] %v2614
  %2649 = vst [vmem:[#allocation3 + $0xf8] sm:$0xff] %v2616
  %v2650 = vld [vmem:[%s356] sm:$0xff]
  %v2651 = vld [vmem:[%s356 + $0x8] sm:$0xff]
  %v2652 = vld [vmem:[%s356 + $0x10] sm:$0xff]
  %v2653 = vld [vmem:[%s356 + $0x18] sm:$0xff]
  %s2654 = scalar_lea.vmem %s3, 512
  %v2655 = vld [vmem:[%s2654] sm:$0xff]
  %v2656 = vld [vmem:[%s2654 + $0x8] sm:$0xff]
  %v2657 = vld [vmem:[%s2654 + $0x10] sm:$0xff]
  %v2658 = vld [vmem:[%s2654 + $0x18] sm:$0xff]
  %v2659 = vld [vmem:[%s2654 + $0x20] sm:$0xff]
  %v2660 = vld [vmem:[%s2654 + $0x28] sm:$0xff]
  %v2661 = vld [vmem:[%s2654 + $0x30] sm:$0xff]
  %v2662 = vld [vmem:[%s2654 + $0x38] sm:$0xff]
  %v2663 = vld [vmem:[%s2654 + $0x40] sm:$0xff]
  %v2664 = vld [vmem:[%s2654 + $0x48] sm:$0xff]
  %v2665 = vld [vmem:[%s2654 + $0x50] sm:$0xff]
  %v2666 = vld [vmem:[%s2654 + $0x58] sm:$0xff]
  %v2667 = vld [vmem:[%s2654 + $0x60] sm:$0xff]
  %v2668 = vld [vmem:[%s2654 + $0x68] sm:$0xff]
  %v2669 = vld [vmem:[%s2654 + $0x70] sm:$0xff]
  %v2670 = vld [vmem:[%s2654 + $0x78] sm:$0xff]
  %v2671 = vld [vmem:[%s2654 + $0x80] sm:$0xff]
  %v2672 = vld [vmem:[%s2654 + $0x88] sm:$0xff]
  %v2673 = vld [vmem:[%s2654 + $0x90] sm:$0xff]
  %v2674 = vld [vmem:[%s2654 + $0x98] sm:$0xff]
  %v2675 = vld [vmem:[%s2654 + $0xa0] sm:$0xff]
  %v2676 = vld [vmem:[%s2654 + $0xa8] sm:$0xff]
  %v2677 = vld [vmem:[%s2654 + $0xb0] sm:$0xff]
  %v2678 = vld [vmem:[%s2654 + $0xb8] sm:$0xff]
  %v2679 = vld [vmem:[%s2654 + $0xc0] sm:$0xff]
  %v2680 = vld [vmem:[%s2654 + $0xc8] sm:$0xff]
  %v2681 = vld [vmem:[%s2654 + $0xd0] sm:$0xff]
  %v2682 = vld [vmem:[%s2654 + $0xd8] sm:$0xff]
  %v2683 = vld [vmem:[%s2654 + $0xe0] sm:$0xff]
  %v2684 = vld [vmem:[%s2654 + $0xe8] sm:$0xff]
  %v2685 = vld [vmem:[%s2654 + $0xf0] sm:$0xff]
  %v2686 = vld [vmem:[%s2654 + $0xf8] sm:$0xff]
  %v2687 = vld [vmem:[%s2654 + $0x100] sm:$0xff]
  %v2688 = vld [vmem:[%s2654 + $0x108] sm:$0xff]
  %v2689 = vld [vmem:[%s2654 + $0x110] sm:$0xff]
  %v2690 = vld [vmem:[%s2654 + $0x118] sm:$0xff]
  %v2691 = vld [vmem:[%s2654 + $0x120] sm:$0xff]
  %v2692 = vld [vmem:[%s2654 + $0x128] sm:$0xff]
  %v2693 = vld [vmem:[%s2654 + $0x130] sm:$0xff]
  %v2694 = vld [vmem:[%s2654 + $0x138] sm:$0xff]
  %v2695 = vld [vmem:[%s2654 + $0x140] sm:$0xff]
  %v2696 = vld [vmem:[%s2654 + $0x148] sm:$0xff]
  %v2697 = vld [vmem:[%s2654 + $0x150] sm:$0xff]
  %v2698 = vld [vmem:[%s2654 + $0x158] sm:$0xff]
  %v2699 = vld [vmem:[%s2654 + $0x160] sm:$0xff]
  %v2700 = vld [vmem:[%s2654 + $0x168] sm:$0xff]
  %v2701 = vld [vmem:[%s2654 + $0x170] sm:$0xff]
  %v2702 = vld [vmem:[%s2654 + $0x178] sm:$0xff]
  %v2703 = vld [vmem:[%s2654 + $0x180] sm:$0xff]
  %v2704 = vld [vmem:[%s2654 + $0x188] sm:$0xff]
  %v2705 = vld [vmem:[%s2654 + $0x190] sm:$0xff]
  %v2706 = vld [vmem:[%s2654 + $0x198] sm:$0xff]
  %v2707 = vld [vmem:[%s2654 + $0x1a0] sm:$0xff]
  %v2708 = vld [vmem:[%s2654 + $0x1a8] sm:$0xff]
  %v2709 = vld [vmem:[%s2654 + $0x1b0] sm:$0xff]
  %v2710 = vld [vmem:[%s2654 + $0x1b8] sm:$0xff]
  %v2711 = vld [vmem:[%s2654 + $0x1c0] sm:$0xff]
  %v2712 = vld [vmem:[%s2654 + $0x1c8] sm:$0xff]
  %v2713 = vld [vmem:[%s2654 + $0x1d0] sm:$0xff]
  %v2714 = vld [vmem:[%s2654 + $0x1d8] sm:$0xff]
  %v2715 = vld [vmem:[%s2654 + $0x1e0] sm:$0xff]
  %v2716 = vld [vmem:[%s2654 + $0x1e8] sm:$0xff]
  %v2717 = vld [vmem:[%s2654 + $0x1f0] sm:$0xff]
  %v2718 = vld [vmem:[%s2654 + $0x1f8] sm:$0xff]
  %2719 = vmatprep.subr.mxu0 %v2716
  %2720 = vmatpush1.msra.mxu0 %v2715
  %2721 = vmatprep.subr.mxu0 %v2712
  %2722 = vmatpush1.msra.mxu0 %v2711
  %2723 = vmatprep.subr.mxu0 %v2708
  %2724 = vmatpush1.msra.mxu0 %v2707
  %2725 = vmatprep.subr.mxu0 %v2704
  %2726 = vmatpush1.msra.mxu0 %v2703
  %2727 = vmatprep.subr.mxu0 %v2700
  %2728 = vmatpush1.msra.mxu0 %v2699
  %2729 = vmatprep.subr.mxu0 %v2696
  %2730 = vmatpush1.msra.mxu0 %v2695
  %2731 = vmatprep.subr.mxu0 %v2692
  %2732 = vmatpush1.msra.mxu0 %v2691
  %2733 = vmatprep.subr.mxu0 %v2688
  %2734 = vmatpush1.msra.mxu0 %v2687
  %2735 = vmatprep.subr.mxu0 %v2684
  %2736 = vmatpush1.msra.mxu0 %v2683
  %2737 = vmatprep.subr.mxu0 %v2680
  %2738 = vmatpush1.msra.mxu0 %v2679
  %2739 = vmatprep.subr.mxu0 %v2676
  %2740 = vmatpush1.msra.mxu0 %v2675
  %2741 = vmatprep.subr.mxu0 %v2672
  %2742 = vmatpush1.msra.mxu0 %v2671
  %2743 = vmatprep.subr.mxu0 %v2668
  %2744 = vmatpush1.msra.mxu0 %v2667
  %2745 = vmatprep.subr.mxu0 %v2664
  %2746 = vmatpush1.msra.mxu0 %v2663
  %2747 = vmatprep.subr.mxu0 %v2660
  %2748 = vmatpush1.msra.mxu0 %v2659
  %2749 = vmatprep.subr.mxu0 %v2656
  %2750 = vmatpush1.msra.mxu0 %v2655
  %2751 = vmatprep.subr.mxu0 0.0
  %2752 = vmatpush2.msra.mxu0 0.0
  %2753 = vmatprep.subr.mxu0 0.0
  %2754 = vmatpush2.msra.mxu0 0.0
  %2755 = vmatprep.subr.mxu0 0.0
  %2756 = vmatpush2.msra.mxu0 0.0
  %2757 = vmatprep.subr.mxu0 0.0
  %2758 = vmatpush2.msra.mxu0 0.0
  %2759 = vmatprep.subr.mxu0 0.0
  %2760 = vmatpush2.msra.mxu0 0.0
  %2761 = vmatprep.subr.mxu0 0.0
  %2762 = vmatpush2.msra.mxu0 0.0
  %2763 = vmatprep.subr.mxu0 0.0
  %2764 = vmatpush2.msra.mxu0 0.0
  %2765 = vmatprep.subr.mxu0 0.0
  %2766 = vmatpush2.msra.mxu0 0.0
  %2767 = vmatprep.subr.mxu0 0.0
  %2768 = vmatpush2.msra.mxu0 0.0
  %2769 = vmatprep.subr.mxu0 0.0
  %2770 = vmatpush2.msra.mxu0 0.0
  %2771 = vmatprep.subr.mxu0 0.0
  %2772 = vmatpush2.msra.mxu0 0.0
  %2773 = vmatprep.subr.mxu0 0.0
  %2774 = vmatpush2.msra.mxu0 0.0
  %2775 = vmatprep.subr.mxu0 0.0
  %2776 = vmatpush2.msra.mxu0 0.0
  %2777 = vmatprep.subr.mxu0 0.0
  %2778 = vmatpush2.msra.mxu0 0.0
  %2779 = vmatprep.subr.mxu0 0.0
  %2780 = vmatpush2.msra.mxu0 0.0
  %2781 = vmatprep.subr.mxu0 0.0
  %2782 = vmatpush2.msra.mxu0 0.0
  %2783 = vmatprep.mubr.f32.mxu0 0.0
  %2784 = vmatmul.mubr.f32.gmra.mxu0 0.0
  %v2785 = vpop.f32.mrf.mxu0
  %v2786 = vadd.f32 0.0, %v2785
  %v2787 = vpop.f32.mrf.mxu0
  %v2788 = vadd.f32 0.0, %v2787
  %2789 = vdwg.mxu0
  %2790 = vmatprep.subr.mxu0 %v2718
  %2791 = vmatpush1.msra.mxu0 %v2717
  %2792 = vmatprep.subr.mxu0 %v2714
  %2793 = vmatpush1.msra.mxu0 %v2713
  %2794 = vmatprep.subr.mxu0 %v2710
  %2795 = vmatpush1.msra.mxu0 %v2709
  %2796 = vmatprep.subr.mxu0 %v2706
  %2797 = vmatpush1.msra.mxu0 %v2705
  %2798 = vmatprep.subr.mxu0 %v2702
  %2799 = vmatpush1.msra.mxu0 %v2701
  %2800 = vmatprep.subr.mxu0 %v2698
  %2801 = vmatpush1.msra.mxu0 %v2697
  %2802 = vmatprep.subr.mxu0 %v2694
  %2803 = vmatpush1.msra.mxu0 %v2693
  %2804 = vmatprep.subr.mxu0 %v2690
  %2805 = vmatpush1.msra.mxu0 %v2689
  %2806 = vmatprep.subr.mxu0 %v2686
  %2807 = vmatpush1.msra.mxu0 %v2685
  %2808 = vmatprep.subr.mxu0 %v2682
  %2809 = vmatpush1.msra.mxu0 %v2681
  %2810 = vmatprep.subr.mxu0 %v2678
  %2811 = vmatpush1.msra.mxu0 %v2677
  %2812 = vmatprep.subr.mxu0 %v2674
  %2813 = vmatpush1.msra.mxu0 %v2673
  %2814 = vmatprep.subr.mxu0 %v2670
  %2815 = vmatpush1.msra.mxu0 %v2669
  %2816 = vmatprep.subr.mxu0 %v2666
  %2817 = vmatpush1.msra.mxu0 %v2665
  %2818 = vmatprep.subr.mxu0 %v2662
  %2819 = vmatpush1.msra.mxu0 %v2661
  %2820 = vmatprep.subr.mxu0 %v2658
  %2821 = vmatpush1.msra.mxu0 %v2657
  %2822 = vmatprep.subr.mxu0 0.0
  %2823 = vmatpush2.msra.mxu0 0.0
  %2824 = vmatprep.subr.mxu0 0.0
  %2825 = vmatpush2.msra.mxu0 0.0
  %2826 = vmatprep.subr.mxu0 0.0
  %2827 = vmatpush2.msra.mxu0 0.0
  %2828 = vmatprep.subr.mxu0 0.0
  %2829 = vmatpush2.msra.mxu0 0.0
  %2830 = vmatprep.subr.mxu0 0.0
  %2831 = vmatpush2.msra.mxu0 0.0
  %2832 = vmatprep.subr.mxu0 0.0
  %2833 = vmatpush2.msra.mxu0 0.0
  %2834 = vmatprep.subr.mxu0 0.0
  %2835 = vmatpush2.msra.mxu0 0.0
  %2836 = vmatprep.subr.mxu0 0.0
  %2837 = vmatpush2.msra.mxu0 0.0
  %2838 = vmatprep.subr.mxu0 0.0
  %2839 = vmatpush2.msra.mxu0 0.0
  %2840 = vmatprep.subr.mxu0 0.0
  %2841 = vmatpush2.msra.mxu0 0.0
  %2842 = vmatprep.subr.mxu0 0.0
  %2843 = vmatpush2.msra.mxu0 0.0
  %2844 = vmatprep.subr.mxu0 0.0
  %2845 = vmatpush2.msra.mxu0 0.0
  %2846 = vmatprep.subr.mxu0 0.0
  %2847 = vmatpush2.msra.mxu0 0.0
  %2848 = vmatprep.subr.mxu0 0.0
  %2849 = vmatpush2.msra.mxu0 0.0
  %2850 = vmatprep.subr.mxu0 0.0
  %2851 = vmatpush2.msra.mxu0 0.0
  %2852 = vmatprep.subr.mxu0 0.0
  %2853 = vmatpush2.msra.mxu0 0.0
  %2854 = vmatprep.mubr.f32.mxu0 0.0
  %2855 = vmatmul.mubr.f32.gmra.mxu0 0.0
  %v2856 = vpop.f32.mrf.mxu0
  %v2857 = vadd.f32 0.0, %v2856
  %v2858 = vpop.f32.mrf.mxu0
  %v2859 = vadd.f32 0.0, %v2858
  %2860 = vdwg.mxu0
  %v2861 = vadd.f32 %v2650, %v2786
  %v2862 = vadd.f32 %v2651, %v2788
  %v2863 = vadd.f32 %v2652, %v2857
  %v2864 = vadd.f32 %v2653, %v2859
  %v2865 = vxor.u32 %v2861, 2147483648
  %v2866 = vmul.f32 %v2865, 1.442695
  %v2867 = vpow.pop %v2866
  %v2868 = vadd.f32 %v2867, 1.0
  %v2869 = vrcp.pop %v2868
  %v2870 = vmul.f32 1.0, %v2869
  %v2871 = vxor.u32 %v2862, 2147483648
  %v2872 = vmul.f32 %v2871, 1.442695
  %v2873 = vpow.pop %v2872
  %v2874 = vadd.f32 %v2873, 1.0
  %v2875 = vrcp.pop %v2874
  %v2876 = vmul.f32 1.0, %v2875
  %v2877 = vtanh.pop %v2863
  %v2878 = vxor.u32 %v2864, 2147483648
  %v2879 = vmul.f32 %v2878, 1.442695
  %v2880 = vpow.pop %v2879
  %v2881 = vadd.f32 %v2880, 1.0
  %v2882 = vrcp.pop %v2881
  %v2883 = vmul.f32 1.0, %v2882
  %v2884 = vmul.f32 %v2876, 0.0
  %v2885 = vmul.f32 %v2870, %v2877
  %v2886 = vadd.f32 %v2884, %v2885
  %v2887 = vtanh.pop %v2886
  %v2888 = vmul.f32 %v2883, %v2887
  %2889 = vst [vmem:[#allocation2] sm:$0xff] %v2888
  %v2890 = vld [vmem:[%s598] sm:$0xff]
  %v2891 = vld [vmem:[%s598 + $0x8] sm:$0xff]
  %v2892 = vld [vmem:[%s598 + $0x10] sm:$0xff]
  %v2893 = vld [vmem:[%s598 + $0x18] sm:$0xff]
  %v2894 = vld [vmem:[%s2654] sm:$0xff]
  %v2895 = vld [vmem:[%s2654 + $0x8] sm:$0xff]
  %v2896 = vld [vmem:[%s2654 + $0x10] sm:$0xff]
  %v2897 = vld [vmem:[%s2654 + $0x18] sm:$0xff]
  %v2898 = vld [vmem:[%s2654 + $0x20] sm:$0xff]
  %v2899 = vld [vmem:[%s2654 + $0x28] sm:$0xff]
  %v2900 = vld [vmem:[%s2654 + $0x30] sm:$0xff]
  %v2901 = vld [vmem:[%s2654 + $0x38] sm:$0xff]
  %v2902 = vld [vmem:[%s2654 + $0x40] sm:$0xff]
  %v2903 = vld [vmem:[%s2654 + $0x48] sm:$0xff]
  %v2904 = vld [vmem:[%s2654 + $0x50] sm:$0xff]
  %v2905 = vld [vmem:[%s2654 + $0x58] sm:$0xff]
  %v2906 = vld [vmem:[%s2654 + $0x60] sm:$0xff]
  %v2907 = vld [vmem:[%s2654 + $0x68] sm:$0xff]
  %v2908 = vld [vmem:[%s2654 + $0x70] sm:$0xff]
  %v2909 = vld [vmem:[%s2654 + $0x78] sm:$0xff]
  %v2910 = vld [vmem:[%s2654 + $0x80] sm:$0xff]
  %v2911 = vld [vmem:[%s2654 + $0x88] sm:$0xff]
  %v2912 = vld [vmem:[%s2654 + $0x90] sm:$0xff]
  %v2913 = vld [vmem:[%s2654 + $0x98] sm:$0xff]
  %v2914 = vld [vmem:[%s2654 + $0xa0] sm:$0xff]
  %v2915 = vld [vmem:[%s2654 + $0xa8] sm:$0xff]
  %v2916 = vld [vmem:[%s2654 + $0xb0] sm:$0xff]
  %v2917 = vld [vmem:[%s2654 + $0xb8] sm:$0xff]
  %v2918 = vld [vmem:[%s2654 + $0xc0] sm:$0xff]
  %v2919 = vld [vmem:[%s2654 + $0xc8] sm:$0xff]
  %v2920 = vld [vmem:[%s2654 + $0xd0] sm:$0xff]
  %v2921 = vld [vmem:[%s2654 + $0xd8] sm:$0xff]
  %v2922 = vld [vmem:[%s2654 + $0xe0] sm:$0xff]
  %v2923 = vld [vmem:[%s2654 + $0xe8] sm:$0xff]
  %v2924 = vld [vmem:[%s2654 + $0xf0] sm:$0xff]
  %v2925 = vld [vmem:[%s2654 + $0xf8] sm:$0xff]
  %v2926 = vld [vmem:[%s2654 + $0x100] sm:$0xff]
  %v2927 = vld [vmem:[%s2654 + $0x108] sm:$0xff]
  %v2928 = vld [vmem:[%s2654 + $0x110] sm:$0xff]
  %v2929 = vld [vmem:[%s2654 + $0x118] sm:$0xff]
  %v2930 = vld [vmem:[%s2654 + $0x120] sm:$0xff]
  %v2931 = vld [vmem:[%s2654 + $0x128] sm:$0xff]
  %v2932 = vld [vmem:[%s2654 + $0x130] sm:$0xff]
  %v2933 = vld [vmem:[%s2654 + $0x138] sm:$0xff]
  %v2934 = vld [vmem:[%s2654 + $0x140] sm:$0xff]
  %v2935 = vld [vmem:[%s2654 + $0x148] sm:$0xff]
  %v2936 = vld [vmem:[%s2654 + $0x150] sm:$0xff]
  %v2937 = vld [vmem:[%s2654 + $0x158] sm:$0xff]
  %v2938 = vld [vmem:[%s2654 + $0x160] sm:$0xff]
  %v2939 = vld [vmem:[%s2654 + $0x168] sm:$0xff]
  %v2940 = vld [vmem:[%s2654 + $0x170] sm:$0xff]
  %v2941 = vld [vmem:[%s2654 + $0x178] sm:$0xff]
  %v2942 = vld [vmem:[%s2654 + $0x180] sm:$0xff]
  %v2943 = vld [vmem:[%s2654 + $0x188] sm:$0xff]
  %v2944 = vld [vmem:[%s2654 + $0x190] sm:$0xff]
  %v2945 = vld [vmem:[%s2654 + $0x198] sm:$0xff]
  %v2946 = vld [vmem:[%s2654 + $0x1a0] sm:$0xff]
  %v2947 = vld [vmem:[%s2654 + $0x1a8] sm:$0xff]
  %v2948 = vld [vmem:[%s2654 + $0x1b0] sm:$0xff]
  %v2949 = vld [vmem:[%s2654 + $0x1b8] sm:$0xff]
  %v2950 = vld [vmem:[%s2654 + $0x1c0] sm:$0xff]
  %v2951 = vld [vmem:[%s2654 + $0x1c8] sm:$0xff]
  %v2952 = vld [vmem:[%s2654 + $0x1d0] sm:$0xff]
  %v2953 = vld [vmem:[%s2654 + $0x1d8] sm:$0xff]
  %v2954 = vld [vmem:[%s2654 + $0x1e0] sm:$0xff]
  %v2955 = vld [vmem:[%s2654 + $0x1e8] sm:$0xff]
  %v2956 = vld [vmem:[%s2654 + $0x1f0] sm:$0xff]
  %v2957 = vld [vmem:[%s2654 + $0x1f8] sm:$0xff]
  %2958 = vmatprep.subr.mxu0 %v2955
  %2959 = vmatpush1.msra.mxu0 %v2954
  %2960 = vmatprep.subr.mxu0 %v2951
  %2961 = vmatpush1.msra.mxu0 %v2950
  %2962 = vmatprep.subr.mxu0 %v2947
  %2963 = vmatpush1.msra.mxu0 %v2946
  %2964 = vmatprep.subr.mxu0 %v2943
  %2965 = vmatpush1.msra.mxu0 %v2942
  %2966 = vmatprep.subr.mxu0 %v2939
  %2967 = vmatpush1.msra.mxu0 %v2938
  %2968 = vmatprep.subr.mxu0 %v2935
  %2969 = vmatpush1.msra.mxu0 %v2934
  %2970 = vmatprep.subr.mxu0 %v2931
  %2971 = vmatpush1.msra.mxu0 %v2930
  %2972 = vmatprep.subr.mxu0 %v2927
  %2973 = vmatpush1.msra.mxu0 %v2926
  %2974 = vmatprep.subr.mxu0 %v2923
  %2975 = vmatpush1.msra.mxu0 %v2922
  %2976 = vmatprep.subr.mxu0 %v2919
  %2977 = vmatpush1.msra.mxu0 %v2918
  %2978 = vmatprep.subr.mxu0 %v2915
  %2979 = vmatpush1.msra.mxu0 %v2914
  %2980 = vmatprep.subr.mxu0 %v2911
  %2981 = vmatpush1.msra.mxu0 %v2910
  %2982 = vmatprep.subr.mxu0 %v2907
  %2983 = vmatpush1.msra.mxu0 %v2906
  %2984 = vmatprep.subr.mxu0 %v2903
  %2985 = vmatpush1.msra.mxu0 %v2902
  %2986 = vmatprep.subr.mxu0 %v2899
  %2987 = vmatpush1.msra.mxu0 %v2898
  %2988 = vmatprep.subr.mxu0 %v2895
  %2989 = vmatpush1.msra.mxu0 %v2894
  %2990 = vmatprep.subr.mxu0 0.0
  %2991 = vmatpush2.msra.mxu0 0.0
  %2992 = vmatprep.subr.mxu0 0.0
  %2993 = vmatpush2.msra.mxu0 0.0
  %2994 = vmatprep.subr.mxu0 0.0
  %2995 = vmatpush2.msra.mxu0 0.0
  %2996 = vmatprep.subr.mxu0 0.0
  %2997 = vmatpush2.msra.mxu0 0.0
  %2998 = vmatprep.subr.mxu0 0.0
  %2999 = vmatpush2.msra.mxu0 0.0
  %3000 = vmatprep.subr.mxu0 0.0
  %3001 = vmatpush2.msra.mxu0 0.0
  %3002 = vmatprep.subr.mxu0 0.0
  %3003 = vmatpush2.msra.mxu0 0.0
  %3004 = vmatprep.subr.mxu0 0.0
  %3005 = vmatpush2.msra.mxu0 0.0
  %3006 = vmatprep.subr.mxu0 0.0
  %3007 = vmatpush2.msra.mxu0 0.0
  %3008 = vmatprep.subr.mxu0 0.0
  %3009 = vmatpush2.msra.mxu0 0.0
  %3010 = vmatprep.subr.mxu0 0.0
  %3011 = vmatpush2.msra.mxu0 0.0
  %3012 = vmatprep.subr.mxu0 0.0
  %3013 = vmatpush2.msra.mxu0 0.0
  %3014 = vmatprep.subr.mxu0 0.0
  %3015 = vmatpush2.msra.mxu0 0.0
  %3016 = vmatprep.subr.mxu0 0.0
  %3017 = vmatpush2.msra.mxu0 0.0
  %3018 = vmatprep.subr.mxu0 0.0
  %3019 = vmatpush2.msra.mxu0 0.0
  %3020 = vmatprep.subr.mxu0 0.0
  %3021 = vmatpush2.msra.mxu0 0.0
  %3022 = vmatprep.mubr.f32.mxu0 0.0
  %3023 = vmatmul.mubr.f32.gmra.mxu0 %v2888
  %v3024 = vpop.f32.mrf.mxu0
  %v3025 = vadd.f32 0.0, %v3024
  %v3026 = vpop.f32.mrf.mxu0
  %v3027 = vadd.f32 0.0, %v3026
  %3028 = vdwg.mxu0
  %3029 = vmatprep.subr.mxu0 %v2957
  %3030 = vmatpush1.msra.mxu0 %v2956
  %3031 = vmatprep.subr.mxu0 %v2953
  %3032 = vmatpush1.msra.mxu0 %v2952
  %3033 = vmatprep.subr.mxu0 %v2949
  %3034 = vmatpush1.msra.mxu0 %v2948
  %3035 = vmatprep.subr.mxu0 %v2945
  %3036 = vmatpush1.msra.mxu0 %v2944
  %3037 = vmatprep.subr.mxu0 %v2941
  %3038 = vmatpush1.msra.mxu0 %v2940
  %3039 = vmatprep.subr.mxu0 %v2937
  %3040 = vmatpush1.msra.mxu0 %v2936
  %3041 = vmatprep.subr.mxu0 %v2933
  %3042 = vmatpush1.msra.mxu0 %v2932
  %3043 = vmatprep.subr.mxu0 %v2929
  %3044 = vmatpush1.msra.mxu0 %v2928
  %3045 = vmatprep.subr.mxu0 %v2925
  %3046 = vmatpush1.msra.mxu0 %v2924
  %3047 = vmatprep.subr.mxu0 %v2921
  %3048 = vmatpush1.msra.mxu0 %v2920
  %3049 = vmatprep.subr.mxu0 %v2917
  %3050 = vmatpush1.msra.mxu0 %v2916
  %3051 = vmatprep.subr.mxu0 %v2913
  %3052 = vmatpush1.msra.mxu0 %v2912
  %3053 = vmatprep.subr.mxu0 %v2909
  %3054 = vmatpush1.msra.mxu0 %v2908
  %3055 = vmatprep.subr.mxu0 %v2905
  %3056 = vmatpush1.msra.mxu0 %v2904
  %3057 = vmatprep.subr.mxu0 %v2901
  %3058 = vmatpush1.msra.mxu0 %v2900
  %3059 = vmatprep.subr.mxu0 %v2897
  %3060 = vmatpush1.msra.mxu0 %v2896
  %3061 = vmatprep.subr.mxu0 0.0
  %3062 = vmatpush2.msra.mxu0 0.0
  %3063 = vmatprep.subr.mxu0 0.0
  %3064 = vmatpush2.msra.mxu0 0.0
  %3065 = vmatprep.subr.mxu0 0.0
  %3066 = vmatpush2.msra.mxu0 0.0
  %3067 = vmatprep.subr.mxu0 0.0
  %3068 = vmatpush2.msra.mxu0 0.0
  %3069 = vmatprep.subr.mxu0 0.0
  %3070 = vmatpush2.msra.mxu0 0.0
  %3071 = vmatprep.subr.mxu0 0.0
  %3072 = vmatpush2.msra.mxu0 0.0
  %3073 = vmatprep.subr.mxu0 0.0
  %3074 = vmatpush2.msra.mxu0 0.0
  %3075 = vmatprep.subr.mxu0 0.0
  %3076 = vmatpush2.msra.mxu0 0.0
  %3077 = vmatprep.subr.mxu0 0.0
  %3078 = vmatpush2.msra.mxu0 0.0
  %3079 = vmatprep.subr.mxu0 0.0
  %3080 = vmatpush2.msra.mxu0 0.0
  %3081 = vmatprep.subr.mxu0 0.0
  %3082 = vmatpush2.msra.mxu0 0.0
  %3083 = vmatprep.subr.mxu0 0.0
  %3084 = vmatpush2.msra.mxu0 0.0
  %3085 = vmatprep.subr.mxu0 0.0
  %3086 = vmatpush2.msra.mxu0 0.0
  %3087 = vmatprep.subr.mxu0 0.0
  %3088 = vmatpush2.msra.mxu0 0.0
  %3089 = vmatprep.subr.mxu0 0.0
  %3090 = vmatpush2.msra.mxu0 0.0
  %3091 = vmatprep.subr.mxu0 0.0
  %3092 = vmatpush2.msra.mxu0 0.0
  %3093 = vmatprep.mubr.f32.mxu0 0.0
  %3094 = vmatmul.mubr.f32.gmra.mxu0 %v2888
  %v3095 = vpop.f32.mrf.mxu0
  %v3096 = vadd.f32 0.0, %v3095
  %v3097 = vpop.f32.mrf.mxu0
  %v3098 = vadd.f32 0.0, %v3097
  %3099 = vdwg.mxu0
  %v3100 = vadd.f32 %v2890, %v3025
  %v3101 = vadd.f32 %v2891, %v3027
  %v3102 = vadd.f32 %v2892, %v3096
  %v3103 = vadd.f32 %v2893, %v3098
  %v3104 = vxor.u32 %v3100, 2147483648
  %v3105 = vmul.f32 %v3104, 1.442695
  %v3106 = vpow.pop %v3105
  %v3107 = vadd.f32 %v3106, 1.0
  %v3108 = vrcp.pop %v3107
  %v3109 = vmul.f32 1.0, %v3108
  %v3110 = vxor.u32 %v3101, 2147483648
  %v3111 = vmul.f32 %v3110, 1.442695
  %v3112 = vpow.pop %v3111
  %v3113 = vadd.f32 %v3112, 1.0
  %v3114 = vrcp.pop %v3113
  %v3115 = vmul.f32 1.0, %v3114
  %v3116 = vtanh.pop %v3102
  %v3117 = vxor.u32 %v3103, 2147483648
  %v3118 = vmul.f32 %v3117, 1.442695
  %v3119 = vpow.pop %v3118
  %v3120 = vadd.f32 %v3119, 1.0
  %v3121 = vrcp.pop %v3120
  %v3122 = vmul.f32 1.0, %v3121
  %v3123 = vmul.f32 %v3115, %v2886
  %v3124 = vmul.f32 %v3109, %v3116
  %v3125 = vadd.f32 %v3123, %v3124
  %v3126 = vtanh.pop %v3125
  %v3127 = vmul.f32 %v3122, %v3126
  %3128 = vst [vmem:[%s837] sm:$0xff] %v3127
  %v3129 = vld [vmem:[%s841] sm:$0xff]
  %v3130 = vld [vmem:[%s841 + $0x8] sm:$0xff]
  %v3131 = vld [vmem:[%s841 + $0x10] sm:$0xff]
  %v3132 = vld [vmem:[%s841 + $0x18] sm:$0xff]
  %v3133 = vld [vmem:[%s2654] sm:$0xff]
  %v3134 = vld [vmem:[%s2654 + $0x8] sm:$0xff]
  %v3135 = vld [vmem:[%s2654 + $0x10] sm:$0xff]
  %v3136 = vld [vmem:[%s2654 + $0x18] sm:$0xff]
  %v3137 = vld [vmem:[%s2654 + $0x20] sm:$0xff]
  %v3138 = vld [vmem:[%s2654 + $0x28] sm:$0xff]
  %v3139 = vld [vmem:[%s2654 + $0x30] sm:$0xff]
  %v3140 = vld [vmem:[%s2654 + $0x38] sm:$0xff]
  %v3141 = vld [vmem:[%s2654 + $0x40] sm:$0xff]
  %v3142 = vld [vmem:[%s2654 + $0x48] sm:$0xff]
  %v3143 = vld [vmem:[%s2654 + $0x50] sm:$0xff]
  %v3144 = vld [vmem:[%s2654 + $0x58] sm:$0xff]
  %v3145 = vld [vmem:[%s2654 + $0x60] sm:$0xff]
  %v3146 = vld [vmem:[%s2654 + $0x68] sm:$0xff]
  %v3147 = vld [vmem:[%s2654 + $0x70] sm:$0xff]
  %v3148 = vld [vmem:[%s2654 + $0x78] sm:$0xff]
  %v3149 = vld [vmem:[%s2654 + $0x80] sm:$0xff]
  %v3150 = vld [vmem:[%s2654 + $0x88] sm:$0xff]
  %v3151 = vld [vmem:[%s2654 + $0x90] sm:$0xff]
  %v3152 = vld [vmem:[%s2654 + $0x98] sm:$0xff]
  %v3153 = vld [vmem:[%s2654 + $0xa0] sm:$0xff]
  %v3154 = vld [vmem:[%s2654 + $0xa8] sm:$0xff]
  %v3155 = vld [vmem:[%s2654 + $0xb0] sm:$0xff]
  %v3156 = vld [vmem:[%s2654 + $0xb8] sm:$0xff]
  %v3157 = vld [vmem:[%s2654 + $0xc0] sm:$0xff]
  %v3158 = vld [vmem:[%s2654 + $0xc8] sm:$0xff]
  %v3159 = vld [vmem:[%s2654 + $0xd0] sm:$0xff]
  %v3160 = vld [vmem:[%s2654 + $0xd8] sm:$0xff]
  %v3161 = vld [vmem:[%s2654 + $0xe0] sm:$0xff]
  %v3162 = vld [vmem:[%s2654 + $0xe8] sm:$0xff]
  %v3163 = vld [vmem:[%s2654 + $0xf0] sm:$0xff]
  %v3164 = vld [vmem:[%s2654 + $0xf8] sm:$0xff]
  %v3165 = vld [vmem:[%s2654 + $0x100] sm:$0xff]
  %v3166 = vld [vmem:[%s2654 + $0x108] sm:$0xff]
  %v3167 = vld [vmem:[%s2654 + $0x110] sm:$0xff]
  %v3168 = vld [vmem:[%s2654 + $0x118] sm:$0xff]
  %v3169 = vld [vmem:[%s2654 + $0x120] sm:$0xff]
  %v3170 = vld [vmem:[%s2654 + $0x128] sm:$0xff]
  %v3171 = vld [vmem:[%s2654 + $0x130] sm:$0xff]
  %v3172 = vld [vmem:[%s2654 + $0x138] sm:$0xff]
  %v3173 = vld [vmem:[%s2654 + $0x140] sm:$0xff]
  %v3174 = vld [vmem:[%s2654 + $0x148] sm:$0xff]
  %v3175 = vld [vmem:[%s2654 + $0x150] sm:$0xff]
  %v3176 = vld [vmem:[%s2654 + $0x158] sm:$0xff]
  %v3177 = vld [vmem:[%s2654 + $0x160] sm:$0xff]
  %v3178 = vld [vmem:[%s2654 + $0x168] sm:$0xff]
  %v3179 = vld [vmem:[%s2654 + $0x170] sm:$0xff]
  %v3180 = vld [vmem:[%s2654 + $0x178] sm:$0xff]
  %v3181 = vld [vmem:[%s2654 + $0x180] sm:$0xff]
  %v3182 = vld [vmem:[%s2654 + $0x188] sm:$0xff]
  %v3183 = vld [vmem:[%s2654 + $0x190] sm:$0xff]
  %v3184 = vld [vmem:[%s2654 + $0x198] sm:$0xff]
  %v3185 = vld [vmem:[%s2654 + $0x1a0] sm:$0xff]
  %v3186 = vld [vmem:[%s2654 + $0x1a8] sm:$0xff]
  %v3187 = vld [vmem:[%s2654 + $0x1b0] sm:$0xff]
  %v3188 = vld [vmem:[%s2654 + $0x1b8] sm:$0xff]
  %v3189 = vld [vmem:[%s2654 + $0x1c0] sm:$0xff]
  %v3190 = vld [vmem:[%s2654 + $0x1c8] sm:$0xff]
  %v3191 = vld [vmem:[%s2654 + $0x1d0] sm:$0xff]
  %v3192 = vld [vmem:[%s2654 + $0x1d8] sm:$0xff]
  %v3193 = vld [vmem:[%s2654 + $0x1e0] sm:$0xff]
  %v3194 = vld [vmem:[%s2654 + $0x1e8] sm:$0xff]
  %v3195 = vld [vmem:[%s2654 + $0x1f0] sm:$0xff]
  %v3196 = vld [vmem:[%s2654 + $0x1f8] sm:$0xff]
  %3197 = vmatprep.subr.mxu0 %v3194
  %3198 = vmatpush1.msra.mxu0 %v3193
  %3199 = vmatprep.subr.mxu0 %v3190
  %3200 = vmatpush1.msra.mxu0 %v3189
  %3201 = vmatprep.subr.mxu0 %v3186
  %3202 = vmatpush1.msra.mxu0 %v3185
  %3203 = vmatprep.subr.mxu0 %v3182
  %3204 = vmatpush1.msra.mxu0 %v3181
  %3205 = vmatprep.subr.mxu0 %v3178
  %3206 = vmatpush1.msra.mxu0 %v3177
  %3207 = vmatprep.subr.mxu0 %v3174
  %3208 = vmatpush1.msra.mxu0 %v3173
  %3209 = vmatprep.subr.mxu0 %v3170
  %3210 = vmatpush1.msra.mxu0 %v3169
  %3211 = vmatprep.subr.mxu0 %v3166
  %3212 = vmatpush1.msra.mxu0 %v3165
  %3213 = vmatprep.subr.mxu0 %v3162
  %3214 = vmatpush1.msra.mxu0 %v3161
  %3215 = vmatprep.subr.mxu0 %v3158
  %3216 = vmatpush1.msra.mxu0 %v3157
  %3217 = vmatprep.subr.mxu0 %v3154
  %3218 = vmatpush1.msra.mxu0 %v3153
  %3219 = vmatprep.subr.mxu0 %v3150
  %3220 = vmatpush1.msra.mxu0 %v3149
  %3221 = vmatprep.subr.mxu0 %v3146
  %3222 = vmatpush1.msra.mxu0 %v3145
  %3223 = vmatprep.subr.mxu0 %v3142
  %3224 = vmatpush1.msra.mxu0 %v3141
  %3225 = vmatprep.subr.mxu0 %v3138
  %3226 = vmatpush1.msra.mxu0 %v3137
  %3227 = vmatprep.subr.mxu0 %v3134
  %3228 = vmatpush1.msra.mxu0 %v3133
  %3229 = vmatprep.subr.mxu0 0.0
  %3230 = vmatpush2.msra.mxu0 0.0
  %3231 = vmatprep.subr.mxu0 0.0
  %3232 = vmatpush2.msra.mxu0 0.0
  %3233 = vmatprep.subr.mxu0 0.0
  %3234 = vmatpush2.msra.mxu0 0.0
  %3235 = vmatprep.subr.mxu0 0.0
  %3236 = vmatpush2.msra.mxu0 0.0
  %3237 = vmatprep.subr.mxu0 0.0
  %3238 = vmatpush2.msra.mxu0 0.0
  %3239 = vmatprep.subr.mxu0 0.0
  %3240 = vmatpush2.msra.mxu0 0.0
  %3241 = vmatprep.subr.mxu0 0.0
  %3242 = vmatpush2.msra.mxu0 0.0
  %3243 = vmatprep.subr.mxu0 0.0
  %3244 = vmatpush2.msra.mxu0 0.0
  %3245 = vmatprep.subr.mxu0 0.0
  %3246 = vmatpush2.msra.mxu0 0.0
  %3247 = vmatprep.subr.mxu0 0.0
  %3248 = vmatpush2.msra.mxu0 0.0
  %3249 = vmatprep.subr.mxu0 0.0
  %3250 = vmatpush2.msra.mxu0 0.0
  %3251 = vmatprep.subr.mxu0 0.0
  %3252 = vmatpush2.msra.mxu0 0.0
  %3253 = vmatprep.subr.mxu0 0.0
  %3254 = vmatpush2.msra.mxu0 0.0
  %3255 = vmatprep.subr.mxu0 0.0
  %3256 = vmatpush2.msra.mxu0 0.0
  %3257 = vmatprep.subr.mxu0 0.0
  %3258 = vmatpush2.msra.mxu0 0.0
  %3259 = vmatprep.subr.mxu0 0.0
  %3260 = vmatpush2.msra.mxu0 0.0
  %3261 = vmatprep.mubr.f32.mxu0 0.0
  %3262 = vmatmul.mubr.f32.gmra.mxu0 %v3127
  %v3263 = vpop.f32.mrf.mxu0
  %v3264 = vadd.f32 0.0, %v3263
  %v3265 = vpop.f32.mrf.mxu0
  %v3266 = vadd.f32 0.0, %v3265
  %3267 = vdwg.mxu0
  %3268 = vmatprep.subr.mxu0 %v3196
  %3269 = vmatpush1.msra.mxu0 %v3195
  %3270 = vmatprep.subr.mxu0 %v3192
  %3271 = vmatpush1.msra.mxu0 %v3191
  %3272 = vmatprep.subr.mxu0 %v3188
  %3273 = vmatpush1.msra.mxu0 %v3187
  %3274 = vmatprep.subr.mxu0 %v3184
  %3275 = vmatpush1.msra.mxu0 %v3183
  %3276 = vmatprep.subr.mxu0 %v3180
  %3277 = vmatpush1.msra.mxu0 %v3179
  %3278 = vmatprep.subr.mxu0 %v3176
  %3279 = vmatpush1.msra.mxu0 %v3175
  %3280 = vmatprep.subr.mxu0 %v3172
  %3281 = vmatpush1.msra.mxu0 %v3171
  %3282 = vmatprep.subr.mxu0 %v3168
  %3283 = vmatpush1.msra.mxu0 %v3167
  %3284 = vmatprep.subr.mxu0 %v3164
  %3285 = vmatpush1.msra.mxu0 %v3163
  %3286 = vmatprep.subr.mxu0 %v3160
  %3287 = vmatpush1.msra.mxu0 %v3159
  %3288 = vmatprep.subr.mxu0 %v3156
  %3289 = vmatpush1.msra.mxu0 %v3155
  %3290 = vmatprep.subr.mxu0 %v3152
  %3291 = vmatpush1.msra.mxu0 %v3151
  %3292 = vmatprep.subr.mxu0 %v3148
  %3293 = vmatpush1.msra.mxu0 %v3147
  %3294 = vmatprep.subr.mxu0 %v3144
  %3295 = vmatpush1.msra.mxu0 %v3143
  %3296 = vmatprep.subr.mxu0 %v3140
  %3297 = vmatpush1.msra.mxu0 %v3139
  %3298 = vmatprep.subr.mxu0 %v3136
  %3299 = vmatpush1.msra.mxu0 %v3135
  %3300 = vmatprep.subr.mxu0 0.0
  %3301 = vmatpush2.msra.mxu0 0.0
  %3302 = vmatprep.subr.mxu0 0.0
  %3303 = vmatpush2.msra.mxu0 0.0
  %3304 = vmatprep.subr.mxu0 0.0
  %3305 = vmatpush2.msra.mxu0 0.0
  %3306 = vmatprep.subr.mxu0 0.0
  %3307 = vmatpush2.msra.mxu0 0.0
  %3308 = vmatprep.subr.mxu0 0.0
  %3309 = vmatpush2.msra.mxu0 0.0
  %3310 = vmatprep.subr.mxu0 0.0
  %3311 = vmatpush2.msra.mxu0 0.0
  %3312 = vmatprep.subr.mxu0 0.0
  %3313 = vmatpush2.msra.mxu0 0.0
  %3314 = vmatprep.subr.mxu0 0.0
  %3315 = vmatpush2.msra.mxu0 0.0
  %3316 = vmatprep.subr.mxu0 0.0
  %3317 = vmatpush2.msra.mxu0 0.0
  %3318 = vmatprep.subr.mxu0 0.0
  %3319 = vmatpush2.msra.mxu0 0.0
  %3320 = vmatprep.subr.mxu0 0.0
  %3321 = vmatpush2.msra.mxu0 0.0
  %3322 = vmatprep.subr.mxu0 0.0
  %3323 = vmatpush2.msra.mxu0 0.0
  %3324 = vmatprep.subr.mxu0 0.0
  %3325 = vmatpush2.msra.mxu0 0.0
  %3326 = vmatprep.subr.mxu0 0.0
  %3327 = vmatpush2.msra.mxu0 0.0
  %3328 = vmatprep.subr.mxu0 0.0
  %3329 = vmatpush2.msra.mxu0 0.0
  %3330 = vmatprep.subr.mxu0 0.0
  %3331 = vmatpush2.msra.mxu0 0.0
  %3332 = vmatprep.mubr.f32.mxu0 0.0
  %3333 = vmatmul.mubr.f32.gmra.mxu0 %v3127
  %v3334 = vpop.f32.mrf.mxu0
  %v3335 = vadd.f32 0.0, %v3334
  %v3336 = vpop.f32.mrf.mxu0
  %v3337 = vadd.f32 0.0, %v3336
  %3338 = vdwg.mxu0
  %v3339 = vadd.f32 %v3129, %v3264
  %v3340 = vadd.f32 %v3130, %v3266
  %v3341 = vadd.f32 %v3131, %v3335
  %v3342 = vadd.f32 %v3132, %v3337
  %v3343 = vxor.u32 %v3339, 2147483648
  %v3344 = vmul.f32 %v3343, 1.442695
  %v3345 = vpow.pop %v3344
  %v3346 = vadd.f32 %v3345, 1.0
  %v3347 = vrcp.pop %v3346
  %v3348 = vmul.f32 1.0, %v3347
  %v3349 = vxor.u32 %v3340, 2147483648
  %v3350 = vmul.f32 %v3349, 1.442695
  %v3351 = vpow.pop %v3350
  %v3352 = vadd.f32 %v3351, 1.0
  %v3353 = vrcp.pop %v3352
  %v3354 = vmul.f32 1.0, %v3353
  %v3355 = vtanh.pop %v3341
  %v3356 = vxor.u32 %v3342, 2147483648
  %v3357 = vmul.f32 %v3356, 1.442695
  %v3358 = vpow.pop %v3357
  %v3359 = vadd.f32 %v3358, 1.0
  %v3360 = vrcp.pop %v3359
  %v3361 = vmul.f32 1.0, %v3360
  %v3362 = vmul.f32 %v3354, %v3125
  %v3363 = vmul.f32 %v3348, %v3355
  %v3364 = vadd.f32 %v3362, %v3363
  %v3365 = vtanh.pop %v3364
  %v3366 = vmul.f32 %v3361, %v3365
  %3367 = vst [vmem:[%s1080] sm:$0xff] %v3366
  %v3368 = vld [vmem:[%s1084] sm:$0xff]
  %v3369 = vld [vmem:[%s1084 + $0x8] sm:$0xff]
  %v3370 = vld [vmem:[%s1084 + $0x10] sm:$0xff]
  %v3371 = vld [vmem:[%s1084 + $0x18] sm:$0xff]
  %v3372 = vld [vmem:[%s2654] sm:$0xff]
  %v3373 = vld [vmem:[%s2654 + $0x8] sm:$0xff]
  %v3374 = vld [vmem:[%s2654 + $0x10] sm:$0xff]
  %v3375 = vld [vmem:[%s2654 + $0x18] sm:$0xff]
  %v3376 = vld [vmem:[%s2654 + $0x20] sm:$0xff]
  %v3377 = vld [vmem:[%s2654 + $0x28] sm:$0xff]
  %v3378 = vld [vmem:[%s2654 + $0x30] sm:$0xff]
  %v3379 = vld [vmem:[%s2654 + $0x38] sm:$0xff]
  %v3380 = vld [vmem:[%s2654 + $0x40] sm:$0xff]
  %v3381 = vld [vmem:[%s2654 + $0x48] sm:$0xff]
  %v3382 = vld [vmem:[%s2654 + $0x50] sm:$0xff]
  %v3383 = vld [vmem:[%s2654 + $0x58] sm:$0xff]
  %v3384 = vld [vmem:[%s2654 + $0x60] sm:$0xff]
  %v3385 = vld [vmem:[%s2654 + $0x68] sm:$0xff]
  %v3386 = vld [vmem:[%s2654 + $0x70] sm:$0xff]
  %v3387 = vld [vmem:[%s2654 + $0x78] sm:$0xff]
  %v3388 = vld [vmem:[%s2654 + $0x80] sm:$0xff]
  %v3389 = vld [vmem:[%s2654 + $0x88] sm:$0xff]
  %v3390 = vld [vmem:[%s2654 + $0x90] sm:$0xff]
  %v3391 = vld [vmem:[%s2654 + $0x98] sm:$0xff]
  %v3392 = vld [vmem:[%s2654 + $0xa0] sm:$0xff]
  %v3393 = vld [vmem:[%s2654 + $0xa8] sm:$0xff]
  %v3394 = vld [vmem:[%s2654 + $0xb0] sm:$0xff]
  %v3395 = vld [vmem:[%s2654 + $0xb8] sm:$0xff]
  %v3396 = vld [vmem:[%s2654 + $0xc0] sm:$0xff]
  %v3397 = vld [vmem:[%s2654 + $0xc8] sm:$0xff]
  %v3398 = vld [vmem:[%s2654 + $0xd0] sm:$0xff]
  %v3399 = vld [vmem:[%s2654 + $0xd8] sm:$0xff]
  %v3400 = vld [vmem:[%s2654 + $0xe0] sm:$0xff]
  %v3401 = vld [vmem:[%s2654 + $0xe8] sm:$0xff]
  %v3402 = vld [vmem:[%s2654 + $0xf0] sm:$0xff]
  %v3403 = vld [vmem:[%s2654 + $0xf8] sm:$0xff]
  %v3404 = vld [vmem:[%s2654 + $0x100] sm:$0xff]
  %v3405 = vld [vmem:[%s2654 + $0x108] sm:$0xff]
  %v3406 = vld [vmem:[%s2654 + $0x110] sm:$0xff]
  %v3407 = vld [vmem:[%s2654 + $0x118] sm:$0xff]
  %v3408 = vld [vmem:[%s2654 + $0x120] sm:$0xff]
  %v3409 = vld [vmem:[%s2654 + $0x128] sm:$0xff]
  %v3410 = vld [vmem:[%s2654 + $0x130] sm:$0xff]
  %v3411 = vld [vmem:[%s2654 + $0x138] sm:$0xff]
  %v3412 = vld [vmem:[%s2654 + $0x140] sm:$0xff]
  %v3413 = vld [vmem:[%s2654 + $0x148] sm:$0xff]
  %v3414 = vld [vmem:[%s2654 + $0x150] sm:$0xff]
  %v3415 = vld [vmem:[%s2654 + $0x158] sm:$0xff]
  %v3416 = vld [vmem:[%s2654 + $0x160] sm:$0xff]
  %v3417 = vld [vmem:[%s2654 + $0x168] sm:$0xff]
  %v3418 = vld [vmem:[%s2654 + $0x170] sm:$0xff]
  %v3419 = vld [vmem:[%s2654 + $0x178] sm:$0xff]
  %v3420 = vld [vmem:[%s2654 + $0x180] sm:$0xff]
  %v3421 = vld [vmem:[%s2654 + $0x188] sm:$0xff]
  %v3422 = vld [vmem:[%s2654 + $0x190] sm:$0xff]
  %v3423 = vld [vmem:[%s2654 + $0x198] sm:$0xff]
  %v3424 = vld [vmem:[%s2654 + $0x1a0] sm:$0xff]
  %v3425 = vld [vmem:[%s2654 + $0x1a8] sm:$0xff]
  %v3426 = vld [vmem:[%s2654 + $0x1b0] sm:$0xff]
  %v3427 = vld [vmem:[%s2654 + $0x1b8] sm:$0xff]
  %v3428 = vld [vmem:[%s2654 + $0x1c0] sm:$0xff]
  %v3429 = vld [vmem:[%s2654 + $0x1c8] sm:$0xff]
  %v3430 = vld [vmem:[%s2654 + $0x1d0] sm:$0xff]
  %v3431 = vld [vmem:[%s2654 + $0x1d8] sm:$0xff]
  %v3432 = vld [vmem:[%s2654 + $0x1e0] sm:$0xff]
  %v3433 = vld [vmem:[%s2654 + $0x1e8] sm:$0xff]
  %v3434 = vld [vmem:[%s2654 + $0x1f0] sm:$0xff]
  %v3435 = vld [vmem:[%s2654 + $0x1f8] sm:$0xff]
  %3436 = vmatprep.subr.mxu0 %v3433
  %3437 = vmatpush1.msra.mxu0 %v3432
  %3438 = vmatprep.subr.mxu0 %v3429
  %3439 = vmatpush1.msra.mxu0 %v3428
  %3440 = vmatprep.subr.mxu0 %v3425
  %3441 = vmatpush1.msra.mxu0 %v3424
  %3442 = vmatprep.subr.mxu0 %v3421
  %3443 = vmatpush1.msra.mxu0 %v3420
  %3444 = vmatprep.subr.mxu0 %v3417
  %3445 = vmatpush1.msra.mxu0 %v3416
  %3446 = vmatprep.subr.mxu0 %v3413
  %3447 = vmatpush1.msra.mxu0 %v3412
  %3448 = vmatprep.subr.mxu0 %v3409
  %3449 = vmatpush1.msra.mxu0 %v3408
  %3450 = vmatprep.subr.mxu0 %v3405
  %3451 = vmatpush1.msra.mxu0 %v3404
  %3452 = vmatprep.subr.mxu0 %v3401
  %3453 = vmatpush1.msra.mxu0 %v3400
  %3454 = vmatprep.subr.mxu0 %v3397
  %3455 = vmatpush1.msra.mxu0 %v3396
  %3456 = vmatprep.subr.mxu0 %v3393
  %3457 = vmatpush1.msra.mxu0 %v3392
  %3458 = vmatprep.subr.mxu0 %v3389
  %3459 = vmatpush1.msra.mxu0 %v3388
  %3460 = vmatprep.subr.mxu0 %v3385
  %3461 = vmatpush1.msra.mxu0 %v3384
  %3462 = vmatprep.subr.mxu0 %v3381
  %3463 = vmatpush1.msra.mxu0 %v3380
  %3464 = vmatprep.subr.mxu0 %v3377
  %3465 = vmatpush1.msra.mxu0 %v3376
  %3466 = vmatprep.subr.mxu0 %v3373
  %3467 = vmatpush1.msra.mxu0 %v3372
  %3468 = vmatprep.subr.mxu0 0.0
  %3469 = vmatpush2.msra.mxu0 0.0
  %3470 = vmatprep.subr.mxu0 0.0
  %3471 = vmatpush2.msra.mxu0 0.0
  %3472 = vmatprep.subr.mxu0 0.0
  %3473 = vmatpush2.msra.mxu0 0.0
  %3474 = vmatprep.subr.mxu0 0.0
  %3475 = vmatpush2.msra.mxu0 0.0
  %3476 = vmatprep.subr.mxu0 0.0
  %3477 = vmatpush2.msra.mxu0 0.0
  %3478 = vmatprep.subr.mxu0 0.0
  %3479 = vmatpush2.msra.mxu0 0.0
  %3480 = vmatprep.subr.mxu0 0.0
  %3481 = vmatpush2.msra.mxu0 0.0
  %3482 = vmatprep.subr.mxu0 0.0
  %3483 = vmatpush2.msra.mxu0 0.0
  %3484 = vmatprep.subr.mxu0 0.0
  %3485 = vmatpush2.msra.mxu0 0.0
  %3486 = vmatprep.subr.mxu0 0.0
  %3487 = vmatpush2.msra.mxu0 0.0
  %3488 = vmatprep.subr.mxu0 0.0
  %3489 = vmatpush2.msra.mxu0 0.0
  %3490 = vmatprep.subr.mxu0 0.0
  %3491 = vmatpush2.msra.mxu0 0.0
  %3492 = vmatprep.subr.mxu0 0.0
  %3493 = vmatpush2.msra.mxu0 0.0
  %3494 = vmatprep.subr.mxu0 0.0
  %3495 = vmatpush2.msra.mxu0 0.0
  %3496 = vmatprep.subr.mxu0 0.0
  %3497 = vmatpush2.msra.mxu0 0.0
  %3498 = vmatprep.subr.mxu0 0.0
  %3499 = vmatpush2.msra.mxu0 0.0
  %3500 = vmatprep.mubr.f32.mxu0 0.0
  %3501 = vmatmul.mubr.f32.gmra.mxu0 %v3366
  %v3502 = vpop.f32.mrf.mxu0
  %v3503 = vadd.f32 0.0, %v3502
  %v3504 = vpop.f32.mrf.mxu0
  %v3505 = vadd.f32 0.0, %v3504
  %3506 = vdwg.mxu0
  %3507 = vmatprep.subr.mxu0 %v3435
  %3508 = vmatpush1.msra.mxu0 %v3434
  %3509 = vmatprep.subr.mxu0 %v3431
  %3510 = vmatpush1.msra.mxu0 %v3430
  %3511 = vmatprep.subr.mxu0 %v3427
  %3512 = vmatpush1.msra.mxu0 %v3426
  %3513 = vmatprep.subr.mxu0 %v3423
  %3514 = vmatpush1.msra.mxu0 %v3422
  %3515 = vmatprep.subr.mxu0 %v3419
  %3516 = vmatpush1.msra.mxu0 %v3418
  %3517 = vmatprep.subr.mxu0 %v3415
  %3518 = vmatpush1.msra.mxu0 %v3414
  %3519 = vmatprep.subr.mxu0 %v3411
  %3520 = vmatpush1.msra.mxu0 %v3410
  %3521 = vmatprep.subr.mxu0 %v3407
  %3522 = vmatpush1.msra.mxu0 %v3406
  %3523 = vmatprep.subr.mxu0 %v3403
  %3524 = vmatpush1.msra.mxu0 %v3402
  %3525 = vmatprep.subr.mxu0 %v3399
  %3526 = vmatpush1.msra.mxu0 %v3398
  %3527 = vmatprep.subr.mxu0 %v3395
  %3528 = vmatpush1.msra.mxu0 %v3394
  %3529 = vmatprep.subr.mxu0 %v3391
  %3530 = vmatpush1.msra.mxu0 %v3390
  %3531 = vmatprep.subr.mxu0 %v3387
  %3532 = vmatpush1.msra.mxu0 %v3386
  %3533 = vmatprep.subr.mxu0 %v3383
  %3534 = vmatpush1.msra.mxu0 %v3382
  %3535 = vmatprep.subr.mxu0 %v3379
  %3536 = vmatpush1.msra.mxu0 %v3378
  %3537 = vmatprep.subr.mxu0 %v3375
  %3538 = vmatpush1.msra.mxu0 %v3374
  %3539 = vmatprep.subr.mxu0 0.0
  %3540 = vmatpush2.msra.mxu0 0.0
  %3541 = vmatprep.subr.mxu0 0.0
  %3542 = vmatpush2.msra.mxu0 0.0
  %3543 = vmatprep.subr.mxu0 0.0
  %3544 = vmatpush2.msra.mxu0 0.0
  %3545 = vmatprep.subr.mxu0 0.0
  %3546 = vmatpush2.msra.mxu0 0.0
  %3547 = vmatprep.subr.mxu0 0.0
  %3548 = vmatpush2.msra.mxu0 0.0
  %3549 = vmatprep.subr.mxu0 0.0
  %3550 = vmatpush2.msra.mxu0 0.0
  %3551 = vmatprep.subr.mxu0 0.0
  %3552 = vmatpush2.msra.mxu0 0.0
  %3553 = vmatprep.subr.mxu0 0.0
  %3554 = vmatpush2.msra.mxu0 0.0
  %3555 = vmatprep.subr.mxu0 0.0
  %3556 = vmatpush2.msra.mxu0 0.0
  %3557 = vmatprep.subr.mxu0 0.0
  %3558 = vmatpush2.msra.mxu0 0.0
  %3559 = vmatprep.subr.mxu0 0.0
  %3560 = vmatpush2.msra.mxu0 0.0
  %3561 = vmatprep.subr.mxu0 0.0
  %3562 = vmatpush2.msra.mxu0 0.0
  %3563 = vmatprep.subr.mxu0 0.0
  %3564 = vmatpush2.msra.mxu0 0.0
  %3565 = vmatprep.subr.mxu0 0.0
  %3566 = vmatpush2.msra.mxu0 0.0
  %3567 = vmatprep.subr.mxu0 0.0
  %3568 = vmatpush2.msra.mxu0 0.0
  %3569 = vmatprep.subr.mxu0 0.0
  %3570 = vmatpush2.msra.mxu0 0.0
  %3571 = vmatprep.mubr.f32.mxu0 0.0
  %3572 = vmatmul.mubr.f32.gmra.mxu0 %v3366
  %v3573 = vpop.f32.mrf.mxu0
  %v3574 = vadd.f32 0.0, %v3573
  %v3575 = vpop.f32.mrf.mxu0
  %v3576 = vadd.f32 0.0, %v3575
  %3577 = vdwg.mxu0
  %v3578 = vadd.f32 %v3368, %v3503
  %v3579 = vadd.f32 %v3369, %v3505
  %v3580 = vadd.f32 %v3370, %v3574
  %v3581 = vadd.f32 %v3371, %v3576
  %v3582 = vxor.u32 %v3578, 2147483648
  %v3583 = vmul.f32 %v3582, 1.442695
  %v3584 = vpow.pop %v3583
  %v3585 = vadd.f32 %v3584, 1.0
  %v3586 = vrcp.pop %v3585
  %v3587 = vmul.f32 1.0, %v3586
  %v3588 = vxor.u32 %v3579, 2147483648
  %v3589 = vmul.f32 %v3588, 1.442695
  %v3590 = vpow.pop %v3589
  %v3591 = vadd.f32 %v3590, 1.0
  %v3592 = vrcp.pop %v3591
  %v3593 = vmul.f32 1.0, %v3592
  %v3594 = vtanh.pop %v3580
  %v3595 = vxor.u32 %v3581, 2147483648
  %v3596 = vmul.f32 %v3595, 1.442695
  %v3597 = vpow.pop %v3596
  %v3598 = vadd.f32 %v3597, 1.0
  %v3599 = vrcp.pop %v3598
  %v3600 = vmul.f32 1.0, %v3599
  %v3601 = vmul.f32 %v3593, %v3364
  %v3602 = vmul.f32 %v3587, %v3594
  %v3603 = vadd.f32 %v3601, %v3602
  %v3604 = vtanh.pop %v3603
  %v3605 = vmul.f32 %v3600, %v3604
  %3606 = vst [vmem:[%s1323] sm:$0xff] %v3605
  %v3607 = vld [vmem:[%s1327] sm:$0xff]
  %v3608 = vld [vmem:[%s1327 + $0x8] sm:$0xff]
  %v3609 = vld [vmem:[%s1327 + $0x10] sm:$0xff]
  %v3610 = vld [vmem:[%s1327 + $0x18] sm:$0xff]
  %v3611 = vld [vmem:[%s2654] sm:$0xff]
  %v3612 = vld [vmem:[%s2654 + $0x8] sm:$0xff]
  %v3613 = vld [vmem:[%s2654 + $0x10] sm:$0xff]
  %v3614 = vld [vmem:[%s2654 + $0x18] sm:$0xff]
  %v3615 = vld [vmem:[%s2654 + $0x20] sm:$0xff]
  %v3616 = vld [vmem:[%s2654 + $0x28] sm:$0xff]
  %v3617 = vld [vmem:[%s2654 + $0x30] sm:$0xff]
  %v3618 = vld [vmem:[%s2654 + $0x38] sm:$0xff]
  %v3619 = vld [vmem:[%s2654 + $0x40] sm:$0xff]
  %v3620 = vld [vmem:[%s2654 + $0x48] sm:$0xff]
  %v3621 = vld [vmem:[%s2654 + $0x50] sm:$0xff]
  %v3622 = vld [vmem:[%s2654 + $0x58] sm:$0xff]
  %v3623 = vld [vmem:[%s2654 + $0x60] sm:$0xff]
  %v3624 = vld [vmem:[%s2654 + $0x68] sm:$0xff]
  %v3625 = vld [vmem:[%s2654 + $0x70] sm:$0xff]
  %v3626 = vld [vmem:[%s2654 + $0x78] sm:$0xff]
  %v3627 = vld [vmem:[%s2654 + $0x80] sm:$0xff]
  %v3628 = vld [vmem:[%s2654 + $0x88] sm:$0xff]
  %v3629 = vld [vmem:[%s2654 + $0x90] sm:$0xff]
  %v3630 = vld [vmem:[%s2654 + $0x98] sm:$0xff]
  %v3631 = vld [vmem:[%s2654 + $0xa0] sm:$0xff]
  %v3632 = vld [vmem:[%s2654 + $0xa8] sm:$0xff]
  %v3633 = vld [vmem:[%s2654 + $0xb0] sm:$0xff]
  %v3634 = vld [vmem:[%s2654 + $0xb8] sm:$0xff]
  %v3635 = vld [vmem:[%s2654 + $0xc0] sm:$0xff]
  %v3636 = vld [vmem:[%s2654 + $0xc8] sm:$0xff]
  %v3637 = vld [vmem:[%s2654 + $0xd0] sm:$0xff]
  %v3638 = vld [vmem:[%s2654 + $0xd8] sm:$0xff]
  %v3639 = vld [vmem:[%s2654 + $0xe0] sm:$0xff]
  %v3640 = vld [vmem:[%s2654 + $0xe8] sm:$0xff]
  %v3641 = vld [vmem:[%s2654 + $0xf0] sm:$0xff]
  %v3642 = vld [vmem:[%s2654 + $0xf8] sm:$0xff]
  %v3643 = vld [vmem:[%s2654 + $0x100] sm:$0xff]
  %v3644 = vld [vmem:[%s2654 + $0x108] sm:$0xff]
  %v3645 = vld [vmem:[%s2654 + $0x110] sm:$0xff]
  %v3646 = vld [vmem:[%s2654 + $0x118] sm:$0xff]
  %v3647 = vld [vmem:[%s2654 + $0x120] sm:$0xff]
  %v3648 = vld [vmem:[%s2654 + $0x128] sm:$0xff]
  %v3649 = vld [vmem:[%s2654 + $0x130] sm:$0xff]
  %v3650 = vld [vmem:[%s2654 + $0x138] sm:$0xff]
  %v3651 = vld [vmem:[%s2654 + $0x140] sm:$0xff]
  %v3652 = vld [vmem:[%s2654 + $0x148] sm:$0xff]
  %v3653 = vld [vmem:[%s2654 + $0x150] sm:$0xff]
  %v3654 = vld [vmem:[%s2654 + $0x158] sm:$0xff]
  %v3655 = vld [vmem:[%s2654 + $0x160] sm:$0xff]
  %v3656 = vld [vmem:[%s2654 + $0x168] sm:$0xff]
  %v3657 = vld [vmem:[%s2654 + $0x170] sm:$0xff]
  %v3658 = vld [vmem:[%s2654 + $0x178] sm:$0xff]
  %v3659 = vld [vmem:[%s2654 + $0x180] sm:$0xff]
  %v3660 = vld [vmem:[%s2654 + $0x188] sm:$0xff]
  %v3661 = vld [vmem:[%s2654 + $0x190] sm:$0xff]
  %v3662 = vld [vmem:[%s2654 + $0x198] sm:$0xff]
  %v3663 = vld [vmem:[%s2654 + $0x1a0] sm:$0xff]
  %v3664 = vld [vmem:[%s2654 + $0x1a8] sm:$0xff]
  %v3665 = vld [vmem:[%s2654 + $0x1b0] sm:$0xff]
  %v3666 = vld [vmem:[%s2654 + $0x1b8] sm:$0xff]
  %v3667 = vld [vmem:[%s2654 + $0x1c0] sm:$0xff]
  %v3668 = vld [vmem:[%s2654 + $0x1c8] sm:$0xff]
  %v3669 = vld [vmem:[%s2654 + $0x1d0] sm:$0xff]
  %v3670 = vld [vmem:[%s2654 + $0x1d8] sm:$0xff]
  %v3671 = vld [vmem:[%s2654 + $0x1e0] sm:$0xff]
  %v3672 = vld [vmem:[%s2654 + $0x1e8] sm:$0xff]
  %v3673 = vld [vmem:[%s2654 + $0x1f0] sm:$0xff]
  %v3674 = vld [vmem:[%s2654 + $0x1f8] sm:$0xff]
  %3675 = vmatprep.subr.mxu0 %v3672
  %3676 = vmatpush1.msra.mxu0 %v3671
  %3677 = vmatprep.subr.mxu0 %v3668
  %3678 = vmatpush1.msra.mxu0 %v3667
  %3679 = vmatprep.subr.mxu0 %v3664
  %3680 = vmatpush1.msra.mxu0 %v3663
  %3681 = vmatprep.subr.mxu0 %v3660
  %3682 = vmatpush1.msra.mxu0 %v3659
  %3683 = vmatprep.subr.mxu0 %v3656
  %3684 = vmatpush1.msra.mxu0 %v3655
  %3685 = vmatprep.subr.mxu0 %v3652
  %3686 = vmatpush1.msra.mxu0 %v3651
  %3687 = vmatprep.subr.mxu0 %v3648
  %3688 = vmatpush1.msra.mxu0 %v3647
  %3689 = vmatprep.subr.mxu0 %v3644
  %3690 = vmatpush1.msra.mxu0 %v3643
  %3691 = vmatprep.subr.mxu0 %v3640
  %3692 = vmatpush1.msra.mxu0 %v3639
  %3693 = vmatprep.subr.mxu0 %v3636
  %3694 = vmatpush1.msra.mxu0 %v3635
  %3695 = vmatprep.subr.mxu0 %v3632
  %3696 = vmatpush1.msra.mxu0 %v3631
  %3697 = vmatprep.subr.mxu0 %v3628
  %3698 = vmatpush1.msra.mxu0 %v3627
  %3699 = vmatprep.subr.mxu0 %v3624
  %3700 = vmatpush1.msra.mxu0 %v3623
  %3701 = vmatprep.subr.mxu0 %v3620
  %3702 = vmatpush1.msra.mxu0 %v3619
  %3703 = vmatprep.subr.mxu0 %v3616
  %3704 = vmatpush1.msra.mxu0 %v3615
  %3705 = vmatprep.subr.mxu0 %v3612
  %3706 = vmatpush1.msra.mxu0 %v3611
  %3707 = vmatprep.subr.mxu0 0.0
  %3708 = vmatpush2.msra.mxu0 0.0
  %3709 = vmatprep.subr.mxu0 0.0
  %3710 = vmatpush2.msra.mxu0 0.0
  %3711 = vmatprep.subr.mxu0 0.0
  %3712 = vmatpush2.msra.mxu0 0.0
  %3713 = vmatprep.subr.mxu0 0.0
  %3714 = vmatpush2.msra.mxu0 0.0
  %3715 = vmatprep.subr.mxu0 0.0
  %3716 = vmatpush2.msra.mxu0 0.0
  %3717 = vmatprep.subr.mxu0 0.0
  %3718 = vmatpush2.msra.mxu0 0.0
  %3719 = vmatprep.subr.mxu0 0.0
  %3720 = vmatpush2.msra.mxu0 0.0
  %3721 = vmatprep.subr.mxu0 0.0
  %3722 = vmatpush2.msra.mxu0 0.0
  %3723 = vmatprep.subr.mxu0 0.0
  %3724 = vmatpush2.msra.mxu0 0.0
  %3725 = vmatprep.subr.mxu0 0.0
  %3726 = vmatpush2.msra.mxu0 0.0
  %3727 = vmatprep.subr.mxu0 0.0
  %3728 = vmatpush2.msra.mxu0 0.0
  %3729 = vmatprep.subr.mxu0 0.0
  %3730 = vmatpush2.msra.mxu0 0.0
  %3731 = vmatprep.subr.mxu0 0.0
  %3732 = vmatpush2.msra.mxu0 0.0
  %3733 = vmatprep.subr.mxu0 0.0
  %3734 = vmatpush2.msra.mxu0 0.0
  %3735 = vmatprep.subr.mxu0 0.0
  %3736 = vmatpush2.msra.mxu0 0.0
  %3737 = vmatprep.subr.mxu0 0.0
  %3738 = vmatpush2.msra.mxu0 0.0
  %3739 = vmatprep.mubr.f32.mxu0 0.0
  %3740 = vmatmul.mubr.f32.gmra.mxu0 %v3605
  %v3741 = vpop.f32.mrf.mxu0
  %v3742 = vadd.f32 0.0, %v3741
  %v3743 = vpop.f32.mrf.mxu0
  %v3744 = vadd.f32 0.0, %v3743
  %3745 = vdwg.mxu0
  %3746 = vmatprep.subr.mxu0 %v3674
  %3747 = vmatpush1.msra.mxu0 %v3673
  %3748 = vmatprep.subr.mxu0 %v3670
  %3749 = vmatpush1.msra.mxu0 %v3669
  %3750 = vmatprep.subr.mxu0 %v3666
  %3751 = vmatpush1.msra.mxu0 %v3665
  %3752 = vmatprep.subr.mxu0 %v3662
  %3753 = vmatpush1.msra.mxu0 %v3661
  %3754 = vmatprep.subr.mxu0 %v3658
  %3755 = vmatpush1.msra.mxu0 %v3657
  %3756 = vmatprep.subr.mxu0 %v3654
  %3757 = vmatpush1.msra.mxu0 %v3653
  %3758 = vmatprep.subr.mxu0 %v3650
  %3759 = vmatpush1.msra.mxu0 %v3649
  %3760 = vmatprep.subr.mxu0 %v3646
  %3761 = vmatpush1.msra.mxu0 %v3645
  %3762 = vmatprep.subr.mxu0 %v3642
  %3763 = vmatpush1.msra.mxu0 %v3641
  %3764 = vmatprep.subr.mxu0 %v3638
  %3765 = vmatpush1.msra.mxu0 %v3637
  %3766 = vmatprep.subr.mxu0 %v3634
  %3767 = vmatpush1.msra.mxu0 %v3633
  %3768 = vmatprep.subr.mxu0 %v3630
  %3769 = vmatpush1.msra.mxu0 %v3629
  %3770 = vmatprep.subr.mxu0 %v3626
  %3771 = vmatpush1.msra.mxu0 %v3625
  %3772 = vmatprep.subr.mxu0 %v3622
  %3773 = vmatpush1.msra.mxu0 %v3621
  %3774 = vmatprep.subr.mxu0 %v3618
  %3775 = vmatpush1.msra.mxu0 %v3617
  %3776 = vmatprep.subr.mxu0 %v3614
  %3777 = vmatpush1.msra.mxu0 %v3613
  %3778 = vmatprep.subr.mxu0 0.0
  %3779 = vmatpush2.msra.mxu0 0.0
  %3780 = vmatprep.subr.mxu0 0.0
  %3781 = vmatpush2.msra.mxu0 0.0
  %3782 = vmatprep.subr.mxu0 0.0
  %3783 = vmatpush2.msra.mxu0 0.0
  %3784 = vmatprep.subr.mxu0 0.0
  %3785 = vmatpush2.msra.mxu0 0.0
  %3786 = vmatprep.subr.mxu0 0.0
  %3787 = vmatpush2.msra.mxu0 0.0
  %3788 = vmatprep.subr.mxu0 0.0
  %3789 = vmatpush2.msra.mxu0 0.0
  %3790 = vmatprep.subr.mxu0 0.0
  %3791 = vmatpush2.msra.mxu0 0.0
  %3792 = vmatprep.subr.mxu0 0.0
  %3793 = vmatpush2.msra.mxu0 0.0
  %3794 = vmatprep.subr.mxu0 0.0
  %3795 = vmatpush2.msra.mxu0 0.0
  %3796 = vmatprep.subr.mxu0 0.0
  %3797 = vmatpush2.msra.mxu0 0.0
  %3798 = vmatprep.subr.mxu0 0.0
  %3799 = vmatpush2.msra.mxu0 0.0
  %3800 = vmatprep.subr.mxu0 0.0
  %3801 = vmatpush2.msra.mxu0 0.0
  %3802 = vmatprep.subr.mxu0 0.0
  %3803 = vmatpush2.msra.mxu0 0.0
  %3804 = vmatprep.subr.mxu0 0.0
  %3805 = vmatpush2.msra.mxu0 0.0
  %3806 = vmatprep.subr.mxu0 0.0
  %3807 = vmatpush2.msra.mxu0 0.0
  %3808 = vmatprep.subr.mxu0 0.0
  %3809 = vmatpush2.msra.mxu0 0.0
  %3810 = vmatprep.mubr.f32.mxu0 0.0
  %3811 = vmatmul.mubr.f32.gmra.mxu0 %v3605
  %v3812 = vpop.f32.mrf.mxu0
  %v3813 = vadd.f32 0.0, %v3812
  %v3814 = vpop.f32.mrf.mxu0
  %v3815 = vadd.f32 0.0, %v3814
  %3816 = vdwg.mxu0
  %v3817 = vadd.f32 %v3607, %v3742
  %v3818 = vadd.f32 %v3608, %v3744
  %v3819 = vadd.f32 %v3609, %v3813
  %v3820 = vadd.f32 %v3610, %v3815
  %v3821 = vxor.u32 %v3817, 2147483648
  %v3822 = vmul.f32 %v3821, 1.442695
  %v3823 = vpow.pop %v3822
  %v3824 = vadd.f32 %v3823, 1.0
  %v3825 = vrcp.pop %v3824
  %v3826 = vmul.f32 1.0, %v3825
  %v3827 = vxor.u32 %v3818, 2147483648
  %v3828 = vmul.f32 %v3827, 1.442695
  %v3829 = vpow.pop %v3828
  %v3830 = vadd.f32 %v3829, 1.0
  %v3831 = vrcp.pop %v3830
  %v3832 = vmul.f32 1.0, %v3831
  %v3833 = vtanh.pop %v3819
  %v3834 = vxor.u32 %v3820, 2147483648
  %v3835 = vmul.f32 %v3834, 1.442695
  %v3836 = vpow.pop %v3835
  %v3837 = vadd.f32 %v3836, 1.0
  %v3838 = vrcp.pop %v3837
  %v3839 = vmul.f32 1.0, %v3838
  %v3840 = vmul.f32 %v3832, %v3603
  %v3841 = vmul.f32 %v3826, %v3833
  %v3842 = vadd.f32 %v3840, %v3841
  %v3843 = vtanh.pop %v3842
  %v3844 = vmul.f32 %v3839, %v3843
  %3845 = vst [vmem:[%s1566] sm:$0xff] %v3844
  %v3846 = vld [vmem:[%s1570] sm:$0xff]
  %v3847 = vld [vmem:[%s1570 + $0x8] sm:$0xff]
  %v3848 = vld [vmem:[%s1570 + $0x10] sm:$0xff]
  %v3849 = vld [vmem:[%s1570 + $0x18] sm:$0xff]
  %v3850 = vld [vmem:[%s2654] sm:$0xff]
  %v3851 = vld [vmem:[%s2654 + $0x8] sm:$0xff]
  %v3852 = vld [vmem:[%s2654 + $0x10] sm:$0xff]
  %v3853 = vld [vmem:[%s2654 + $0x18] sm:$0xff]
  %v3854 = vld [vmem:[%s2654 + $0x20] sm:$0xff]
  %v3855 = vld [vmem:[%s2654 + $0x28] sm:$0xff]
  %v3856 = vld [vmem:[%s2654 + $0x30] sm:$0xff]
  %v3857 = vld [vmem:[%s2654 + $0x38] sm:$0xff]
  %v3858 = vld [vmem:[%s2654 + $0x40] sm:$0xff]
  %v3859 = vld [vmem:[%s2654 + $0x48] sm:$0xff]
  %v3860 = vld [vmem:[%s2654 + $0x50] sm:$0xff]
  %v3861 = vld [vmem:[%s2654 + $0x58] sm:$0xff]
  %v3862 = vld [vmem:[%s2654 + $0x60] sm:$0xff]
  %v3863 = vld [vmem:[%s2654 + $0x68] sm:$0xff]
  %v3864 = vld [vmem:[%s2654 + $0x70] sm:$0xff]
  %v3865 = vld [vmem:[%s2654 + $0x78] sm:$0xff]
  %v3866 = vld [vmem:[%s2654 + $0x80] sm:$0xff]
  %v3867 = vld [vmem:[%s2654 + $0x88] sm:$0xff]
  %v3868 = vld [vmem:[%s2654 + $0x90] sm:$0xff]
  %v3869 = vld [vmem:[%s2654 + $0x98] sm:$0xff]
  %v3870 = vld [vmem:[%s2654 + $0xa0] sm:$0xff]
  %v3871 = vld [vmem:[%s2654 + $0xa8] sm:$0xff]
  %v3872 = vld [vmem:[%s2654 + $0xb0] sm:$0xff]
  %v3873 = vld [vmem:[%s2654 + $0xb8] sm:$0xff]
  %v3874 = vld [vmem:[%s2654 + $0xc0] sm:$0xff]
  %v3875 = vld [vmem:[%s2654 + $0xc8] sm:$0xff]
  %v3876 = vld [vmem:[%s2654 + $0xd0] sm:$0xff]
  %v3877 = vld [vmem:[%s2654 + $0xd8] sm:$0xff]
  %v3878 = vld [vmem:[%s2654 + $0xe0] sm:$0xff]
  %v3879 = vld [vmem:[%s2654 + $0xe8] sm:$0xff]
  %v3880 = vld [vmem:[%s2654 + $0xf0] sm:$0xff]
  %v3881 = vld [vmem:[%s2654 + $0xf8] sm:$0xff]
  %v3882 = vld [vmem:[%s2654 + $0x100] sm:$0xff]
  %v3883 = vld [vmem:[%s2654 + $0x108] sm:$0xff]
  %v3884 = vld [vmem:[%s2654 + $0x110] sm:$0xff]
  %v3885 = vld [vmem:[%s2654 + $0x118] sm:$0xff]
  %v3886 = vld [vmem:[%s2654 + $0x120] sm:$0xff]
  %v3887 = vld [vmem:[%s2654 + $0x128] sm:$0xff]
  %v3888 = vld [vmem:[%s2654 + $0x130] sm:$0xff]
  %v3889 = vld [vmem:[%s2654 + $0x138] sm:$0xff]
  %v3890 = vld [vmem:[%s2654 + $0x140] sm:$0xff]
  %v3891 = vld [vmem:[%s2654 + $0x148] sm:$0xff]
  %v3892 = vld [vmem:[%s2654 + $0x150] sm:$0xff]
  %v3893 = vld [vmem:[%s2654 + $0x158] sm:$0xff]
  %v3894 = vld [vmem:[%s2654 + $0x160] sm:$0xff]
  %v3895 = vld [vmem:[%s2654 + $0x168] sm:$0xff]
  %v3896 = vld [vmem:[%s2654 + $0x170] sm:$0xff]
  %v3897 = vld [vmem:[%s2654 + $0x178] sm:$0xff]
  %v3898 = vld [vmem:[%s2654 + $0x180] sm:$0xff]
  %v3899 = vld [vmem:[%s2654 + $0x188] sm:$0xff]
  %v3900 = vld [vmem:[%s2654 + $0x190] sm:$0xff]
  %v3901 = vld [vmem:[%s2654 + $0x198] sm:$0xff]
  %v3902 = vld [vmem:[%s2654 + $0x1a0] sm:$0xff]
  %v3903 = vld [vmem:[%s2654 + $0x1a8] sm:$0xff]
  %v3904 = vld [vmem:[%s2654 + $0x1b0] sm:$0xff]
  %v3905 = vld [vmem:[%s2654 + $0x1b8] sm:$0xff]
  %v3906 = vld [vmem:[%s2654 + $0x1c0] sm:$0xff]
  %v3907 = vld [vmem:[%s2654 + $0x1c8] sm:$0xff]
  %v3908 = vld [vmem:[%s2654 + $0x1d0] sm:$0xff]
  %v3909 = vld [vmem:[%s2654 + $0x1d8] sm:$0xff]
  %v3910 = vld [vmem:[%s2654 + $0x1e0] sm:$0xff]
  %v3911 = vld [vmem:[%s2654 + $0x1e8] sm:$0xff]
  %v3912 = vld [vmem:[%s2654 + $0x1f0] sm:$0xff]
  %v3913 = vld [vmem:[%s2654 + $0x1f8] sm:$0xff]
  %3914 = vmatprep.subr.mxu0 %v3911
  %3915 = vmatpush1.msra.mxu0 %v3910
  %3916 = vmatprep.subr.mxu0 %v3907
  %3917 = vmatpush1.msra.mxu0 %v3906
  %3918 = vmatprep.subr.mxu0 %v3903
  %3919 = vmatpush1.msra.mxu0 %v3902
  %3920 = vmatprep.subr.mxu0 %v3899
  %3921 = vmatpush1.msra.mxu0 %v3898
  %3922 = vmatprep.subr.mxu0 %v3895
  %3923 = vmatpush1.msra.mxu0 %v3894
  %3924 = vmatprep.subr.mxu0 %v3891
  %3925 = vmatpush1.msra.mxu0 %v3890
  %3926 = vmatprep.subr.mxu0 %v3887
  %3927 = vmatpush1.msra.mxu0 %v3886
  %3928 = vmatprep.subr.mxu0 %v3883
  %3929 = vmatpush1.msra.mxu0 %v3882
  %3930 = vmatprep.subr.mxu0 %v3879
  %3931 = vmatpush1.msra.mxu0 %v3878
  %3932 = vmatprep.subr.mxu0 %v3875
  %3933 = vmatpush1.msra.mxu0 %v3874
  %3934 = vmatprep.subr.mxu0 %v3871
  %3935 = vmatpush1.msra.mxu0 %v3870
  %3936 = vmatprep.subr.mxu0 %v3867
  %3937 = vmatpush1.msra.mxu0 %v3866
  %3938 = vmatprep.subr.mxu0 %v3863
  %3939 = vmatpush1.msra.mxu0 %v3862
  %3940 = vmatprep.subr.mxu0 %v3859
  %3941 = vmatpush1.msra.mxu0 %v3858
  %3942 = vmatprep.subr.mxu0 %v3855
  %3943 = vmatpush1.msra.mxu0 %v3854
  %3944 = vmatprep.subr.mxu0 %v3851
  %3945 = vmatpush1.msra.mxu0 %v3850
  %3946 = vmatprep.subr.mxu0 0.0
  %3947 = vmatpush2.msra.mxu0 0.0
  %3948 = vmatprep.subr.mxu0 0.0
  %3949 = vmatpush2.msra.mxu0 0.0
  %3950 = vmatprep.subr.mxu0 0.0
  %3951 = vmatpush2.msra.mxu0 0.0
  %3952 = vmatprep.subr.mxu0 0.0
  %3953 = vmatpush2.msra.mxu0 0.0
  %3954 = vmatprep.subr.mxu0 0.0
  %3955 = vmatpush2.msra.mxu0 0.0
  %3956 = vmatprep.subr.mxu0 0.0
  %3957 = vmatpush2.msra.mxu0 0.0
  %3958 = vmatprep.subr.mxu0 0.0
  %3959 = vmatpush2.msra.mxu0 0.0
  %3960 = vmatprep.subr.mxu0 0.0
  %3961 = vmatpush2.msra.mxu0 0.0
  %3962 = vmatprep.subr.mxu0 0.0
  %3963 = vmatpush2.msra.mxu0 0.0
  %3964 = vmatprep.subr.mxu0 0.0
  %3965 = vmatpush2.msra.mxu0 0.0
  %3966 = vmatprep.subr.mxu0 0.0
  %3967 = vmatpush2.msra.mxu0 0.0
  %3968 = vmatprep.subr.mxu0 0.0
  %3969 = vmatpush2.msra.mxu0 0.0
  %3970 = vmatprep.subr.mxu0 0.0
  %3971 = vmatpush2.msra.mxu0 0.0
  %3972 = vmatprep.subr.mxu0 0.0
  %3973 = vmatpush2.msra.mxu0 0.0
  %3974 = vmatprep.subr.mxu0 0.0
  %3975 = vmatpush2.msra.mxu0 0.0
  %3976 = vmatprep.subr.mxu0 0.0
  %3977 = vmatpush2.msra.mxu0 0.0
  %3978 = vmatprep.mubr.f32.mxu0 0.0
  %3979 = vmatmul.mubr.f32.gmra.mxu0 %v3844
  %v3980 = vpop.f32.mrf.mxu0
  %v3981 = vadd.f32 0.0, %v3980
  %v3982 = vpop.f32.mrf.mxu0
  %v3983 = vadd.f32 0.0, %v3982
  %3984 = vdwg.mxu0
  %3985 = vmatprep.subr.mxu0 %v3913
  %3986 = vmatpush1.msra.mxu0 %v3912
  %3987 = vmatprep.subr.mxu0 %v3909
  %3988 = vmatpush1.msra.mxu0 %v3908
  %3989 = vmatprep.subr.mxu0 %v3905
  %3990 = vmatpush1.msra.mxu0 %v3904
  %3991 = vmatprep.subr.mxu0 %v3901
  %3992 = vmatpush1.msra.mxu0 %v3900
  %3993 = vmatprep.subr.mxu0 %v3897
  %3994 = vmatpush1.msra.mxu0 %v3896
  %3995 = vmatprep.subr.mxu0 %v3893
  %3996 = vmatpush1.msra.mxu0 %v3892
  %3997 = vmatprep.subr.mxu0 %v3889
  %3998 = vmatpush1.msra.mxu0 %v3888
  %3999 = vmatprep.subr.mxu0 %v3885
  %4000 = vmatpush1.msra.mxu0 %v3884
  %4001 = vmatprep.subr.mxu0 %v3881
  %4002 = vmatpush1.msra.mxu0 %v3880
  %4003 = vmatprep.subr.mxu0 %v3877
  %4004 = vmatpush1.msra.mxu0 %v3876
  %4005 = vmatprep.subr.mxu0 %v3873
  %4006 = vmatpush1.msra.mxu0 %v3872
  %4007 = vmatprep.subr.mxu0 %v3869
  %4008 = vmatpush1.msra.mxu0 %v3868
  %4009 = vmatprep.subr.mxu0 %v3865
  %4010 = vmatpush1.msra.mxu0 %v3864
  %4011 = vmatprep.subr.mxu0 %v3861
  %4012 = vmatpush1.msra.mxu0 %v3860
  %4013 = vmatprep.subr.mxu0 %v3857
  %4014 = vmatpush1.msra.mxu0 %v3856
  %4015 = vmatprep.subr.mxu0 %v3853
  %4016 = vmatpush1.msra.mxu0 %v3852
  %4017 = vmatprep.subr.mxu0 0.0
  %4018 = vmatpush2.msra.mxu0 0.0
  %4019 = vmatprep.subr.mxu0 0.0
  %4020 = vmatpush2.msra.mxu0 0.0
  %4021 = vmatprep.subr.mxu0 0.0
  %4022 = vmatpush2.msra.mxu0 0.0
  %4023 = vmatprep.subr.mxu0 0.0
  %4024 = vmatpush2.msra.mxu0 0.0
  %4025 = vmatprep.subr.mxu0 0.0
  %4026 = vmatpush2.msra.mxu0 0.0
  %4027 = vmatprep.subr.mxu0 0.0
  %4028 = vmatpush2.msra.mxu0 0.0
  %4029 = vmatprep.subr.mxu0 0.0
  %4030 = vmatpush2.msra.mxu0 0.0
  %4031 = vmatprep.subr.mxu0 0.0
  %4032 = vmatpush2.msra.mxu0 0.0
  %4033 = vmatprep.subr.mxu0 0.0
  %4034 = vmatpush2.msra.mxu0 0.0
  %4035 = vmatprep.subr.mxu0 0.0
  %4036 = vmatpush2.msra.mxu0 0.0
  %4037 = vmatprep.subr.mxu0 0.0
  %4038 = vmatpush2.msra.mxu0 0.0
  %4039 = vmatprep.subr.mxu0 0.0
  %4040 = vmatpush2.msra.mxu0 0.0
  %4041 = vmatprep.subr.mxu0 0.0
  %4042 = vmatpush2.msra.mxu0 0.0
  %4043 = vmatprep.subr.mxu0 0.0
  %4044 = vmatpush2.msra.mxu0 0.0
  %4045 = vmatprep.subr.mxu0 0.0
  %4046 = vmatpush2.msra.mxu0 0.0
  %4047 = vmatprep.subr.mxu0 0.0
  %4048 = vmatpush2.msra.mxu0 0.0
  %4049 = vmatprep.mubr.f32.mxu0 0.0
  %4050 = vmatmul.mubr.f32.gmra.mxu0 %v3844
  %v4051 = vpop.f32.mrf.mxu0
  %v4052 = vadd.f32 0.0, %v4051
  %v4053 = vpop.f32.mrf.mxu0
  %v4054 = vadd.f32 0.0, %v4053
  %4055 = vdwg.mxu0
  %v4056 = vadd.f32 %v3846, %v3981
  %v4057 = vadd.f32 %v3847, %v3983
  %v4058 = vadd.f32 %v3848, %v4052
  %v4059 = vadd.f32 %v3849, %v4054
  %v4060 = vxor.u32 %v4056, 2147483648
  %v4061 = vmul.f32 %v4060, 1.442695
  %v4062 = vpow.pop %v4061
  %v4063 = vadd.f32 %v4062, 1.0
  %v4064 = vrcp.pop %v4063
  %v4065 = vmul.f32 1.0, %v4064
  %v4066 = vxor.u32 %v4057, 2147483648
  %v4067 = vmul.f32 %v4066, 1.442695
  %v4068 = vpow.pop %v4067
  %v4069 = vadd.f32 %v4068, 1.0
  %v4070 = vrcp.pop %v4069
  %v4071 = vmul.f32 1.0, %v4070
  %v4072 = vtanh.pop %v4058
  %v4073 = vxor.u32 %v4059, 2147483648
  %v4074 = vmul.f32 %v4073, 1.442695
  %v4075 = vpow.pop %v4074
  %v4076 = vadd.f32 %v4075, 1.0
  %v4077 = vrcp.pop %v4076
  %v4078 = vmul.f32 1.0, %v4077
  %v4079 = vmul.f32 %v4071, %v3842
  %v4080 = vmul.f32 %v4065, %v4072
  %v4081 = vadd.f32 %v4079, %v4080
  %v4082 = vtanh.pop %v4081
  %v4083 = vmul.f32 %v4078, %v4082
  %4084 = vst [vmem:[%s1809] sm:$0xff] %v4083
  %v4085 = vld [vmem:[%s1813] sm:$0xff]
  %v4086 = vld [vmem:[%s1813 + $0x8] sm:$0xff]
  %v4087 = vld [vmem:[%s1813 + $0x10] sm:$0xff]
  %v4088 = vld [vmem:[%s1813 + $0x18] sm:$0xff]
  %v4089 = vld [vmem:[%s2654] sm:$0xff]
  %v4090 = vld [vmem:[%s2654 + $0x8] sm:$0xff]
  %v4091 = vld [vmem:[%s2654 + $0x10] sm:$0xff]
  %v4092 = vld [vmem:[%s2654 + $0x18] sm:$0xff]
  %v4093 = vld [vmem:[%s2654 + $0x20] sm:$0xff]
  %v4094 = vld [vmem:[%s2654 + $0x28] sm:$0xff]
  %v4095 = vld [vmem:[%s2654 + $0x30] sm:$0xff]
  %v4096 = vld [vmem:[%s2654 + $0x38] sm:$0xff]
  %v4097 = vld [vmem:[%s2654 + $0x40] sm:$0xff]
  %v4098 = vld [vmem:[%s2654 + $0x48] sm:$0xff]
  %v4099 = vld [vmem:[%s2654 + $0x50] sm:$0xff]
  %v4100 = vld [vmem:[%s2654 + $0x58] sm:$0xff]
  %v4101 = vld [vmem:[%s2654 + $0x60] sm:$0xff]
  %v4102 = vld [vmem:[%s2654 + $0x68] sm:$0xff]
  %v4103 = vld [vmem:[%s2654 + $0x70] sm:$0xff]
  %v4104 = vld [vmem:[%s2654 + $0x78] sm:$0xff]
  %v4105 = vld [vmem:[%s2654 + $0x80] sm:$0xff]
  %v4106 = vld [vmem:[%s2654 + $0x88] sm:$0xff]
  %v4107 = vld [vmem:[%s2654 + $0x90] sm:$0xff]
  %v4108 = vld [vmem:[%s2654 + $0x98] sm:$0xff]
  %v4109 = vld [vmem:[%s2654 + $0xa0] sm:$0xff]
  %v4110 = vld [vmem:[%s2654 + $0xa8] sm:$0xff]
  %v4111 = vld [vmem:[%s2654 + $0xb0] sm:$0xff]
  %v4112 = vld [vmem:[%s2654 + $0xb8] sm:$0xff]
  %v4113 = vld [vmem:[%s2654 + $0xc0] sm:$0xff]
  %v4114 = vld [vmem:[%s2654 + $0xc8] sm:$0xff]
  %v4115 = vld [vmem:[%s2654 + $0xd0] sm:$0xff]
  %v4116 = vld [vmem:[%s2654 + $0xd8] sm:$0xff]
  %v4117 = vld [vmem:[%s2654 + $0xe0] sm:$0xff]
  %v4118 = vld [vmem:[%s2654 + $0xe8] sm:$0xff]
  %v4119 = vld [vmem:[%s2654 + $0xf0] sm:$0xff]
  %v4120 = vld [vmem:[%s2654 + $0xf8] sm:$0xff]
  %v4121 = vld [vmem:[%s2654 + $0x100] sm:$0xff]
  %v4122 = vld [vmem:[%s2654 + $0x108] sm:$0xff]
  %v4123 = vld [vmem:[%s2654 + $0x110] sm:$0xff]
  %v4124 = vld [vmem:[%s2654 + $0x118] sm:$0xff]
  %v4125 = vld [vmem:[%s2654 + $0x120] sm:$0xff]
  %v4126 = vld [vmem:[%s2654 + $0x128] sm:$0xff]
  %v4127 = vld [vmem:[%s2654 + $0x130] sm:$0xff]
  %v4128 = vld [vmem:[%s2654 + $0x138] sm:$0xff]
  %v4129 = vld [vmem:[%s2654 + $0x140] sm:$0xff]
  %v4130 = vld [vmem:[%s2654 + $0x148] sm:$0xff]
  %v4131 = vld [vmem:[%s2654 + $0x150] sm:$0xff]
  %v4132 = vld [vmem:[%s2654 + $0x158] sm:$0xff]
  %v4133 = vld [vmem:[%s2654 + $0x160] sm:$0xff]
  %v4134 = vld [vmem:[%s2654 + $0x168] sm:$0xff]
  %v4135 = vld [vmem:[%s2654 + $0x170] sm:$0xff]
  %v4136 = vld [vmem:[%s2654 + $0x178] sm:$0xff]
  %v4137 = vld [vmem:[%s2654 + $0x180] sm:$0xff]
  %v4138 = vld [vmem:[%s2654 + $0x188] sm:$0xff]
  %v4139 = vld [vmem:[%s2654 + $0x190] sm:$0xff]
  %v4140 = vld [vmem:[%s2654 + $0x198] sm:$0xff]
  %v4141 = vld [vmem:[%s2654 + $0x1a0] sm:$0xff]
  %v4142 = vld [vmem:[%s2654 + $0x1a8] sm:$0xff]
  %v4143 = vld [vmem:[%s2654 + $0x1b0] sm:$0xff]
  %v4144 = vld [vmem:[%s2654 + $0x1b8] sm:$0xff]
  %v4145 = vld [vmem:[%s2654 + $0x1c0] sm:$0xff]
  %v4146 = vld [vmem:[%s2654 + $0x1c8] sm:$0xff]
  %v4147 = vld [vmem:[%s2654 + $0x1d0] sm:$0xff]
  %v4148 = vld [vmem:[%s2654 + $0x1d8] sm:$0xff]
  %v4149 = vld [vmem:[%s2654 + $0x1e0] sm:$0xff]
  %v4150 = vld [vmem:[%s2654 + $0x1e8] sm:$0xff]
  %v4151 = vld [vmem:[%s2654 + $0x1f0] sm:$0xff]
  %v4152 = vld [vmem:[%s2654 + $0x1f8] sm:$0xff]
  %4153 = vmatprep.subr.mxu0 %v4150
  %4154 = vmatpush1.msra.mxu0 %v4149
  %4155 = vmatprep.subr.mxu0 %v4146
  %4156 = vmatpush1.msra.mxu0 %v4145
  %4157 = vmatprep.subr.mxu0 %v4142
  %4158 = vmatpush1.msra.mxu0 %v4141
  %4159 = vmatprep.subr.mxu0 %v4138
  %4160 = vmatpush1.msra.mxu0 %v4137
  %4161 = vmatprep.subr.mxu0 %v4134
  %4162 = vmatpush1.msra.mxu0 %v4133
  %4163 = vmatprep.subr.mxu0 %v4130
  %4164 = vmatpush1.msra.mxu0 %v4129
  %4165 = vmatprep.subr.mxu0 %v4126
  %4166 = vmatpush1.msra.mxu0 %v4125
  %4167 = vmatprep.subr.mxu0 %v4122
  %4168 = vmatpush1.msra.mxu0 %v4121
  %4169 = vmatprep.subr.mxu0 %v4118
  %4170 = vmatpush1.msra.mxu0 %v4117
  %4171 = vmatprep.subr.mxu0 %v4114
  %4172 = vmatpush1.msra.mxu0 %v4113
  %4173 = vmatprep.subr.mxu0 %v4110
  %4174 = vmatpush1.msra.mxu0 %v4109
  %4175 = vmatprep.subr.mxu0 %v4106
  %4176 = vmatpush1.msra.mxu0 %v4105
  %4177 = vmatprep.subr.mxu0 %v4102
  %4178 = vmatpush1.msra.mxu0 %v4101
  %4179 = vmatprep.subr.mxu0 %v4098
  %4180 = vmatpush1.msra.mxu0 %v4097
  %4181 = vmatprep.subr.mxu0 %v4094
  %4182 = vmatpush1.msra.mxu0 %v4093
  %4183 = vmatprep.subr.mxu0 %v4090
  %4184 = vmatpush1.msra.mxu0 %v4089
  %4185 = vmatprep.subr.mxu0 0.0
  %4186 = vmatpush2.msra.mxu0 0.0
  %4187 = vmatprep.subr.mxu0 0.0
  %4188 = vmatpush2.msra.mxu0 0.0
  %4189 = vmatprep.subr.mxu0 0.0
  %4190 = vmatpush2.msra.mxu0 0.0
  %4191 = vmatprep.subr.mxu0 0.0
  %4192 = vmatpush2.msra.mxu0 0.0
  %4193 = vmatprep.subr.mxu0 0.0
  %4194 = vmatpush2.msra.mxu0 0.0
  %4195 = vmatprep.subr.mxu0 0.0
  %4196 = vmatpush2.msra.mxu0 0.0
  %4197 = vmatprep.subr.mxu0 0.0
  %4198 = vmatpush2.msra.mxu0 0.0
  %4199 = vmatprep.subr.mxu0 0.0
  %4200 = vmatpush2.msra.mxu0 0.0
  %4201 = vmatprep.subr.mxu0 0.0
  %4202 = vmatpush2.msra.mxu0 0.0
  %4203 = vmatprep.subr.mxu0 0.0
  %4204 = vmatpush2.msra.mxu0 0.0
  %4205 = vmatprep.subr.mxu0 0.0
  %4206 = vmatpush2.msra.mxu0 0.0
  %4207 = vmatprep.subr.mxu0 0.0
  %4208 = vmatpush2.msra.mxu0 0.0
  %4209 = vmatprep.subr.mxu0 0.0
  %4210 = vmatpush2.msra.mxu0 0.0
  %4211 = vmatprep.subr.mxu0 0.0
  %4212 = vmatpush2.msra.mxu0 0.0
  %4213 = vmatprep.subr.mxu0 0.0
  %4214 = vmatpush2.msra.mxu0 0.0
  %4215 = vmatprep.subr.mxu0 0.0
  %4216 = vmatpush2.msra.mxu0 0.0
  %4217 = vmatprep.mubr.f32.mxu0 0.0
  %4218 = vmatmul.mubr.f32.gmra.mxu0 %v4083
  %v4219 = vpop.f32.mrf.mxu0
  %v4220 = vadd.f32 0.0, %v4219
  %v4221 = vpop.f32.mrf.mxu0
  %v4222 = vadd.f32 0.0, %v4221
  %4223 = vdwg.mxu0
  %4224 = vmatprep.subr.mxu0 %v4152
  %4225 = vmatpush1.msra.mxu0 %v4151
  %4226 = vmatprep.subr.mxu0 %v4148
  %4227 = vmatpush1.msra.mxu0 %v4147
  %4228 = vmatprep.subr.mxu0 %v4144
  %4229 = vmatpush1.msra.mxu0 %v4143
  %4230 = vmatprep.subr.mxu0 %v4140
  %4231 = vmatpush1.msra.mxu0 %v4139
  %4232 = vmatprep.subr.mxu0 %v4136
  %4233 = vmatpush1.msra.mxu0 %v4135
  %4234 = vmatprep.subr.mxu0 %v4132
  %4235 = vmatpush1.msra.mxu0 %v4131
  %4236 = vmatprep.subr.mxu0 %v4128
  %4237 = vmatpush1.msra.mxu0 %v4127
  %4238 = vmatprep.subr.mxu0 %v4124
  %4239 = vmatpush1.msra.mxu0 %v4123
  %4240 = vmatprep.subr.mxu0 %v4120
  %4241 = vmatpush1.msra.mxu0 %v4119
  %4242 = vmatprep.subr.mxu0 %v4116
  %4243 = vmatpush1.msra.mxu0 %v4115
  %4244 = vmatprep.subr.mxu0 %v4112
  %4245 = vmatpush1.msra.mxu0 %v4111
  %4246 = vmatprep.subr.mxu0 %v4108
  %4247 = vmatpush1.msra.mxu0 %v4107
  %4248 = vmatprep.subr.mxu0 %v4104
  %4249 = vmatpush1.msra.mxu0 %v4103
  %4250 = vmatprep.subr.mxu0 %v4100
  %4251 = vmatpush1.msra.mxu0 %v4099
  %4252 = vmatprep.subr.mxu0 %v4096
  %4253 = vmatpush1.msra.mxu0 %v4095
  %4254 = vmatprep.subr.mxu0 %v4092
  %4255 = vmatpush1.msra.mxu0 %v4091
  %4256 = vmatprep.subr.mxu0 0.0
  %4257 = vmatpush2.msra.mxu0 0.0
  %4258 = vmatprep.subr.mxu0 0.0
  %4259 = vmatpush2.msra.mxu0 0.0
  %4260 = vmatprep.subr.mxu0 0.0
  %4261 = vmatpush2.msra.mxu0 0.0
  %4262 = vmatprep.subr.mxu0 0.0
  %4263 = vmatpush2.msra.mxu0 0.0
  %4264 = vmatprep.subr.mxu0 0.0
  %4265 = vmatpush2.msra.mxu0 0.0
  %4266 = vmatprep.subr.mxu0 0.0
  %4267 = vmatpush2.msra.mxu0 0.0
  %4268 = vmatprep.subr.mxu0 0.0
  %4269 = vmatpush2.msra.mxu0 0.0
  %4270 = vmatprep.subr.mxu0 0.0
  %4271 = vmatpush2.msra.mxu0 0.0
  %4272 = vmatprep.subr.mxu0 0.0
  %4273 = vmatpush2.msra.mxu0 0.0
  %4274 = vmatprep.subr.mxu0 0.0
  %4275 = vmatpush2.msra.mxu0 0.0
  %4276 = vmatprep.subr.mxu0 0.0
  %4277 = vmatpush2.msra.mxu0 0.0
  %4278 = vmatprep.subr.mxu0 0.0
  %4279 = vmatpush2.msra.mxu0 0.0
  %4280 = vmatprep.subr.mxu0 0.0
  %4281 = vmatpush2.msra.mxu0 0.0
  %4282 = vmatprep.subr.mxu0 0.0
  %4283 = vmatpush2.msra.mxu0 0.0
  %4284 = vmatprep.subr.mxu0 0.0
  %4285 = vmatpush2.msra.mxu0 0.0
  %4286 = vmatprep.subr.mxu0 0.0
  %4287 = vmatpush2.msra.mxu0 0.0
  %4288 = vmatprep.mubr.f32.mxu0 0.0
  %4289 = vmatmul.mubr.f32.gmra.mxu0 %v4083
  %v4290 = vpop.f32.mrf.mxu0
  %v4291 = vadd.f32 0.0, %v4290
  %v4292 = vpop.f32.mrf.mxu0
  %v4293 = vadd.f32 0.0, %v4292
  %4294 = vdwg.mxu0
  %v4295 = vadd.f32 %v4085, %v4220
  %v4296 = vadd.f32 %v4086, %v4222
  %v4297 = vadd.f32 %v4087, %v4291
  %v4298 = vadd.f32 %v4088, %v4293
  %v4299 = vxor.u32 %v4295, 2147483648
  %v4300 = vmul.f32 %v4299, 1.442695
  %v4301 = vpow.pop %v4300
  %v4302 = vadd.f32 %v4301, 1.0
  %v4303 = vrcp.pop %v4302
  %v4304 = vmul.f32 1.0, %v4303
  %v4305 = vxor.u32 %v4296, 2147483648
  %v4306 = vmul.f32 %v4305, 1.442695
  %v4307 = vpow.pop %v4306
  %v4308 = vadd.f32 %v4307, 1.0
  %v4309 = vrcp.pop %v4308
  %v4310 = vmul.f32 1.0, %v4309
  %v4311 = vtanh.pop %v4297
  %v4312 = vxor.u32 %v4298, 2147483648
  %v4313 = vmul.f32 %v4312, 1.442695
  %v4314 = vpow.pop %v4313
  %v4315 = vadd.f32 %v4314, 1.0
  %v4316 = vrcp.pop %v4315
  %v4317 = vmul.f32 1.0, %v4316
  %v4318 = vmul.f32 %v4310, %v4081
  %v4319 = vmul.f32 %v4304, %v4311
  %v4320 = vadd.f32 %v4318, %v4319
  %v4321 = vtanh.pop %v4320
  %v4322 = vmul.f32 %v4317, %v4321
  %4323 = vst [vmem:[%s2052] sm:$0xff] %v4322
  %v4324 = vld [vmem:[%s2056] sm:$0xff]
  %v4325 = vld [vmem:[%s2056 + $0x8] sm:$0xff]
  %v4326 = vld [vmem:[%s2056 + $0x10] sm:$0xff]
  %v4327 = vld [vmem:[%s2056 + $0x18] sm:$0xff]
  %v4328 = vld [vmem:[%s2654] sm:$0xff]
  %v4329 = vld [vmem:[%s2654 + $0x8] sm:$0xff]
  %v4330 = vld [vmem:[%s2654 + $0x10] sm:$0xff]
  %v4331 = vld [vmem:[%s2654 + $0x18] sm:$0xff]
  %v4332 = vld [vmem:[%s2654 + $0x20] sm:$0xff]
  %v4333 = vld [vmem:[%s2654 + $0x28] sm:$0xff]
  %v4334 = vld [vmem:[%s2654 + $0x30] sm:$0xff]
  %v4335 = vld [vmem:[%s2654 + $0x38] sm:$0xff]
  %v4336 = vld [vmem:[%s2654 + $0x40] sm:$0xff]
  %v4337 = vld [vmem:[%s2654 + $0x48] sm:$0xff]
  %v4338 = vld [vmem:[%s2654 + $0x50] sm:$0xff]
  %v4339 = vld [vmem:[%s2654 + $0x58] sm:$0xff]
  %v4340 = vld [vmem:[%s2654 + $0x60] sm:$0xff]
  %v4341 = vld [vmem:[%s2654 + $0x68] sm:$0xff]
  %v4342 = vld [vmem:[%s2654 + $0x70] sm:$0xff]
  %v4343 = vld [vmem:[%s2654 + $0x78] sm:$0xff]
  %v4344 = vld [vmem:[%s2654 + $0x80] sm:$0xff]
  %v4345 = vld [vmem:[%s2654 + $0x88] sm:$0xff]
  %v4346 = vld [vmem:[%s2654 + $0x90] sm:$0xff]
  %v4347 = vld [vmem:[%s2654 + $0x98] sm:$0xff]
  %v4348 = vld [vmem:[%s2654 + $0xa0] sm:$0xff]
  %v4349 = vld [vmem:[%s2654 + $0xa8] sm:$0xff]
  %v4350 = vld [vmem:[%s2654 + $0xb0] sm:$0xff]
  %v4351 = vld [vmem:[%s2654 + $0xb8] sm:$0xff]
  %v4352 = vld [vmem:[%s2654 + $0xc0] sm:$0xff]
  %v4353 = vld [vmem:[%s2654 + $0xc8] sm:$0xff]
  %v4354 = vld [vmem:[%s2654 + $0xd0] sm:$0xff]
  %v4355 = vld [vmem:[%s2654 + $0xd8] sm:$0xff]
  %v4356 = vld [vmem:[%s2654 + $0xe0] sm:$0xff]
  %v4357 = vld [vmem:[%s2654 + $0xe8] sm:$0xff]
  %v4358 = vld [vmem:[%s2654 + $0xf0] sm:$0xff]
  %v4359 = vld [vmem:[%s2654 + $0xf8] sm:$0xff]
  %v4360 = vld [vmem:[%s2654 + $0x100] sm:$0xff]
  %v4361 = vld [vmem:[%s2654 + $0x108] sm:$0xff]
  %v4362 = vld [vmem:[%s2654 + $0x110] sm:$0xff]
  %v4363 = vld [vmem:[%s2654 + $0x118] sm:$0xff]
  %v4364 = vld [vmem:[%s2654 + $0x120] sm:$0xff]
  %v4365 = vld [vmem:[%s2654 + $0x128] sm:$0xff]
  %v4366 = vld [vmem:[%s2654 + $0x130] sm:$0xff]
  %v4367 = vld [vmem:[%s2654 + $0x138] sm:$0xff]
  %v4368 = vld [vmem:[%s2654 + $0x140] sm:$0xff]
  %v4369 = vld [vmem:[%s2654 + $0x148] sm:$0xff]
  %v4370 = vld [vmem:[%s2654 + $0x150] sm:$0xff]
  %v4371 = vld [vmem:[%s2654 + $0x158] sm:$0xff]
  %v4372 = vld [vmem:[%s2654 + $0x160] sm:$0xff]
  %v4373 = vld [vmem:[%s2654 + $0x168] sm:$0xff]
  %v4374 = vld [vmem:[%s2654 + $0x170] sm:$0xff]
  %v4375 = vld [vmem:[%s2654 + $0x178] sm:$0xff]
  %v4376 = vld [vmem:[%s2654 + $0x180] sm:$0xff]
  %v4377 = vld [vmem:[%s2654 + $0x188] sm:$0xff]
  %v4378 = vld [vmem:[%s2654 + $0x190] sm:$0xff]
  %v4379 = vld [vmem:[%s2654 + $0x198] sm:$0xff]
  %v4380 = vld [vmem:[%s2654 + $0x1a0] sm:$0xff]
  %v4381 = vld [vmem:[%s2654 + $0x1a8] sm:$0xff]
  %v4382 = vld [vmem:[%s2654 + $0x1b0] sm:$0xff]
  %v4383 = vld [vmem:[%s2654 + $0x1b8] sm:$0xff]
  %v4384 = vld [vmem:[%s2654 + $0x1c0] sm:$0xff]
  %v4385 = vld [vmem:[%s2654 + $0x1c8] sm:$0xff]
  %v4386 = vld [vmem:[%s2654 + $0x1d0] sm:$0xff]
  %v4387 = vld [vmem:[%s2654 + $0x1d8] sm:$0xff]
  %v4388 = vld [vmem:[%s2654 + $0x1e0] sm:$0xff]
  %v4389 = vld [vmem:[%s2654 + $0x1e8] sm:$0xff]
  %v4390 = vld [vmem:[%s2654 + $0x1f0] sm:$0xff]
  %v4391 = vld [vmem:[%s2654 + $0x1f8] sm:$0xff]
  %4392 = vmatprep.subr.mxu0 %v4389
  %4393 = vmatpush1.msra.mxu0 %v4388
  %4394 = vmatprep.subr.mxu0 %v4385
  %4395 = vmatpush1.msra.mxu0 %v4384
  %4396 = vmatprep.subr.mxu0 %v4381
  %4397 = vmatpush1.msra.mxu0 %v4380
  %4398 = vmatprep.subr.mxu0 %v4377
  %4399 = vmatpush1.msra.mxu0 %v4376
  %4400 = vmatprep.subr.mxu0 %v4373
  %4401 = vmatpush1.msra.mxu0 %v4372
  %4402 = vmatprep.subr.mxu0 %v4369
  %4403 = vmatpush1.msra.mxu0 %v4368
  %4404 = vmatprep.subr.mxu0 %v4365
  %4405 = vmatpush1.msra.mxu0 %v4364
  %4406 = vmatprep.subr.mxu0 %v4361
  %4407 = vmatpush1.msra.mxu0 %v4360
  %4408 = vmatprep.subr.mxu0 %v4357
  %4409 = vmatpush1.msra.mxu0 %v4356
  %4410 = vmatprep.subr.mxu0 %v4353
  %4411 = vmatpush1.msra.mxu0 %v4352
  %4412 = vmatprep.subr.mxu0 %v4349
  %4413 = vmatpush1.msra.mxu0 %v4348
  %4414 = vmatprep.subr.mxu0 %v4345
  %4415 = vmatpush1.msra.mxu0 %v4344
  %4416 = vmatprep.subr.mxu0 %v4341
  %4417 = vmatpush1.msra.mxu0 %v4340
  %4418 = vmatprep.subr.mxu0 %v4337
  %4419 = vmatpush1.msra.mxu0 %v4336
  %4420 = vmatprep.subr.mxu0 %v4333
  %4421 = vmatpush1.msra.mxu0 %v4332
  %4422 = vmatprep.subr.mxu0 %v4329
  %4423 = vmatpush1.msra.mxu0 %v4328
  %4424 = vmatprep.subr.mxu0 0.0
  %4425 = vmatpush2.msra.mxu0 0.0
  %4426 = vmatprep.subr.mxu0 0.0
  %4427 = vmatpush2.msra.mxu0 0.0
  %4428 = vmatprep.subr.mxu0 0.0
  %4429 = vmatpush2.msra.mxu0 0.0
  %4430 = vmatprep.subr.mxu0 0.0
  %4431 = vmatpush2.msra.mxu0 0.0
  %4432 = vmatprep.subr.mxu0 0.0
  %4433 = vmatpush2.msra.mxu0 0.0
  %4434 = vmatprep.subr.mxu0 0.0
  %4435 = vmatpush2.msra.mxu0 0.0
  %4436 = vmatprep.subr.mxu0 0.0
  %4437 = vmatpush2.msra.mxu0 0.0
  %4438 = vmatprep.subr.mxu0 0.0
  %4439 = vmatpush2.msra.mxu0 0.0
  %4440 = vmatprep.subr.mxu0 0.0
  %4441 = vmatpush2.msra.mxu0 0.0
  %4442 = vmatprep.subr.mxu0 0.0
  %4443 = vmatpush2.msra.mxu0 0.0
  %4444 = vmatprep.subr.mxu0 0.0
  %4445 = vmatpush2.msra.mxu0 0.0
  %4446 = vmatprep.subr.mxu0 0.0
  %4447 = vmatpush2.msra.mxu0 0.0
  %4448 = vmatprep.subr.mxu0 0.0
  %4449 = vmatpush2.msra.mxu0 0.0
  %4450 = vmatprep.subr.mxu0 0.0
  %4451 = vmatpush2.msra.mxu0 0.0
  %4452 = vmatprep.subr.mxu0 0.0
  %4453 = vmatpush2.msra.mxu0 0.0
  %4454 = vmatprep.subr.mxu0 0.0
  %4455 = vmatpush2.msra.mxu0 0.0
  %4456 = vmatprep.mubr.f32.mxu0 0.0
  %4457 = vmatmul.mubr.f32.gmra.mxu0 %v4322
  %v4458 = vpop.f32.mrf.mxu0
  %v4459 = vadd.f32 0.0, %v4458
  %v4460 = vpop.f32.mrf.mxu0
  %v4461 = vadd.f32 0.0, %v4460
  %4462 = vdwg.mxu0
  %4463 = vmatprep.subr.mxu0 %v4391
  %4464 = vmatpush1.msra.mxu0 %v4390
  %4465 = vmatprep.subr.mxu0 %v4387
  %4466 = vmatpush1.msra.mxu0 %v4386
  %4467 = vmatprep.subr.mxu0 %v4383
  %4468 = vmatpush1.msra.mxu0 %v4382
  %4469 = vmatprep.subr.mxu0 %v4379
  %4470 = vmatpush1.msra.mxu0 %v4378
  %4471 = vmatprep.subr.mxu0 %v4375
  %4472 = vmatpush1.msra.mxu0 %v4374
  %4473 = vmatprep.subr.mxu0 %v4371
  %4474 = vmatpush1.msra.mxu0 %v4370
  %4475 = vmatprep.subr.mxu0 %v4367
  %4476 = vmatpush1.msra.mxu0 %v4366
  %4477 = vmatprep.subr.mxu0 %v4363
  %4478 = vmatpush1.msra.mxu0 %v4362
  %4479 = vmatprep.subr.mxu0 %v4359
  %4480 = vmatpush1.msra.mxu0 %v4358
  %4481 = vmatprep.subr.mxu0 %v4355
  %4482 = vmatpush1.msra.mxu0 %v4354
  %4483 = vmatprep.subr.mxu0 %v4351
  %4484 = vmatpush1.msra.mxu0 %v4350
  %4485 = vmatprep.subr.mxu0 %v4347
  %4486 = vmatpush1.msra.mxu0 %v4346
  %4487 = vmatprep.subr.mxu0 %v4343
  %4488 = vmatpush1.msra.mxu0 %v4342
  %4489 = vmatprep.subr.mxu0 %v4339
  %4490 = vmatpush1.msra.mxu0 %v4338
  %4491 = vmatprep.subr.mxu0 %v4335
  %4492 = vmatpush1.msra.mxu0 %v4334
  %4493 = vmatprep.subr.mxu0 %v4331
  %4494 = vmatpush1.msra.mxu0 %v4330
  %4495 = vmatprep.subr.mxu0 0.0
  %4496 = vmatpush2.msra.mxu0 0.0
  %4497 = vmatprep.subr.mxu0 0.0
  %4498 = vmatpush2.msra.mxu0 0.0
  %4499 = vmatprep.subr.mxu0 0.0
  %4500 = vmatpush2.msra.mxu0 0.0
  %4501 = vmatprep.subr.mxu0 0.0
  %4502 = vmatpush2.msra.mxu0 0.0
  %4503 = vmatprep.subr.mxu0 0.0
  %4504 = vmatpush2.msra.mxu0 0.0
  %4505 = vmatprep.subr.mxu0 0.0
  %4506 = vmatpush2.msra.mxu0 0.0
  %4507 = vmatprep.subr.mxu0 0.0
  %4508 = vmatpush2.msra.mxu0 0.0
  %4509 = vmatprep.subr.mxu0 0.0
  %4510 = vmatpush2.msra.mxu0 0.0
  %4511 = vmatprep.subr.mxu0 0.0
  %4512 = vmatpush2.msra.mxu0 0.0
  %4513 = vmatprep.subr.mxu0 0.0
  %4514 = vmatpush2.msra.mxu0 0.0
  %4515 = vmatprep.subr.mxu0 0.0
  %4516 = vmatpush2.msra.mxu0 0.0
  %4517 = vmatprep.subr.mxu0 0.0
  %4518 = vmatpush2.msra.mxu0 0.0
  %4519 = vmatprep.subr.mxu0 0.0
  %4520 = vmatpush2.msra.mxu0 0.0
  %4521 = vmatprep.subr.mxu0 0.0
  %4522 = vmatpush2.msra.mxu0 0.0
  %4523 = vmatprep.subr.mxu0 0.0
  %4524 = vmatpush2.msra.mxu0 0.0
  %4525 = vmatprep.subr.mxu0 0.0
  %4526 = vmatpush2.msra.mxu0 0.0
  %4527 = vmatprep.mubr.f32.mxu0 0.0
  %4528 = vmatmul.mubr.f32.gmra.mxu0 %v4322
  %v4529 = vpop.f32.mrf.mxu0
  %v4530 = vadd.f32 0.0, %v4529
  %v4531 = vpop.f32.mrf.mxu0
  %v4532 = vadd.f32 0.0, %v4531
  %4533 = vdwg.mxu0
  %v4534 = vadd.f32 %v4324, %v4459
  %v4535 = vadd.f32 %v4325, %v4461
  %v4536 = vadd.f32 %v4326, %v4530
  %v4537 = vadd.f32 %v4327, %v4532
  %v4538 = vxor.u32 %v4534, 2147483648
  %v4539 = vmul.f32 %v4538, 1.442695
  %v4540 = vpow.pop %v4539
  %v4541 = vadd.f32 %v4540, 1.0
  %v4542 = vrcp.pop %v4541
  %v4543 = vmul.f32 1.0, %v4542
  %v4544 = vxor.u32 %v4535, 2147483648
  %v4545 = vmul.f32 %v4544, 1.442695
  %v4546 = vpow.pop %v4545
  %v4547 = vadd.f32 %v4546, 1.0
  %v4548 = vrcp.pop %v4547
  %v4549 = vmul.f32 1.0, %v4548
  %v4550 = vtanh.pop %v4536
  %v4551 = vxor.u32 %v4537, 2147483648
  %v4552 = vmul.f32 %v4551, 1.442695
  %v4553 = vpow.pop %v4552
  %v4554 = vadd.f32 %v4553, 1.0
  %v4555 = vrcp.pop %v4554
  %v4556 = vmul.f32 1.0, %v4555
  %v4557 = vmul.f32 %v4549, %v4320
  %v4558 = vmul.f32 %v4543, %v4550
  %v4559 = vadd.f32 %v4557, %v4558
  %v4560 = vtanh.pop %v4559
  %v4561 = vmul.f32 %v4556, %v4560
  %4562 = vst [vmem:[%s2295] sm:$0xff] %v4561
  %v4563 = vld [vmem:[#allocation2] sm:$0xff]
  %v4564 = vld [vmem:[%s5] sm:$0xff]
  %v4565 = vld [vmem:[%s5 + $0x8] sm:$0xff]
  %v4566 = vld [vmem:[%s5 + $0x10] sm:$0xff]
  %v4567 = vld [vmem:[%s5 + $0x18] sm:$0xff]
  %v4568 = vld [vmem:[%s5 + $0x20] sm:$0xff]
  %v4569 = vld [vmem:[%s5 + $0x28] sm:$0xff]
  %v4570 = vld [vmem:[%s5 + $0x30] sm:$0xff]
  %v4571 = vld [vmem:[%s5 + $0x38] sm:$0xff]
  %v4572 = vld [vmem:[%s5 + $0x40] sm:$0xff]
  %v4573 = vld [vmem:[%s5 + $0x48] sm:$0xff]
  %v4574 = vld [vmem:[%s5 + $0x50] sm:$0xff]
  %v4575 = vld [vmem:[%s5 + $0x58] sm:$0xff]
  %v4576 = vld [vmem:[%s5 + $0x60] sm:$0xff]
  %v4577 = vld [vmem:[%s5 + $0x68] sm:$0xff]
  %v4578 = vld [vmem:[%s5 + $0x70] sm:$0xff]
  %v4579 = vld [vmem:[%s5 + $0x78] sm:$0xff]
  %v4580 = vld [vmem:[%s837] sm:$0xff]
  %s4581 = scalar_lea.vmem %s5, 128
  %v4582 = vld [vmem:[%s4581] sm:$0xff]
  %v4583 = vld [vmem:[%s4581 + $0x8] sm:$0xff]
  %v4584 = vld [vmem:[%s4581 + $0x10] sm:$0xff]
  %v4585 = vld [vmem:[%s4581 + $0x18] sm:$0xff]
  %v4586 = vld [vmem:[%s4581 + $0x20] sm:$0xff]
  %v4587 = vld [vmem:[%s4581 + $0x28] sm:$0xff]
  %v4588 = vld [vmem:[%s4581 + $0x30] sm:$0xff]
  %v4589 = vld [vmem:[%s4581 + $0x38] sm:$0xff]
  %v4590 = vld [vmem:[%s4581 + $0x40] sm:$0xff]
  %v4591 = vld [vmem:[%s4581 + $0x48] sm:$0xff]
  %v4592 = vld [vmem:[%s4581 + $0x50] sm:$0xff]
  %v4593 = vld [vmem:[%s4581 + $0x58] sm:$0xff]
  %v4594 = vld [vmem:[%s4581 + $0x60] sm:$0xff]
  %v4595 = vld [vmem:[%s4581 + $0x68] sm:$0xff]
  %v4596 = vld [vmem:[%s4581 + $0x70] sm:$0xff]
  %v4597 = vld [vmem:[%s4581 + $0x78] sm:$0xff]
  %4598 = vmatprep.subr.mxu0 0.0
  %4599 = vmatpush1.msra.mxu0 %v4597
  %4600 = vmatprep.subr.mxu0 0.0
  %4601 = vmatpush1.msra.mxu0 %v4596
  %4602 = vmatprep.subr.mxu0 0.0
  %4603 = vmatpush1.msra.mxu0 %v4595
  %4604 = vmatprep.subr.mxu0 0.0
  %4605 = vmatpush1.msra.mxu0 %v4594
  %4606 = vmatprep.subr.mxu0 0.0
  %4607 = vmatpush1.msra.mxu0 %v4593
  %4608 = vmatprep.subr.mxu0 0.0
  %4609 = vmatpush1.msra.mxu0 %v4592
  %4610 = vmatprep.subr.mxu0 0.0
  %4611 = vmatpush1.msra.mxu0 %v4591
  %4612 = vmatprep.subr.mxu0 0.0
  %4613 = vmatpush1.msra.mxu0 %v4590
  %4614 = vmatprep.subr.mxu0 0.0
  %4615 = vmatpush1.msra.mxu0 %v4589
  %4616 = vmatprep.subr.mxu0 0.0
  %4617 = vmatpush1.msra.mxu0 %v4588
  %4618 = vmatprep.subr.mxu0 0.0
  %4619 = vmatpush1.msra.mxu0 %v4587
  %4620 = vmatprep.subr.mxu0 0.0
  %4621 = vmatpush1.msra.mxu0 %v4586
  %4622 = vmatprep.subr.mxu0 0.0
  %4623 = vmatpush1.msra.mxu0 %v4585
  %4624 = vmatprep.subr.mxu0 0.0
  %4625 = vmatpush1.msra.mxu0 %v4584
  %4626 = vmatprep.subr.mxu0 0.0
  %4627 = vmatpush1.msra.mxu0 %v4583
  %4628 = vmatprep.subr.mxu0 0.0
  %4629 = vmatpush1.msra.mxu0 %v4582
  %4630 = vmatprep.subr.mxu0 0.0
  %4631 = vmatpush2.msra.mxu0 0.0
  %4632 = vmatprep.subr.mxu0 0.0
  %4633 = vmatpush2.msra.mxu0 0.0
  %4634 = vmatprep.subr.mxu0 0.0
  %4635 = vmatpush2.msra.mxu0 0.0
  %4636 = vmatprep.subr.mxu0 0.0
  %4637 = vmatpush2.msra.mxu0 0.0
  %4638 = vmatprep.subr.mxu0 0.0
  %4639 = vmatpush2.msra.mxu0 0.0
  %4640 = vmatprep.subr.mxu0 0.0
  %4641 = vmatpush2.msra.mxu0 0.0
  %4642 = vmatprep.subr.mxu0 0.0
  %4643 = vmatpush2.msra.mxu0 0.0
  %4644 = vmatprep.subr.mxu0 0.0
  %4645 = vmatpush2.msra.mxu0 0.0
  %4646 = vmatprep.subr.mxu0 0.0
  %4647 = vmatpush2.msra.mxu0 0.0
  %4648 = vmatprep.subr.mxu0 0.0
  %4649 = vmatpush2.msra.mxu0 0.0
  %4650 = vmatprep.subr.mxu0 0.0
  %4651 = vmatpush2.msra.mxu0 0.0
  %4652 = vmatprep.subr.mxu0 0.0
  %4653 = vmatpush2.msra.mxu0 0.0
  %4654 = vmatprep.subr.mxu0 0.0
  %4655 = vmatpush2.msra.mxu0 0.0
  %4656 = vmatprep.subr.mxu0 0.0
  %4657 = vmatpush2.msra.mxu0 0.0
  %4658 = vmatprep.subr.mxu0 0.0
  %4659 = vmatpush2.msra.mxu0 0.0
  %4660 = vmatprep.subr.mxu0 0.0
  %4661 = vmatpush2.msra.mxu0 0.0
  %4662 = vmatprep.mubr.f32.mxu0 0.0
  %4663 = vmatmul.mubr.f32.gmra.mxu0 %v4580
  %v4664 = vpop.f32.mrf.mxu0
  %v4665 = vadd.f32 0.0, %v4664
  %v4666 = vpop.f32.mrf.mxu0
  %4667 = vdwg.mxu0
  %4668 = vmatprep.subr.mxu0 0.0
  %4669 = vmatpush1.msra.mxu0 %v4579
  %4670 = vmatprep.subr.mxu0 0.0
  %4671 = vmatpush1.msra.mxu0 %v4578
  %4672 = vmatprep.subr.mxu0 0.0
  %4673 = vmatpush1.msra.mxu0 %v4577
  %4674 = vmatprep.subr.mxu0 0.0
  %4675 = vmatpush1.msra.mxu0 %v4576
  %4676 = vmatprep.subr.mxu0 0.0
  %4677 = vmatpush1.msra.mxu0 %v4575
  %4678 = vmatprep.subr.mxu0 0.0
  %4679 = vmatpush1.msra.mxu0 %v4574
  %4680 = vmatprep.subr.mxu0 0.0
  %4681 = vmatpush1.msra.mxu0 %v4573
  %4682 = vmatprep.subr.mxu0 0.0
  %4683 = vmatpush1.msra.mxu0 %v4572
  %4684 = vmatprep.subr.mxu0 0.0
  %4685 = vmatpush1.msra.mxu0 %v4571
  %4686 = vmatprep.subr.mxu0 0.0
  %4687 = vmatpush1.msra.mxu0 %v4570
  %4688 = vmatprep.subr.mxu0 0.0
  %4689 = vmatpush1.msra.mxu0 %v4569
  %4690 = vmatprep.subr.mxu0 0.0
  %4691 = vmatpush1.msra.mxu0 %v4568
  %4692 = vmatprep.subr.mxu0 0.0
  %4693 = vmatpush1.msra.mxu0 %v4567
  %4694 = vmatprep.subr.mxu0 0.0
  %4695 = vmatpush1.msra.mxu0 %v4566
  %4696 = vmatprep.subr.mxu0 0.0
  %4697 = vmatpush1.msra.mxu0 %v4565
  %4698 = vmatprep.subr.mxu0 0.0
  %4699 = vmatpush1.msra.mxu0 %v4564
  %4700 = vmatprep.subr.mxu0 0.0
  %4701 = vmatpush2.msra.mxu0 0.0
  %4702 = vmatprep.subr.mxu0 0.0
  %4703 = vmatpush2.msra.mxu0 0.0
  %4704 = vmatprep.subr.mxu0 0.0
  %4705 = vmatpush2.msra.mxu0 0.0
  %4706 = vmatprep.subr.mxu0 0.0
  %4707 = vmatpush2.msra.mxu0 0.0
  %4708 = vmatprep.subr.mxu0 0.0
  %4709 = vmatpush2.msra.mxu0 0.0
  %4710 = vmatprep.subr.mxu0 0.0
  %4711 = vmatpush2.msra.mxu0 0.0
  %4712 = vmatprep.subr.mxu0 0.0
  %4713 = vmatpush2.msra.mxu0 0.0
  %4714 = vmatprep.subr.mxu0 0.0
  %4715 = vmatpush2.msra.mxu0 0.0
  %4716 = vmatprep.subr.mxu0 0.0
  %4717 = vmatpush2.msra.mxu0 0.0
  %4718 = vmatprep.subr.mxu0 0.0
  %4719 = vmatpush2.msra.mxu0 0.0
  %4720 = vmatprep.subr.mxu0 0.0
  %4721 = vmatpush2.msra.mxu0 0.0
  %4722 = vmatprep.subr.mxu0 0.0
  %4723 = vmatpush2.msra.mxu0 0.0
  %4724 = vmatprep.subr.mxu0 0.0
  %4725 = vmatpush2.msra.mxu0 0.0
  %4726 = vmatprep.subr.mxu0 0.0
  %4727 = vmatpush2.msra.mxu0 0.0
  %4728 = vmatprep.subr.mxu0 0.0
  %4729 = vmatpush2.msra.mxu0 0.0
  %4730 = vmatprep.subr.mxu0 0.0
  %4731 = vmatpush2.msra.mxu0 0.0
  %4732 = vmatprep.mubr.f32.mxu0 0.0
  %4733 = vmatmul.mubr.f32.gmra.mxu0 %v4563
  %v4734 = vpop.f32.mrf.mxu0
  %v4735 = vadd.f32 %v4665, %v4734
  %v4736 = vpop.f32.mrf.mxu0
  %4737 = vdwg.mxu0
  %v4738 = vld [vmem:[%s1080] sm:$0xff]
  %s4739 = scalar_lea.vmem %s5, 256
  %v4740 = vld [vmem:[%s4739] sm:$0xff]
  %v4741 = vld [vmem:[%s4739 + $0x8] sm:$0xff]
  %v4742 = vld [vmem:[%s4739 + $0x10] sm:$0xff]
  %v4743 = vld [vmem:[%s4739 + $0x18] sm:$0xff]
  %v4744 = vld [vmem:[%s4739 + $0x20] sm:$0xff]
  %v4745 = vld [vmem:[%s4739 + $0x28] sm:$0xff]
  %v4746 = vld [vmem:[%s4739 + $0x30] sm:$0xff]
  %v4747 = vld [vmem:[%s4739 + $0x38] sm:$0xff]
  %v4748 = vld [vmem:[%s4739 + $0x40] sm:$0xff]
  %v4749 = vld [vmem:[%s4739 + $0x48] sm:$0xff]
  %v4750 = vld [vmem:[%s4739 + $0x50] sm:$0xff]
  %v4751 = vld [vmem:[%s4739 + $0x58] sm:$0xff]
  %v4752 = vld [vmem:[%s4739 + $0x60] sm:$0xff]
  %v4753 = vld [vmem:[%s4739 + $0x68] sm:$0xff]
  %v4754 = vld [vmem:[%s4739 + $0x70] sm:$0xff]
  %v4755 = vld [vmem:[%s4739 + $0x78] sm:$0xff]
  %4756 = vmatprep.subr.mxu0 0.0
  %4757 = vmatpush1.msra.mxu0 %v4755
  %4758 = vmatprep.subr.mxu0 0.0
  %4759 = vmatpush1.msra.mxu0 %v4754
  %4760 = vmatprep.subr.mxu0 0.0
  %4761 = vmatpush1.msra.mxu0 %v4753
  %4762 = vmatprep.subr.mxu0 0.0
  %4763 = vmatpush1.msra.mxu0 %v4752
  %4764 = vmatprep.subr.mxu0 0.0
  %4765 = vmatpush1.msra.mxu0 %v4751
  %4766 = vmatprep.subr.mxu0 0.0
  %4767 = vmatpush1.msra.mxu0 %v4750
  %4768 = vmatprep.subr.mxu0 0.0
  %4769 = vmatpush1.msra.mxu0 %v4749
  %4770 = vmatprep.subr.mxu0 0.0
  %4771 = vmatpush1.msra.mxu0 %v4748
  %4772 = vmatprep.subr.mxu0 0.0
  %4773 = vmatpush1.msra.mxu0 %v4747
  %4774 = vmatprep.subr.mxu0 0.0
  %4775 = vmatpush1.msra.mxu0 %v4746
  %4776 = vmatprep.subr.mxu0 0.0
  %4777 = vmatpush1.msra.mxu0 %v4745
  %4778 = vmatprep.subr.mxu0 0.0
  %4779 = vmatpush1.msra.mxu0 %v4744
  %4780 = vmatprep.subr.mxu0 0.0
  %4781 = vmatpush1.msra.mxu0 %v4743
  %4782 = vmatprep.subr.mxu0 0.0
  %4783 = vmatpush1.msra.mxu0 %v4742
  %4784 = vmatprep.subr.mxu0 0.0
  %4785 = vmatpush1.msra.mxu0 %v4741
  %4786 = vmatprep.subr.mxu0 0.0
  %4787 = vmatpush1.msra.mxu0 %v4740
  %4788 = vmatprep.subr.mxu0 0.0
  %4789 = vmatpush2.msra.mxu0 0.0
  %4790 = vmatprep.subr.mxu0 0.0
  %4791 = vmatpush2.msra.mxu0 0.0
  %4792 = vmatprep.subr.mxu0 0.0
  %4793 = vmatpush2.msra.mxu0 0.0
  %4794 = vmatprep.subr.mxu0 0.0
  %4795 = vmatpush2.msra.mxu0 0.0
  %4796 = vmatprep.subr.mxu0 0.0
  %4797 = vmatpush2.msra.mxu0 0.0
  %4798 = vmatprep.subr.mxu0 0.0
  %4799 = vmatpush2.msra.mxu0 0.0
  %4800 = vmatprep.subr.mxu0 0.0
  %4801 = vmatpush2.msra.mxu0 0.0
  %4802 = vmatprep.subr.mxu0 0.0
  %4803 = vmatpush2.msra.mxu0 0.0
  %4804 = vmatprep.subr.mxu0 0.0
  %4805 = vmatpush2.msra.mxu0 0.0
  %4806 = vmatprep.subr.mxu0 0.0
  %4807 = vmatpush2.msra.mxu0 0.0
  %4808 = vmatprep.subr.mxu0 0.0
  %4809 = vmatpush2.msra.mxu0 0.0
  %4810 = vmatprep.subr.mxu0 0.0
  %4811 = vmatpush2.msra.mxu0 0.0
  %4812 = vmatprep.subr.mxu0 0.0
  %4813 = vmatpush2.msra.mxu0 0.0
  %4814 = vmatprep.subr.mxu0 0.0
  %4815 = vmatpush2.msra.mxu0 0.0
  %4816 = vmatprep.subr.mxu0 0.0
  %4817 = vmatpush2.msra.mxu0 0.0
  %4818 = vmatprep.subr.mxu0 0.0
  %4819 = vmatpush2.msra.mxu0 0.0
  %4820 = vmatprep.mubr.f32.mxu0 0.0
  %4821 = vmatmul.mubr.f32.gmra.mxu0 %v4738
  %v4822 = vpop.f32.mrf.mxu0
  %v4823 = vadd.f32 0.0, %v4822
  %v4824 = vpop.f32.mrf.mxu0
  %4825 = vdwg.mxu0
  %v4826 = vadd.f32 %v4735, %v4823
  %v4827 = vld [vmem:[%s1323] sm:$0xff]
  %s4828 = scalar_lea.vmem %s5, 384
  %v4829 = vld [vmem:[%s4828] sm:$0xff]
  %v4830 = vld [vmem:[%s4828 + $0x8] sm:$0xff]
  %v4831 = vld [vmem:[%s4828 + $0x10] sm:$0xff]
  %v4832 = vld [vmem:[%s4828 + $0x18] sm:$0xff]
  %v4833 = vld [vmem:[%s4828 + $0x20] sm:$0xff]
  %v4834 = vld [vmem:[%s4828 + $0x28] sm:$0xff]
  %v4835 = vld [vmem:[%s4828 + $0x30] sm:$0xff]
  %v4836 = vld [vmem:[%s4828 + $0x38] sm:$0xff]
  %v4837 = vld [vmem:[%s4828 + $0x40] sm:$0xff]
  %v4838 = vld [vmem:[%s4828 + $0x48] sm:$0xff]
  %v4839 = vld [vmem:[%s4828 + $0x50] sm:$0xff]
  %v4840 = vld [vmem:[%s4828 + $0x58] sm:$0xff]
  %v4841 = vld [vmem:[%s4828 + $0x60] sm:$0xff]
  %v4842 = vld [vmem:[%s4828 + $0x68] sm:$0xff]
  %v4843 = vld [vmem:[%s4828 + $0x70] sm:$0xff]
  %v4844 = vld [vmem:[%s4828 + $0x78] sm:$0xff]
  %4845 = vmatprep.subr.mxu0 0.0
  %4846 = vmatpush1.msra.mxu0 %v4844
  %4847 = vmatprep.subr.mxu0 0.0
  %4848 = vmatpush1.msra.mxu0 %v4843
  %4849 = vmatprep.subr.mxu0 0.0
  %4850 = vmatpush1.msra.mxu0 %v4842
  %4851 = vmatprep.subr.mxu0 0.0
  %4852 = vmatpush1.msra.mxu0 %v4841
  %4853 = vmatprep.subr.mxu0 0.0
  %4854 = vmatpush1.msra.mxu0 %v4840
  %4855 = vmatprep.subr.mxu0 0.0
  %4856 = vmatpush1.msra.mxu0 %v4839
  %4857 = vmatprep.subr.mxu0 0.0
  %4858 = vmatpush1.msra.mxu0 %v4838
  %4859 = vmatprep.subr.mxu0 0.0
  %4860 = vmatpush1.msra.mxu0 %v4837
  %4861 = vmatprep.subr.mxu0 0.0
  %4862 = vmatpush1.msra.mxu0 %v4836
  %4863 = vmatprep.subr.mxu0 0.0
  %4864 = vmatpush1.msra.mxu0 %v4835
  %4865 = vmatprep.subr.mxu0 0.0
  %4866 = vmatpush1.msra.mxu0 %v4834
  %4867 = vmatprep.subr.mxu0 0.0
  %4868 = vmatpush1.msra.mxu0 %v4833
  %4869 = vmatprep.subr.mxu0 0.0
  %4870 = vmatpush1.msra.mxu0 %v4832
  %4871 = vmatprep.subr.mxu0 0.0
  %4872 = vmatpush1.msra.mxu0 %v4831
  %4873 = vmatprep.subr.mxu0 0.0
  %4874 = vmatpush1.msra.mxu0 %v4830
  %4875 = vmatprep.subr.mxu0 0.0
  %4876 = vmatpush1.msra.mxu0 %v4829
  %4877 = vmatprep.subr.mxu0 0.0
  %4878 = vmatpush2.msra.mxu0 0.0
  %4879 = vmatprep.subr.mxu0 0.0
  %4880 = vmatpush2.msra.mxu0 0.0
  %4881 = vmatprep.subr.mxu0 0.0
  %4882 = vmatpush2.msra.mxu0 0.0
  %4883 = vmatprep.subr.mxu0 0.0
  %4884 = vmatpush2.msra.mxu0 0.0
  %4885 = vmatprep.subr.mxu0 0.0
  %4886 = vmatpush2.msra.mxu0 0.0
  %4887 = vmatprep.subr.mxu0 0.0
  %4888 = vmatpush2.msra.mxu0 0.0
  %4889 = vmatprep.subr.mxu0 0.0
  %4890 = vmatpush2.msra.mxu0 0.0
  %4891 = vmatprep.subr.mxu0 0.0
  %4892 = vmatpush2.msra.mxu0 0.0
  %4893 = vmatprep.subr.mxu0 0.0
  %4894 = vmatpush2.msra.mxu0 0.0
  %4895 = vmatprep.subr.mxu0 0.0
  %4896 = vmatpush2.msra.mxu0 0.0
  %4897 = vmatprep.subr.mxu0 0.0
  %4898 = vmatpush2.msra.mxu0 0.0
  %4899 = vmatprep.subr.mxu0 0.0
  %4900 = vmatpush2.msra.mxu0 0.0
  %4901 = vmatprep.subr.mxu0 0.0
  %4902 = vmatpush2.msra.mxu0 0.0
  %4903 = vmatprep.subr.mxu0 0.0
  %4904 = vmatpush2.msra.mxu0 0.0
  %4905 = vmatprep.subr.mxu0 0.0
  %4906 = vmatpush2.msra.mxu0 0.0
  %4907 = vmatprep.subr.mxu0 0.0
  %4908 = vmatpush2.msra.mxu0 0.0
  %4909 = vmatprep.mubr.f32.mxu0 0.0
  %4910 = vmatmul.mubr.f32.gmra.mxu0 %v4827
  %v4911 = vpop.f32.mrf.mxu0
  %v4912 = vadd.f32 0.0, %v4911
  %v4913 = vpop.f32.mrf.mxu0
  %4914 = vdwg.mxu0
  %v4915 = vadd.f32 %v4826, %v4912
  %v4916 = vld [vmem:[%s1566] sm:$0xff]
  %s4917 = scalar_lea.vmem %s5, 512
  %v4918 = vld [vmem:[%s4917] sm:$0xff]
  %v4919 = vld [vmem:[%s4917 + $0x8] sm:$0xff]
  %v4920 = vld [vmem:[%s4917 + $0x10] sm:$0xff]
  %v4921 = vld [vmem:[%s4917 + $0x18] sm:$0xff]
  %v4922 = vld [vmem:[%s4917 + $0x20] sm:$0xff]
  %v4923 = vld [vmem:[%s4917 + $0x28] sm:$0xff]
  %v4924 = vld [vmem:[%s4917 + $0x30] sm:$0xff]
  %v4925 = vld [vmem:[%s4917 + $0x38] sm:$0xff]
  %v4926 = vld [vmem:[%s4917 + $0x40] sm:$0xff]
  %v4927 = vld [vmem:[%s4917 + $0x48] sm:$0xff]
  %v4928 = vld [vmem:[%s4917 + $0x50] sm:$0xff]
  %v4929 = vld [vmem:[%s4917 + $0x58] sm:$0xff]
  %v4930 = vld [vmem:[%s4917 + $0x60] sm:$0xff]
  %v4931 = vld [vmem:[%s4917 + $0x68] sm:$0xff]
  %v4932 = vld [vmem:[%s4917 + $0x70] sm:$0xff]
  %v4933 = vld [vmem:[%s4917 + $0x78] sm:$0xff]
  %4934 = vmatprep.subr.mxu0 0.0
  %4935 = vmatpush1.msra.mxu0 %v4933
  %4936 = vmatprep.subr.mxu0 0.0
  %4937 = vmatpush1.msra.mxu0 %v4932
  %4938 = vmatprep.subr.mxu0 0.0
  %4939 = vmatpush1.msra.mxu0 %v4931
  %4940 = vmatprep.subr.mxu0 0.0
  %4941 = vmatpush1.msra.mxu0 %v4930
  %4942 = vmatprep.subr.mxu0 0.0
  %4943 = vmatpush1.msra.mxu0 %v4929
  %4944 = vmatprep.subr.mxu0 0.0
  %4945 = vmatpush1.msra.mxu0 %v4928
  %4946 = vmatprep.subr.mxu0 0.0
  %4947 = vmatpush1.msra.mxu0 %v4927
  %4948 = vmatprep.subr.mxu0 0.0
  %4949 = vmatpush1.msra.mxu0 %v4926
  %4950 = vmatprep.subr.mxu0 0.0
  %4951 = vmatpush1.msra.mxu0 %v4925
  %4952 = vmatprep.subr.mxu0 0.0
  %4953 = vmatpush1.msra.mxu0 %v4924
  %4954 = vmatprep.subr.mxu0 0.0
  %4955 = vmatpush1.msra.mxu0 %v4923
  %4956 = vmatprep.subr.mxu0 0.0
  %4957 = vmatpush1.msra.mxu0 %v4922
  %4958 = vmatprep.subr.mxu0 0.0
  %4959 = vmatpush1.msra.mxu0 %v4921
  %4960 = vmatprep.subr.mxu0 0.0
  %4961 = vmatpush1.msra.mxu0 %v4920
  %4962 = vmatprep.subr.mxu0 0.0
  %4963 = vmatpush1.msra.mxu0 %v4919
  %4964 = vmatprep.subr.mxu0 0.0
  %4965 = vmatpush1.msra.mxu0 %v4918
  %4966 = vmatprep.subr.mxu0 0.0
  %4967 = vmatpush2.msra.mxu0 0.0
  %4968 = vmatprep.subr.mxu0 0.0
  %4969 = vmatpush2.msra.mxu0 0.0
  %4970 = vmatprep.subr.mxu0 0.0
  %4971 = vmatpush2.msra.mxu0 0.0
  %4972 = vmatprep.subr.mxu0 0.0
  %4973 = vmatpush2.msra.mxu0 0.0
  %4974 = vmatprep.subr.mxu0 0.0
  %4975 = vmatpush2.msra.mxu0 0.0
  %4976 = vmatprep.subr.mxu0 0.0
  %4977 = vmatpush2.msra.mxu0 0.0
  %4978 = vmatprep.subr.mxu0 0.0
  %4979 = vmatpush2.msra.mxu0 0.0
  %4980 = vmatprep.subr.mxu0 0.0
  %4981 = vmatpush2.msra.mxu0 0.0
  %4982 = vmatprep.subr.mxu0 0.0
  %4983 = vmatpush2.msra.mxu0 0.0
  %4984 = vmatprep.subr.mxu0 0.0
  %4985 = vmatpush2.msra.mxu0 0.0
  %4986 = vmatprep.subr.mxu0 0.0
  %4987 = vmatpush2.msra.mxu0 0.0
  %4988 = vmatprep.subr.mxu0 0.0
  %4989 = vmatpush2.msra.mxu0 0.0
  %4990 = vmatprep.subr.mxu0 0.0
  %4991 = vmatpush2.msra.mxu0 0.0
  %4992 = vmatprep.subr.mxu0 0.0
  %4993 = vmatpush2.msra.mxu0 0.0
  %4994 = vmatprep.subr.mxu0 0.0
  %4995 = vmatpush2.msra.mxu0 0.0
  %4996 = vmatprep.subr.mxu0 0.0
  %4997 = vmatpush2.msra.mxu0 0.0
  %4998 = vmatprep.mubr.f32.mxu0 0.0
  %4999 = vmatmul.mubr.f32.gmra.mxu0 %v4916
  %v5000 = vpop.f32.mrf.mxu0
  %v5001 = vadd.f32 0.0, %v5000
  %v5002 = vpop.f32.mrf.mxu0
  %5003 = vdwg.mxu0
  %v5004 = vadd.f32 %v4915, %v5001
  %v5005 = vld [vmem:[%s1809] sm:$0xff]
  %s5006 = scalar_lea.vmem %s5, 640
  %v5007 = vld [vmem:[%s5006] sm:$0xff]
  %v5008 = vld [vmem:[%s5006 + $0x8] sm:$0xff]
  %v5009 = vld [vmem:[%s5006 + $0x10] sm:$0xff]
  %v5010 = vld [vmem:[%s5006 + $0x18] sm:$0xff]
  %v5011 = vld [vmem:[%s5006 + $0x20] sm:$0xff]
  %v5012 = vld [vmem:[%s5006 + $0x28] sm:$0xff]
  %v5013 = vld [vmem:[%s5006 + $0x30] sm:$0xff]
  %v5014 = vld [vmem:[%s5006 + $0x38] sm:$0xff]
  %v5015 = vld [vmem:[%s5006 + $0x40] sm:$0xff]
  %v5016 = vld [vmem:[%s5006 + $0x48] sm:$0xff]
  %v5017 = vld [vmem:[%s5006 + $0x50] sm:$0xff]
  %v5018 = vld [vmem:[%s5006 + $0x58] sm:$0xff]
  %v5019 = vld [vmem:[%s5006 + $0x60] sm:$0xff]
  %v5020 = vld [vmem:[%s5006 + $0x68] sm:$0xff]
  %v5021 = vld [vmem:[%s5006 + $0x70] sm:$0xff]
  %v5022 = vld [vmem:[%s5006 + $0x78] sm:$0xff]
  %5023 = vmatprep.subr.mxu0 0.0
  %5024 = vmatpush1.msra.mxu0 %v5022
  %5025 = vmatprep.subr.mxu0 0.0
  %5026 = vmatpush1.msra.mxu0 %v5021
  %5027 = vmatprep.subr.mxu0 0.0
  %5028 = vmatpush1.msra.mxu0 %v5020
  %5029 = vmatprep.subr.mxu0 0.0
  %5030 = vmatpush1.msra.mxu0 %v5019
  %5031 = vmatprep.subr.mxu0 0.0
  %5032 = vmatpush1.msra.mxu0 %v5018
  %5033 = vmatprep.subr.mxu0 0.0
  %5034 = vmatpush1.msra.mxu0 %v5017
  %5035 = vmatprep.subr.mxu0 0.0
  %5036 = vmatpush1.msra.mxu0 %v5016
  %5037 = vmatprep.subr.mxu0 0.0
  %5038 = vmatpush1.msra.mxu0 %v5015
  %5039 = vmatprep.subr.mxu0 0.0
  %5040 = vmatpush1.msra.mxu0 %v5014
  %5041 = vmatprep.subr.mxu0 0.0
  %5042 = vmatpush1.msra.mxu0 %v5013
  %5043 = vmatprep.subr.mxu0 0.0
  %5044 = vmatpush1.msra.mxu0 %v5012
  %5045 = vmatprep.subr.mxu0 0.0
  %5046 = vmatpush1.msra.mxu0 %v5011
  %5047 = vmatprep.subr.mxu0 0.0
  %5048 = vmatpush1.msra.mxu0 %v5010
  %5049 = vmatprep.subr.mxu0 0.0
  %5050 = vmatpush1.msra.mxu0 %v5009
  %5051 = vmatprep.subr.mxu0 0.0
  %5052 = vmatpush1.msra.mxu0 %v5008
  %5053 = vmatprep.subr.mxu0 0.0
  %5054 = vmatpush1.msra.mxu0 %v5007
  %5055 = vmatprep.subr.mxu0 0.0
  %5056 = vmatpush2.msra.mxu0 0.0
  %5057 = vmatprep.subr.mxu0 0.0
  %5058 = vmatpush2.msra.mxu0 0.0
  %5059 = vmatprep.subr.mxu0 0.0
  %5060 = vmatpush2.msra.mxu0 0.0
  %5061 = vmatprep.subr.mxu0 0.0
  %5062 = vmatpush2.msra.mxu0 0.0
  %5063 = vmatprep.subr.mxu0 0.0
  %5064 = vmatpush2.msra.mxu0 0.0
  %5065 = vmatprep.subr.mxu0 0.0
  %5066 = vmatpush2.msra.mxu0 0.0
  %5067 = vmatprep.subr.mxu0 0.0
  %5068 = vmatpush2.msra.mxu0 0.0
  %5069 = vmatprep.subr.mxu0 0.0
  %5070 = vmatpush2.msra.mxu0 0.0
  %5071 = vmatprep.subr.mxu0 0.0
  %5072 = vmatpush2.msra.mxu0 0.0
  %5073 = vmatprep.subr.mxu0 0.0
  %5074 = vmatpush2.msra.mxu0 0.0
  %5075 = vmatprep.subr.mxu0 0.0
  %5076 = vmatpush2.msra.mxu0 0.0
  %5077 = vmatprep.subr.mxu0 0.0
  %5078 = vmatpush2.msra.mxu0 0.0
  %5079 = vmatprep.subr.mxu0 0.0
  %5080 = vmatpush2.msra.mxu0 0.0
  %5081 = vmatprep.subr.mxu0 0.0
  %5082 = vmatpush2.msra.mxu0 0.0
  %5083 = vmatprep.subr.mxu0 0.0
  %5084 = vmatpush2.msra.mxu0 0.0
  %5085 = vmatprep.subr.mxu0 0.0
  %5086 = vmatpush2.msra.mxu0 0.0
  %5087 = vmatprep.mubr.f32.mxu0 0.0
  %5088 = vmatmul.mubr.f32.gmra.mxu0 %v5005
  %v5089 = vpop.f32.mrf.mxu0
  %v5090 = vadd.f32 0.0, %v5089
  %v5091 = vpop.f32.mrf.mxu0
  %5092 = vdwg.mxu0
  %v5093 = vadd.f32 %v5004, %v5090
  %v5094 = vld [vmem:[%s2052] sm:$0xff]
  %s5095 = scalar_lea.vmem %s5, 768
  %v5096 = vld [vmem:[%s5095] sm:$0xff]
  %v5097 = vld [vmem:[%s5095 + $0x8] sm:$0xff]
  %v5098 = vld [vmem:[%s5095 + $0x10] sm:$0xff]
  %v5099 = vld [vmem:[%s5095 + $0x18] sm:$0xff]
  %v5100 = vld [vmem:[%s5095 + $0x20] sm:$0xff]
  %v5101 = vld [vmem:[%s5095 + $0x28] sm:$0xff]
  %v5102 = vld [vmem:[%s5095 + $0x30] sm:$0xff]
  %v5103 = vld [vmem:[%s5095 + $0x38] sm:$0xff]
  %v5104 = vld [vmem:[%s5095 + $0x40] sm:$0xff]
  %v5105 = vld [vmem:[%s5095 + $0x48] sm:$0xff]
  %v5106 = vld [vmem:[%s5095 + $0x50] sm:$0xff]
  %v5107 = vld [vmem:[%s5095 + $0x58] sm:$0xff]
  %v5108 = vld [vmem:[%s5095 + $0x60] sm:$0xff]
  %v5109 = vld [vmem:[%s5095 + $0x68] sm:$0xff]
  %v5110 = vld [vmem:[%s5095 + $0x70] sm:$0xff]
  %v5111 = vld [vmem:[%s5095 + $0x78] sm:$0xff]
  %5112 = vmatprep.subr.mxu0 0.0
  %5113 = vmatpush1.msra.mxu0 %v5111
  %5114 = vmatprep.subr.mxu0 0.0
  %5115 = vmatpush1.msra.mxu0 %v5110
  %5116 = vmatprep.subr.mxu0 0.0
  %5117 = vmatpush1.msra.mxu0 %v5109
  %5118 = vmatprep.subr.mxu0 0.0
  %5119 = vmatpush1.msra.mxu0 %v5108
  %5120 = vmatprep.subr.mxu0 0.0
  %5121 = vmatpush1.msra.mxu0 %v5107
  %5122 = vmatprep.subr.mxu0 0.0
  %5123 = vmatpush1.msra.mxu0 %v5106
  %5124 = vmatprep.subr.mxu0 0.0
  %5125 = vmatpush1.msra.mxu0 %v5105
  %5126 = vmatprep.subr.mxu0 0.0
  %5127 = vmatpush1.msra.mxu0 %v5104
  %5128 = vmatprep.subr.mxu0 0.0
  %5129 = vmatpush1.msra.mxu0 %v5103
  %5130 = vmatprep.subr.mxu0 0.0
  %5131 = vmatpush1.msra.mxu0 %v5102
  %5132 = vmatprep.subr.mxu0 0.0
  %5133 = vmatpush1.msra.mxu0 %v5101
  %5134 = vmatprep.subr.mxu0 0.0
  %5135 = vmatpush1.msra.mxu0 %v5100
  %5136 = vmatprep.subr.mxu0 0.0
  %5137 = vmatpush1.msra.mxu0 %v5099
  %5138 = vmatprep.subr.mxu0 0.0
  %5139 = vmatpush1.msra.mxu0 %v5098
  %5140 = vmatprep.subr.mxu0 0.0
  %5141 = vmatpush1.msra.mxu0 %v5097
  %5142 = vmatprep.subr.mxu0 0.0
  %5143 = vmatpush1.msra.mxu0 %v5096
  %5144 = vmatprep.subr.mxu0 0.0
  %5145 = vmatpush2.msra.mxu0 0.0
  %5146 = vmatprep.subr.mxu0 0.0
  %5147 = vmatpush2.msra.mxu0 0.0
  %5148 = vmatprep.subr.mxu0 0.0
  %5149 = vmatpush2.msra.mxu0 0.0
  %5150 = vmatprep.subr.mxu0 0.0
  %5151 = vmatpush2.msra.mxu0 0.0
  %5152 = vmatprep.subr.mxu0 0.0
  %5153 = vmatpush2.msra.mxu0 0.0
  %5154 = vmatprep.subr.mxu0 0.0
  %5155 = vmatpush2.msra.mxu0 0.0
  %5156 = vmatprep.subr.mxu0 0.0
  %5157 = vmatpush2.msra.mxu0 0.0
  %5158 = vmatprep.subr.mxu0 0.0
  %5159 = vmatpush2.msra.mxu0 0.0
  %5160 = vmatprep.subr.mxu0 0.0
  %5161 = vmatpush2.msra.mxu0 0.0
  %5162 = vmatprep.subr.mxu0 0.0
  %5163 = vmatpush2.msra.mxu0 0.0
  %5164 = vmatprep.subr.mxu0 0.0
  %5165 = vmatpush2.msra.mxu0 0.0
  %5166 = vmatprep.subr.mxu0 0.0
  %5167 = vmatpush2.msra.mxu0 0.0
  %5168 = vmatprep.subr.mxu0 0.0
  %5169 = vmatpush2.msra.mxu0 0.0
  %5170 = vmatprep.subr.mxu0 0.0
  %5171 = vmatpush2.msra.mxu0 0.0
  %5172 = vmatprep.subr.mxu0 0.0
  %5173 = vmatpush2.msra.mxu0 0.0
  %5174 = vmatprep.subr.mxu0 0.0
  %5175 = vmatpush2.msra.mxu0 0.0
  %5176 = vmatprep.mubr.f32.mxu0 0.0
  %5177 = vmatmul.mubr.f32.gmra.mxu0 %v5094
  %v5178 = vpop.f32.mrf.mxu0
  %v5179 = vadd.f32 0.0, %v5178
  %v5180 = vpop.f32.mrf.mxu0
  %5181 = vdwg.mxu0
  %v5182 = vadd.f32 %v5093, %v5179
  %v5183 = vld [vmem:[%s2295] sm:$0xff]
  %s5184 = scalar_lea.vmem %s5, 896
  %v5185 = vld [vmem:[%s5184] sm:$0xff]
  %v5186 = vld [vmem:[%s5184 + $0x8] sm:$0xff]
  %v5187 = vld [vmem:[%s5184 + $0x10] sm:$0xff]
  %v5188 = vld [vmem:[%s5184 + $0x18] sm:$0xff]
  %v5189 = vld [vmem:[%s5184 + $0x20] sm:$0xff]
  %v5190 = vld [vmem:[%s5184 + $0x28] sm:$0xff]
  %v5191 = vld [vmem:[%s5184 + $0x30] sm:$0xff]
  %v5192 = vld [vmem:[%s5184 + $0x38] sm:$0xff]
  %v5193 = vld [vmem:[%s5184 + $0x40] sm:$0xff]
  %v5194 = vld [vmem:[%s5184 + $0x48] sm:$0xff]
  %v5195 = vld [vmem:[%s5184 + $0x50] sm:$0xff]
  %v5196 = vld [vmem:[%s5184 + $0x58] sm:$0xff]
  %v5197 = vld [vmem:[%s5184 + $0x60] sm:$0xff]
  %v5198 = vld [vmem:[%s5184 + $0x68] sm:$0xff]
  %v5199 = vld [vmem:[%s5184 + $0x70] sm:$0xff]
  %v5200 = vld [vmem:[%s5184 + $0x78] sm:$0xff]
  %5201 = vmatprep.subr.mxu0 0.0
  %5202 = vmatpush1.msra.mxu0 %v5200
  %5203 = vmatprep.subr.mxu0 0.0
  %5204 = vmatpush1.msra.mxu0 %v5199
  %5205 = vmatprep.subr.mxu0 0.0
  %5206 = vmatpush1.msra.mxu0 %v5198
  %5207 = vmatprep.subr.mxu0 0.0
  %5208 = vmatpush1.msra.mxu0 %v5197
  %5209 = vmatprep.subr.mxu0 0.0
  %5210 = vmatpush1.msra.mxu0 %v5196
  %5211 = vmatprep.subr.mxu0 0.0
  %5212 = vmatpush1.msra.mxu0 %v5195
  %5213 = vmatprep.subr.mxu0 0.0
  %5214 = vmatpush1.msra.mxu0 %v5194
  %5215 = vmatprep.subr.mxu0 0.0
  %5216 = vmatpush1.msra.mxu0 %v5193
  %5217 = vmatprep.subr.mxu0 0.0
  %5218 = vmatpush1.msra.mxu0 %v5192
  %5219 = vmatprep.subr.mxu0 0.0
  %5220 = vmatpush1.msra.mxu0 %v5191
  %5221 = vmatprep.subr.mxu0 0.0
  %5222 = vmatpush1.msra.mxu0 %v5190
  %5223 = vmatprep.subr.mxu0 0.0
  %5224 = vmatpush1.msra.mxu0 %v5189
  %5225 = vmatprep.subr.mxu0 0.0
  %5226 = vmatpush1.msra.mxu0 %v5188
  %5227 = vmatprep.subr.mxu0 0.0
  %5228 = vmatpush1.msra.mxu0 %v5187
  %5229 = vmatprep.subr.mxu0 0.0
  %5230 = vmatpush1.msra.mxu0 %v5186
  %5231 = vmatprep.subr.mxu0 0.0
  %5232 = vmatpush1.msra.mxu0 %v5185
  %5233 = vmatprep.subr.mxu0 0.0
  %5234 = vmatpush2.msra.mxu0 0.0
  %5235 = vmatprep.subr.mxu0 0.0
  %5236 = vmatpush2.msra.mxu0 0.0
  %5237 = vmatprep.subr.mxu0 0.0
  %5238 = vmatpush2.msra.mxu0 0.0
  %5239 = vmatprep.subr.mxu0 0.0
  %5240 = vmatpush2.msra.mxu0 0.0
  %5241 = vmatprep.subr.mxu0 0.0
  %5242 = vmatpush2.msra.mxu0 0.0
  %5243 = vmatprep.subr.mxu0 0.0
  %5244 = vmatpush2.msra.mxu0 0.0
  %5245 = vmatprep.subr.mxu0 0.0
  %5246 = vmatpush2.msra.mxu0 0.0
  %5247 = vmatprep.subr.mxu0 0.0
  %5248 = vmatpush2.msra.mxu0 0.0
  %5249 = vmatprep.subr.mxu0 0.0
  %5250 = vmatpush2.msra.mxu0 0.0
  %5251 = vmatprep.subr.mxu0 0.0
  %5252 = vmatpush2.msra.mxu0 0.0
  %5253 = vmatprep.subr.mxu0 0.0
  %5254 = vmatpush2.msra.mxu0 0.0
  %5255 = vmatprep.subr.mxu0 0.0
  %5256 = vmatpush2.msra.mxu0 0.0
  %5257 = vmatprep.subr.mxu0 0.0
  %5258 = vmatpush2.msra.mxu0 0.0
  %5259 = vmatprep.subr.mxu0 0.0
  %5260 = vmatpush2.msra.mxu0 0.0
  %5261 = vmatprep.subr.mxu0 0.0
  %5262 = vmatpush2.msra.mxu0 0.0
  %5263 = vmatprep.subr.mxu0 0.0
  %5264 = vmatpush2.msra.mxu0 0.0
  %5265 = vmatprep.mubr.f32.mxu0 0.0
  %5266 = vmatmul.mubr.f32.gmra.mxu0 %v5183
  %v5267 = vpop.f32.mrf.mxu0
  %v5268 = vadd.f32 0.0, %v5267
  %v5269 = vpop.f32.mrf.mxu0
  %5270 = vdwg.mxu0
  %v5271 = vadd.f32 %v5182, %v5268
  %v5272 = vld [vmem:[%s6] sm:$0x1]
  %v5274 = vlaneseq
  %v5275 = vshrl.u32 %v5274, 7
  %v5276 = vsub.s32 0, %v5275
  %v5277 = vrot.slane %v5272, %v5276
  %v5279 = vadd.f32 %v5271, %v5277
  %5280 = vst [vmem:[%s7] sm:$0xff] %v5279
  // Predicated region
  $region30: #{flexible_lstm_forward.1} parent=0 // pred_check
    _
  $region31: #{flexible_lstm_forward.1} parent=0 // pred_check_branch
    %5282 = sbr.rel (0) target = $region33
  $region32: #{flexible_lstm_forward.1} parent=0 // pred_region
    _
  $region33: #{flexible_lstm_forward.1} parent=0 // pred_fallthru
    _
  // Predicated region
  $region34: #{flexible_lstm_forward.1} parent=0 // pred_check
    _
  $region35: #{flexible_lstm_forward.1} parent=0 // pred_check_branch
    %5284 = sbr.rel (0) target = $region37
  $region36: #{flexible_lstm_forward.1} parent=0 // pred_region
    _
  $region37: #{flexible_lstm_forward.1} parent=0 // pred_fallthru
    _

</llo_original>
